<compile_context>
chip_gen: v7x
topology: tpu7x:2x2x1
jax: 0.10.0
libtpu: 0.0.40
codegen_flags: <defaults>
</compile_context>

<pallas_src>
import jax
import jax.numpy as jnp
from jax.experimental import pallas as pl
from jax.experimental.pallas import tpu as pltpu


def _round_up(x, m):
    return (x + m - 1) // m * m


def _pad_flat(x_nhwc):
    """Zero-pad (1 halo top/left, 2 bottom, 1 right), flatten each image to a
    row-major slab, pad the slab length to a multiple of 8 (so per-image offsets
    stay sublane-aligned), and stack the images contiguously."""
    n, h, w, cin = x_nhwc.shape
    wp = w + 2
    lp = (h + 3) * wp
    lpp = _round_up(lp, 8)
    xp = jnp.pad(x_nhwc, ((0, 0), (1, 2), (1, 1), (0, 0))).reshape(n, lp, cin)
    if lpp != lp:
        xp = jnp.pad(xp, ((0, 0), (0, lpp - lp), (0, 0)))
    return xp.reshape(n * lpp, cin), wp, lpp


# --------------------------- fused down block ------------------------------- #

def down_block(x_nhwc, w_oihw, conv_b, gamma, beta, mean, var, eps=1e-5):
    """Fused Conv3x3(pad=1) + BatchNorm(eval) + ReLU + AvgPool2d(2).

    One un-gridded pallas_call for the whole batch."""
    n, h, w, cin = x_nhwc.shape
    cout = w_oihw.shape[0]
    xflat, wp, lpp = _pad_flat(x_nhwc)
    m = h * wp                       # valid conv rows per image (2 garbage cols/row)
    hh, wh = h // 2, w // 2
    m_all = (n - 1) * lpp + m        # conv rows for the whole batch (junk rows between)
    ms = m_all + 2 * wp              # stacked-LHS rows (covers the dy row shifts)

    # Weights with the dx taps stacked into the contraction dim: (3, 3*cin, cout).
    w3 = jnp.transpose(w_oihw, (2, 3, 1, 0)).reshape(3, 3 * cin, cout).astype(jnp.float32)

    inv_std = jax.lax.rsqrt(var + eps)
    scale = (gamma * inv_std).reshape(1, cout).astype(jnp.float32)
    bias = ((conv_b - mean) * gamma * inv_std + beta).reshape(1, cout).astype(jnp.float32)

    def kernel(x_ref, w_ref, s_ref, b_ref, o_ref, stk, ysc):
        # Tap stacking: 3 shifted copies of x into the lane dim -> K = 3*cin,
        # 3 MXU matmuls instead of 9 skinny K=cin matmuls.
        for dx in range(3):
            stk[:, dx * cin:(dx + 1) * cin] = x_ref[pl.ds(dx, ms), :]
        acc = jnp.zeros((m_all, cout), jnp.float32)
        for dy in range(3):
            acc = acc + jnp.dot(stk[pl.ds(dy * wp, m_all), :], w_ref[dy],
                                preferred_element_type=jnp.float32)
        # BN (folded inference stats) + ReLU, kept in a VMEM scratch for pooling.
        ysc[...] = jnp.maximum(acc * s_ref[...] + b_ref[...], 0.0)
        # 2x2 average pool on the VPU via sublane-strided reads: no O(H^2 W^2)
        # pool matrix, no pool matmul, 4x-smaller HBM write kept.  The strided
        # reads also skip the 2 garbage columns per padded row.
        for i in range(n):
            for rh in range(hh):
                base = i * lpp + 2 * rh * wp
                e = (ysc[pl.ds(base, wh, stride=2), :]
                     + ysc[pl.ds(base + 1, wh, stride=2), :]
                     + ysc[pl.ds(base + wp, wh, stride=2), :]
                     + ysc[pl.ds(base + wp + 1, wh, stride=2), :])
                o_ref[i, rh, :, :] = e * 0.25

    vmem = pl.BlockSpec(memory_space=pltpu.MemorySpace.VMEM)
    out = pl.pallas_call(
        kernel,
        out_shape=jax.ShapeDtypeStruct((n, hh, wh, cout), jnp.float32),
        in_specs=[vmem, vmem, vmem, vmem],
        out_specs=vmem,
        scratch_shapes=[
            pltpu.VMEM((ms, 3 * cin), jnp.float32),     # stacked conv LHS
            pltpu.VMEM((m_all, cout), jnp.float32),     # conv+BN+ReLU result
        ],
    )(xflat, w3, scale, bias)
    return out                                           # already NHWC, pooled


# ---------------------------- fused up block -------------------------------- #

# For output parity a (row % 2) and collapsed tap p (0/1), the 3x3 kernel rows
# that contribute after nearest-2x upsampling:
_UP_TAP_GROUPS = {(0, 0): (0,), (0, 1): (1, 2), (1, 0): (0, 1), (1, 1): (2,)}


def up_block(x_nhwc, w_oihw, conv_b, gamma, beta, mean, var, eps=1e-5):
    """Fused nearest-2x Upsample + Conv3x3(pad=1) + BatchNorm(eval) + ReLU.

    Parity decomposition: upsample + conv3x3 == four stride-1 2x2 convs on the
    ORIGINAL (small) image, one per output parity, so the 4x-upsampled tensor
    never exists in HBM.  Each parity plane is written to its own output slab;
    the interleave + garbage-column drop happen in the wrapper (no scatter
    matmul)."""
    n, h, w, cin = x_nhwc.shape
    cout = w_oihw.shape[0]
    xflat, wp, lpp = _pad_flat(x_nhwc)
    mh = h * wp                      # per-parity conv rows (low resolution)
    m_all = (n - 1) * lpp + mh
    ms = m_all + wp + 2              # stacked-LHS rows (covers parity row shifts)

    # Collapse the 3x3 kernel into four 2x2 kernels (one per output parity) and
    # stack the four taps into the contraction dim: wu[2a+b] is (4*cin, cout).
    wt = jnp.transpose(w_oihw, (2, 3, 1, 0)).astype(jnp.float32)   # (3,3,cin,cout)
    mats = []
    for a in range(2):
        for b in range(2):
            for p in range(2):
                for q in range(2):
                    wsum = jnp.zeros((cin, cout), jnp.float32)
                    for dy in _UP_TAP_GROUPS[(a, p)]:
                        for dx in _UP_TAP_GROUPS[(b, q)]:
                            wsum = wsum + wt[dy, dx]
                    mats.append(wsum)
    wu = jnp.stack(mats, axis=0).reshape(4, 4 * cin, cout)

    inv_std = jax.lax.rsqrt(var + eps)
    scale = (gamma * inv_std).reshape(1, cout).astype(jnp.float32)
    bias = ((conv_b - mean) * gamma * inv_std + beta).reshape(1, cout).astype(jnp.float32)

    def kernel(x_ref, w_ref, s_ref, b_ref, o_ref, stk):
        # Stack the four 2x2 taps into the lane/contraction dim: K = 4*cin.
        for k, off in enumerate((0, 1, wp, wp + 1)):     # k = 2*p + q
            stk[:, k * cin:(k + 1) * cin] = x_ref[pl.ds(off, ms), :]
        for a in range(2):                               # output parity (row, col)
            for b2 in range(2):
                acc = jnp.dot(stk[pl.ds(a * wp + b2, m_all), :], w_ref[2 * a + b2],
                              preferred_element_type=jnp.float32)
                y = jnp.maximum(acc * s_ref[...] + b_ref[...], 0.0)   # BN + ReLU
                for i in range(n):                       # drop inter-image junk rows
                    o_ref[i, 2 * a + b2, :, :] = y[i * lpp:i * lpp + mh, :]

    vmem = pl.BlockSpec(memory_space=pltpu.MemorySpace.VMEM)
    out = pl.pallas_call(
        kernel,
        out_shape=jax.ShapeDtypeStruct((n, 4, mh, cout), jnp.float32),
        in_specs=[vmem, vmem, vmem, vmem],
        out_specs=vmem,
        scratch_shapes=[pltpu.VMEM((ms, 4 * cin), jnp.float32)],
    )(xflat, wu, scale, bias)

    # Parity interleave + garbage-column drop: pure layout work in the wrapper.
    out = out.reshape(n, 2, 2, h, wp, cout)[:, :, :, :, :w, :]
    out = out.transpose(0, 3, 1, 4, 2, 5).reshape(n, 2 * h, 2 * w, cout)
    return out


# --------------------------- parameters / model ----------------------------- #

def make_block_params(key, cin, cout):
    k1, k2, k3, k4, k5, k6 = jax.random.split(key, 6)
    return dict(
        w_oihw=0.1 * jax.random.normal(k1, (cout, cin, 3, 3), jnp.float32),
        conv_b=0.1 * jax.random.normal(k2, (cout,), jnp.float32),
        gamma=1.0 + 0.1 * jax.random.normal(k3, (cout,), jnp.float32),
        beta=0.1 * jax.random.normal(k4, (cout,), jnp.float32),
        mean=0.1 * jax.random.normal(k5, (cout,), jnp.float32),
        var=1.0 + 0.1 * jax.random.uniform(k6, (cout,), jnp.float32),
    )


def init_hourglass_params(key, block_expansion, in_features, num_blocks, max_features):
    down_ch = []
    for i in range(num_blocks):
        cin = in_features if i == 0 else min(max_features, block_expansion * 2 ** i)
        cout = min(max_features, block_expansion * 2 ** (i + 1))
        down_ch.append((cin, cout))
    up_ch = []
    for i in range(num_blocks)[::-1]:
        cin = min(max_features, block_expansion * 2 ** (i + 1))
        if i != num_blocks - 1:
            cin = 2 * cin
        cout = min(max_features, block_expansion * 2 ** i)
        up_ch.append((cin, cout))
    keys = jax.random.split(key, num_blocks * 2)
    down = [make_block_params(k, c[0], c[1]) for k, c in zip(keys[:num_blocks], down_ch)]
    up = [make_block_params(k, c[0], c[1]) for k, c in zip(keys[num_blocks:], up_ch)]
    return {"down": down, "up": up}


def hourglass_forward(x_nchw, params):
    x = jnp.transpose(x_nchw, (0, 2, 3, 1))              # NCHW -> NHWC
    # Encoder: each block is one fused pallas_call (conv+BN+ReLU+pool).
    skips = [x]
    for p in params["down"]:
        skips.append(down_block(skips[-1], **p))
    # Decoder: each block is one fused pallas_call (upsample+conv+BN+ReLU).
    out = skips.pop()
    for p in params["up"]:
        out = up_block(out, **p)
        out = jnp.concatenate([out, skips.pop()], axis=-1)   # cat(dim=1) in NCHW
    return jnp.transpose(out, (0, 3, 1, 2))              # back to NCHW


# ---------------------------- pure-JAX reference ---------------------------- #

def avg_pool_2x2(x):  # NHWC, kernel 2, stride 2
    n, h, w, c = x.shape
    return x.reshape(n, h // 2, 2, w // 2, 2, c).mean(axis=(2, 4))


def upsample_nearest_2x(x):
    return jnp.repeat(jnp.repeat(x, 2, axis=1), 2, axis=2)


def _ref_block(x, p, eps=1e-5):  # NHWC
    y = jax.lax.conv_general_dilated(
        x, jnp.transpose(p["w_oihw"], (2, 3, 1, 0)),
        window_strides=(1, 1), padding=((1, 1), (1, 1)),
        dimension_numbers=("NHWC", "HWIO", "NHWC"),
    ) + p["conv_b"]
    y = (y - p["mean"]) / jnp.sqrt(p["var"] + eps) * p["gamma"] + p["beta"]
    return jnp.maximum(y, 0.0)


def hourglass_reference(x_nchw, params):
    x = jnp.transpose(x_nchw, (0, 2, 3, 1))
    outs = [x]
    for p in params["down"]:
        outs.append(avg_pool_2x2(_ref_block(outs[-1], p)))
    out = outs.pop()
    for p in params["up"]:
        out = _ref_block(upsample_nearest_2x(out), p)
        out = jnp.concatenate([out, outs.pop()], axis=-1)
    return jnp.transpose(out, (0, 3, 1, 2))


# ---------------------------------- main ------------------------------------ #

if __name__ == "__main__":
    block_expansion, in_features, num_blocks, max_features = 8, 4, 3, 32
    N, H, W = 2, 16, 16

    key = jax.random.PRNGKey(0)
    kx, kp = jax.random.split(key)
    x = jax.random.normal(kx, (N, in_features, H, W), jnp.float32)
    params = init_hourglass_params(kp, block_expansion, in_features, num_blocks,
                                   max_features)

    fwd = jax.jit(hourglass_forward)
    out = jax.block_until_ready(fwd(x, params))

    assert out.shape == (N, block_expansion + in_features, H, W), out.shape
    ref = hourglass_reference(x, params)
    max_err = float(jnp.max(jnp.abs(out - ref)))
    assert jnp.allclose(out, ref, rtol=5e-3, atol=5e-3), max_err

    print("KERNEL_OK")
</pallas_src>

<mosaic_0001>
module attributes {stable_mosaic.version = 11 : i64} {
  func.func @kernel(%arg0: memref<688x4xf32, #tpu.memory_space<vmem>>, %arg1: memref<3x12x16xf32, #tpu.memory_space<vmem>>, %arg2: memref<1x16xf32, #tpu.memory_space<vmem>>, %arg3: memref<1x16xf32, #tpu.memory_space<vmem>>, %arg4: memref<2x8x8x16xf32, #tpu.memory_space<vmem>>, %arg5: memref<668x12xf32, #tpu.memory_space<vmem>>, %arg6: memref<632x16xf32, #tpu.memory_space<vmem>>) attributes {dimension_semantics = [], scalar_prefetch = 0 : i64, scratch_operands = 2 : i64, tpu.core_type = #tpu.core_type<tc>} {
    %c0 = arith.constant 0 : index
    %c0_0 = arith.constant 0 : index
    %0 = vector.load %arg0[%c0, %c0_0] : memref<688x4xf32, #tpu.memory_space<vmem>>, vector<668x4xf32>
    %c0_1 = arith.constant 0 : index
    %c0_2 = arith.constant 0 : index
    %1 = vector.load %arg5[%c0_1, %c0_2] : memref<668x12xf32, #tpu.memory_space<vmem>>, vector<668x4xf32>
    tpu.vector_store %arg5[%c0_1, %c0_2], %0 {strides = array<i32>} : memref<668x12xf32, #tpu.memory_space<vmem>>, vector<668x4xf32>,
    %c1 = arith.constant 1 : index
    %c0_3 = arith.constant 0 : index
    %2 = vector.load %arg0[%c1, %c0_3] : memref<688x4xf32, #tpu.memory_space<vmem>>, vector<668x4xf32>
    %c0_4 = arith.constant 0 : index
    %c4 = arith.constant 4 : index
    %3 = vector.load %arg5[%c0_4, %c4] : memref<668x12xf32, #tpu.memory_space<vmem>>, vector<668x4xf32>
    tpu.vector_store %arg5[%c0_4, %c4], %2 {strides = array<i32>} : memref<668x12xf32, #tpu.memory_space<vmem>>, vector<668x4xf32>,
    %c2 = arith.constant 2 : index
    %c0_5 = arith.constant 0 : index
    %4 = vector.load %arg0[%c2, %c0_5] : memref<688x4xf32, #tpu.memory_space<vmem>>, vector<668x4xf32>
    %c0_6 = arith.constant 0 : index
    %c8 = arith.constant 8 : index
    %5 = vector.load %arg5[%c0_6, %c8] : memref<668x12xf32, #tpu.memory_space<vmem>>, vector<668x4xf32>
    tpu.vector_store %arg5[%c0_6, %c8], %4 {strides = array<i32>} : memref<668x12xf32, #tpu.memory_space<vmem>>, vector<668x4xf32>,
    %cst = arith.constant 0.000000e+00 : f32
    %6 = vector.broadcast %cst : f32 to vector<632x16xf32>
    %c0_7 = arith.constant 0 : index
    %c0_8 = arith.constant 0 : index
    %7 = vector.load %arg5[%c0_7, %c0_8] : memref<668x12xf32, #tpu.memory_space<vmem>>, vector<632x12xf32>
    %c0_9 = arith.constant 0 : index
    %c0_10 = arith.constant 0 : index
    %c0_11 = arith.constant 0 : index
    %8 = vector.load %arg1[%c0_9, %c0_10, %c0_11] : memref<3x12x16xf32, #tpu.memory_space<vmem>>, vector<1x12x16xf32>
    %9 = vector.shape_cast %8 : vector<1x12x16xf32> to vector<12x16xf32>
    %cst_12 = arith.constant dense<0.000000e+00> : vector<632x16xf32>
    %10 = tpu.matmul %7, %9, %cst_12 {dimension_numbers = #tpu.dot_dimension_numbers<[1], [0], [0], [1], [0, 0, 1, 1], [], []>} : vector<632x12xf32>, vector<12x16xf32>, vector<632x16xf32> -> vector<632x16xf32>
    %11 = arith.addf %6, %10 : vector<632x16xf32>
    %c18 = arith.constant 18 : index
    %c0_13 = arith.constant 0 : index
    %12 = vector.load %arg5[%c18, %c0_13] : memref<668x12xf32, #tpu.memory_space<vmem>>, vector<632x12xf32>
    %c1_14 = arith.constant 1 : index
    %c0_15 = arith.constant 0 : index
    %c0_16 = arith.constant 0 : index
    %13 = vector.load %arg1[%c1_14, %c0_15, %c0_16] : memref<3x12x16xf32, #tpu.memory_space<vmem>>, vector<1x12x16xf32>
    %14 = vector.shape_cast %13 : vector<1x12x16xf32> to vector<12x16xf32>
    %cst_17 = arith.constant dense<0.000000e+00> : vector<632x16xf32>
    %15 = tpu.matmul %12, %14, %cst_17 {dimension_numbers = #tpu.dot_dimension_numbers<[1], [0], [0], [1], [0, 0, 1, 1], [], []>} : vector<632x12xf32>, vector<12x16xf32>, vector<632x16xf32> -> vector<632x16xf32>
    %16 = arith.addf %11, %15 : vector<632x16xf32>
    %c36 = arith.constant 36 : index
    %c0_18 = arith.constant 0 : index
    %17 = vector.load %arg5[%c36, %c0_18] : memref<668x12xf32, #tpu.memory_space<vmem>>, vector<632x12xf32>
    %c2_19 = arith.constant 2 : index
    %c0_20 = arith.constant 0 : index
    %c0_21 = arith.constant 0 : index
    %18 = vector.load %arg1[%c2_19, %c0_20, %c0_21] : memref<3x12x16xf32, #tpu.memory_space<vmem>>, vector<1x12x16xf32>
    %19 = vector.shape_cast %18 : vector<1x12x16xf32> to vector<12x16xf32>
    %cst_22 = arith.constant dense<0.000000e+00> : vector<632x16xf32>
    %20 = tpu.matmul %17, %19, %cst_22 {dimension_numbers = #tpu.dot_dimension_numbers<[1], [0], [0], [1], [0, 0, 1, 1], [], []>} : vector<632x12xf32>, vector<12x16xf32>, vector<632x16xf32> -> vector<632x16xf32>
    %21 = arith.addf %16, %20 : vector<632x16xf32>
    %c0_23 = arith.constant 0 : index
    %c0_24 = arith.constant 0 : index
    %22 = vector.load %arg2[%c0_23, %c0_24] : memref<1x16xf32, #tpu.memory_space<vmem>>, vector<1x16xf32>
    %23 = vector.broadcast %22 : vector<1x16xf32> to vector<632x16xf32>
    %24 = arith.mulf %21, %23 : vector<632x16xf32>
    %c0_25 = arith.constant 0 : index
    %c0_26 = arith.constant 0 : index
    %25 = vector.load %arg3[%c0_25, %c0_26] : memref<1x16xf32, #tpu.memory_space<vmem>>, vector<1x16xf32>
    %26 = vector.broadcast %25 : vector<1x16xf32> to vector<632x16xf32>
    %27 = arith.addf %24, %26 : vector<632x16xf32>
    %cst_27 = arith.constant 0.000000e+00 : f32
    %28 = vector.broadcast %cst_27 : f32 to vector<632x16xf32>
    %29 = arith.maximumf %27, %28 : vector<632x16xf32>
    %c0_28 = arith.constant 0 : index
    %c0_29 = arith.constant 0 : index
    %30 = vector.load %arg6[%c0_28, %c0_29] : memref<632x16xf32, #tpu.memory_space<vmem>>, vector<632x16xf32>
    tpu.vector_store %arg6[%c0_28, %c0_29], %29 {strides = array<i32>} : memref<632x16xf32, #tpu.memory_space<vmem>>, vector<632x16xf32>,
    %c0_30 = arith.constant 0 : index
    %c0_31 = arith.constant 0 : index
    %31 = tpu.strided_load %arg6[%c0_30, %c0_31] {strides = array<i32: 2, 1>} : memref<632x16xf32, #tpu.memory_space<vmem>>, vector<8x16xf32>
    %c1_32 = arith.constant 1 : index
    %c0_33 = arith.constant 0 : index
    %32 = tpu.strided_load %arg6[%c1_32, %c0_33] {strides = array<i32: 2, 1>} : memref<632x16xf32, #tpu.memory_space<vmem>>, vector<8x16xf32>
    %33 = arith.addf %31, %32 : vector<8x16xf32>
    %c18_34 = arith.constant 18 : index
    %c0_35 = arith.constant 0 : index
    %34 = tpu.strided_load %arg6[%c18_34, %c0_35] {strides = array<i32: 2, 1>} : memref<632x16xf32, #tpu.memory_space<vmem>>, vector<8x16xf32>
    %35 = arith.addf %33, %34 : vector<8x16xf32>
    %c19 = arith.constant 19 : index
    %c0_36 = arith.constant 0 : index
    %36 = tpu.strided_load %arg6[%c19, %c0_36] {strides = array<i32: 2, 1>} : memref<632x16xf32, #tpu.memory_space<vmem>>, vector<8x16xf32>
    %37 = arith.addf %35, %36 : vector<8x16xf32>
    %cst_37 = arith.constant 2.500000e-01 : f32
    %38 = vector.broadcast %cst_37 : f32 to vector<8x16xf32>
    %39 = arith.mulf %37, %38 : vector<8x16xf32>
    %c0_38 = arith.constant 0 : index
    %c0_39 = arith.constant 0 : index
    %c0_40 = arith.constant 0 : index
    %c0_41 = arith.constant 0 : index
    %40 = vector.load %arg4[%c0_38, %c0_39, %c0_40, %c0_41] : memref<2x8x8x16xf32, #tpu.memory_space<vmem>>, vector<1x1x8x16xf32>
    %41 = vector.shape_cast %40 : vector<1x1x8x16xf32> to vector<8x16xf32>
    %42 = vector.shape_cast %39 : vector<8x16xf32> to vector<1x1x8x16xf32>
    tpu.vector_store %arg4[%c0_38, %c0_39, %c0_40, %c0_41], %42 {strides = array<i32>} : memref<2x8x8x16xf32, #tpu.memory_space<vmem>>, vector<1x1x8x16xf32>,
    %c36_42 = arith.constant 36 : index
    %c0_43 = arith.constant 0 : index
    %43 = tpu.strided_load %arg6[%c36_42, %c0_43] {strides = array<i32: 2, 1>} : memref<632x16xf32, #tpu.memory_space<vmem>>, vector<8x16xf32>
    %c37 = arith.constant 37 : index
    %c0_44 = arith.constant 0 : index
    %44 = tpu.strided_load %arg6[%c37, %c0_44] {strides = array<i32: 2, 1>} : memref<632x16xf32, #tpu.memory_space<vmem>>, vector<8x16xf32>
    %45 = arith.addf %43, %44 : vector<8x16xf32>
    %c54 = arith.constant 54 : index
    %c0_45 = arith.constant 0 : index
    %46 = tpu.strided_load %arg6[%c54, %c0_45] {strides = array<i32: 2, 1>} : memref<632x16xf32, #tpu.memory_space<vmem>>, vector<8x16xf32>
    %47 = arith.addf %45, %46 : vector<8x16xf32>
    %c55 = arith.constant 55 : index
    %c0_46 = arith.constant 0 : index
    %48 = tpu.strided_load %arg6[%c55, %c0_46] {strides = array<i32: 2, 1>} : memref<632x16xf32, #tpu.memory_space<vmem>>, vector<8x16xf32>
    %49 = arith.addf %47, %48 : vector<8x16xf32>
    %cst_47 = arith.constant 2.500000e-01 : f32
    %50 = vector.broadcast %cst_47 : f32 to vector<8x16xf32>
    %51 = arith.mulf %49, %50 : vector<8x16xf32>
    %c0_48 = arith.constant 0 : index
    %c1_49 = arith.constant 1 : index
    %c0_50 = arith.constant 0 : index
    %c0_51 = arith.constant 0 : index
    %52 = vector.load %arg4[%c0_48, %c1_49, %c0_50, %c0_51] : memref<2x8x8x16xf32, #tpu.memory_space<vmem>>, vector<1x1x8x16xf32>
    %53 = vector.shape_cast %52 : vector<1x1x8x16xf32> to vector<8x16xf32>
    %54 = vector.shape_cast %51 : vector<8x16xf32> to vector<1x1x8x16xf32>
    tpu.vector_store %arg4[%c0_48, %c1_49, %c0_50, %c0_51], %54 {strides = array<i32>} : memref<2x8x8x16xf32, #tpu.memory_space<vmem>>, vector<1x1x8x16xf32>,
    %c72 = arith.constant 72 : index
    %c0_52 = arith.constant 0 : index
    %55 = tpu.strided_load %arg6[%c72, %c0_52] {strides = array<i32: 2, 1>} : memref<632x16xf32, #tpu.memory_space<vmem>>, vector<8x16xf32>
    %c73 = arith.constant 73 : index
    %c0_53 = arith.constant 0 : index
    %56 = tpu.strided_load %arg6[%c73, %c0_53] {strides = array<i32: 2, 1>} : memref<632x16xf32, #tpu.memory_space<vmem>>, vector<8x16xf32>
    %57 = arith.addf %55, %56 : vector<8x16xf32>
    %c90 = arith.constant 90 : index
    %c0_54 = arith.constant 0 : index
    %58 = tpu.strided_load %arg6[%c90, %c0_54] {strides = array<i32: 2, 1>} : memref<632x16xf32, #tpu.memory_space<vmem>>, vector<8x16xf32>
    %59 = arith.addf %57, %58 : vector<8x16xf32>
    %c91 = arith.constant 91 : index
    %c0_55 = arith.constant 0 : index
    %60 = tpu.strided_load %arg6[%c91, %c0_55] {strides = array<i32: 2, 1>} : memref<632x16xf32, #tpu.memory_space<vmem>>, vector<8x16xf32>
    %61 = arith.addf %59, %60 : vector<8x16xf32>
    %cst_56 = arith.constant 2.500000e-01 : f32
    %62 = vector.broadcast %cst_56 : f32 to vector<8x16xf32>
    %63 = arith.mulf %61, %62 : vector<8x16xf32>
    %c0_57 = arith.constant 0 : index
    %c2_58 = arith.constant 2 : index
    %c0_59 = arith.constant 0 : index
    %c0_60 = arith.constant 0 : index
    %64 = vector.load %arg4[%c0_57, %c2_58, %c0_59, %c0_60] : memref<2x8x8x16xf32, #tpu.memory_space<vmem>>, vector<1x1x8x16xf32>
    %65 = vector.shape_cast %64 : vector<1x1x8x16xf32> to vector<8x16xf32>
    %66 = vector.shape_cast %63 : vector<8x16xf32> to vector<1x1x8x16xf32>
    tpu.vector_store %arg4[%c0_57, %c2_58, %c0_59, %c0_60], %66 {strides = array<i32>} : memref<2x8x8x16xf32, #tpu.memory_space<vmem>>, vector<1x1x8x16xf32>,
    %c108 = arith.constant 108 : index
    %c0_61 = arith.constant 0 : index
    %67 = tpu.strided_load %arg6[%c108, %c0_61] {strides = array<i32: 2, 1>} : memref<632x16xf32, #tpu.memory_space<vmem>>, vector<8x16xf32>
    %c109 = arith.constant 109 : index
    %c0_62 = arith.constant 0 : index
    %68 = tpu.strided_load %arg6[%c109, %c0_62] {strides = array<i32: 2, 1>} : memref<632x16xf32, #tpu.memory_space<vmem>>, vector<8x16xf32>
    %69 = arith.addf %67, %68 : vector<8x16xf32>
    %c126 = arith.constant 126 : index
    %c0_63 = arith.constant 0 : index
    %70 = tpu.strided_load %arg6[%c126, %c0_63] {strides = array<i32: 2, 1>} : memref<632x16xf32, #tpu.memory_space<vmem>>, vector<8x16xf32>
    %71 = arith.addf %69, %70 : vector<8x16xf32>
    %c127 = arith.constant 127 : index
    %c0_64 = arith.constant 0 : index
    %72 = tpu.strided_load %arg6[%c127, %c0_64] {strides = array<i32: 2, 1>} : memref<632x16xf32, #tpu.memory_space<vmem>>, vector<8x16xf32>
    %73 = arith.addf %71, %72 : vector<8x16xf32>
    %cst_65 = arith.constant 2.500000e-01 : f32
    %74 = vector.broadcast %cst_65 : f32 to vector<8x16xf32>
    %75 = arith.mulf %73, %74 : vector<8x16xf32>
    %c0_66 = arith.constant 0 : index
    %c3 = arith.constant 3 : index
    %c0_67 = arith.constant 0 : index
    %c0_68 = arith.constant 0 : index
    %76 = vector.load %arg4[%c0_66, %c3, %c0_67, %c0_68] : memref<2x8x8x16xf32, #tpu.memory_space<vmem>>, vector<1x1x8x16xf32>
    %77 = vector.shape_cast %76 : vector<1x1x8x16xf32> to vector<8x16xf32>
    %78 = vector.shape_cast %75 : vector<8x16xf32> to vector<1x1x8x16xf32>
    tpu.vector_store %arg4[%c0_66, %c3, %c0_67, %c0_68], %78 {strides = array<i32>} : memref<2x8x8x16xf32, #tpu.memory_space<vmem>>, vector<1x1x8x16xf32>,
    %c144 = arith.constant 144 : index
    %c0_69 = arith.constant 0 : index
    %79 = tpu.strided_load %arg6[%c144, %c0_69] {strides = array<i32: 2, 1>} : memref<632x16xf32, #tpu.memory_space<vmem>>, vector<8x16xf32>
    %c145 = arith.constant 145 : index
    %c0_70 = arith.constant 0 : index
    %80 = tpu.strided_load %arg6[%c145, %c0_70] {strides = array<i32: 2, 1>} : memref<632x16xf32, #tpu.memory_space<vmem>>, vector<8x16xf32>
    %81 = arith.addf %79, %80 : vector<8x16xf32>
    %c162 = arith.constant 162 : index
    %c0_71 = arith.constant 0 : index
    %82 = tpu.strided_load %arg6[%c162, %c0_71] {strides = array<i32: 2, 1>} : memref<632x16xf32, #tpu.memory_space<vmem>>, vector<8x16xf32>
    %83 = arith.addf %81, %82 : vector<8x16xf32>
    %c163 = arith.constant 163 : index
    %c0_72 = arith.constant 0 : index
    %84 = tpu.strided_load %arg6[%c163, %c0_72] {strides = array<i32: 2, 1>} : memref<632x16xf32, #tpu.memory_space<vmem>>, vector<8x16xf32>
    %85 = arith.addf %83, %84 : vector<8x16xf32>
    %cst_73 = arith.constant 2.500000e-01 : f32
    %86 = vector.broadcast %cst_73 : f32 to vector<8x16xf32>
    %87 = arith.mulf %85, %86 : vector<8x16xf32>
    %c0_74 = arith.constant 0 : index
    %c4_75 = arith.constant 4 : index
    %c0_76 = arith.constant 0 : index
    %c0_77 = arith.constant 0 : index
    %88 = vector.load %arg4[%c0_74, %c4_75, %c0_76, %c0_77] : memref<2x8x8x16xf32, #tpu.memory_space<vmem>>, vector<1x1x8x16xf32>
    %89 = vector.shape_cast %88 : vector<1x1x8x16xf32> to vector<8x16xf32>
    %90 = vector.shape_cast %87 : vector<8x16xf32> to vector<1x1x8x16xf32>
    tpu.vector_store %arg4[%c0_74, %c4_75, %c0_76, %c0_77], %90 {strides = array<i32>} : memref<2x8x8x16xf32, #tpu.memory_space<vmem>>, vector<1x1x8x16xf32>,
    %c180 = arith.constant 180 : index
    %c0_78 = arith.constant 0 : index
    %91 = tpu.strided_load %arg6[%c180, %c0_78] {strides = array<i32: 2, 1>} : memref<632x16xf32, #tpu.memory_space<vmem>>, vector<8x16xf32>
    %c181 = arith.constant 181 : index
    %c0_79 = arith.constant 0 : index
    %92 = tpu.strided_load %arg6[%c181, %c0_79] {strides = array<i32: 2, 1>} : memref<632x16xf32, #tpu.memory_space<vmem>>, vector<8x16xf32>
    %93 = arith.addf %91, %92 : vector<8x16xf32>
    %c198 = arith.constant 198 : index
    %c0_80 = arith.constant 0 : index
    %94 = tpu.strided_load %arg6[%c198, %c0_80] {strides = array<i32: 2, 1>} : memref<632x16xf32, #tpu.memory_space<vmem>>, vector<8x16xf32>
    %95 = arith.addf %93, %94 : vector<8x16xf32>
    %c199 = arith.constant 199 : index
    %c0_81 = arith.constant 0 : index
    %96 = tpu.strided_load %arg6[%c199, %c0_81] {strides = array<i32: 2, 1>} : memref<632x16xf32, #tpu.memory_space<vmem>>, vector<8x16xf32>
    %97 = arith.addf %95, %96 : vector<8x16xf32>
    %cst_82 = arith.constant 2.500000e-01 : f32
    %98 = vector.broadcast %cst_82 : f32 to vector<8x16xf32>
    %99 = arith.mulf %97, %98 : vector<8x16xf32>
    %c0_83 = arith.constant 0 : index
    %c5 = arith.constant 5 : index
    %c0_84 = arith.constant 0 : index
    %c0_85 = arith.constant 0 : index
    %100 = vector.load %arg4[%c0_83, %c5, %c0_84, %c0_85] : memref<2x8x8x16xf32, #tpu.memory_space<vmem>>, vector<1x1x8x16xf32>
    %101 = vector.shape_cast %100 : vector<1x1x8x16xf32> to vector<8x16xf32>
    %102 = vector.shape_cast %99 : vector<8x16xf32> to vector<1x1x8x16xf32>
    tpu.vector_store %arg4[%c0_83, %c5, %c0_84, %c0_85], %102 {strides = array<i32>} : memref<2x8x8x16xf32, #tpu.memory_space<vmem>>, vector<1x1x8x16xf32>,
    %c216 = arith.constant 216 : index
    %c0_86 = arith.constant 0 : index
    %103 = tpu.strided_load %arg6[%c216, %c0_86] {strides = array<i32: 2, 1>} : memref<632x16xf32, #tpu.memory_space<vmem>>, vector<8x16xf32>
    %c217 = arith.constant 217 : index
    %c0_87 = arith.constant 0 : index
    %104 = tpu.strided_load %arg6[%c217, %c0_87] {strides = array<i32: 2, 1>} : memref<632x16xf32, #tpu.memory_space<vmem>>, vector<8x16xf32>
    %105 = arith.addf %103, %104 : vector<8x16xf32>
    %c234 = arith.constant 234 : index
    %c0_88 = arith.constant 0 : index
    %106 = tpu.strided_load %arg6[%c234, %c0_88] {strides = array<i32: 2, 1>} : memref<632x16xf32, #tpu.memory_space<vmem>>, vector<8x16xf32>
    %107 = arith.addf %105, %106 : vector<8x16xf32>
    %c235 = arith.constant 235 : index
    %c0_89 = arith.constant 0 : index
    %108 = tpu.strided_load %arg6[%c235, %c0_89] {strides = array<i32: 2, 1>} : memref<632x16xf32, #tpu.memory_space<vmem>>, vector<8x16xf32>
    %109 = arith.addf %107, %108 : vector<8x16xf32>
    %cst_90 = arith.constant 2.500000e-01 : f32
    %110 = vector.broadcast %cst_90 : f32 to vector<8x16xf32>
    %111 = arith.mulf %109, %110 : vector<8x16xf32>
    %c0_91 = arith.constant 0 : index
    %c6 = arith.constant 6 : index
    %c0_92 = arith.constant 0 : index
    %c0_93 = arith.constant 0 : index
    %112 = vector.load %arg4[%c0_91, %c6, %c0_92, %c0_93] : memref<2x8x8x16xf32, #tpu.memory_space<vmem>>, vector<1x1x8x16xf32>
    %113 = vector.shape_cast %112 : vector<1x1x8x16xf32> to vector<8x16xf32>
    %114 = vector.shape_cast %111 : vector<8x16xf32> to vector<1x1x8x16xf32>
    tpu.vector_store %arg4[%c0_91, %c6, %c0_92, %c0_93], %114 {strides = array<i32>} : memref<2x8x8x16xf32, #tpu.memory_space<vmem>>, vector<1x1x8x16xf32>,
    %c252 = arith.constant 252 : index
    %c0_94 = arith.constant 0 : index
    %115 = tpu.strided_load %arg6[%c252, %c0_94] {strides = array<i32: 2, 1>} : memref<632x16xf32, #tpu.memory_space<vmem>>, vector<8x16xf32>
    %c253 = arith.constant 253 : index
    %c0_95 = arith.constant 0 : index
    %116 = tpu.strided_load %arg6[%c253, %c0_95] {strides = array<i32: 2, 1>} : memref<632x16xf32, #tpu.memory_space<vmem>>, vector<8x16xf32>
    %117 = arith.addf %115, %116 : vector<8x16xf32>
    %c270 = arith.constant 270 : index
    %c0_96 = arith.constant 0 : index
    %118 = tpu.strided_load %arg6[%c270, %c0_96] {strides = array<i32: 2, 1>} : memref<632x16xf32, #tpu.memory_space<vmem>>, vector<8x16xf32>
    %119 = arith.addf %117, %118 : vector<8x16xf32>
    %c271 = arith.constant 271 : index
    %c0_97 = arith.constant 0 : index
    %120 = tpu.strided_load %arg6[%c271, %c0_97] {strides = array<i32: 2, 1>} : memref<632x16xf32, #tpu.memory_space<vmem>>, vector<8x16xf32>
    %121 = arith.addf %119, %120 : vector<8x16xf32>
    %cst_98 = arith.constant 2.500000e-01 : f32
    %122 = vector.broadcast %cst_98 : f32 to vector<8x16xf32>
    %123 = arith.mulf %121, %122 : vector<8x16xf32>
    %c0_99 = arith.constant 0 : index
    %c7 = arith.constant 7 : index
    %c0_100 = arith.constant 0 : index
    %c0_101 = arith.constant 0 : index
    %124 = vector.load %arg4[%c0_99, %c7, %c0_100, %c0_101] : memref<2x8x8x16xf32, #tpu.memory_space<vmem>>, vector<1x1x8x16xf32>
    %125 = vector.shape_cast %124 : vector<1x1x8x16xf32> to vector<8x16xf32>
    %126 = vector.shape_cast %123 : vector<8x16xf32> to vector<1x1x8x16xf32>
    tpu.vector_store %arg4[%c0_99, %c7, %c0_100, %c0_101], %126 {strides = array<i32>} : memref<2x8x8x16xf32, #tpu.memory_space<vmem>>, vector<1x1x8x16xf32>,
    %c344 = arith.constant 344 : index
    %c0_102 = arith.constant 0 : index
    %127 = tpu.strided_load %arg6[%c344, %c0_102] {strides = array<i32: 2, 1>} : memref<632x16xf32, #tpu.memory_space<vmem>>, vector<8x16xf32>
    %c345 = arith.constant 345 : index
    %c0_103 = arith.constant 0 : index
    %128 = tpu.strided_load %arg6[%c345, %c0_103] {strides = array<i32: 2, 1>} : memref<632x16xf32, #tpu.memory_space<vmem>>, vector<8x16xf32>
    %129 = arith.addf %127, %128 : vector<8x16xf32>
    %c362 = arith.constant 362 : index
    %c0_104 = arith.constant 0 : index
    %130 = tpu.strided_load %arg6[%c362, %c0_104] {strides = array<i32: 2, 1>} : memref<632x16xf32, #tpu.memory_space<vmem>>, vector<8x16xf32>
    %131 = arith.addf %129, %130 : vector<8x16xf32>
    %c363 = arith.constant 363 : index
    %c0_105 = arith.constant 0 : index
    %132 = tpu.strided_load %arg6[%c363, %c0_105] {strides = array<i32: 2, 1>} : memref<632x16xf32, #tpu.memory_space<vmem>>, vector<8x16xf32>
    %133 = arith.addf %131, %132 : vector<8x16xf32>
    %cst_106 = arith.constant 2.500000e-01 : f32
    %134 = vector.broadcast %cst_106 : f32 to vector<8x16xf32>
    %135 = arith.mulf %133, %134 : vector<8x16xf32>
    %c1_107 = arith.constant 1 : index
    %c0_108 = arith.constant 0 : index
    %c0_109 = arith.constant 0 : index
    %c0_110 = arith.constant 0 : index
    %136 = vector.load %arg4[%c1_107, %c0_108, %c0_109, %c0_110] : memref<2x8x8x16xf32, #tpu.memory_space<vmem>>, vector<1x1x8x16xf32>
    %137 = vector.shape_cast %136 : vector<1x1x8x16xf32> to vector<8x16xf32>
    %138 = vector.shape_cast %135 : vector<8x16xf32> to vector<1x1x8x16xf32>
    tpu.vector_store %arg4[%c1_107, %c0_108, %c0_109, %c0_110], %138 {strides = array<i32>} : memref<2x8x8x16xf32, #tpu.memory_space<vmem>>, vector<1x1x8x16xf32>,
    %c380 = arith.constant 380 : index
    %c0_111 = arith.constant 0 : index
    %139 = tpu.strided_load %arg6[%c380, %c0_111] {strides = array<i32: 2, 1>} : memref<632x16xf32, #tpu.memory_space<vmem>>, vector<8x16xf32>
    %c381 = arith.constant 381 : index
    %c0_112 = arith.constant 0 : index
    %140 = tpu.strided_load %arg6[%c381, %c0_112] {strides = array<i32: 2, 1>} : memref<632x16xf32, #tpu.memory_space<vmem>>, vector<8x16xf32>
    %141 = arith.addf %139, %140 : vector<8x16xf32>
    %c398 = arith.constant 398 : index
    %c0_113 = arith.constant 0 : index
    %142 = tpu.strided_load %arg6[%c398, %c0_113] {strides = array<i32: 2, 1>} : memref<632x16xf32, #tpu.memory_space<vmem>>, vector<8x16xf32>
    %143 = arith.addf %141, %142 : vector<8x16xf32>
    %c399 = arith.constant 399 : index
    %c0_114 = arith.constant 0 : index
    %144 = tpu.strided_load %arg6[%c399, %c0_114] {strides = array<i32: 2, 1>} : memref<632x16xf32, #tpu.memory_space<vmem>>, vector<8x16xf32>
    %145 = arith.addf %143, %144 : vector<8x16xf32>
    %cst_115 = arith.constant 2.500000e-01 : f32
    %146 = vector.broadcast %cst_115 : f32 to vector<8x16xf32>
    %147 = arith.mulf %145, %146 : vector<8x16xf32>
    %c1_116 = arith.constant 1 : index
    %c1_117 = arith.constant 1 : index
    %c0_118 = arith.constant 0 : index
    %c0_119 = arith.constant 0 : index
    %148 = vector.load %arg4[%c1_116, %c1_117, %c0_118, %c0_119] : memref<2x8x8x16xf32, #tpu.memory_space<vmem>>, vector<1x1x8x16xf32>
    %149 = vector.shape_cast %148 : vector<1x1x8x16xf32> to vector<8x16xf32>
    %150 = vector.shape_cast %147 : vector<8x16xf32> to vector<1x1x8x16xf32>
    tpu.vector_store %arg4[%c1_116, %c1_117, %c0_118, %c0_119], %150 {strides = array<i32>} : memref<2x8x8x16xf32, #tpu.memory_space<vmem>>, vector<1x1x8x16xf32>,
    %c416 = arith.constant 416 : index
    %c0_120 = arith.constant 0 : index
    %151 = tpu.strided_load %arg6[%c416, %c0_120] {strides = array<i32: 2, 1>} : memref<632x16xf32, #tpu.memory_space<vmem>>, vector<8x16xf32>
    %c417 = arith.constant 417 : index
    %c0_121 = arith.constant 0 : index
    %152 = tpu.strided_load %arg6[%c417, %c0_121] {strides = array<i32: 2, 1>} : memref<632x16xf32, #tpu.memory_space<vmem>>, vector<8x16xf32>
    %153 = arith.addf %151, %152 : vector<8x16xf32>
    %c434 = arith.constant 434 : index
    %c0_122 = arith.constant 0 : index
    %154 = tpu.strided_load %arg6[%c434, %c0_122] {strides = array<i32: 2, 1>} : memref<632x16xf32, #tpu.memory_space<vmem>>, vector<8x16xf32>
    %155 = arith.addf %153, %154 : vector<8x16xf32>
    %c435 = arith.constant 435 : index
    %c0_123 = arith.constant 0 : index
    %156 = tpu.strided_load %arg6[%c435, %c0_123] {strides = array<i32: 2, 1>} : memref<632x16xf32, #tpu.memory_space<vmem>>, vector<8x16xf32>
    %157 = arith.addf %155, %156 : vector<8x16xf32>
    %cst_124 = arith.constant 2.500000e-01 : f32
    %158 = vector.broadcast %cst_124 : f32 to vector<8x16xf32>
    %159 = arith.mulf %157, %158 : vector<8x16xf32>
    %c1_125 = arith.constant 1 : index
    %c2_126 = arith.constant 2 : index
    %c0_127 = arith.constant 0 : index
    %c0_128 = arith.constant 0 : index
    %160 = vector.load %arg4[%c1_125, %c2_126, %c0_127, %c0_128] : memref<2x8x8x16xf32, #tpu.memory_space<vmem>>, vector<1x1x8x16xf32>
    %161 = vector.shape_cast %160 : vector<1x1x8x16xf32> to vector<8x16xf32>
    %162 = vector.shape_cast %159 : vector<8x16xf32> to vector<1x1x8x16xf32>
    tpu.vector_store %arg4[%c1_125, %c2_126, %c0_127, %c0_128], %162 {strides = array<i32>} : memref<2x8x8x16xf32, #tpu.memory_space<vmem>>, vector<1x1x8x16xf32>,
    %c452 = arith.constant 452 : index
    %c0_129 = arith.constant 0 : index
    %163 = tpu.strided_load %arg6[%c452, %c0_129] {strides = array<i32: 2, 1>} : memref<632x16xf32, #tpu.memory_space<vmem>>, vector<8x16xf32>
    %c453 = arith.constant 453 : index
    %c0_130 = arith.constant 0 : index
    %164 = tpu.strided_load %arg6[%c453, %c0_130] {strides = array<i32: 2, 1>} : memref<632x16xf32, #tpu.memory_space<vmem>>, vector<8x16xf32>
    %165 = arith.addf %163, %164 : vector<8x16xf32>
    %c470 = arith.constant 470 : index
    %c0_131 = arith.constant 0 : index
    %166 = tpu.strided_load %arg6[%c470, %c0_131] {strides = array<i32: 2, 1>} : memref<632x16xf32, #tpu.memory_space<vmem>>, vector<8x16xf32>
    %167 = arith.addf %165, %166 : vector<8x16xf32>
    %c471 = arith.constant 471 : index
    %c0_132 = arith.constant 0 : index
    %168 = tpu.strided_load %arg6[%c471, %c0_132] {strides = array<i32: 2, 1>} : memref<632x16xf32, #tpu.memory_space<vmem>>, vector<8x16xf32>
    %169 = arith.addf %167, %168 : vector<8x16xf32>
    %cst_133 = arith.constant 2.500000e-01 : f32
    %170 = vector.broadcast %cst_133 : f32 to vector<8x16xf32>
    %171 = arith.mulf %169, %170 : vector<8x16xf32>
    %c1_134 = arith.constant 1 : index
    %c3_135 = arith.constant 3 : index
    %c0_136 = arith.constant 0 : index
    %c0_137 = arith.constant 0 : index
    %172 = vector.load %arg4[%c1_134, %c3_135, %c0_136, %c0_137] : memref<2x8x8x16xf32, #tpu.memory_space<vmem>>, vector<1x1x8x16xf32>
    %173 = vector.shape_cast %172 : vector<1x1x8x16xf32> to vector<8x16xf32>
    %174 = vector.shape_cast %171 : vector<8x16xf32> to vector<1x1x8x16xf32>
    tpu.vector_store %arg4[%c1_134, %c3_135, %c0_136, %c0_137], %174 {strides = array<i32>} : memref<2x8x8x16xf32, #tpu.memory_space<vmem>>, vector<1x1x8x16xf32>,
    %c488 = arith.constant 488 : index
    %c0_138 = arith.constant 0 : index
    %175 = tpu.strided_load %arg6[%c488, %c0_138] {strides = array<i32: 2, 1>} : memref<632x16xf32, #tpu.memory_space<vmem>>, vector<8x16xf32>
    %c489 = arith.constant 489 : index
    %c0_139 = arith.constant 0 : index
    %176 = tpu.strided_load %arg6[%c489, %c0_139] {strides = array<i32: 2, 1>} : memref<632x16xf32, #tpu.memory_space<vmem>>, vector<8x16xf32>
    %177 = arith.addf %175, %176 : vector<8x16xf32>
    %c506 = arith.constant 506 : index
    %c0_140 = arith.constant 0 : index
    %178 = tpu.strided_load %arg6[%c506, %c0_140] {strides = array<i32: 2, 1>} : memref<632x16xf32, #tpu.memory_space<vmem>>, vector<8x16xf32>
    %179 = arith.addf %177, %178 : vector<8x16xf32>
    %c507 = arith.constant 507 : index
    %c0_141 = arith.constant 0 : index
    %180 = tpu.strided_load %arg6[%c507, %c0_141] {strides = array<i32: 2, 1>} : memref<632x16xf32, #tpu.memory_space<vmem>>, vector<8x16xf32>
    %181 = arith.addf %179, %180 : vector<8x16xf32>
    %cst_142 = arith.constant 2.500000e-01 : f32
    %182 = vector.broadcast %cst_142 : f32 to vector<8x16xf32>
    %183 = arith.mulf %181, %182 : vector<8x16xf32>
    %c1_143 = arith.constant 1 : index
    %c4_144 = arith.constant 4 : index
    %c0_145 = arith.constant 0 : index
    %c0_146 = arith.constant 0 : index
    %184 = vector.load %arg4[%c1_143, %c4_144, %c0_145, %c0_146] : memref<2x8x8x16xf32, #tpu.memory_space<vmem>>, vector<1x1x8x16xf32>
    %185 = vector.shape_cast %184 : vector<1x1x8x16xf32> to vector<8x16xf32>
    %186 = vector.shape_cast %183 : vector<8x16xf32> to vector<1x1x8x16xf32>
    tpu.vector_store %arg4[%c1_143, %c4_144, %c0_145, %c0_146], %186 {strides = array<i32>} : memref<2x8x8x16xf32, #tpu.memory_space<vmem>>, vector<1x1x8x16xf32>,
    %c524 = arith.constant 524 : index
    %c0_147 = arith.constant 0 : index
    %187 = tpu.strided_load %arg6[%c524, %c0_147] {strides = array<i32: 2, 1>} : memref<632x16xf32, #tpu.memory_space<vmem>>, vector<8x16xf32>
    %c525 = arith.constant 525 : index
    %c0_148 = arith.constant 0 : index
    %188 = tpu.strided_load %arg6[%c525, %c0_148] {strides = array<i32: 2, 1>} : memref<632x16xf32, #tpu.memory_space<vmem>>, vector<8x16xf32>
    %189 = arith.addf %187, %188 : vector<8x16xf32>
    %c542 = arith.constant 542 : index
    %c0_149 = arith.constant 0 : index
    %190 = tpu.strided_load %arg6[%c542, %c0_149] {strides = array<i32: 2, 1>} : memref<632x16xf32, #tpu.memory_space<vmem>>, vector<8x16xf32>
    %191 = arith.addf %189, %190 : vector<8x16xf32>
    %c543 = arith.constant 543 : index
    %c0_150 = arith.constant 0 : index
    %192 = tpu.strided_load %arg6[%c543, %c0_150] {strides = array<i32: 2, 1>} : memref<632x16xf32, #tpu.memory_space<vmem>>, vector<8x16xf32>
    %193 = arith.addf %191, %192 : vector<8x16xf32>
    %cst_151 = arith.constant 2.500000e-01 : f32
    %194 = vector.broadcast %cst_151 : f32 to vector<8x16xf32>
    %195 = arith.mulf %193, %194 : vector<8x16xf32>
    %c1_152 = arith.constant 1 : index
    %c5_153 = arith.constant 5 : index
    %c0_154 = arith.constant 0 : index
    %c0_155 = arith.constant 0 : index
    %196 = vector.load %arg4[%c1_152, %c5_153, %c0_154, %c0_155] : memref<2x8x8x16xf32, #tpu.memory_space<vmem>>, vector<1x1x8x16xf32>
    %197 = vector.shape_cast %196 : vector<1x1x8x16xf32> to vector<8x16xf32>
    %198 = vector.shape_cast %195 : vector<8x16xf32> to vector<1x1x8x16xf32>
    tpu.vector_store %arg4[%c1_152, %c5_153, %c0_154, %c0_155], %198 {strides = array<i32>} : memref<2x8x8x16xf32, #tpu.memory_space<vmem>>, vector<1x1x8x16xf32>,
    %c560 = arith.constant 560 : index
    %c0_156 = arith.constant 0 : index
    %199 = tpu.strided_load %arg6[%c560, %c0_156] {strides = array<i32: 2, 1>} : memref<632x16xf32, #tpu.memory_space<vmem>>, vector<8x16xf32>
    %c561 = arith.constant 561 : index
    %c0_157 = arith.constant 0 : index
    %200 = tpu.strided_load %arg6[%c561, %c0_157] {strides = array<i32: 2, 1>} : memref<632x16xf32, #tpu.memory_space<vmem>>, vector<8x16xf32>
    %201 = arith.addf %199, %200 : vector<8x16xf32>
    %c578 = arith.constant 578 : index
    %c0_158 = arith.constant 0 : index
    %202 = tpu.strided_load %arg6[%c578, %c0_158] {strides = array<i32: 2, 1>} : memref<632x16xf32, #tpu.memory_space<vmem>>, vector<8x16xf32>
    %203 = arith.addf %201, %202 : vector<8x16xf32>
    %c579 = arith.constant 579 : index
    %c0_159 = arith.constant 0 : index
    %204 = tpu.strided_load %arg6[%c579, %c0_159] {strides = array<i32: 2, 1>} : memref<632x16xf32, #tpu.memory_space<vmem>>, vector<8x16xf32>
    %205 = arith.addf %203, %204 : vector<8x16xf32>
    %cst_160 = arith.constant 2.500000e-01 : f32
    %206 = vector.broadcast %cst_160 : f32 to vector<8x16xf32>
    %207 = arith.mulf %205, %206 : vector<8x16xf32>
    %c1_161 = arith.constant 1 : index
    %c6_162 = arith.constant 6 : index
    %c0_163 = arith.constant 0 : index
    %c0_164 = arith.constant 0 : index
    %208 = vector.load %arg4[%c1_161, %c6_162, %c0_163, %c0_164] : memref<2x8x8x16xf32, #tpu.memory_space<vmem>>, vector<1x1x8x16xf32>
    %209 = vector.shape_cast %208 : vector<1x1x8x16xf32> to vector<8x16xf32>
    %210 = vector.shape_cast %207 : vector<8x16xf32> to vector<1x1x8x16xf32>
    tpu.vector_store %arg4[%c1_161, %c6_162, %c0_163, %c0_164], %210 {strides = array<i32>} : memref<2x8x8x16xf32, #tpu.memory_space<vmem>>, vector<1x1x8x16xf32>,
    %c596 = arith.constant 596 : index
    %c0_165 = arith.constant 0 : index
    %211 = tpu.strided_load %arg6[%c596, %c0_165] {strides = array<i32: 2, 1>} : memref<632x16xf32, #tpu.memory_space<vmem>>, vector<8x16xf32>
    %c597 = arith.constant 597 : index
    %c0_166 = arith.constant 0 : index
    %212 = tpu.strided_load %arg6[%c597, %c0_166] {strides = array<i32: 2, 1>} : memref<632x16xf32, #tpu.memory_space<vmem>>, vector<8x16xf32>
    %213 = arith.addf %211, %212 : vector<8x16xf32>
    %c614 = arith.constant 614 : index
    %c0_167 = arith.constant 0 : index
    %214 = tpu.strided_load %arg6[%c614, %c0_167] {strides = array<i32: 2, 1>} : memref<632x16xf32, #tpu.memory_space<vmem>>, vector<8x16xf32>
    %215 = arith.addf %213, %214 : vector<8x16xf32>
    %c615 = arith.constant 615 : index
    %c0_168 = arith.constant 0 : index
    %216 = tpu.strided_load %arg6[%c615, %c0_168] {strides = array<i32: 2, 1>} : memref<632x16xf32, #tpu.memory_space<vmem>>, vector<8x16xf32>
    %217 = arith.addf %215, %216 : vector<8x16xf32>
    %cst_169 = arith.constant 2.500000e-01 : f32
    %218 = vector.broadcast %cst_169 : f32 to vector<8x16xf32>
    %219 = arith.mulf %217, %218 : vector<8x16xf32>
    %c1_170 = arith.constant 1 : index
    %c7_171 = arith.constant 7 : index
    %c0_172 = arith.constant 0 : index
    %c0_173 = arith.constant 0 : index
    %220 = vector.load %arg4[%c1_170, %c7_171, %c0_172, %c0_173] : memref<2x8x8x16xf32, #tpu.memory_space<vmem>>, vector<1x1x8x16xf32>
    %221 = vector.shape_cast %220 : vector<1x1x8x16xf32> to vector<8x16xf32>
    %222 = vector.shape_cast %219 : vector<8x16xf32> to vector<1x1x8x16xf32>
    tpu.vector_store %arg4[%c1_170, %c7_171, %c0_172, %c0_173], %222 {strides = array<i32>} : memref<2x8x8x16xf32, #tpu.memory_space<vmem>>, vector<1x1x8x16xf32>,
    return
  }
}

module attributes {stable_mosaic.version = 11 : i64} {
  func.func @kernel(%arg0: memref<224x16xf32, #tpu.memory_space<vmem>>, %arg1: memref<3x48x32xf32, #tpu.memory_space<vmem>>, %arg2: memref<1x32xf32, #tpu.memory_space<vmem>>, %arg3: memref<1x32xf32, #tpu.memory_space<vmem>>, %arg4: memref<2x4x4x32xf32, #tpu.memory_space<vmem>>, %arg5: memref<212x48xf32, #tpu.memory_space<vmem>>, %arg6: memref<192x32xf32, #tpu.memory_space<vmem>>) attributes {dimension_semantics = [], scalar_prefetch = 0 : i64, scratch_operands = 2 : i64, tpu.core_type = #tpu.core_type<tc>} {
    %c0 = arith.constant 0 : index
    %c0_0 = arith.constant 0 : index
    %0 = vector.load %arg0[%c0, %c0_0] : memref<224x16xf32, #tpu.memory_space<vmem>>, vector<212x16xf32>
    %c0_1 = arith.constant 0 : index
    %c0_2 = arith.constant 0 : index
    %1 = vector.load %arg5[%c0_1, %c0_2] : memref<212x48xf32, #tpu.memory_space<vmem>>, vector<212x16xf32>
    tpu.vector_store %arg5[%c0_1, %c0_2], %0 {strides = array<i32>} : memref<212x48xf32, #tpu.memory_space<vmem>>, vector<212x16xf32>,
    %c1 = arith.constant 1 : index
    %c0_3 = arith.constant 0 : index
    %2 = vector.load %arg0[%c1, %c0_3] : memref<224x16xf32, #tpu.memory_space<vmem>>, vector<212x16xf32>
    %c0_4 = arith.constant 0 : index
    %c16 = arith.constant 16 : index
    %3 = vector.load %arg5[%c0_4, %c16] : memref<212x48xf32, #tpu.memory_space<vmem>>, vector<212x16xf32>
    tpu.vector_store %arg5[%c0_4, %c16], %2 {strides = array<i32>} : memref<212x48xf32, #tpu.memory_space<vmem>>, vector<212x16xf32>,
    %c2 = arith.constant 2 : index
    %c0_5 = arith.constant 0 : index
    %4 = vector.load %arg0[%c2, %c0_5] : memref<224x16xf32, #tpu.memory_space<vmem>>, vector<212x16xf32>
    %c0_6 = arith.constant 0 : index
    %c32 = arith.constant 32 : index
    %5 = vector.load %arg5[%c0_6, %c32] : memref<212x48xf32, #tpu.memory_space<vmem>>, vector<212x16xf32>
    tpu.vector_store %arg5[%c0_6, %c32], %4 {strides = array<i32>} : memref<212x48xf32, #tpu.memory_space<vmem>>, vector<212x16xf32>,
    %cst = arith.constant 0.000000e+00 : f32
    %6 = vector.broadcast %cst : f32 to vector<192x32xf32>
    %c0_7 = arith.constant 0 : index
    %c0_8 = arith.constant 0 : index
    %7 = vector.load %arg5[%c0_7, %c0_8] : memref<212x48xf32, #tpu.memory_space<vmem>>, vector<192x48xf32>
    %c0_9 = arith.constant 0 : index
    %c0_10 = arith.constant 0 : index
    %c0_11 = arith.constant 0 : index
    %8 = vector.load %arg1[%c0_9, %c0_10, %c0_11] : memref<3x48x32xf32, #tpu.memory_space<vmem>>, vector<1x48x32xf32>
    %9 = vector.shape_cast %8 : vector<1x48x32xf32> to vector<48x32xf32>
    %cst_12 = arith.constant dense<0.000000e+00> : vector<192x32xf32>
    %10 = tpu.matmul %7, %9, %cst_12 {dimension_numbers = #tpu.dot_dimension_numbers<[1], [0], [0], [1], [0, 0, 1, 1], [], []>} : vector<192x48xf32>, vector<48x32xf32>, vector<192x32xf32> -> vector<192x32xf32>
    %11 = arith.addf %6, %10 : vector<192x32xf32>
    %c10 = arith.constant 10 : index
    %c0_13 = arith.constant 0 : index
    %12 = vector.load %arg5[%c10, %c0_13] : memref<212x48xf32, #tpu.memory_space<vmem>>, vector<192x48xf32>
    %c1_14 = arith.constant 1 : index
    %c0_15 = arith.constant 0 : index
    %c0_16 = arith.constant 0 : index
    %13 = vector.load %arg1[%c1_14, %c0_15, %c0_16] : memref<3x48x32xf32, #tpu.memory_space<vmem>>, vector<1x48x32xf32>
    %14 = vector.shape_cast %13 : vector<1x48x32xf32> to vector<48x32xf32>
    %cst_17 = arith.constant dense<0.000000e+00> : vector<192x32xf32>
    %15 = tpu.matmul %12, %14, %cst_17 {dimension_numbers = #tpu.dot_dimension_numbers<[1], [0], [0], [1], [0, 0, 1, 1], [], []>} : vector<192x48xf32>, vector<48x32xf32>, vector<192x32xf32> -> vector<192x32xf32>
    %16 = arith.addf %11, %15 : vector<192x32xf32>
    %c20 = arith.constant 20 : index
    %c0_18 = arith.constant 0 : index
    %17 = vector.load %arg5[%c20, %c0_18] : memref<212x48xf32, #tpu.memory_space<vmem>>, vector<192x48xf32>
    %c2_19 = arith.constant 2 : index
    %c0_20 = arith.constant 0 : index
    %c0_21 = arith.constant 0 : index
    %18 = vector.load %arg1[%c2_19, %c0_20, %c0_21] : memref<3x48x32xf32, #tpu.memory_space<vmem>>, vector<1x48x32xf32>
    %19 = vector.shape_cast %18 : vector<1x48x32xf32> to vector<48x32xf32>
    %cst_22 = arith.constant dense<0.000000e+00> : vector<192x32xf32>
    %20 = tpu.matmul %17, %19, %cst_22 {dimension_numbers = #tpu.dot_dimension_numbers<[1], [0], [0], [1], [0, 0, 1, 1], [], []>} : vector<192x48xf32>, vector<48x32xf32>, vector<192x32xf32> -> vector<192x32xf32>
    %21 = arith.addf %16, %20 : vector<192x32xf32>
    %c0_23 = arith.constant 0 : index
    %c0_24 = arith.constant 0 : index
    %22 = vector.load %arg2[%c0_23, %c0_24] : memref<1x32xf32, #tpu.memory_space<vmem>>, vector<1x32xf32>
    %23 = vector.broadcast %22 : vector<1x32xf32> to vector<192x32xf32>
    %24 = arith.mulf %21, %23 : vector<192x32xf32>
    %c0_25 = arith.constant 0 : index
    %c0_26 = arith.constant 0 : index
    %25 = vector.load %arg3[%c0_25, %c0_26] : memref<1x32xf32, #tpu.memory_space<vmem>>, vector<1x32xf32>
    %26 = vector.broadcast %25 : vector<1x32xf32> to vector<192x32xf32>
    %27 = arith.addf %24, %26 : vector<192x32xf32>
    %cst_27 = arith.constant 0.000000e+00 : f32
    %28 = vector.broadcast %cst_27 : f32 to vector<192x32xf32>
    %29 = arith.maximumf %27, %28 : vector<192x32xf32>
    %c0_28 = arith.constant 0 : index
    %c0_29 = arith.constant 0 : index
    %30 = vector.load %arg6[%c0_28, %c0_29] : memref<192x32xf32, #tpu.memory_space<vmem>>, vector<192x32xf32>
    tpu.vector_store %arg6[%c0_28, %c0_29], %29 {strides = array<i32>} : memref<192x32xf32, #tpu.memory_space<vmem>>, vector<192x32xf32>,
    %c0_30 = arith.constant 0 : index
    %c0_31 = arith.constant 0 : index
    %31 = tpu.strided_load %arg6[%c0_30, %c0_31] {strides = array<i32: 2, 1>} : memref<192x32xf32, #tpu.memory_space<vmem>>, vector<4x32xf32>
    %c1_32 = arith.constant 1 : index
    %c0_33 = arith.constant 0 : index
    %32 = tpu.strided_load %arg6[%c1_32, %c0_33] {strides = array<i32: 2, 1>} : memref<192x32xf32, #tpu.memory_space<vmem>>, vector<4x32xf32>
    %33 = arith.addf %31, %32 : vector<4x32xf32>
    %c10_34 = arith.constant 10 : index
    %c0_35 = arith.constant 0 : index
    %34 = tpu.strided_load %arg6[%c10_34, %c0_35] {strides = array<i32: 2, 1>} : memref<192x32xf32, #tpu.memory_space<vmem>>, vector<4x32xf32>
    %35 = arith.addf %33, %34 : vector<4x32xf32>
    %c11 = arith.constant 11 : index
    %c0_36 = arith.constant 0 : index
    %36 = tpu.strided_load %arg6[%c11, %c0_36] {strides = array<i32: 2, 1>} : memref<192x32xf32, #tpu.memory_space<vmem>>, vector<4x32xf32>
    %37 = arith.addf %35, %36 : vector<4x32xf32>
    %cst_37 = arith.constant 2.500000e-01 : f32
    %38 = vector.broadcast %cst_37 : f32 to vector<4x32xf32>
    %39 = arith.mulf %37, %38 : vector<4x32xf32>
    %c0_38 = arith.constant 0 : index
    %c0_39 = arith.constant 0 : index
    %c0_40 = arith.constant 0 : index
    %c0_41 = arith.constant 0 : index
    %40 = vector.load %arg4[%c0_38, %c0_39, %c0_40, %c0_41] : memref<2x4x4x32xf32, #tpu.memory_space<vmem>>, vector<1x1x4x32xf32>
    %41 = vector.shape_cast %40 : vector<1x1x4x32xf32> to vector<4x32xf32>
    %42 = vector.shape_cast %39 : vector<4x32xf32> to vector<1x1x4x32xf32>
    tpu.vector_store %arg4[%c0_38, %c0_39, %c0_40, %c0_41], %42 {strides = array<i32>} : memref<2x4x4x32xf32, #tpu.memory_space<vmem>>, vector<1x1x4x32xf32>,
    %c20_42 = arith.constant 20 : index
    %c0_43 = arith.constant 0 : index
    %43 = tpu.strided_load %arg6[%c20_42, %c0_43] {strides = array<i32: 2, 1>} : memref<192x32xf32, #tpu.memory_space<vmem>>, vector<4x32xf32>
    %c21 = arith.constant 21 : index
    %c0_44 = arith.constant 0 : index
    %44 = tpu.strided_load %arg6[%c21, %c0_44] {strides = array<i32: 2, 1>} : memref<192x32xf32, #tpu.memory_space<vmem>>, vector<4x32xf32>
    %45 = arith.addf %43, %44 : vector<4x32xf32>
    %c30 = arith.constant 30 : index
    %c0_45 = arith.constant 0 : index
    %46 = tpu.strided_load %arg6[%c30, %c0_45] {strides = array<i32: 2, 1>} : memref<192x32xf32, #tpu.memory_space<vmem>>, vector<4x32xf32>
    %47 = arith.addf %45, %46 : vector<4x32xf32>
    %c31 = arith.constant 31 : index
    %c0_46 = arith.constant 0 : index
    %48 = tpu.strided_load %arg6[%c31, %c0_46] {strides = array<i32: 2, 1>} : memref<192x32xf32, #tpu.memory_space<vmem>>, vector<4x32xf32>
    %49 = arith.addf %47, %48 : vector<4x32xf32>
    %cst_47 = arith.constant 2.500000e-01 : f32
    %50 = vector.broadcast %cst_47 : f32 to vector<4x32xf32>
    %51 = arith.mulf %49, %50 : vector<4x32xf32>
    %c0_48 = arith.constant 0 : index
    %c1_49 = arith.constant 1 : index
    %c0_50 = arith.constant 0 : index
    %c0_51 = arith.constant 0 : index
    %52 = vector.load %arg4[%c0_48, %c1_49, %c0_50, %c0_51] : memref<2x4x4x32xf32, #tpu.memory_space<vmem>>, vector<1x1x4x32xf32>
    %53 = vector.shape_cast %52 : vector<1x1x4x32xf32> to vector<4x32xf32>
    %54 = vector.shape_cast %51 : vector<4x32xf32> to vector<1x1x4x32xf32>
    tpu.vector_store %arg4[%c0_48, %c1_49, %c0_50, %c0_51], %54 {strides = array<i32>} : memref<2x4x4x32xf32, #tpu.memory_space<vmem>>, vector<1x1x4x32xf32>,
    %c40 = arith.constant 40 : index
    %c0_52 = arith.constant 0 : index
    %55 = tpu.strided_load %arg6[%c40, %c0_52] {strides = array<i32: 2, 1>} : memref<192x32xf32, #tpu.memory_space<vmem>>, vector<4x32xf32>
    %c41 = arith.constant 41 : index
    %c0_53 = arith.constant 0 : index
    %56 = tpu.strided_load %arg6[%c41, %c0_53] {strides = array<i32: 2, 1>} : memref<192x32xf32, #tpu.memory_space<vmem>>, vector<4x32xf32>
    %57 = arith.addf %55, %56 : vector<4x32xf32>
    %c50 = arith.constant 50 : index
    %c0_54 = arith.constant 0 : index
    %58 = tpu.strided_load %arg6[%c50, %c0_54] {strides = array<i32: 2, 1>} : memref<192x32xf32, #tpu.memory_space<vmem>>, vector<4x32xf32>
    %59 = arith.addf %57, %58 : vector<4x32xf32>
    %c51 = arith.constant 51 : index
    %c0_55 = arith.constant 0 : index
    %60 = tpu.strided_load %arg6[%c51, %c0_55] {strides = array<i32: 2, 1>} : memref<192x32xf32, #tpu.memory_space<vmem>>, vector<4x32xf32>
    %61 = arith.addf %59, %60 : vector<4x32xf32>
    %cst_56 = arith.constant 2.500000e-01 : f32
    %62 = vector.broadcast %cst_56 : f32 to vector<4x32xf32>
    %63 = arith.mulf %61, %62 : vector<4x32xf32>
    %c0_57 = arith.constant 0 : index
    %c2_58 = arith.constant 2 : index
    %c0_59 = arith.constant 0 : index
    %c0_60 = arith.constant 0 : index
    %64 = vector.load %arg4[%c0_57, %c2_58, %c0_59, %c0_60] : memref<2x4x4x32xf32, #tpu.memory_space<vmem>>, vector<1x1x4x32xf32>
    %65 = vector.shape_cast %64 : vector<1x1x4x32xf32> to vector<4x32xf32>
    %66 = vector.shape_cast %63 : vector<4x32xf32> to vector<1x1x4x32xf32>
    tpu.vector_store %arg4[%c0_57, %c2_58, %c0_59, %c0_60], %66 {strides = array<i32>} : memref<2x4x4x32xf32, #tpu.memory_space<vmem>>, vector<1x1x4x32xf32>,
    %c60 = arith.constant 60 : index
    %c0_61 = arith.constant 0 : index
    %67 = tpu.strided_load %arg6[%c60, %c0_61] {strides = array<i32: 2, 1>} : memref<192x32xf32, #tpu.memory_space<vmem>>, vector<4x32xf32>
    %c61 = arith.constant 61 : index
    %c0_62 = arith.constant 0 : index
    %68 = tpu.strided_load %arg6[%c61, %c0_62] {strides = array<i32: 2, 1>} : memref<192x32xf32, #tpu.memory_space<vmem>>, vector<4x32xf32>
    %69 = arith.addf %67, %68 : vector<4x32xf32>
    %c70 = arith.constant 70 : index
    %c0_63 = arith.constant 0 : index
    %70 = tpu.strided_load %arg6[%c70, %c0_63] {strides = array<i32: 2, 1>} : memref<192x32xf32, #tpu.memory_space<vmem>>, vector<4x32xf32>
    %71 = arith.addf %69, %70 : vector<4x32xf32>
    %c71 = arith.constant 71 : index
    %c0_64 = arith.constant 0 : index
    %72 = tpu.strided_load %arg6[%c71, %c0_64] {strides = array<i32: 2, 1>} : memref<192x32xf32, #tpu.memory_space<vmem>>, vector<4x32xf32>
    %73 = arith.addf %71, %72 : vector<4x32xf32>
    %cst_65 = arith.constant 2.500000e-01 : f32
    %74 = vector.broadcast %cst_65 : f32 to vector<4x32xf32>
    %75 = arith.mulf %73, %74 : vector<4x32xf32>
    %c0_66 = arith.constant 0 : index
    %c3 = arith.constant 3 : index
    %c0_67 = arith.constant 0 : index
    %c0_68 = arith.constant 0 : index
    %76 = vector.load %arg4[%c0_66, %c3, %c0_67, %c0_68] : memref<2x4x4x32xf32, #tpu.memory_space<vmem>>, vector<1x1x4x32xf32>
    %77 = vector.shape_cast %76 : vector<1x1x4x32xf32> to vector<4x32xf32>
    %78 = vector.shape_cast %75 : vector<4x32xf32> to vector<1x1x4x32xf32>
    tpu.vector_store %arg4[%c0_66, %c3, %c0_67, %c0_68], %78 {strides = array<i32>} : memref<2x4x4x32xf32, #tpu.memory_space<vmem>>, vector<1x1x4x32xf32>,
    %c112 = arith.constant 112 : index
    %c0_69 = arith.constant 0 : index
    %79 = tpu.strided_load %arg6[%c112, %c0_69] {strides = array<i32: 2, 1>} : memref<192x32xf32, #tpu.memory_space<vmem>>, vector<4x32xf32>
    %c113 = arith.constant 113 : index
    %c0_70 = arith.constant 0 : index
    %80 = tpu.strided_load %arg6[%c113, %c0_70] {strides = array<i32: 2, 1>} : memref<192x32xf32, #tpu.memory_space<vmem>>, vector<4x32xf32>
    %81 = arith.addf %79, %80 : vector<4x32xf32>
    %c122 = arith.constant 122 : index
    %c0_71 = arith.constant 0 : index
    %82 = tpu.strided_load %arg6[%c122, %c0_71] {strides = array<i32: 2, 1>} : memref<192x32xf32, #tpu.memory_space<vmem>>, vector<4x32xf32>
    %83 = arith.addf %81, %82 : vector<4x32xf32>
    %c123 = arith.constant 123 : index
    %c0_72 = arith.constant 0 : index
    %84 = tpu.strided_load %arg6[%c123, %c0_72] {strides = array<i32: 2, 1>} : memref<192x32xf32, #tpu.memory_space<vmem>>, vector<4x32xf32>
    %85 = arith.addf %83, %84 : vector<4x32xf32>
    %cst_73 = arith.constant 2.500000e-01 : f32
    %86 = vector.broadcast %cst_73 : f32 to vector<4x32xf32>
    %87 = arith.mulf %85, %86 : vector<4x32xf32>
    %c1_74 = arith.constant 1 : index
    %c0_75 = arith.constant 0 : index
    %c0_76 = arith.constant 0 : index
    %c0_77 = arith.constant 0 : index
    %88 = vector.load %arg4[%c1_74, %c0_75, %c0_76, %c0_77] : memref<2x4x4x32xf32, #tpu.memory_space<vmem>>, vector<1x1x4x32xf32>
    %89 = vector.shape_cast %88 : vector<1x1x4x32xf32> to vector<4x32xf32>
    %90 = vector.shape_cast %87 : vector<4x32xf32> to vector<1x1x4x32xf32>
    tpu.vector_store %arg4[%c1_74, %c0_75, %c0_76, %c0_77], %90 {strides = array<i32>} : memref<2x4x4x32xf32, #tpu.memory_space<vmem>>, vector<1x1x4x32xf32>,
    %c132 = arith.constant 132 : index
    %c0_78 = arith.constant 0 : index
    %91 = tpu.strided_load %arg6[%c132, %c0_78] {strides = array<i32: 2, 1>} : memref<192x32xf32, #tpu.memory_space<vmem>>, vector<4x32xf32>
    %c133 = arith.constant 133 : index
    %c0_79 = arith.constant 0 : index
    %92 = tpu.strided_load %arg6[%c133, %c0_79] {strides = array<i32: 2, 1>} : memref<192x32xf32, #tpu.memory_space<vmem>>, vector<4x32xf32>
    %93 = arith.addf %91, %92 : vector<4x32xf32>
    %c142 = arith.constant 142 : index
    %c0_80 = arith.constant 0 : index
    %94 = tpu.strided_load %arg6[%c142, %c0_80] {strides = array<i32: 2, 1>} : memref<192x32xf32, #tpu.memory_space<vmem>>, vector<4x32xf32>
    %95 = arith.addf %93, %94 : vector<4x32xf32>
    %c143 = arith.constant 143 : index
    %c0_81 = arith.constant 0 : index
    %96 = tpu.strided_load %arg6[%c143, %c0_81] {strides = array<i32: 2, 1>} : memref<192x32xf32, #tpu.memory_space<vmem>>, vector<4x32xf32>
    %97 = arith.addf %95, %96 : vector<4x32xf32>
    %cst_82 = arith.constant 2.500000e-01 : f32
    %98 = vector.broadcast %cst_82 : f32 to vector<4x32xf32>
    %99 = arith.mulf %97, %98 : vector<4x32xf32>
    %c1_83 = arith.constant 1 : index
    %c1_84 = arith.constant 1 : index
    %c0_85 = arith.constant 0 : index
    %c0_86 = arith.constant 0 : index
    %100 = vector.load %arg4[%c1_83, %c1_84, %c0_85, %c0_86] : memref<2x4x4x32xf32, #tpu.memory_space<vmem>>, vector<1x1x4x32xf32>
    %101 = vector.shape_cast %100 : vector<1x1x4x32xf32> to vector<4x32xf32>
    %102 = vector.shape_cast %99 : vector<4x32xf32> to vector<1x1x4x32xf32>
    tpu.vector_store %arg4[%c1_83, %c1_84, %c0_85, %c0_86], %102 {strides = array<i32>} : memref<2x4x4x32xf32, #tpu.memory_space<vmem>>, vector<1x1x4x32xf32>,
    %c152 = arith.constant 152 : index
    %c0_87 = arith.constant 0 : index
    %103 = tpu.strided_load %arg6[%c152, %c0_87] {strides = array<i32: 2, 1>} : memref<192x32xf32, #tpu.memory_space<vmem>>, vector<4x32xf32>
    %c153 = arith.constant 153 : index
    %c0_88 = arith.constant 0 : index
    %104 = tpu.strided_load %arg6[%c153, %c0_88] {strides = array<i32: 2, 1>} : memref<192x32xf32, #tpu.memory_space<vmem>>, vector<4x32xf32>
    %105 = arith.addf %103, %104 : vector<4x32xf32>
    %c162 = arith.constant 162 : index
    %c0_89 = arith.constant 0 : index
    %106 = tpu.strided_load %arg6[%c162, %c0_89] {strides = array<i32: 2, 1>} : memref<192x32xf32, #tpu.memory_space<vmem>>, vector<4x32xf32>
    %107 = arith.addf %105, %106 : vector<4x32xf32>
    %c163 = arith.constant 163 : index
    %c0_90 = arith.constant 0 : index
    %108 = tpu.strided_load %arg6[%c163, %c0_90] {strides = array<i32: 2, 1>} : memref<192x32xf32, #tpu.memory_space<vmem>>, vector<4x32xf32>
    %109 = arith.addf %107, %108 : vector<4x32xf32>
    %cst_91 = arith.constant 2.500000e-01 : f32
    %110 = vector.broadcast %cst_91 : f32 to vector<4x32xf32>
    %111 = arith.mulf %109, %110 : vector<4x32xf32>
    %c1_92 = arith.constant 1 : index
    %c2_93 = arith.constant 2 : index
    %c0_94 = arith.constant 0 : index
    %c0_95 = arith.constant 0 : index
    %112 = vector.load %arg4[%c1_92, %c2_93, %c0_94, %c0_95] : memref<2x4x4x32xf32, #tpu.memory_space<vmem>>, vector<1x1x4x32xf32>
    %113 = vector.shape_cast %112 : vector<1x1x4x32xf32> to vector<4x32xf32>
    %114 = vector.shape_cast %111 : vector<4x32xf32> to vector<1x1x4x32xf32>
    tpu.vector_store %arg4[%c1_92, %c2_93, %c0_94, %c0_95], %114 {strides = array<i32>} : memref<2x4x4x32xf32, #tpu.memory_space<vmem>>, vector<1x1x4x32xf32>,
    %c172 = arith.constant 172 : index
    %c0_96 = arith.constant 0 : index
    %115 = tpu.strided_load %arg6[%c172, %c0_96] {strides = array<i32: 2, 1>} : memref<192x32xf32, #tpu.memory_space<vmem>>, vector<4x32xf32>
    %c173 = arith.constant 173 : index
    %c0_97 = arith.constant 0 : index
    %116 = tpu.strided_load %arg6[%c173, %c0_97] {strides = array<i32: 2, 1>} : memref<192x32xf32, #tpu.memory_space<vmem>>, vector<4x32xf32>
    %117 = arith.addf %115, %116 : vector<4x32xf32>
    %c182 = arith.constant 182 : index
    %c0_98 = arith.constant 0 : index
    %118 = tpu.strided_load %arg6[%c182, %c0_98] {strides = array<i32: 2, 1>} : memref<192x32xf32, #tpu.memory_space<vmem>>, vector<4x32xf32>
    %119 = arith.addf %117, %118 : vector<4x32xf32>
    %c183 = arith.constant 183 : index
    %c0_99 = arith.constant 0 : index
    %120 = tpu.strided_load %arg6[%c183, %c0_99] {strides = array<i32: 2, 1>} : memref<192x32xf32, #tpu.memory_space<vmem>>, vector<4x32xf32>
    %121 = arith.addf %119, %120 : vector<4x32xf32>
    %cst_100 = arith.constant 2.500000e-01 : f32
    %122 = vector.broadcast %cst_100 : f32 to vector<4x32xf32>
    %123 = arith.mulf %121, %122 : vector<4x32xf32>
    %c1_101 = arith.constant 1 : index
    %c3_102 = arith.constant 3 : index
    %c0_103 = arith.constant 0 : index
    %c0_104 = arith.constant 0 : index
    %124 = vector.load %arg4[%c1_101, %c3_102, %c0_103, %c0_104] : memref<2x4x4x32xf32, #tpu.memory_space<vmem>>, vector<1x1x4x32xf32>
    %125 = vector.shape_cast %124 : vector<1x1x4x32xf32> to vector<4x32xf32>
    %126 = vector.shape_cast %123 : vector<4x32xf32> to vector<1x1x4x32xf32>
    tpu.vector_store %arg4[%c1_101, %c3_102, %c0_103, %c0_104], %126 {strides = array<i32>} : memref<2x4x4x32xf32, #tpu.memory_space<vmem>>, vector<1x1x4x32xf32>,
    return
  }
}

module attributes {stable_mosaic.version = 11 : i64} {
  func.func @kernel(%arg0: memref<96x32xf32, #tpu.memory_space<vmem>>, %arg1: memref<3x96x32xf32, #tpu.memory_space<vmem>>, %arg2: memref<1x32xf32, #tpu.memory_space<vmem>>, %arg3: memref<1x32xf32, #tpu.memory_space<vmem>>, %arg4: memref<2x2x2x32xf32, #tpu.memory_space<vmem>>, %arg5: memref<84x96xf32, #tpu.memory_space<vmem>>, %arg6: memref<72x32xf32, #tpu.memory_space<vmem>>) attributes {dimension_semantics = [], scalar_prefetch = 0 : i64, scratch_operands = 2 : i64, tpu.core_type = #tpu.core_type<tc>} {
    %c0 = arith.constant 0 : index
    %c0_0 = arith.constant 0 : index
    %0 = vector.load %arg0[%c0, %c0_0] : memref<96x32xf32, #tpu.memory_space<vmem>>, vector<84x32xf32>
    %c0_1 = arith.constant 0 : index
    %c0_2 = arith.constant 0 : index
    %1 = vector.load %arg5[%c0_1, %c0_2] : memref<84x96xf32, #tpu.memory_space<vmem>>, vector<84x32xf32>
    tpu.vector_store %arg5[%c0_1, %c0_2], %0 {strides = array<i32>} : memref<84x96xf32, #tpu.memory_space<vmem>>, vector<84x32xf32>,
    %c1 = arith.constant 1 : index
    %c0_3 = arith.constant 0 : index
    %2 = vector.load %arg0[%c1, %c0_3] : memref<96x32xf32, #tpu.memory_space<vmem>>, vector<84x32xf32>
    %c0_4 = arith.constant 0 : index
    %c32 = arith.constant 32 : index
    %3 = vector.load %arg5[%c0_4, %c32] : memref<84x96xf32, #tpu.memory_space<vmem>>, vector<84x32xf32>
    tpu.vector_store %arg5[%c0_4, %c32], %2 {strides = array<i32>} : memref<84x96xf32, #tpu.memory_space<vmem>>, vector<84x32xf32>,
    %c2 = arith.constant 2 : index
    %c0_5 = arith.constant 0 : index
    %4 = vector.load %arg0[%c2, %c0_5] : memref<96x32xf32, #tpu.memory_space<vmem>>, vector<84x32xf32>
    %c0_6 = arith.constant 0 : index
    %c64 = arith.constant 64 : index
    %5 = vector.load %arg5[%c0_6, %c64] : memref<84x96xf32, #tpu.memory_space<vmem>>, vector<84x32xf32>
    tpu.vector_store %arg5[%c0_6, %c64], %4 {strides = array<i32>} : memref<84x96xf32, #tpu.memory_space<vmem>>, vector<84x32xf32>,
    %cst = arith.constant 0.000000e+00 : f32
    %6 = vector.broadcast %cst : f32 to vector<72x32xf32>
    %c0_7 = arith.constant 0 : index
    %c0_8 = arith.constant 0 : index
    %7 = vector.load %arg5[%c0_7, %c0_8] : memref<84x96xf32, #tpu.memory_space<vmem>>, vector<72x96xf32>
    %c0_9 = arith.constant 0 : index
    %c0_10 = arith.constant 0 : index
    %c0_11 = arith.constant 0 : index
    %8 = vector.load %arg1[%c0_9, %c0_10, %c0_11] : memref<3x96x32xf32, #tpu.memory_space<vmem>>, vector<1x96x32xf32>
    %9 = vector.shape_cast %8 : vector<1x96x32xf32> to vector<96x32xf32>
    %cst_12 = arith.constant dense<0.000000e+00> : vector<72x32xf32>
    %10 = tpu.matmul %7, %9, %cst_12 {dimension_numbers = #tpu.dot_dimension_numbers<[1], [0], [0], [1], [0, 0, 1, 1], [], []>} : vector<72x96xf32>, vector<96x32xf32>, vector<72x32xf32> -> vector<72x32xf32>
    %11 = arith.addf %6, %10 : vector<72x32xf32>
    %c6 = arith.constant 6 : index
    %c0_13 = arith.constant 0 : index
    %12 = vector.load %arg5[%c6, %c0_13] : memref<84x96xf32, #tpu.memory_space<vmem>>, vector<72x96xf32>
    %c1_14 = arith.constant 1 : index
    %c0_15 = arith.constant 0 : index
    %c0_16 = arith.constant 0 : index
    %13 = vector.load %arg1[%c1_14, %c0_15, %c0_16] : memref<3x96x32xf32, #tpu.memory_space<vmem>>, vector<1x96x32xf32>
    %14 = vector.shape_cast %13 : vector<1x96x32xf32> to vector<96x32xf32>
    %cst_17 = arith.constant dense<0.000000e+00> : vector<72x32xf32>
    %15 = tpu.matmul %12, %14, %cst_17 {dimension_numbers = #tpu.dot_dimension_numbers<[1], [0], [0], [1], [0, 0, 1, 1], [], []>} : vector<72x96xf32>, vector<96x32xf32>, vector<72x32xf32> -> vector<72x32xf32>
    %16 = arith.addf %11, %15 : vector<72x32xf32>
    %c12 = arith.constant 12 : index
    %c0_18 = arith.constant 0 : index
    %17 = vector.load %arg5[%c12, %c0_18] : memref<84x96xf32, #tpu.memory_space<vmem>>, vector<72x96xf32>
    %c2_19 = arith.constant 2 : index
    %c0_20 = arith.constant 0 : index
    %c0_21 = arith.constant 0 : index
    %18 = vector.load %arg1[%c2_19, %c0_20, %c0_21] : memref<3x96x32xf32, #tpu.memory_space<vmem>>, vector<1x96x32xf32>
    %19 = vector.shape_cast %18 : vector<1x96x32xf32> to vector<96x32xf32>
    %cst_22 = arith.constant dense<0.000000e+00> : vector<72x32xf32>
    %20 = tpu.matmul %17, %19, %cst_22 {dimension_numbers = #tpu.dot_dimension_numbers<[1], [0], [0], [1], [0, 0, 1, 1], [], []>} : vector<72x96xf32>, vector<96x32xf32>, vector<72x32xf32> -> vector<72x32xf32>
    %21 = arith.addf %16, %20 : vector<72x32xf32>
    %c0_23 = arith.constant 0 : index
    %c0_24 = arith.constant 0 : index
    %22 = vector.load %arg2[%c0_23, %c0_24] : memref<1x32xf32, #tpu.memory_space<vmem>>, vector<1x32xf32>
    %23 = vector.broadcast %22 : vector<1x32xf32> to vector<72x32xf32>
    %24 = arith.mulf %21, %23 : vector<72x32xf32>
    %c0_25 = arith.constant 0 : index
    %c0_26 = arith.constant 0 : index
    %25 = vector.load %arg3[%c0_25, %c0_26] : memref<1x32xf32, #tpu.memory_space<vmem>>, vector<1x32xf32>
    %26 = vector.broadcast %25 : vector<1x32xf32> to vector<72x32xf32>
    %27 = arith.addf %24, %26 : vector<72x32xf32>
    %cst_27 = arith.constant 0.000000e+00 : f32
    %28 = vector.broadcast %cst_27 : f32 to vector<72x32xf32>
    %29 = arith.maximumf %27, %28 : vector<72x32xf32>
    %c0_28 = arith.constant 0 : index
    %c0_29 = arith.constant 0 : index
    %30 = vector.load %arg6[%c0_28, %c0_29] : memref<72x32xf32, #tpu.memory_space<vmem>>, vector<72x32xf32>
    tpu.vector_store %arg6[%c0_28, %c0_29], %29 {strides = array<i32>} : memref<72x32xf32, #tpu.memory_space<vmem>>, vector<72x32xf32>,
    %c0_30 = arith.constant 0 : index
    %c0_31 = arith.constant 0 : index
    %31 = tpu.strided_load %arg6[%c0_30, %c0_31] {strides = array<i32: 2, 1>} : memref<72x32xf32, #tpu.memory_space<vmem>>, vector<2x32xf32>
    %c1_32 = arith.constant 1 : index
    %c0_33 = arith.constant 0 : index
    %32 = tpu.strided_load %arg6[%c1_32, %c0_33] {strides = array<i32: 2, 1>} : memref<72x32xf32, #tpu.memory_space<vmem>>, vector<2x32xf32>
    %33 = arith.addf %31, %32 : vector<2x32xf32>
    %c6_34 = arith.constant 6 : index
    %c0_35 = arith.constant 0 : index
    %34 = tpu.strided_load %arg6[%c6_34, %c0_35] {strides = array<i32: 2, 1>} : memref<72x32xf32, #tpu.memory_space<vmem>>, vector<2x32xf32>
    %35 = arith.addf %33, %34 : vector<2x32xf32>
    %c7 = arith.constant 7 : index
    %c0_36 = arith.constant 0 : index
    %36 = tpu.strided_load %arg6[%c7, %c0_36] {strides = array<i32: 2, 1>} : memref<72x32xf32, #tpu.memory_space<vmem>>, vector<2x32xf32>
    %37 = arith.addf %35, %36 : vector<2x32xf32>
    %cst_37 = arith.constant 2.500000e-01 : f32
    %38 = vector.broadcast %cst_37 : f32 to vector<2x32xf32>
    %39 = arith.mulf %37, %38 : vector<2x32xf32>
    %c0_38 = arith.constant 0 : index
    %c0_39 = arith.constant 0 : index
    %c0_40 = arith.constant 0 : index
    %c0_41 = arith.constant 0 : index
    %40 = vector.load %arg4[%c0_38, %c0_39, %c0_40, %c0_41] : memref<2x2x2x32xf32, #tpu.memory_space<vmem>>, vector<1x1x2x32xf32>
    %41 = vector.shape_cast %40 : vector<1x1x2x32xf32> to vector<2x32xf32>
    %42 = vector.shape_cast %39 : vector<2x32xf32> to vector<1x1x2x32xf32>
    tpu.vector_store %arg4[%c0_38, %c0_39, %c0_40, %c0_41], %42 {strides = array<i32>} : memref<2x2x2x32xf32, #tpu.memory_space<vmem>>, vector<1x1x2x32xf32>,
    %c12_42 = arith.constant 12 : index
    %c0_43 = arith.constant 0 : index
    %43 = tpu.strided_load %arg6[%c12_42, %c0_43] {strides = array<i32: 2, 1>} : memref<72x32xf32, #tpu.memory_space<vmem>>, vector<2x32xf32>
    %c13 = arith.constant 13 : index
    %c0_44 = arith.constant 0 : index
    %44 = tpu.strided_load %arg6[%c13, %c0_44] {strides = array<i32: 2, 1>} : memref<72x32xf32, #tpu.memory_space<vmem>>, vector<2x32xf32>
    %45 = arith.addf %43, %44 : vector<2x32xf32>
    %c18 = arith.constant 18 : index
    %c0_45 = arith.constant 0 : index
    %46 = tpu.strided_load %arg6[%c18, %c0_45] {strides = array<i32: 2, 1>} : memref<72x32xf32, #tpu.memory_space<vmem>>, vector<2x32xf32>
    %47 = arith.addf %45, %46 : vector<2x32xf32>
    %c19 = arith.constant 19 : index
    %c0_46 = arith.constant 0 : index
    %48 = tpu.strided_load %arg6[%c19, %c0_46] {strides = array<i32: 2, 1>} : memref<72x32xf32, #tpu.memory_space<vmem>>, vector<2x32xf32>
    %49 = arith.addf %47, %48 : vector<2x32xf32>
    %cst_47 = arith.constant 2.500000e-01 : f32
    %50 = vector.broadcast %cst_47 : f32 to vector<2x32xf32>
    %51 = arith.mulf %49, %50 : vector<2x32xf32>
    %c0_48 = arith.constant 0 : index
    %c1_49 = arith.constant 1 : index
    %c0_50 = arith.constant 0 : index
    %c0_51 = arith.constant 0 : index
    %52 = vector.load %arg4[%c0_48, %c1_49, %c0_50, %c0_51] : memref<2x2x2x32xf32, #tpu.memory_space<vmem>>, vector<1x1x2x32xf32>
    %53 = vector.shape_cast %52 : vector<1x1x2x32xf32> to vector<2x32xf32>
    %54 = vector.shape_cast %51 : vector<2x32xf32> to vector<1x1x2x32xf32>
    tpu.vector_store %arg4[%c0_48, %c1_49, %c0_50, %c0_51], %54 {strides = array<i32>} : memref<2x2x2x32xf32, #tpu.memory_space<vmem>>, vector<1x1x2x32xf32>,
    %c48 = arith.constant 48 : index
    %c0_52 = arith.constant 0 : index
    %55 = tpu.strided_load %arg6[%c48, %c0_52] {strides = array<i32: 2, 1>} : memref<72x32xf32, #tpu.memory_space<vmem>>, vector<2x32xf32>
    %c49 = arith.constant 49 : index
    %c0_53 = arith.constant 0 : index
    %56 = tpu.strided_load %arg6[%c49, %c0_53] {strides = array<i32: 2, 1>} : memref<72x32xf32, #tpu.memory_space<vmem>>, vector<2x32xf32>
    %57 = arith.addf %55, %56 : vector<2x32xf32>
    %c54 = arith.constant 54 : index
    %c0_54 = arith.constant 0 : index
    %58 = tpu.strided_load %arg6[%c54, %c0_54] {strides = array<i32: 2, 1>} : memref<72x32xf32, #tpu.memory_space<vmem>>, vector<2x32xf32>
    %59 = arith.addf %57, %58 : vector<2x32xf32>
    %c55 = arith.constant 55 : index
    %c0_55 = arith.constant 0 : index
    %60 = tpu.strided_load %arg6[%c55, %c0_55] {strides = array<i32: 2, 1>} : memref<72x32xf32, #tpu.memory_space<vmem>>, vector<2x32xf32>
    %61 = arith.addf %59, %60 : vector<2x32xf32>
    %cst_56 = arith.constant 2.500000e-01 : f32
    %62 = vector.broadcast %cst_56 : f32 to vector<2x32xf32>
    %63 = arith.mulf %61, %62 : vector<2x32xf32>
    %c1_57 = arith.constant 1 : index
    %c0_58 = arith.constant 0 : index
    %c0_59 = arith.constant 0 : index
    %c0_60 = arith.constant 0 : index
    %64 = vector.load %arg4[%c1_57, %c0_58, %c0_59, %c0_60] : memref<2x2x2x32xf32, #tpu.memory_space<vmem>>, vector<1x1x2x32xf32>
    %65 = vector.shape_cast %64 : vector<1x1x2x32xf32> to vector<2x32xf32>
    %66 = vector.shape_cast %63 : vector<2x32xf32> to vector<1x1x2x32xf32>
    tpu.vector_store %arg4[%c1_57, %c0_58, %c0_59, %c0_60], %66 {strides = array<i32>} : memref<2x2x2x32xf32, #tpu.memory_space<vmem>>, vector<1x1x2x32xf32>,
    %c60 = arith.constant 60 : index
    %c0_61 = arith.constant 0 : index
    %67 = tpu.strided_load %arg6[%c60, %c0_61] {strides = array<i32: 2, 1>} : memref<72x32xf32, #tpu.memory_space<vmem>>, vector<2x32xf32>
    %c61 = arith.constant 61 : index
    %c0_62 = arith.constant 0 : index
    %68 = tpu.strided_load %arg6[%c61, %c0_62] {strides = array<i32: 2, 1>} : memref<72x32xf32, #tpu.memory_space<vmem>>, vector<2x32xf32>
    %69 = arith.addf %67, %68 : vector<2x32xf32>
    %c66 = arith.constant 66 : index
    %c0_63 = arith.constant 0 : index
    %70 = tpu.strided_load %arg6[%c66, %c0_63] {strides = array<i32: 2, 1>} : memref<72x32xf32, #tpu.memory_space<vmem>>, vector<2x32xf32>
    %71 = arith.addf %69, %70 : vector<2x32xf32>
    %c67 = arith.constant 67 : index
    %c0_64 = arith.constant 0 : index
    %72 = tpu.strided_load %arg6[%c67, %c0_64] {strides = array<i32: 2, 1>} : memref<72x32xf32, #tpu.memory_space<vmem>>, vector<2x32xf32>
    %73 = arith.addf %71, %72 : vector<2x32xf32>
    %cst_65 = arith.constant 2.500000e-01 : f32
    %74 = vector.broadcast %cst_65 : f32 to vector<2x32xf32>
    %75 = arith.mulf %73, %74 : vector<2x32xf32>
    %c1_66 = arith.constant 1 : index
    %c1_67 = arith.constant 1 : index
    %c0_68 = arith.constant 0 : index
    %c0_69 = arith.constant 0 : index
    %76 = vector.load %arg4[%c1_66, %c1_67, %c0_68, %c0_69] : memref<2x2x2x32xf32, #tpu.memory_space<vmem>>, vector<1x1x2x32xf32>
    %77 = vector.shape_cast %76 : vector<1x1x2x32xf32> to vector<2x32xf32>
    %78 = vector.shape_cast %75 : vector<2x32xf32> to vector<1x1x2x32xf32>
    tpu.vector_store %arg4[%c1_66, %c1_67, %c0_68, %c0_69], %78 {strides = array<i32>} : memref<2x2x2x32xf32, #tpu.memory_space<vmem>>, vector<1x1x2x32xf32>,
    return
  }
}

module attributes {stable_mosaic.version = 11 : i64} {
  func.func @kernel(%arg0: memref<48x32xf32, #tpu.memory_space<vmem>>, %arg1: memref<4x128x32xf32, #tpu.memory_space<vmem>>, %arg2: memref<1x32xf32, #tpu.memory_space<vmem>>, %arg3: memref<1x32xf32, #tpu.memory_space<vmem>>, %arg4: memref<2x4x8x32xf32, #tpu.memory_space<vmem>>, %arg5: memref<38x128xf32, #tpu.memory_space<vmem>>) attributes {dimension_semantics = [], scalar_prefetch = 0 : i64, scratch_operands = 1 : i64, tpu.core_type = #tpu.core_type<tc>} {
    %c0 = arith.constant 0 : index
    %c0_0 = arith.constant 0 : index
    %0 = vector.load %arg0[%c0, %c0_0] : memref<48x32xf32, #tpu.memory_space<vmem>>, vector<38x32xf32>
    %c0_1 = arith.constant 0 : index
    %c0_2 = arith.constant 0 : index
    %1 = vector.load %arg5[%c0_1, %c0_2] : memref<38x128xf32, #tpu.memory_space<vmem>>, vector<38x32xf32>
    tpu.vector_store %arg5[%c0_1, %c0_2], %0 {strides = array<i32>} : memref<38x128xf32, #tpu.memory_space<vmem>>, vector<38x32xf32>,
    %c1 = arith.constant 1 : index
    %c0_3 = arith.constant 0 : index
    %2 = vector.load %arg0[%c1, %c0_3] : memref<48x32xf32, #tpu.memory_space<vmem>>, vector<38x32xf32>
    %c0_4 = arith.constant 0 : index
    %c32 = arith.constant 32 : index
    %3 = vector.load %arg5[%c0_4, %c32] : memref<38x128xf32, #tpu.memory_space<vmem>>, vector<38x32xf32>
    tpu.vector_store %arg5[%c0_4, %c32], %2 {strides = array<i32>} : memref<38x128xf32, #tpu.memory_space<vmem>>, vector<38x32xf32>,
    %c4 = arith.constant 4 : index
    %c0_5 = arith.constant 0 : index
    %4 = vector.load %arg0[%c4, %c0_5] : memref<48x32xf32, #tpu.memory_space<vmem>>, vector<38x32xf32>
    %c0_6 = arith.constant 0 : index
    %c64 = arith.constant 64 : index
    %5 = vector.load %arg5[%c0_6, %c64] : memref<38x128xf32, #tpu.memory_space<vmem>>, vector<38x32xf32>
    tpu.vector_store %arg5[%c0_6, %c64], %4 {strides = array<i32>} : memref<38x128xf32, #tpu.memory_space<vmem>>, vector<38x32xf32>,
    %c5 = arith.constant 5 : index
    %c0_7 = arith.constant 0 : index
    %6 = vector.load %arg0[%c5, %c0_7] : memref<48x32xf32, #tpu.memory_space<vmem>>, vector<38x32xf32>
    %c0_8 = arith.constant 0 : index
    %c96 = arith.constant 96 : index
    %7 = vector.load %arg5[%c0_8, %c96] : memref<38x128xf32, #tpu.memory_space<vmem>>, vector<38x32xf32>
    tpu.vector_store %arg5[%c0_8, %c96], %6 {strides = array<i32>} : memref<38x128xf32, #tpu.memory_space<vmem>>, vector<38x32xf32>,
    %c0_9 = arith.constant 0 : index
    %c0_10 = arith.constant 0 : index
    %8 = vector.load %arg5[%c0_9, %c0_10] : memref<38x128xf32, #tpu.memory_space<vmem>>, vector<32x128xf32>
    %c0_11 = arith.constant 0 : index
    %c0_12 = arith.constant 0 : index
    %c0_13 = arith.constant 0 : index
    %9 = vector.load %arg1[%c0_11, %c0_12, %c0_13] : memref<4x128x32xf32, #tpu.memory_space<vmem>>, vector<1x128x32xf32>
    %10 = vector.shape_cast %9 : vector<1x128x32xf32> to vector<128x32xf32>
    %cst = arith.constant dense<0.000000e+00> : vector<32x32xf32>
    %11 = tpu.matmul %8, %10, %cst {dimension_numbers = #tpu.dot_dimension_numbers<[1], [0], [0], [1], [0, 0, 1, 1], [], []>} : vector<32x128xf32>, vector<128x32xf32>, vector<32x32xf32> -> vector<32x32xf32>
    %c0_14 = arith.constant 0 : index
    %c0_15 = arith.constant 0 : index
    %12 = vector.load %arg2[%c0_14, %c0_15] : memref<1x32xf32, #tpu.memory_space<vmem>>, vector<1x32xf32>
    %13 = vector.broadcast %12 : vector<1x32xf32> to vector<32x32xf32>
    %14 = arith.mulf %11, %13 : vector<32x32xf32>
    %c0_16 = arith.constant 0 : index
    %c0_17 = arith.constant 0 : index
    %15 = vector.load %arg3[%c0_16, %c0_17] : memref<1x32xf32, #tpu.memory_space<vmem>>, vector<1x32xf32>
    %16 = vector.broadcast %15 : vector<1x32xf32> to vector<32x32xf32>
    %17 = arith.addf %14, %16 : vector<32x32xf32>
    %cst_18 = arith.constant 0.000000e+00 : f32
    %18 = vector.broadcast %cst_18 : f32 to vector<32x32xf32>
    %19 = arith.maximumf %17, %18 : vector<32x32xf32>
    %20 = vector.extract_strided_slice %19 {offsets = [0, 0], sizes = [8, 32], strides = [1, 1]} : vector<32x32xf32> to vector<8x32xf32>
    %c0_19 = arith.constant 0 : index
    %c0_20 = arith.constant 0 : index
    %c0_21 = arith.constant 0 : index
    %c0_22 = arith.constant 0 : index
    %21 = vector.load %arg4[%c0_19, %c0_20, %c0_21, %c0_22] : memref<2x4x8x32xf32, #tpu.memory_space<vmem>>, vector<1x1x8x32xf32>
    %22 = vector.shape_cast %21 : vector<1x1x8x32xf32> to vector<8x32xf32>
    %23 = vector.shape_cast %20 : vector<8x32xf32> to vector<1x1x8x32xf32>
    tpu.vector_store %arg4[%c0_19, %c0_20, %c0_21, %c0_22], %23 {strides = array<i32>} : memref<2x4x8x32xf32, #tpu.memory_space<vmem>>, vector<1x1x8x32xf32>,
    %24 = vector.extract_strided_slice %19 {offsets = [24, 0], sizes = [8, 32], strides = [1, 1]} : vector<32x32xf32> to vector<8x32xf32>
    %c1_23 = arith.constant 1 : index
    %c0_24 = arith.constant 0 : index
    %c0_25 = arith.constant 0 : index
    %c0_26 = arith.constant 0 : index
    %25 = vector.load %arg4[%c1_23, %c0_24, %c0_25, %c0_26] : memref<2x4x8x32xf32, #tpu.memory_space<vmem>>, vector<1x1x8x32xf32>
    %26 = vector.shape_cast %25 : vector<1x1x8x32xf32> to vector<8x32xf32>
    %27 = vector.shape_cast %24 : vector<8x32xf32> to vector<1x1x8x32xf32>
    tpu.vector_store %arg4[%c1_23, %c0_24, %c0_25, %c0_26], %27 {strides = array<i32>} : memref<2x4x8x32xf32, #tpu.memory_space<vmem>>, vector<1x1x8x32xf32>,
    %c1_27 = arith.constant 1 : index
    %c0_28 = arith.constant 0 : index
    %28 = vector.load %arg5[%c1_27, %c0_28] : memref<38x128xf32, #tpu.memory_space<vmem>>, vector<32x128xf32>
    %c1_29 = arith.constant 1 : index
    %c0_30 = arith.constant 0 : index
    %c0_31 = arith.constant 0 : index
    %29 = vector.load %arg1[%c1_29, %c0_30, %c0_31] : memref<4x128x32xf32, #tpu.memory_space<vmem>>, vector<1x128x32xf32>
    %30 = vector.shape_cast %29 : vector<1x128x32xf32> to vector<128x32xf32>
    %cst_32 = arith.constant dense<0.000000e+00> : vector<32x32xf32>
    %31 = tpu.matmul %28, %30, %cst_32 {dimension_numbers = #tpu.dot_dimension_numbers<[1], [0], [0], [1], [0, 0, 1, 1], [], []>} : vector<32x128xf32>, vector<128x32xf32>, vector<32x32xf32> -> vector<32x32xf32>
    %c0_33 = arith.constant 0 : index
    %c0_34 = arith.constant 0 : index
    %32 = vector.load %arg2[%c0_33, %c0_34] : memref<1x32xf32, #tpu.memory_space<vmem>>, vector<1x32xf32>
    %33 = vector.broadcast %32 : vector<1x32xf32> to vector<32x32xf32>
    %34 = arith.mulf %31, %33 : vector<32x32xf32>
    %c0_35 = arith.constant 0 : index
    %c0_36 = arith.constant 0 : index
    %35 = vector.load %arg3[%c0_35, %c0_36] : memref<1x32xf32, #tpu.memory_space<vmem>>, vector<1x32xf32>
    %36 = vector.broadcast %35 : vector<1x32xf32> to vector<32x32xf32>
    %37 = arith.addf %34, %36 : vector<32x32xf32>
    %cst_37 = arith.constant 0.000000e+00 : f32
    %38 = vector.broadcast %cst_37 : f32 to vector<32x32xf32>
    %39 = arith.maximumf %37, %38 : vector<32x32xf32>
    %40 = vector.extract_strided_slice %39 {offsets = [0, 0], sizes = [8, 32], strides = [1, 1]} : vector<32x32xf32> to vector<8x32xf32>
    %c0_38 = arith.constant 0 : index
    %c1_39 = arith.constant 1 : index
    %c0_40 = arith.constant 0 : index
    %c0_41 = arith.constant 0 : index
    %41 = vector.load %arg4[%c0_38, %c1_39, %c0_40, %c0_41] : memref<2x4x8x32xf32, #tpu.memory_space<vmem>>, vector<1x1x8x32xf32>
    %42 = vector.shape_cast %41 : vector<1x1x8x32xf32> to vector<8x32xf32>
    %43 = vector.shape_cast %40 : vector<8x32xf32> to vector<1x1x8x32xf32>
    tpu.vector_store %arg4[%c0_38, %c1_39, %c0_40, %c0_41], %43 {strides = array<i32>} : memref<2x4x8x32xf32, #tpu.memory_space<vmem>>, vector<1x1x8x32xf32>,
    %44 = vector.extract_strided_slice %39 {offsets = [24, 0], sizes = [8, 32], strides = [1, 1]} : vector<32x32xf32> to vector<8x32xf32>
    %c1_42 = arith.constant 1 : index
    %c1_43 = arith.constant 1 : index
    %c0_44 = arith.constant 0 : index
    %c0_45 = arith.constant 0 : index
    %45 = vector.load %arg4[%c1_42, %c1_43, %c0_44, %c0_45] : memref<2x4x8x32xf32, #tpu.memory_space<vmem>>, vector<1x1x8x32xf32>
    %46 = vector.shape_cast %45 : vector<1x1x8x32xf32> to vector<8x32xf32>
    %47 = vector.shape_cast %44 : vector<8x32xf32> to vector<1x1x8x32xf32>
    tpu.vector_store %arg4[%c1_42, %c1_43, %c0_44, %c0_45], %47 {strides = array<i32>} : memref<2x4x8x32xf32, #tpu.memory_space<vmem>>, vector<1x1x8x32xf32>,
    %c4_46 = arith.constant 4 : index
    %c0_47 = arith.constant 0 : index
    %48 = vector.load %arg5[%c4_46, %c0_47] : memref<38x128xf32, #tpu.memory_space<vmem>>, vector<32x128xf32>
    %c2 = arith.constant 2 : index
    %c0_48 = arith.constant 0 : index
    %c0_49 = arith.constant 0 : index
    %49 = vector.load %arg1[%c2, %c0_48, %c0_49] : memref<4x128x32xf32, #tpu.memory_space<vmem>>, vector<1x128x32xf32>
    %50 = vector.shape_cast %49 : vector<1x128x32xf32> to vector<128x32xf32>
    %cst_50 = arith.constant dense<0.000000e+00> : vector<32x32xf32>
    %51 = tpu.matmul %48, %50, %cst_50 {dimension_numbers = #tpu.dot_dimension_numbers<[1], [0], [0], [1], [0, 0, 1, 1], [], []>} : vector<32x128xf32>, vector<128x32xf32>, vector<32x32xf32> -> vector<32x32xf32>
    %c0_51 = arith.constant 0 : index
    %c0_52 = arith.constant 0 : index
    %52 = vector.load %arg2[%c0_51, %c0_52] : memref<1x32xf32, #tpu.memory_space<vmem>>, vector<1x32xf32>
    %53 = vector.broadcast %52 : vector<1x32xf32> to vector<32x32xf32>
    %54 = arith.mulf %51, %53 : vector<32x32xf32>
    %c0_53 = arith.constant 0 : index
    %c0_54 = arith.constant 0 : index
    %55 = vector.load %arg3[%c0_53, %c0_54] : memref<1x32xf32, #tpu.memory_space<vmem>>, vector<1x32xf32>
    %56 = vector.broadcast %55 : vector<1x32xf32> to vector<32x32xf32>
    %57 = arith.addf %54, %56 : vector<32x32xf32>
    %cst_55 = arith.constant 0.000000e+00 : f32
    %58 = vector.broadcast %cst_55 : f32 to vector<32x32xf32>
    %59 = arith.maximumf %57, %58 : vector<32x32xf32>
    %60 = vector.extract_strided_slice %59 {offsets = [0, 0], sizes = [8, 32], strides = [1, 1]} : vector<32x32xf32> to vector<8x32xf32>
    %c0_56 = arith.constant 0 : index
    %c2_57 = arith.constant 2 : index
    %c0_58 = arith.constant 0 : index
    %c0_59 = arith.constant 0 : index
    %61 = vector.load %arg4[%c0_56, %c2_57, %c0_58, %c0_59] : memref<2x4x8x32xf32, #tpu.memory_space<vmem>>, vector<1x1x8x32xf32>
    %62 = vector.shape_cast %61 : vector<1x1x8x32xf32> to vector<8x32xf32>
    %63 = vector.shape_cast %60 : vector<8x32xf32> to vector<1x1x8x32xf32>
    tpu.vector_store %arg4[%c0_56, %c2_57, %c0_58, %c0_59], %63 {strides = array<i32>} : memref<2x4x8x32xf32, #tpu.memory_space<vmem>>, vector<1x1x8x32xf32>,
    %64 = vector.extract_strided_slice %59 {offsets = [24, 0], sizes = [8, 32], strides = [1, 1]} : vector<32x32xf32> to vector<8x32xf32>
    %c1_60 = arith.constant 1 : index
    %c2_61 = arith.constant 2 : index
    %c0_62 = arith.constant 0 : index
    %c0_63 = arith.constant 0 : index
    %65 = vector.load %arg4[%c1_60, %c2_61, %c0_62, %c0_63] : memref<2x4x8x32xf32, #tpu.memory_space<vmem>>, vector<1x1x8x32xf32>
    %66 = vector.shape_cast %65 : vector<1x1x8x32xf32> to vector<8x32xf32>
    %67 = vector.shape_cast %64 : vector<8x32xf32> to vector<1x1x8x32xf32>
    tpu.vector_store %arg4[%c1_60, %c2_61, %c0_62, %c0_63], %67 {strides = array<i32>} : memref<2x4x8x32xf32, #tpu.memory_space<vmem>>, vector<1x1x8x32xf32>,
    %c5_64 = arith.constant 5 : index
    %c0_65 = arith.constant 0 : index
    %68 = vector.load %arg5[%c5_64, %c0_65] : memref<38x128xf32, #tpu.memory_space<vmem>>, vector<32x128xf32>
    %c3 = arith.constant 3 : index
    %c0_66 = arith.constant 0 : index
    %c0_67 = arith.constant 0 : index
    %69 = vector.load %arg1[%c3, %c0_66, %c0_67] : memref<4x128x32xf32, #tpu.memory_space<vmem>>, vector<1x128x32xf32>
    %70 = vector.shape_cast %69 : vector<1x128x32xf32> to vector<128x32xf32>
    %cst_68 = arith.constant dense<0.000000e+00> : vector<32x32xf32>
    %71 = tpu.matmul %68, %70, %cst_68 {dimension_numbers = #tpu.dot_dimension_numbers<[1], [0], [0], [1], [0, 0, 1, 1], [], []>} : vector<32x128xf32>, vector<128x32xf32>, vector<32x32xf32> -> vector<32x32xf32>
    %c0_69 = arith.constant 0 : index
    %c0_70 = arith.constant 0 : index
    %72 = vector.load %arg2[%c0_69, %c0_70] : memref<1x32xf32, #tpu.memory_space<vmem>>, vector<1x32xf32>
    %73 = vector.broadcast %72 : vector<1x32xf32> to vector<32x32xf32>
    %74 = arith.mulf %71, %73 : vector<32x32xf32>
    %c0_71 = arith.constant 0 : index
    %c0_72 = arith.constant 0 : index
    %75 = vector.load %arg3[%c0_71, %c0_72] : memref<1x32xf32, #tpu.memory_space<vmem>>, vector<1x32xf32>
    %76 = vector.broadcast %75 : vector<1x32xf32> to vector<32x32xf32>
    %77 = arith.addf %74, %76 : vector<32x32xf32>
    %cst_73 = arith.constant 0.000000e+00 : f32
    %78 = vector.broadcast %cst_73 : f32 to vector<32x32xf32>
    %79 = arith.maximumf %77, %78 : vector<32x32xf32>
    %80 = vector.extract_strided_slice %79 {offsets = [0, 0], sizes = [8, 32], strides = [1, 1]} : vector<32x32xf32> to vector<8x32xf32>
    %c0_74 = arith.constant 0 : index
    %c3_75 = arith.constant 3 : index
    %c0_76 = arith.constant 0 : index
    %c0_77 = arith.constant 0 : index
    %81 = vector.load %arg4[%c0_74, %c3_75, %c0_76, %c0_77] : memref<2x4x8x32xf32, #tpu.memory_space<vmem>>, vector<1x1x8x32xf32>
    %82 = vector.shape_cast %81 : vector<1x1x8x32xf32> to vector<8x32xf32>
    %83 = vector.shape_cast %80 : vector<8x32xf32> to vector<1x1x8x32xf32>
    tpu.vector_store %arg4[%c0_74, %c3_75, %c0_76, %c0_77], %83 {strides = array<i32>} : memref<2x4x8x32xf32, #tpu.memory_space<vmem>>, vector<1x1x8x32xf32>,
    %84 = vector.extract_strided_slice %79 {offsets = [24, 0], sizes = [8, 32], strides = [1, 1]} : vector<32x32xf32> to vector<8x32xf32>
    %c1_78 = arith.constant 1 : index
    %c3_79 = arith.constant 3 : index
    %c0_80 = arith.constant 0 : index
    %c0_81 = arith.constant 0 : index
    %85 = vector.load %arg4[%c1_78, %c3_79, %c0_80, %c0_81] : memref<2x4x8x32xf32, #tpu.memory_space<vmem>>, vector<1x1x8x32xf32>
    %86 = vector.shape_cast %85 : vector<1x1x8x32xf32> to vector<8x32xf32>
    %87 = vector.shape_cast %84 : vector<8x32xf32> to vector<1x1x8x32xf32>
    tpu.vector_store %arg4[%c1_78, %c3_79, %c0_80, %c0_81], %87 {strides = array<i32>} : memref<2x4x8x32xf32, #tpu.memory_space<vmem>>, vector<1x1x8x32xf32>,
    return
  }
}

module attributes {stable_mosaic.version = 11 : i64} {
  func.func @kernel(%arg0: memref<96x64xf32, #tpu.memory_space<vmem>>, %arg1: memref<4x256x16xf32, #tpu.memory_space<vmem>>, %arg2: memref<1x16xf32, #tpu.memory_space<vmem>>, %arg3: memref<1x16xf32, #tpu.memory_space<vmem>>, %arg4: memref<2x4x24x16xf32, #tpu.memory_space<vmem>>, %arg5: memref<80x256xf32, #tpu.memory_space<vmem>>) attributes {dimension_semantics = [], scalar_prefetch = 0 : i64, scratch_operands = 1 : i64, tpu.core_type = #tpu.core_type<tc>} {
    %c0 = arith.constant 0 : index
    %c0_0 = arith.constant 0 : index
    %0 = vector.load %arg0[%c0, %c0_0] : memref<96x64xf32, #tpu.memory_space<vmem>>, vector<80x64xf32>
    %c0_1 = arith.constant 0 : index
    %c0_2 = arith.constant 0 : index
    %1 = vector.load %arg5[%c0_1, %c0_2] : memref<80x256xf32, #tpu.memory_space<vmem>>, vector<80x64xf32>
    tpu.vector_store %arg5[%c0_1, %c0_2], %0 {strides = array<i32>} : memref<80x256xf32, #tpu.memory_space<vmem>>, vector<80x64xf32>,
    %c1 = arith.constant 1 : index
    %c0_3 = arith.constant 0 : index
    %2 = vector.load %arg0[%c1, %c0_3] : memref<96x64xf32, #tpu.memory_space<vmem>>, vector<80x64xf32>
    %c0_4 = arith.constant 0 : index
    %c64 = arith.constant 64 : index
    %3 = vector.load %arg5[%c0_4, %c64] : memref<80x256xf32, #tpu.memory_space<vmem>>, vector<80x64xf32>
    tpu.vector_store %arg5[%c0_4, %c64], %2 {strides = array<i32>} : memref<80x256xf32, #tpu.memory_space<vmem>>, vector<80x64xf32>,
    %c6 = arith.constant 6 : index
    %c0_5 = arith.constant 0 : index
    %4 = vector.load %arg0[%c6, %c0_5] : memref<96x64xf32, #tpu.memory_space<vmem>>, vector<80x64xf32>
    %c0_6 = arith.constant 0 : index
    %c128 = arith.constant 128 : index
    %5 = vector.load %arg5[%c0_6, %c128] : memref<80x256xf32, #tpu.memory_space<vmem>>, vector<80x64xf32>
    tpu.vector_store %arg5[%c0_6, %c128], %4 {strides = array<i32>} : memref<80x256xf32, #tpu.memory_space<vmem>>, vector<80x64xf32>,
    %c7 = arith.constant 7 : index
    %c0_7 = arith.constant 0 : index
    %6 = vector.load %arg0[%c7, %c0_7] : memref<96x64xf32, #tpu.memory_space<vmem>>, vector<80x64xf32>
    %c0_8 = arith.constant 0 : index
    %c192 = arith.constant 192 : index
    %7 = vector.load %arg5[%c0_8, %c192] : memref<80x256xf32, #tpu.memory_space<vmem>>, vector<80x64xf32>
    tpu.vector_store %arg5[%c0_8, %c192], %6 {strides = array<i32>} : memref<80x256xf32, #tpu.memory_space<vmem>>, vector<80x64xf32>,
    %c0_9 = arith.constant 0 : index
    %c0_10 = arith.constant 0 : index
    %8 = vector.load %arg5[%c0_9, %c0_10] : memref<80x256xf32, #tpu.memory_space<vmem>>, vector<72x256xf32>
    %c0_11 = arith.constant 0 : index
    %c0_12 = arith.constant 0 : index
    %c0_13 = arith.constant 0 : index
    %9 = vector.load %arg1[%c0_11, %c0_12, %c0_13] : memref<4x256x16xf32, #tpu.memory_space<vmem>>, vector<1x256x16xf32>
    %10 = vector.shape_cast %9 : vector<1x256x16xf32> to vector<256x16xf32>
    %cst = arith.constant dense<0.000000e+00> : vector<72x16xf32>
    %11 = tpu.matmul %8, %10, %cst {dimension_numbers = #tpu.dot_dimension_numbers<[1], [0], [0], [1], [0, 0, 1, 1], [], []>} : vector<72x256xf32>, vector<256x16xf32>, vector<72x16xf32> -> vector<72x16xf32>
    %c0_14 = arith.constant 0 : index
    %c0_15 = arith.constant 0 : index
    %12 = vector.load %arg2[%c0_14, %c0_15] : memref<1x16xf32, #tpu.memory_space<vmem>>, vector<1x16xf32>
    %13 = vector.broadcast %12 : vector<1x16xf32> to vector<72x16xf32>
    %14 = arith.mulf %11, %13 : vector<72x16xf32>
    %c0_16 = arith.constant 0 : index
    %c0_17 = arith.constant 0 : index
    %15 = vector.load %arg3[%c0_16, %c0_17] : memref<1x16xf32, #tpu.memory_space<vmem>>, vector<1x16xf32>
    %16 = vector.broadcast %15 : vector<1x16xf32> to vector<72x16xf32>
    %17 = arith.addf %14, %16 : vector<72x16xf32>
    %cst_18 = arith.constant 0.000000e+00 : f32
    %18 = vector.broadcast %cst_18 : f32 to vector<72x16xf32>
    %19 = arith.maximumf %17, %18 : vector<72x16xf32>
    %20 = vector.extract_strided_slice %19 {offsets = [0, 0], sizes = [24, 16], strides = [1, 1]} : vector<72x16xf32> to vector<24x16xf32>
    %c0_19 = arith.constant 0 : index
    %c0_20 = arith.constant 0 : index
    %c0_21 = arith.constant 0 : index
    %c0_22 = arith.constant 0 : index
    %21 = vector.load %arg4[%c0_19, %c0_20, %c0_21, %c0_22] : memref<2x4x24x16xf32, #tpu.memory_space<vmem>>, vector<1x1x24x16xf32>
    %22 = vector.shape_cast %21 : vector<1x1x24x16xf32> to vector<24x16xf32>
    %23 = vector.shape_cast %20 : vector<24x16xf32> to vector<1x1x24x16xf32>
    tpu.vector_store %arg4[%c0_19, %c0_20, %c0_21, %c0_22], %23 {strides = array<i32>} : memref<2x4x24x16xf32, #tpu.memory_space<vmem>>, vector<1x1x24x16xf32>,
    %24 = vector.extract_strided_slice %19 {offsets = [48, 0], sizes = [24, 16], strides = [1, 1]} : vector<72x16xf32> to vector<24x16xf32>
    %c1_23 = arith.constant 1 : index
    %c0_24 = arith.constant 0 : index
    %c0_25 = arith.constant 0 : index
    %c0_26 = arith.constant 0 : index
    %25 = vector.load %arg4[%c1_23, %c0_24, %c0_25, %c0_26] : memref<2x4x24x16xf32, #tpu.memory_space<vmem>>, vector<1x1x24x16xf32>
    %26 = vector.shape_cast %25 : vector<1x1x24x16xf32> to vector<24x16xf32>
    %27 = vector.shape_cast %24 : vector<24x16xf32> to vector<1x1x24x16xf32>
    tpu.vector_store %arg4[%c1_23, %c0_24, %c0_25, %c0_26], %27 {strides = array<i32>} : memref<2x4x24x16xf32, #tpu.memory_space<vmem>>, vector<1x1x24x16xf32>,
    %c1_27 = arith.constant 1 : index
    %c0_28 = arith.constant 0 : index
    %28 = vector.load %arg5[%c1_27, %c0_28] : memref<80x256xf32, #tpu.memory_space<vmem>>, vector<72x256xf32>
    %c1_29 = arith.constant 1 : index
    %c0_30 = arith.constant 0 : index
    %c0_31 = arith.constant 0 : index
    %29 = vector.load %arg1[%c1_29, %c0_30, %c0_31] : memref<4x256x16xf32, #tpu.memory_space<vmem>>, vector<1x256x16xf32>
    %30 = vector.shape_cast %29 : vector<1x256x16xf32> to vector<256x16xf32>
    %cst_32 = arith.constant dense<0.000000e+00> : vector<72x16xf32>
    %31 = tpu.matmul %28, %30, %cst_32 {dimension_numbers = #tpu.dot_dimension_numbers<[1], [0], [0], [1], [0, 0, 1, 1], [], []>} : vector<72x256xf32>, vector<256x16xf32>, vector<72x16xf32> -> vector<72x16xf32>
    %c0_33 = arith.constant 0 : index
    %c0_34 = arith.constant 0 : index
    %32 = vector.load %arg2[%c0_33, %c0_34] : memref<1x16xf32, #tpu.memory_space<vmem>>, vector<1x16xf32>
    %33 = vector.broadcast %32 : vector<1x16xf32> to vector<72x16xf32>
    %34 = arith.mulf %31, %33 : vector<72x16xf32>
    %c0_35 = arith.constant 0 : index
    %c0_36 = arith.constant 0 : index
    %35 = vector.load %arg3[%c0_35, %c0_36] : memref<1x16xf32, #tpu.memory_space<vmem>>, vector<1x16xf32>
    %36 = vector.broadcast %35 : vector<1x16xf32> to vector<72x16xf32>
    %37 = arith.addf %34, %36 : vector<72x16xf32>
    %cst_37 = arith.constant 0.000000e+00 : f32
    %38 = vector.broadcast %cst_37 : f32 to vector<72x16xf32>
    %39 = arith.maximumf %37, %38 : vector<72x16xf32>
    %40 = vector.extract_strided_slice %39 {offsets = [0, 0], sizes = [24, 16], strides = [1, 1]} : vector<72x16xf32> to vector<24x16xf32>
    %c0_38 = arith.constant 0 : index
    %c1_39 = arith.constant 1 : index
    %c0_40 = arith.constant 0 : index
    %c0_41 = arith.constant 0 : index
    %41 = vector.load %arg4[%c0_38, %c1_39, %c0_40, %c0_41] : memref<2x4x24x16xf32, #tpu.memory_space<vmem>>, vector<1x1x24x16xf32>
    %42 = vector.shape_cast %41 : vector<1x1x24x16xf32> to vector<24x16xf32>
    %43 = vector.shape_cast %40 : vector<24x16xf32> to vector<1x1x24x16xf32>
    tpu.vector_store %arg4[%c0_38, %c1_39, %c0_40, %c0_41], %43 {strides = array<i32>} : memref<2x4x24x16xf32, #tpu.memory_space<vmem>>, vector<1x1x24x16xf32>,
    %44 = vector.extract_strided_slice %39 {offsets = [48, 0], sizes = [24, 16], strides = [1, 1]} : vector<72x16xf32> to vector<24x16xf32>
    %c1_42 = arith.constant 1 : index
    %c1_43 = arith.constant 1 : index
    %c0_44 = arith.constant 0 : index
    %c0_45 = arith.constant 0 : index
    %45 = vector.load %arg4[%c1_42, %c1_43, %c0_44, %c0_45] : memref<2x4x24x16xf32, #tpu.memory_space<vmem>>, vector<1x1x24x16xf32>
    %46 = vector.shape_cast %45 : vector<1x1x24x16xf32> to vector<24x16xf32>
    %47 = vector.shape_cast %44 : vector<24x16xf32> to vector<1x1x24x16xf32>
    tpu.vector_store %arg4[%c1_42, %c1_43, %c0_44, %c0_45], %47 {strides = array<i32>} : memref<2x4x24x16xf32, #tpu.memory_space<vmem>>, vector<1x1x24x16xf32>,
    %c6_46 = arith.constant 6 : index
    %c0_47 = arith.constant 0 : index
    %48 = vector.load %arg5[%c6_46, %c0_47] : memref<80x256xf32, #tpu.memory_space<vmem>>, vector<72x256xf32>
    %c2 = arith.constant 2 : index
    %c0_48 = arith.constant 0 : index
    %c0_49 = arith.constant 0 : index
    %49 = vector.load %arg1[%c2, %c0_48, %c0_49] : memref<4x256x16xf32, #tpu.memory_space<vmem>>, vector<1x256x16xf32>
    %50 = vector.shape_cast %49 : vector<1x256x16xf32> to vector<256x16xf32>
    %cst_50 = arith.constant dense<0.000000e+00> : vector<72x16xf32>
    %51 = tpu.matmul %48, %50, %cst_50 {dimension_numbers = #tpu.dot_dimension_numbers<[1], [0], [0], [1], [0, 0, 1, 1], [], []>} : vector<72x256xf32>, vector<256x16xf32>, vector<72x16xf32> -> vector<72x16xf32>
    %c0_51 = arith.constant 0 : index
    %c0_52 = arith.constant 0 : index
    %52 = vector.load %arg2[%c0_51, %c0_52] : memref<1x16xf32, #tpu.memory_space<vmem>>, vector<1x16xf32>
    %53 = vector.broadcast %52 : vector<1x16xf32> to vector<72x16xf32>
    %54 = arith.mulf %51, %53 : vector<72x16xf32>
    %c0_53 = arith.constant 0 : index
    %c0_54 = arith.constant 0 : index
    %55 = vector.load %arg3[%c0_53, %c0_54] : memref<1x16xf32, #tpu.memory_space<vmem>>, vector<1x16xf32>
    %56 = vector.broadcast %55 : vector<1x16xf32> to vector<72x16xf32>
    %57 = arith.addf %54, %56 : vector<72x16xf32>
    %cst_55 = arith.constant 0.000000e+00 : f32
    %58 = vector.broadcast %cst_55 : f32 to vector<72x16xf32>
    %59 = arith.maximumf %57, %58 : vector<72x16xf32>
    %60 = vector.extract_strided_slice %59 {offsets = [0, 0], sizes = [24, 16], strides = [1, 1]} : vector<72x16xf32> to vector<24x16xf32>
    %c0_56 = arith.constant 0 : index
    %c2_57 = arith.constant 2 : index
    %c0_58 = arith.constant 0 : index
    %c0_59 = arith.constant 0 : index
    %61 = vector.load %arg4[%c0_56, %c2_57, %c0_58, %c0_59] : memref<2x4x24x16xf32, #tpu.memory_space<vmem>>, vector<1x1x24x16xf32>
    %62 = vector.shape_cast %61 : vector<1x1x24x16xf32> to vector<24x16xf32>
    %63 = vector.shape_cast %60 : vector<24x16xf32> to vector<1x1x24x16xf32>
    tpu.vector_store %arg4[%c0_56, %c2_57, %c0_58, %c0_59], %63 {strides = array<i32>} : memref<2x4x24x16xf32, #tpu.memory_space<vmem>>, vector<1x1x24x16xf32>,
    %64 = vector.extract_strided_slice %59 {offsets = [48, 0], sizes = [24, 16], strides = [1, 1]} : vector<72x16xf32> to vector<24x16xf32>
    %c1_60 = arith.constant 1 : index
    %c2_61 = arith.constant 2 : index
    %c0_62 = arith.constant 0 : index
    %c0_63 = arith.constant 0 : index
    %65 = vector.load %arg4[%c1_60, %c2_61, %c0_62, %c0_63] : memref<2x4x24x16xf32, #tpu.memory_space<vmem>>, vector<1x1x24x16xf32>
    %66 = vector.shape_cast %65 : vector<1x1x24x16xf32> to vector<24x16xf32>
    %67 = vector.shape_cast %64 : vector<24x16xf32> to vector<1x1x24x16xf32>
    tpu.vector_store %arg4[%c1_60, %c2_61, %c0_62, %c0_63], %67 {strides = array<i32>} : memref<2x4x24x16xf32, #tpu.memory_space<vmem>>, vector<1x1x24x16xf32>,
    %c7_64 = arith.constant 7 : index
    %c0_65 = arith.constant 0 : index
    %68 = vector.load %arg5[%c7_64, %c0_65] : memref<80x256xf32, #tpu.memory_space<vmem>>, vector<72x256xf32>
    %c3 = arith.constant 3 : index
    %c0_66 = arith.constant 0 : index
    %c0_67 = arith.constant 0 : index
    %69 = vector.load %arg1[%c3, %c0_66, %c0_67] : memref<4x256x16xf32, #tpu.memory_space<vmem>>, vector<1x256x16xf32>
    %70 = vector.shape_cast %69 : vector<1x256x16xf32> to vector<256x16xf32>
    %cst_68 = arith.constant dense<0.000000e+00> : vector<72x16xf32>
    %71 = tpu.matmul %68, %70, %cst_68 {dimension_numbers = #tpu.dot_dimension_numbers<[1], [0], [0], [1], [0, 0, 1, 1], [], []>} : vector<72x256xf32>, vector<256x16xf32>, vector<72x16xf32> -> vector<72x16xf32>
    %c0_69 = arith.constant 0 : index
    %c0_70 = arith.constant 0 : index
    %72 = vector.load %arg2[%c0_69, %c0_70] : memref<1x16xf32, #tpu.memory_space<vmem>>, vector<1x16xf32>
    %73 = vector.broadcast %72 : vector<1x16xf32> to vector<72x16xf32>
    %74 = arith.mulf %71, %73 : vector<72x16xf32>
    %c0_71 = arith.constant 0 : index
    %c0_72 = arith.constant 0 : index
    %75 = vector.load %arg3[%c0_71, %c0_72] : memref<1x16xf32, #tpu.memory_space<vmem>>, vector<1x16xf32>
    %76 = vector.broadcast %75 : vector<1x16xf32> to vector<72x16xf32>
    %77 = arith.addf %74, %76 : vector<72x16xf32>
    %cst_73 = arith.constant 0.000000e+00 : f32
    %78 = vector.broadcast %cst_73 : f32 to vector<72x16xf32>
    %79 = arith.maximumf %77, %78 : vector<72x16xf32>
    %80 = vector.extract_strided_slice %79 {offsets = [0, 0], sizes = [24, 16], strides = [1, 1]} : vector<72x16xf32> to vector<24x16xf32>
    %c0_74 = arith.constant 0 : index
    %c3_75 = arith.constant 3 : index
    %c0_76 = arith.constant 0 : index
    %c0_77 = arith.constant 0 : index
    %81 = vector.load %arg4[%c0_74, %c3_75, %c0_76, %c0_77] : memref<2x4x24x16xf32, #tpu.memory_space<vmem>>, vector<1x1x24x16xf32>
    %82 = vector.shape_cast %81 : vector<1x1x24x16xf32> to vector<24x16xf32>
    %83 = vector.shape_cast %80 : vector<24x16xf32> to vector<1x1x24x16xf32>
    tpu.vector_store %arg4[%c0_74, %c3_75, %c0_76, %c0_77], %83 {strides = array<i32>} : memref<2x4x24x16xf32, #tpu.memory_space<vmem>>, vector<1x1x24x16xf32>,
    %84 = vector.extract_strided_slice %79 {offsets = [48, 0], sizes = [24, 16], strides = [1, 1]} : vector<72x16xf32> to vector<24x16xf32>
    %c1_78 = arith.constant 1 : index
    %c3_79 = arith.constant 3 : index
    %c0_80 = arith.constant 0 : index
    %c0_81 = arith.constant 0 : index
    %85 = vector.load %arg4[%c1_78, %c3_79, %c0_80, %c0_81] : memref<2x4x24x16xf32, #tpu.memory_space<vmem>>, vector<1x1x24x16xf32>
    %86 = vector.shape_cast %85 : vector<1x1x24x16xf32> to vector<24x16xf32>
    %87 = vector.shape_cast %84 : vector<24x16xf32> to vector<1x1x24x16xf32>
    tpu.vector_store %arg4[%c1_78, %c3_79, %c0_80, %c0_81], %87 {strides = array<i32>} : memref<2x4x24x16xf32, #tpu.memory_space<vmem>>, vector<1x1x24x16xf32>,
    return
  }
}

module attributes {stable_mosaic.version = 11 : i64} {
  func.func @kernel(%arg0: memref<224x32xf32, #tpu.memory_space<vmem>>, %arg1: memref<4x128x8xf32, #tpu.memory_space<vmem>>, %arg2: memref<1x8xf32, #tpu.memory_space<vmem>>, %arg3: memref<1x8xf32, #tpu.memory_space<vmem>>, %arg4: memref<2x4x80x8xf32, #tpu.memory_space<vmem>>, %arg5: memref<204x128xf32, #tpu.memory_space<vmem>>) attributes {dimension_semantics = [], scalar_prefetch = 0 : i64, scratch_operands = 1 : i64, tpu.core_type = #tpu.core_type<tc>} {
    %c0 = arith.constant 0 : index
    %c0_0 = arith.constant 0 : index
    %0 = vector.load %arg0[%c0, %c0_0] : memref<224x32xf32, #tpu.memory_space<vmem>>, vector<204x32xf32>
    %c0_1 = arith.constant 0 : index
    %c0_2 = arith.constant 0 : index
    %1 = vector.load %arg5[%c0_1, %c0_2] : memref<204x128xf32, #tpu.memory_space<vmem>>, vector<204x32xf32>
    tpu.vector_store %arg5[%c0_1, %c0_2], %0 {strides = array<i32>} : memref<204x128xf32, #tpu.memory_space<vmem>>, vector<204x32xf32>,
    %c1 = arith.constant 1 : index
    %c0_3 = arith.constant 0 : index
    %2 = vector.load %arg0[%c1, %c0_3] : memref<224x32xf32, #tpu.memory_space<vmem>>, vector<204x32xf32>
    %c0_4 = arith.constant 0 : index
    %c32 = arith.constant 32 : index
    %3 = vector.load %arg5[%c0_4, %c32] : memref<204x128xf32, #tpu.memory_space<vmem>>, vector<204x32xf32>
    tpu.vector_store %arg5[%c0_4, %c32], %2 {strides = array<i32>} : memref<204x128xf32, #tpu.memory_space<vmem>>, vector<204x32xf32>,
    %c10 = arith.constant 10 : index
    %c0_5 = arith.constant 0 : index
    %4 = vector.load %arg0[%c10, %c0_5] : memref<224x32xf32, #tpu.memory_space<vmem>>, vector<204x32xf32>
    %c0_6 = arith.constant 0 : index
    %c64 = arith.constant 64 : index
    %5 = vector.load %arg5[%c0_6, %c64] : memref<204x128xf32, #tpu.memory_space<vmem>>, vector<204x32xf32>
    tpu.vector_store %arg5[%c0_6, %c64], %4 {strides = array<i32>} : memref<204x128xf32, #tpu.memory_space<vmem>>, vector<204x32xf32>,
    %c11 = arith.constant 11 : index
    %c0_7 = arith.constant 0 : index
    %6 = vector.load %arg0[%c11, %c0_7] : memref<224x32xf32, #tpu.memory_space<vmem>>, vector<204x32xf32>
    %c0_8 = arith.constant 0 : index
    %c96 = arith.constant 96 : index
    %7 = vector.load %arg5[%c0_8, %c96] : memref<204x128xf32, #tpu.memory_space<vmem>>, vector<204x32xf32>
    tpu.vector_store %arg5[%c0_8, %c96], %6 {strides = array<i32>} : memref<204x128xf32, #tpu.memory_space<vmem>>, vector<204x32xf32>,
    %c0_9 = arith.constant 0 : index
    %c0_10 = arith.constant 0 : index
    %8 = vector.load %arg5[%c0_9, %c0_10] : memref<204x128xf32, #tpu.memory_space<vmem>>, vector<192x128xf32>
    %c0_11 = arith.constant 0 : index
    %c0_12 = arith.constant 0 : index
    %c0_13 = arith.constant 0 : index
    %9 = vector.load %arg1[%c0_11, %c0_12, %c0_13] : memref<4x128x8xf32, #tpu.memory_space<vmem>>, vector<1x128x8xf32>
    %10 = vector.shape_cast %9 : vector<1x128x8xf32> to vector<128x8xf32>
    %cst = arith.constant dense<0.000000e+00> : vector<192x8xf32>
    %11 = tpu.matmul %8, %10, %cst {dimension_numbers = #tpu.dot_dimension_numbers<[1], [0], [0], [1], [0, 0, 1, 1], [], []>} : vector<192x128xf32>, vector<128x8xf32>, vector<192x8xf32> -> vector<192x8xf32>
    %c0_14 = arith.constant 0 : index
    %c0_15 = arith.constant 0 : index
    %12 = vector.load %arg2[%c0_14, %c0_15] : memref<1x8xf32, #tpu.memory_space<vmem>>, vector<1x8xf32>
    %13 = vector.broadcast %12 : vector<1x8xf32> to vector<192x8xf32>
    %14 = arith.mulf %11, %13 : vector<192x8xf32>
    %c0_16 = arith.constant 0 : index
    %c0_17 = arith.constant 0 : index
    %15 = vector.load %arg3[%c0_16, %c0_17] : memref<1x8xf32, #tpu.memory_space<vmem>>, vector<1x8xf32>
    %16 = vector.broadcast %15 : vector<1x8xf32> to vector<192x8xf32>
    %17 = arith.addf %14, %16 : vector<192x8xf32>
    %cst_18 = arith.constant 0.000000e+00 : f32
    %18 = vector.broadcast %cst_18 : f32 to vector<192x8xf32>
    %19 = arith.maximumf %17, %18 : vector<192x8xf32>
    %20 = vector.extract_strided_slice %19 {offsets = [0, 0], sizes = [80, 8], strides = [1, 1]} : vector<192x8xf32> to vector<80x8xf32>
    %c0_19 = arith.constant 0 : index
    %c0_20 = arith.constant 0 : index
    %c0_21 = arith.constant 0 : index
    %c0_22 = arith.constant 0 : index
    %21 = vector.load %arg4[%c0_19, %c0_20, %c0_21, %c0_22] : memref<2x4x80x8xf32, #tpu.memory_space<vmem>>, vector<1x1x80x8xf32>
    %22 = vector.shape_cast %21 : vector<1x1x80x8xf32> to vector<80x8xf32>
    %23 = vector.shape_cast %20 : vector<80x8xf32> to vector<1x1x80x8xf32>
    tpu.vector_store %arg4[%c0_19, %c0_20, %c0_21, %c0_22], %23 {strides = array<i32>} : memref<2x4x80x8xf32, #tpu.memory_space<vmem>>, vector<1x1x80x8xf32>,
    %24 = vector.extract_strided_slice %19 {offsets = [112, 0], sizes = [80, 8], strides = [1, 1]} : vector<192x8xf32> to vector<80x8xf32>
    %c1_23 = arith.constant 1 : index
    %c0_24 = arith.constant 0 : index
    %c0_25 = arith.constant 0 : index
    %c0_26 = arith.constant 0 : index
    %25 = vector.load %arg4[%c1_23, %c0_24, %c0_25, %c0_26] : memref<2x4x80x8xf32, #tpu.memory_space<vmem>>, vector<1x1x80x8xf32>
    %26 = vector.shape_cast %25 : vector<1x1x80x8xf32> to vector<80x8xf32>
    %27 = vector.shape_cast %24 : vector<80x8xf32> to vector<1x1x80x8xf32>
    tpu.vector_store %arg4[%c1_23, %c0_24, %c0_25, %c0_26], %27 {strides = array<i32>} : memref<2x4x80x8xf32, #tpu.memory_space<vmem>>, vector<1x1x80x8xf32>,
    %c1_27 = arith.constant 1 : index
    %c0_28 = arith.constant 0 : index
    %28 = vector.load %arg5[%c1_27, %c0_28] : memref<204x128xf32, #tpu.memory_space<vmem>>, vector<192x128xf32>
    %c1_29 = arith.constant 1 : index
    %c0_30 = arith.constant 0 : index
    %c0_31 = arith.constant 0 : index
    %29 = vector.load %arg1[%c1_29, %c0_30, %c0_31] : memref<4x128x8xf32, #tpu.memory_space<vmem>>, vector<1x128x8xf32>
    %30 = vector.shape_cast %29 : vector<1x128x8xf32> to vector<128x8xf32>
    %cst_32 = arith.constant dense<0.000000e+00> : vector<192x8xf32>
    %31 = tpu.matmul %28, %30, %cst_32 {dimension_numbers = #tpu.dot_dimension_numbers<[1], [0], [0], [1], [0, 0, 1, 1], [], []>} : vector<192x128xf32>, vector<128x8xf32>, vector<192x8xf32> -> vector<192x8xf32>
    %c0_33 = arith.constant 0 : index
    %c0_34 = arith.constant 0 : index
    %32 = vector.load %arg2[%c0_33, %c0_34] : memref<1x8xf32, #tpu.memory_space<vmem>>, vector<1x8xf32>
    %33 = vector.broadcast %32 : vector<1x8xf32> to vector<192x8xf32>
    %34 = arith.mulf %31, %33 : vector<192x8xf32>
    %c0_35 = arith.constant 0 : index
    %c0_36 = arith.constant 0 : index
    %35 = vector.load %arg3[%c0_35, %c0_36] : memref<1x8xf32, #tpu.memory_space<vmem>>, vector<1x8xf32>
    %36 = vector.broadcast %35 : vector<1x8xf32> to vector<192x8xf32>
    %37 = arith.addf %34, %36 : vector<192x8xf32>
    %cst_37 = arith.constant 0.000000e+00 : f32
    %38 = vector.broadcast %cst_37 : f32 to vector<192x8xf32>
    %39 = arith.maximumf %37, %38 : vector<192x8xf32>
    %40 = vector.extract_strided_slice %39 {offsets = [0, 0], sizes = [80, 8], strides = [1, 1]} : vector<192x8xf32> to vector<80x8xf32>
    %c0_38 = arith.constant 0 : index
    %c1_39 = arith.constant 1 : index
    %c0_40 = arith.constant 0 : index
    %c0_41 = arith.constant 0 : index
    %41 = vector.load %arg4[%c0_38, %c1_39, %c0_40, %c0_41] : memref<2x4x80x8xf32, #tpu.memory_space<vmem>>, vector<1x1x80x8xf32>
    %42 = vector.shape_cast %41 : vector<1x1x80x8xf32> to vector<80x8xf32>
    %43 = vector.shape_cast %40 : vector<80x8xf32> to vector<1x1x80x8xf32>
    tpu.vector_store %arg4[%c0_38, %c1_39, %c0_40, %c0_41], %43 {strides = array<i32>} : memref<2x4x80x8xf32, #tpu.memory_space<vmem>>, vector<1x1x80x8xf32>,
    %44 = vector.extract_strided_slice %39 {offsets = [112, 0], sizes = [80, 8], strides = [1, 1]} : vector<192x8xf32> to vector<80x8xf32>
    %c1_42 = arith.constant 1 : index
    %c1_43 = arith.constant 1 : index
    %c0_44 = arith.constant 0 : index
    %c0_45 = arith.constant 0 : index
    %45 = vector.load %arg4[%c1_42, %c1_43, %c0_44, %c0_45] : memref<2x4x80x8xf32, #tpu.memory_space<vmem>>, vector<1x1x80x8xf32>
    %46 = vector.shape_cast %45 : vector<1x1x80x8xf32> to vector<80x8xf32>
    %47 = vector.shape_cast %44 : vector<80x8xf32> to vector<1x1x80x8xf32>
    tpu.vector_store %arg4[%c1_42, %c1_43, %c0_44, %c0_45], %47 {strides = array<i32>} : memref<2x4x80x8xf32, #tpu.memory_space<vmem>>, vector<1x1x80x8xf32>,
    %c10_46 = arith.constant 10 : index
    %c0_47 = arith.constant 0 : index
    %48 = vector.load %arg5[%c10_46, %c0_47] : memref<204x128xf32, #tpu.memory_space<vmem>>, vector<192x128xf32>
    %c2 = arith.constant 2 : index
    %c0_48 = arith.constant 0 : index
    %c0_49 = arith.constant 0 : index
    %49 = vector.load %arg1[%c2, %c0_48, %c0_49] : memref<4x128x8xf32, #tpu.memory_space<vmem>>, vector<1x128x8xf32>
    %50 = vector.shape_cast %49 : vector<1x128x8xf32> to vector<128x8xf32>
    %cst_50 = arith.constant dense<0.000000e+00> : vector<192x8xf32>
    %51 = tpu.matmul %48, %50, %cst_50 {dimension_numbers = #tpu.dot_dimension_numbers<[1], [0], [0], [1], [0, 0, 1, 1], [], []>} : vector<192x128xf32>, vector<128x8xf32>, vector<192x8xf32> -> vector<192x8xf32>
    %c0_51 = arith.constant 0 : index
    %c0_52 = arith.constant 0 : index
    %52 = vector.load %arg2[%c0_51, %c0_52] : memref<1x8xf32, #tpu.memory_space<vmem>>, vector<1x8xf32>
    %53 = vector.broadcast %52 : vector<1x8xf32> to vector<192x8xf32>
    %54 = arith.mulf %51, %53 : vector<192x8xf32>
    %c0_53 = arith.constant 0 : index
    %c0_54 = arith.constant 0 : index
    %55 = vector.load %arg3[%c0_53, %c0_54] : memref<1x8xf32, #tpu.memory_space<vmem>>, vector<1x8xf32>
    %56 = vector.broadcast %55 : vector<1x8xf32> to vector<192x8xf32>
    %57 = arith.addf %54, %56 : vector<192x8xf32>
    %cst_55 = arith.constant 0.000000e+00 : f32
    %58 = vector.broadcast %cst_55 : f32 to vector<192x8xf32>
    %59 = arith.maximumf %57, %58 : vector<192x8xf32>
    %60 = vector.extract_strided_slice %59 {offsets = [0, 0], sizes = [80, 8], strides = [1, 1]} : vector<192x8xf32> to vector<80x8xf32>
    %c0_56 = arith.constant 0 : index
    %c2_57 = arith.constant 2 : index
    %c0_58 = arith.constant 0 : index
    %c0_59 = arith.constant 0 : index
    %61 = vector.load %arg4[%c0_56, %c2_57, %c0_58, %c0_59] : memref<2x4x80x8xf32, #tpu.memory_space<vmem>>, vector<1x1x80x8xf32>
    %62 = vector.shape_cast %61 : vector<1x1x80x8xf32> to vector<80x8xf32>
    %63 = vector.shape_cast %60 : vector<80x8xf32> to vector<1x1x80x8xf32>
    tpu.vector_store %arg4[%c0_56, %c2_57, %c0_58, %c0_59], %63 {strides = array<i32>} : memref<2x4x80x8xf32, #tpu.memory_space<vmem>>, vector<1x1x80x8xf32>,
    %64 = vector.extract_strided_slice %59 {offsets = [112, 0], sizes = [80, 8], strides = [1, 1]} : vector<192x8xf32> to vector<80x8xf32>
    %c1_60 = arith.constant 1 : index
    %c2_61 = arith.constant 2 : index
    %c0_62 = arith.constant 0 : index
    %c0_63 = arith.constant 0 : index
    %65 = vector.load %arg4[%c1_60, %c2_61, %c0_62, %c0_63] : memref<2x4x80x8xf32, #tpu.memory_space<vmem>>, vector<1x1x80x8xf32>
    %66 = vector.shape_cast %65 : vector<1x1x80x8xf32> to vector<80x8xf32>
    %67 = vector.shape_cast %64 : vector<80x8xf32> to vector<1x1x80x8xf32>
    tpu.vector_store %arg4[%c1_60, %c2_61, %c0_62, %c0_63], %67 {strides = array<i32>} : memref<2x4x80x8xf32, #tpu.memory_space<vmem>>, vector<1x1x80x8xf32>,
    %c11_64 = arith.constant 11 : index
    %c0_65 = arith.constant 0 : index
    %68 = vector.load %arg5[%c11_64, %c0_65] : memref<204x128xf32, #tpu.memory_space<vmem>>, vector<192x128xf32>
    %c3 = arith.constant 3 : index
    %c0_66 = arith.constant 0 : index
    %c0_67 = arith.constant 0 : index
    %69 = vector.load %arg1[%c3, %c0_66, %c0_67] : memref<4x128x8xf32, #tpu.memory_space<vmem>>, vector<1x128x8xf32>
    %70 = vector.shape_cast %69 : vector<1x128x8xf32> to vector<128x8xf32>
    %cst_68 = arith.constant dense<0.000000e+00> : vector<192x8xf32>
    %71 = tpu.matmul %68, %70, %cst_68 {dimension_numbers = #tpu.dot_dimension_numbers<[1], [0], [0], [1], [0, 0, 1, 1], [], []>} : vector<192x128xf32>, vector<128x8xf32>, vector<192x8xf32> -> vector<192x8xf32>
    %c0_69 = arith.constant 0 : index
    %c0_70 = arith.constant 0 : index
    %72 = vector.load %arg2[%c0_69, %c0_70] : memref<1x8xf32, #tpu.memory_space<vmem>>, vector<1x8xf32>
    %73 = vector.broadcast %72 : vector<1x8xf32> to vector<192x8xf32>
    %74 = arith.mulf %71, %73 : vector<192x8xf32>
    %c0_71 = arith.constant 0 : index
    %c0_72 = arith.constant 0 : index
    %75 = vector.load %arg3[%c0_71, %c0_72] : memref<1x8xf32, #tpu.memory_space<vmem>>, vector<1x8xf32>
    %76 = vector.broadcast %75 : vector<1x8xf32> to vector<192x8xf32>
    %77 = arith.addf %74, %76 : vector<192x8xf32>
    %cst_73 = arith.constant 0.000000e+00 : f32
    %78 = vector.broadcast %cst_73 : f32 to vector<192x8xf32>
    %79 = arith.maximumf %77, %78 : vector<192x8xf32>
    %80 = vector.extract_strided_slice %79 {offsets = [0, 0], sizes = [80, 8], strides = [1, 1]} : vector<192x8xf32> to vector<80x8xf32>
    %c0_74 = arith.constant 0 : index
    %c3_75 = arith.constant 3 : index
    %c0_76 = arith.constant 0 : index
    %c0_77 = arith.constant 0 : index
    %81 = vector.load %arg4[%c0_74, %c3_75, %c0_76, %c0_77] : memref<2x4x80x8xf32, #tpu.memory_space<vmem>>, vector<1x1x80x8xf32>
    %82 = vector.shape_cast %81 : vector<1x1x80x8xf32> to vector<80x8xf32>
    %83 = vector.shape_cast %80 : vector<80x8xf32> to vector<1x1x80x8xf32>
    tpu.vector_store %arg4[%c0_74, %c3_75, %c0_76, %c0_77], %83 {strides = array<i32>} : memref<2x4x80x8xf32, #tpu.memory_space<vmem>>, vector<1x1x80x8xf32>,
    %84 = vector.extract_strided_slice %79 {offsets = [112, 0], sizes = [80, 8], strides = [1, 1]} : vector<192x8xf32> to vector<80x8xf32>
    %c1_78 = arith.constant 1 : index
    %c3_79 = arith.constant 3 : index
    %c0_80 = arith.constant 0 : index
    %c0_81 = arith.constant 0 : index
    %85 = vector.load %arg4[%c1_78, %c3_79, %c0_80, %c0_81] : memref<2x4x80x8xf32, #tpu.memory_space<vmem>>, vector<1x1x80x8xf32>
    %86 = vector.shape_cast %85 : vector<1x1x80x8xf32> to vector<80x8xf32>
    %87 = vector.shape_cast %84 : vector<80x8xf32> to vector<1x1x80x8xf32>
    tpu.vector_store %arg4[%c1_78, %c3_79, %c0_80, %c0_81], %87 {strides = array<i32>} : memref<2x4x80x8xf32, #tpu.memory_space<vmem>>, vector<1x1x80x8xf32>,
    return
  }
}

</mosaic_0001>

<llo_original>
// kernel: hourglass_forward.9
$region0: #{hourglass_forward.9}
  #allocation0 [shape = 'u32[]', space=smem, size = 0x4, offset = 0x4, fixed_abs, tag = 'smem constant byte address 0x4 - core index']
  #allocation1 [shape = 'u32[144,128]{1,0:T(1,128)}', space=vmem, size = 0x12000, scoped, tag = 'internal scratch']
  #allocation2 [shape = 'f32[38,128]{1,0:T(8,128)}', space=vmem, size = 0x5000, scoped, tag = 'scratch operand']
  %s0 = inlined_call_operand.vmem [shape: f32[48,32], index: 0, kind: input, shape index: {}]
  %s1 = inlined_call_operand.vmem [shape: f32[4,128,32], index: 1, kind: input, shape index: {}]
  %s2 = inlined_call_operand.vmem [shape: f32[1,32], index: 2, kind: input, shape index: {}]
  %s3 = inlined_call_operand.vmem [shape: f32[1,32], index: 3, kind: input, shape index: {}]
  %s4 = inlined_call_operand.vmem [shape: f32[2,4,8,32], index: 4, kind: output, shape index: {}]
  %s5 = sld [smem:[#allocation0]]
  $region26: #{hourglass_forward.9} parent=0
    _
  %s7 = ssub.s32 1, %s5
  %s8 = scalar_select 0, %s7, %s5
  // Predicated region
  $region2: #{hourglass_forward.9} parent=0 // pred_check
    _
  $region3: #{hourglass_forward.9} parent=0 // pred_check_branch
    %10 = sbr.rel (0) target = $region5
  $region4: #{hourglass_forward.9} parent=0 // pred_region
    _
  $region5: #{hourglass_forward.9} parent=0 // pred_fallthru
    _
  // Predicated region
  $region6: #{hourglass_forward.9} parent=0 // pred_check
    _
  $region7: #{hourglass_forward.9} parent=0 // pred_check_branch
    %12 = sbr.rel (0) target = $region9
  $region8: #{hourglass_forward.9} parent=0 // pred_region
    _
  $region9: #{hourglass_forward.9} parent=0 // pred_fallthru
    _
  // Predicated region
  $region10: #{hourglass_forward.9} parent=0 // pred_check
    _
  $region11: #{hourglass_forward.9} parent=0 // pred_check_branch
    %14 = sbr.rel (0) target = $region13
  $region12: #{hourglass_forward.9} parent=0 // pred_region
    _
  $region13: #{hourglass_forward.9} parent=0 // pred_fallthru
    _
  // Predicated region
  $region14: #{hourglass_forward.9} parent=0 // pred_check
    _
  $region15: #{hourglass_forward.9} parent=0 // pred_check_branch
    %16 = sbr.rel (0) target = $region17
  $region16: #{hourglass_forward.9} parent=0 // pred_region
    _
  $region17: #{hourglass_forward.9} parent=0 // pred_fallthru
    _
  %v17 = vld [vmem:[%s0] sm:$0xff]
  %v18 = vld [vmem:[%s0 + $0x8] sm:$0xff]
  %v19 = vld [vmem:[%s0 + $0x10] sm:$0xff]
  %v20 = vld [vmem:[%s0 + $0x18] sm:$0xff]
  %v21 = vld [vmem:[%s0 + $0x20] sm:$0x3f]
  %vm22 = vcmask 261120
  %23 = vst.msk [vmem:[#allocation2] sm:$0xff] %vm22, %v17
  %24 = vst.msk [vmem:[#allocation2 + $0x8] sm:$0xff] %vm22, %v18
  %25 = vst.msk [vmem:[#allocation2 + $0x10] sm:$0xff] %vm22, %v19
  %26 = vst.msk [vmem:[#allocation2 + $0x18] sm:$0xff] %vm22, %v20
  %vm27 = vcmask 259072
  %28 = vst.msk [vmem:[#allocation2 + $0x20] sm:$0x3f] %vm27, %v21
  %v29 = vld [vmem:[%s0 + $0x1] sm:$0xff]
  %v30 = vld [vmem:[%s0 + $0x9] sm:$0xff]
  %v31 = vld [vmem:[%s0 + $0x11] sm:$0xff]
  %v32 = vld [vmem:[%s0 + $0x19] sm:$0xff]
  %v33 = vld [vmem:[%s0 + $0x21] sm:$0x3f]
  %39 = vrot.lane.b32.xlu0 %v29, 32
  %v40 = vpop.permute.xlu0 %39
  %41 = vrot.lane.b32.xlu0 %v30, 32
  %v42 = vpop.permute.xlu0 %41
  %43 = vrot.lane.b32.xlu0 %v31, 32
  %v44 = vpop.permute.xlu0 %43
  %45 = vrot.lane.b32.xlu0 %v32, 32
  %v46 = vpop.permute.xlu0 %45
  %47 = vrot.lane.b32.xlu0 %v33, 32
  %v48 = vpop.permute.xlu0 %47
  %vm54 = vcmask 523520
  %55 = vst.msk [vmem:[#allocation2] sm:$0xff] %vm54, %v40
  %56 = vst.msk [vmem:[#allocation2 + $0x8] sm:$0xff] %vm54, %v42
  %57 = vst.msk [vmem:[#allocation2 + $0x10] sm:$0xff] %vm54, %v44
  %58 = vst.msk [vmem:[#allocation2 + $0x18] sm:$0xff] %vm54, %v46
  %vm59 = vcmask 521472
  %60 = vst.msk [vmem:[#allocation2 + $0x20] sm:$0x3f] %vm59, %v48
  %v61 = vld [vmem:[%s0 + $0x4] sm:$0xff]
  %v62 = vld [vmem:[%s0 + $0xc] sm:$0xff]
  %v63 = vld [vmem:[%s0 + $0x14] sm:$0xff]
  %v64 = vld [vmem:[%s0 + $0x1c] sm:$0xff]
  %v65 = vld [vmem:[%s0 + $0x24] sm:$0x3f]
  %71 = vrot.lane.b32.xlu0 %v61, 64
  %v72 = vpop.permute.xlu0 %71
  %73 = vrot.lane.b32.xlu0 %v62, 64
  %v74 = vpop.permute.xlu0 %73
  %75 = vrot.lane.b32.xlu0 %v63, 64
  %v76 = vpop.permute.xlu0 %75
  %77 = vrot.lane.b32.xlu0 %v64, 64
  %v78 = vpop.permute.xlu0 %77
  %79 = vrot.lane.b32.xlu0 %v65, 64
  %v80 = vpop.permute.xlu0 %79
  %vm86 = vcmask 785920
  %87 = vst.msk [vmem:[#allocation2] sm:$0xff] %vm86, %v72
  %88 = vst.msk [vmem:[#allocation2 + $0x8] sm:$0xff] %vm86, %v74
  %89 = vst.msk [vmem:[#allocation2 + $0x10] sm:$0xff] %vm86, %v76
  %90 = vst.msk [vmem:[#allocation2 + $0x18] sm:$0xff] %vm86, %v78
  %vm91 = vcmask 783872
  %92 = vst.msk [vmem:[#allocation2 + $0x20] sm:$0x3f] %vm91, %v80
  %v93 = vld [vmem:[%s0 + $0x5] sm:$0xff]
  %v94 = vld [vmem:[%s0 + $0xd] sm:$0xff]
  %v95 = vld [vmem:[%s0 + $0x15] sm:$0xff]
  %v96 = vld [vmem:[%s0 + $0x1d] sm:$0xff]
  %v97 = vld [vmem:[%s0 + $0x25] sm:$0x3f]
  %103 = vrot.lane.b32.xlu0 %v93, 96
  %v104 = vpop.permute.xlu0 %103
  %105 = vrot.lane.b32.xlu0 %v94, 96
  %v106 = vpop.permute.xlu0 %105
  %107 = vrot.lane.b32.xlu0 %v95, 96
  %v108 = vpop.permute.xlu0 %107
  %109 = vrot.lane.b32.xlu0 %v96, 96
  %v110 = vpop.permute.xlu0 %109
  %111 = vrot.lane.b32.xlu0 %v97, 96
  %v112 = vpop.permute.xlu0 %111
  %vm118 = vcmask 1048320
  %119 = vst.msk [vmem:[#allocation2] sm:$0xff] %vm118, %v104
  %120 = vst.msk [vmem:[#allocation2 + $0x8] sm:$0xff] %vm118, %v106
  %121 = vst.msk [vmem:[#allocation2 + $0x10] sm:$0xff] %vm118, %v108
  %122 = vst.msk [vmem:[#allocation2 + $0x18] sm:$0xff] %vm118, %v110
  %vm123 = vcmask 1046272
  %124 = vst.msk [vmem:[#allocation2 + $0x20] sm:$0x3f] %vm123, %v112
  %v125 = vld [vmem:[#allocation2] sm:$0xff]
  %v126 = vld [vmem:[#allocation2 + $0x8] sm:$0xff]
  %v127 = vld [vmem:[#allocation2 + $0x10] sm:$0xff]
  %v128 = vld [vmem:[#allocation2 + $0x18] sm:$0xff]
  %v129 = vld [vmem:[%s1] sm:$0xff]
  %v130 = vld [vmem:[%s1 + $0x8] sm:$0xff]
  %v131 = vld [vmem:[%s1 + $0x10] sm:$0xff]
  %v132 = vld [vmem:[%s1 + $0x18] sm:$0xff]
  %v133 = vld [vmem:[%s1 + $0x20] sm:$0xff]
  %v134 = vld [vmem:[%s1 + $0x28] sm:$0xff]
  %v135 = vld [vmem:[%s1 + $0x30] sm:$0xff]
  %v136 = vld [vmem:[%s1 + $0x38] sm:$0xff]
  %v137 = vld [vmem:[%s1 + $0x40] sm:$0xff]
  %v138 = vld [vmem:[%s1 + $0x48] sm:$0xff]
  %v139 = vld [vmem:[%s1 + $0x50] sm:$0xff]
  %v140 = vld [vmem:[%s1 + $0x58] sm:$0xff]
  %v141 = vld [vmem:[%s1 + $0x60] sm:$0xff]
  %v142 = vld [vmem:[%s1 + $0x68] sm:$0xff]
  %v143 = vld [vmem:[%s1 + $0x70] sm:$0xff]
  %v144 = vld [vmem:[%s1 + $0x78] sm:$0xff]
  %145 = vmatprep.subr.mxu0 0.0
  %146 = vmatpush1.msra.mxu0 %v129
  %147 = vmatprep.subr.mxu0 0.0
  %148 = vmatpush1.msra.mxu0 %v130
  %149 = vmatprep.subr.mxu0 0.0
  %150 = vmatpush1.msra.mxu0 %v131
  %151 = vmatprep.subr.mxu0 0.0
  %152 = vmatpush1.msra.mxu0 %v132
  %153 = vmatprep.subr.mxu0 0.0
  %154 = vmatpush1.msra.mxu0 %v133
  %155 = vmatprep.subr.mxu0 0.0
  %156 = vmatpush1.msra.mxu0 %v134
  %157 = vmatprep.subr.mxu0 0.0
  %158 = vmatpush1.msra.mxu0 %v135
  %159 = vmatprep.subr.mxu0 0.0
  %160 = vmatpush1.msra.mxu0 %v136
  %161 = vmatprep.subr.mxu0 0.0
  %162 = vmatpush1.msra.mxu0 %v137
  %163 = vmatprep.subr.mxu0 0.0
  %164 = vmatpush1.msra.mxu0 %v138
  %165 = vmatprep.subr.mxu0 0.0
  %166 = vmatpush1.msra.mxu0 %v139
  %167 = vmatprep.subr.mxu0 0.0
  %168 = vmatpush1.msra.mxu0 %v140
  %169 = vmatprep.subr.mxu0 0.0
  %170 = vmatpush1.msra.mxu0 %v141
  %171 = vmatprep.subr.mxu0 0.0
  %172 = vmatpush1.msra.mxu0 %v142
  %173 = vmatprep.subr.mxu0 0.0
  %174 = vmatpush1.msra.mxu0 %v143
  %175 = vmatprep.subr.mxu0 0.0
  %176 = vmatpush1.msra.mxu0 %v144
  %177 = vmatprep.subr.mxu0 0.0
  %178 = vmatpush1.msra.mxu0 0.0
  %179 = vmatprep.subr.mxu0 0.0
  %180 = vmatpush1.msra.mxu0 0.0
  %181 = vmatprep.subr.mxu0 0.0
  %182 = vmatpush1.msra.mxu0 0.0
  %183 = vmatprep.subr.mxu0 0.0
  %184 = vmatpush1.msra.mxu0 0.0
  %185 = vmatprep.subr.mxu0 0.0
  %186 = vmatpush1.msra.mxu0 0.0
  %187 = vmatprep.subr.mxu0 0.0
  %188 = vmatpush1.msra.mxu0 0.0
  %189 = vmatprep.subr.mxu0 0.0
  %190 = vmatpush1.msra.mxu0 0.0
  %191 = vmatprep.subr.mxu0 0.0
  %192 = vmatpush1.msra.mxu0 0.0
  %193 = vmatprep.subr.mxu0 0.0
  %194 = vmatpush1.msra.mxu0 0.0
  %195 = vmatprep.subr.mxu0 0.0
  %196 = vmatpush1.msra.mxu0 0.0
  %197 = vmatprep.subr.mxu0 0.0
  %198 = vmatpush1.msra.mxu0 0.0
  %199 = vmatprep.subr.mxu0 0.0
  %200 = vmatpush1.msra.mxu0 0.0
  %201 = vmatprep.subr.mxu0 0.0
  %202 = vmatpush1.msra.mxu0 0.0
  %203 = vmatprep.subr.mxu0 0.0
  %204 = vmatpush1.msra.mxu0 0.0
  %205 = vmatprep.subr.mxu0 0.0
  %206 = vmatpush1.msra.mxu0 0.0
  %207 = vmatprep.subr.mxu0 0.0
  %208 = vmatpush1.msra.mxu0 0.0
  %209 = vmatprep.mubr.f32.mxu0 0.0
  %210 = vmatmul.mubr.f32.gmra.mrb[0].mxu0 %v125
  %v211 = vpop.f32.mrb[0].mxu0
  %v212 = vadd.f32 0.0, %v211
  %v213 = vpop.f32.mrb[0].mxu0
  %214 = vmatprep.mubr.f32.mxu0 0.0
  %215 = vmatmul.mubr.f32.gmra.mrb[0].mxu0 %v126
  %v216 = vpop.f32.mrb[0].mxu0
  %v217 = vpop.f32.mrb[0].mxu0
  %218 = vmatprep.mubr.f32.mxu0 0.0
  %219 = vmatmul.mubr.f32.gmra.mrb[0].mxu0 %v127
  %v220 = vpop.f32.mrb[0].mxu0
  %v221 = vpop.f32.mrb[0].mxu0
  %222 = vmatprep.mubr.f32.mxu0 0.0
  %223 = vmatmul.mubr.f32.gmra.mrb[0].mxu0 %v128
  %v224 = vpop.f32.mrb[0].mxu0
  %v225 = vadd.f32 0.0, %v224
  %v226 = vpop.f32.mrb[0].mxu0
  %227 = vdwg.mxu0
  %v228 = vld [vmem:[%s2] sm:$0x1]
  %v230 = vlaneseq
  %v231 = vshrl.u32 %v230, 7
  %v232 = vsub.s32 0, %v231
  %v233 = vrot.slane %v228, %v232
  %v235 = vmul.f32 %v212, %v233
  %v236 = vmul.f32 %v225, %v233
  %v237 = vld [vmem:[%s3] sm:$0x1]
  %v239 = vlaneseq
  %v240 = vshrl.u32 %v239, 7
  %v241 = vsub.s32 0, %v240
  %v242 = vrot.slane %v237, %v241
  %v244 = vadd.f32 %v235, %v242
  %v245 = vadd.f32 %v236, %v242
  %v246 = vmax.f32 %v244, 0.0
  %v247 = vmax.f32 %v245, 0.0
  %248 = vst.msk [vmem:[%s4] sm:$0xff] %vm22, %v246
  %s249 = scalar_lea.vmem %s4, 32
  %250 = vst.msk [vmem:[%s249] sm:$0xff] %vm22, %v247
  %v251 = vld [vmem:[#allocation2 + $0x1] sm:$0xff]
  %v252 = vld [vmem:[#allocation2 + $0x9] sm:$0xff]
  %v253 = vld [vmem:[#allocation2 + $0x11] sm:$0xff]
  %v254 = vld [vmem:[#allocation2 + $0x19] sm:$0xff]
  %s255 = scalar_lea.vmem %s1, 128
  %v256 = vld [vmem:[%s255] sm:$0xff]
  %v257 = vld [vmem:[%s255 + $0x8] sm:$0xff]
  %v258 = vld [vmem:[%s255 + $0x10] sm:$0xff]
  %v259 = vld [vmem:[%s255 + $0x18] sm:$0xff]
  %v260 = vld [vmem:[%s255 + $0x20] sm:$0xff]
  %v261 = vld [vmem:[%s255 + $0x28] sm:$0xff]
  %v262 = vld [vmem:[%s255 + $0x30] sm:$0xff]
  %v263 = vld [vmem:[%s255 + $0x38] sm:$0xff]
  %v264 = vld [vmem:[%s255 + $0x40] sm:$0xff]
  %v265 = vld [vmem:[%s255 + $0x48] sm:$0xff]
  %v266 = vld [vmem:[%s255 + $0x50] sm:$0xff]
  %v267 = vld [vmem:[%s255 + $0x58] sm:$0xff]
  %v268 = vld [vmem:[%s255 + $0x60] sm:$0xff]
  %v269 = vld [vmem:[%s255 + $0x68] sm:$0xff]
  %v270 = vld [vmem:[%s255 + $0x70] sm:$0xff]
  %v271 = vld [vmem:[%s255 + $0x78] sm:$0xff]
  %272 = vmatprep.subr.mxu0 0.0
  %273 = vmatpush1.msra.mxu0 %v256
  %274 = vmatprep.subr.mxu0 0.0
  %275 = vmatpush1.msra.mxu0 %v257
  %276 = vmatprep.subr.mxu0 0.0
  %277 = vmatpush1.msra.mxu0 %v258
  %278 = vmatprep.subr.mxu0 0.0
  %279 = vmatpush1.msra.mxu0 %v259
  %280 = vmatprep.subr.mxu0 0.0
  %281 = vmatpush1.msra.mxu0 %v260
  %282 = vmatprep.subr.mxu0 0.0
  %283 = vmatpush1.msra.mxu0 %v261
  %284 = vmatprep.subr.mxu0 0.0
  %285 = vmatpush1.msra.mxu0 %v262
  %286 = vmatprep.subr.mxu0 0.0
  %287 = vmatpush1.msra.mxu0 %v263
  %288 = vmatprep.subr.mxu0 0.0
  %289 = vmatpush1.msra.mxu0 %v264
  %290 = vmatprep.subr.mxu0 0.0
  %291 = vmatpush1.msra.mxu0 %v265
  %292 = vmatprep.subr.mxu0 0.0
  %293 = vmatpush1.msra.mxu0 %v266
  %294 = vmatprep.subr.mxu0 0.0
  %295 = vmatpush1.msra.mxu0 %v267
  %296 = vmatprep.subr.mxu0 0.0
  %297 = vmatpush1.msra.mxu0 %v268
  %298 = vmatprep.subr.mxu0 0.0
  %299 = vmatpush1.msra.mxu0 %v269
  %300 = vmatprep.subr.mxu0 0.0
  %301 = vmatpush1.msra.mxu0 %v270
  %302 = vmatprep.subr.mxu0 0.0
  %303 = vmatpush1.msra.mxu0 %v271
  %304 = vmatprep.subr.mxu0 0.0
  %305 = vmatpush1.msra.mxu0 0.0
  %306 = vmatprep.subr.mxu0 0.0
  %307 = vmatpush1.msra.mxu0 0.0
  %308 = vmatprep.subr.mxu0 0.0
  %309 = vmatpush1.msra.mxu0 0.0
  %310 = vmatprep.subr.mxu0 0.0
  %311 = vmatpush1.msra.mxu0 0.0
  %312 = vmatprep.subr.mxu0 0.0
  %313 = vmatpush1.msra.mxu0 0.0
  %314 = vmatprep.subr.mxu0 0.0
  %315 = vmatpush1.msra.mxu0 0.0
  %316 = vmatprep.subr.mxu0 0.0
  %317 = vmatpush1.msra.mxu0 0.0
  %318 = vmatprep.subr.mxu0 0.0
  %319 = vmatpush1.msra.mxu0 0.0
  %320 = vmatprep.subr.mxu0 0.0
  %321 = vmatpush1.msra.mxu0 0.0
  %322 = vmatprep.subr.mxu0 0.0
  %323 = vmatpush1.msra.mxu0 0.0
  %324 = vmatprep.subr.mxu0 0.0
  %325 = vmatpush1.msra.mxu0 0.0
  %326 = vmatprep.subr.mxu0 0.0
  %327 = vmatpush1.msra.mxu0 0.0
  %328 = vmatprep.subr.mxu0 0.0
  %329 = vmatpush1.msra.mxu0 0.0
  %330 = vmatprep.subr.mxu0 0.0
  %331 = vmatpush1.msra.mxu0 0.0
  %332 = vmatprep.subr.mxu0 0.0
  %333 = vmatpush1.msra.mxu0 0.0
  %334 = vmatprep.subr.mxu0 0.0
  %335 = vmatpush1.msra.mxu0 0.0
  %336 = vmatprep.mubr.f32.mxu0 0.0
  %337 = vmatmul.mubr.f32.gmra.mrb[0].mxu0 %v251
  %v338 = vpop.f32.mrb[0].mxu0
  %v339 = vadd.f32 0.0, %v338
  %v340 = vpop.f32.mrb[0].mxu0
  %341 = vmatprep.mubr.f32.mxu0 0.0
  %342 = vmatmul.mubr.f32.gmra.mrb[0].mxu0 %v252
  %v343 = vpop.f32.mrb[0].mxu0
  %v344 = vpop.f32.mrb[0].mxu0
  %345 = vmatprep.mubr.f32.mxu0 0.0
  %346 = vmatmul.mubr.f32.gmra.mrb[0].mxu0 %v253
  %v347 = vpop.f32.mrb[0].mxu0
  %v348 = vpop.f32.mrb[0].mxu0
  %349 = vmatprep.mubr.f32.mxu0 0.0
  %350 = vmatmul.mubr.f32.gmra.mrb[0].mxu0 %v254
  %v351 = vpop.f32.mrb[0].mxu0
  %v352 = vadd.f32 0.0, %v351
  %v353 = vpop.f32.mrb[0].mxu0
  %354 = vdwg.mxu0
  %v355 = vld [vmem:[%s2] sm:$0x1]
  %v357 = vlaneseq
  %v358 = vshrl.u32 %v357, 7
  %v359 = vsub.s32 0, %v358
  %v360 = vrot.slane %v355, %v359
  %v362 = vmul.f32 %v339, %v360
  %v363 = vmul.f32 %v352, %v360
  %v364 = vld [vmem:[%s3] sm:$0x1]
  %v366 = vlaneseq
  %v367 = vshrl.u32 %v366, 7
  %v368 = vsub.s32 0, %v367
  %v369 = vrot.slane %v364, %v368
  %v371 = vadd.f32 %v362, %v369
  %v372 = vadd.f32 %v363, %v369
  %v373 = vmax.f32 %v371, 0.0
  %v374 = vmax.f32 %v372, 0.0
  %s375 = scalar_lea.vmem %s4, 8
  %376 = vst.msk [vmem:[%s375] sm:$0xff] %vm22, %v373
  %s377 = scalar_lea.vmem %s4, 40
  %378 = vst.msk [vmem:[%s377] sm:$0xff] %vm22, %v374
  %v379 = vld [vmem:[#allocation2 + $0x4] sm:$0xff]
  %v380 = vld [vmem:[#allocation2 + $0xc] sm:$0xff]
  %v381 = vld [vmem:[#allocation2 + $0x14] sm:$0xff]
  %v382 = vld [vmem:[#allocation2 + $0x1c] sm:$0xff]
  %s383 = scalar_lea.vmem %s1, 256
  %v384 = vld [vmem:[%s383] sm:$0xff]
  %v385 = vld [vmem:[%s383 + $0x8] sm:$0xff]
  %v386 = vld [vmem:[%s383 + $0x10] sm:$0xff]
  %v387 = vld [vmem:[%s383 + $0x18] sm:$0xff]
  %v388 = vld [vmem:[%s383 + $0x20] sm:$0xff]
  %v389 = vld [vmem:[%s383 + $0x28] sm:$0xff]
  %v390 = vld [vmem:[%s383 + $0x30] sm:$0xff]
  %v391 = vld [vmem:[%s383 + $0x38] sm:$0xff]
  %v392 = vld [vmem:[%s383 + $0x40] sm:$0xff]
  %v393 = vld [vmem:[%s383 + $0x48] sm:$0xff]
  %v394 = vld [vmem:[%s383 + $0x50] sm:$0xff]
  %v395 = vld [vmem:[%s383 + $0x58] sm:$0xff]
  %v396 = vld [vmem:[%s383 + $0x60] sm:$0xff]
  %v397 = vld [vmem:[%s383 + $0x68] sm:$0xff]
  %v398 = vld [vmem:[%s383 + $0x70] sm:$0xff]
  %v399 = vld [vmem:[%s383 + $0x78] sm:$0xff]
  %400 = vmatprep.subr.mxu0 0.0
  %401 = vmatpush1.msra.mxu0 %v384
  %402 = vmatprep.subr.mxu0 0.0
  %403 = vmatpush1.msra.mxu0 %v385
  %404 = vmatprep.subr.mxu0 0.0
  %405 = vmatpush1.msra.mxu0 %v386
  %406 = vmatprep.subr.mxu0 0.0
  %407 = vmatpush1.msra.mxu0 %v387
  %408 = vmatprep.subr.mxu0 0.0
  %409 = vmatpush1.msra.mxu0 %v388
  %410 = vmatprep.subr.mxu0 0.0
  %411 = vmatpush1.msra.mxu0 %v389
  %412 = vmatprep.subr.mxu0 0.0
  %413 = vmatpush1.msra.mxu0 %v390
  %414 = vmatprep.subr.mxu0 0.0
  %415 = vmatpush1.msra.mxu0 %v391
  %416 = vmatprep.subr.mxu0 0.0
  %417 = vmatpush1.msra.mxu0 %v392
  %418 = vmatprep.subr.mxu0 0.0
  %419 = vmatpush1.msra.mxu0 %v393
  %420 = vmatprep.subr.mxu0 0.0
  %421 = vmatpush1.msra.mxu0 %v394
  %422 = vmatprep.subr.mxu0 0.0
  %423 = vmatpush1.msra.mxu0 %v395
  %424 = vmatprep.subr.mxu0 0.0
  %425 = vmatpush1.msra.mxu0 %v396
  %426 = vmatprep.subr.mxu0 0.0
  %427 = vmatpush1.msra.mxu0 %v397
  %428 = vmatprep.subr.mxu0 0.0
  %429 = vmatpush1.msra.mxu0 %v398
  %430 = vmatprep.subr.mxu0 0.0
  %431 = vmatpush1.msra.mxu0 %v399
  %432 = vmatprep.subr.mxu0 0.0
  %433 = vmatpush1.msra.mxu0 0.0
  %434 = vmatprep.subr.mxu0 0.0
  %435 = vmatpush1.msra.mxu0 0.0
  %436 = vmatprep.subr.mxu0 0.0
  %437 = vmatpush1.msra.mxu0 0.0
  %438 = vmatprep.subr.mxu0 0.0
  %439 = vmatpush1.msra.mxu0 0.0
  %440 = vmatprep.subr.mxu0 0.0
  %441 = vmatpush1.msra.mxu0 0.0
  %442 = vmatprep.subr.mxu0 0.0
  %443 = vmatpush1.msra.mxu0 0.0
  %444 = vmatprep.subr.mxu0 0.0
  %445 = vmatpush1.msra.mxu0 0.0
  %446 = vmatprep.subr.mxu0 0.0
  %447 = vmatpush1.msra.mxu0 0.0
  %448 = vmatprep.subr.mxu0 0.0
  %449 = vmatpush1.msra.mxu0 0.0
  %450 = vmatprep.subr.mxu0 0.0
  %451 = vmatpush1.msra.mxu0 0.0
  %452 = vmatprep.subr.mxu0 0.0
  %453 = vmatpush1.msra.mxu0 0.0
  %454 = vmatprep.subr.mxu0 0.0
  %455 = vmatpush1.msra.mxu0 0.0
  %456 = vmatprep.subr.mxu0 0.0
  %457 = vmatpush1.msra.mxu0 0.0
  %458 = vmatprep.subr.mxu0 0.0
  %459 = vmatpush1.msra.mxu0 0.0
  %460 = vmatprep.subr.mxu0 0.0
  %461 = vmatpush1.msra.mxu0 0.0
  %462 = vmatprep.subr.mxu0 0.0
  %463 = vmatpush1.msra.mxu0 0.0
  %464 = vmatprep.mubr.f32.mxu0 0.0
  %465 = vmatmul.mubr.f32.gmra.mrb[0].mxu0 %v379
  %v466 = vpop.f32.mrb[0].mxu0
  %v467 = vadd.f32 0.0, %v466
  %v468 = vpop.f32.mrb[0].mxu0
  %469 = vmatprep.mubr.f32.mxu0 0.0
  %470 = vmatmul.mubr.f32.gmra.mrb[0].mxu0 %v380
  %v471 = vpop.f32.mrb[0].mxu0
  %v472 = vpop.f32.mrb[0].mxu0
  %473 = vmatprep.mubr.f32.mxu0 0.0
  %474 = vmatmul.mubr.f32.gmra.mrb[0].mxu0 %v381
  %v475 = vpop.f32.mrb[0].mxu0
  %v476 = vpop.f32.mrb[0].mxu0
  %477 = vmatprep.mubr.f32.mxu0 0.0
  %478 = vmatmul.mubr.f32.gmra.mrb[0].mxu0 %v382
  %v479 = vpop.f32.mrb[0].mxu0
  %v480 = vadd.f32 0.0, %v479
  %v481 = vpop.f32.mrb[0].mxu0
  %482 = vdwg.mxu0
  %v483 = vld [vmem:[%s2] sm:$0x1]
  %v485 = vlaneseq
  %v486 = vshrl.u32 %v485, 7
  %v487 = vsub.s32 0, %v486
  %v488 = vrot.slane %v483, %v487
  %v490 = vmul.f32 %v467, %v488
  %v491 = vmul.f32 %v480, %v488
  %v492 = vld [vmem:[%s3] sm:$0x1]
  %v494 = vlaneseq
  %v495 = vshrl.u32 %v494, 7
  %v496 = vsub.s32 0, %v495
  %v497 = vrot.slane %v492, %v496
  %v499 = vadd.f32 %v490, %v497
  %v500 = vadd.f32 %v491, %v497
  %v501 = vmax.f32 %v499, 0.0
  %v502 = vmax.f32 %v500, 0.0
  %s503 = scalar_lea.vmem %s4, 16
  %504 = vst.msk [vmem:[%s503] sm:$0xff] %vm22, %v501
  %s505 = scalar_lea.vmem %s4, 48
  %506 = vst.msk [vmem:[%s505] sm:$0xff] %vm22, %v502
  %v507 = vld [vmem:[#allocation2 + $0x5] sm:$0xff]
  %v508 = vld [vmem:[#allocation2 + $0xd] sm:$0xff]
  %v509 = vld [vmem:[#allocation2 + $0x15] sm:$0xff]
  %v510 = vld [vmem:[#allocation2 + $0x1d] sm:$0xff]
  %s511 = scalar_lea.vmem %s1, 384
  %v512 = vld [vmem:[%s511] sm:$0xff]
  %v513 = vld [vmem:[%s511 + $0x8] sm:$0xff]
  %v514 = vld [vmem:[%s511 + $0x10] sm:$0xff]
  %v515 = vld [vmem:[%s511 + $0x18] sm:$0xff]
  %v516 = vld [vmem:[%s511 + $0x20] sm:$0xff]
  %v517 = vld [vmem:[%s511 + $0x28] sm:$0xff]
  %v518 = vld [vmem:[%s511 + $0x30] sm:$0xff]
  %v519 = vld [vmem:[%s511 + $0x38] sm:$0xff]
  %v520 = vld [vmem:[%s511 + $0x40] sm:$0xff]
  %v521 = vld [vmem:[%s511 + $0x48] sm:$0xff]
  %v522 = vld [vmem:[%s511 + $0x50] sm:$0xff]
  %v523 = vld [vmem:[%s511 + $0x58] sm:$0xff]
  %v524 = vld [vmem:[%s511 + $0x60] sm:$0xff]
  %v525 = vld [vmem:[%s511 + $0x68] sm:$0xff]
  %v526 = vld [vmem:[%s511 + $0x70] sm:$0xff]
  %v527 = vld [vmem:[%s511 + $0x78] sm:$0xff]
  %528 = vmatprep.subr.mxu0 0.0
  %529 = vmatpush1.msra.mxu0 %v512
  %530 = vmatprep.subr.mxu0 0.0
  %531 = vmatpush1.msra.mxu0 %v513
  %532 = vmatprep.subr.mxu0 0.0
  %533 = vmatpush1.msra.mxu0 %v514
  %534 = vmatprep.subr.mxu0 0.0
  %535 = vmatpush1.msra.mxu0 %v515
  %536 = vmatprep.subr.mxu0 0.0
  %537 = vmatpush1.msra.mxu0 %v516
  %538 = vmatprep.subr.mxu0 0.0
  %539 = vmatpush1.msra.mxu0 %v517
  %540 = vmatprep.subr.mxu0 0.0
  %541 = vmatpush1.msra.mxu0 %v518
  %542 = vmatprep.subr.mxu0 0.0
  %543 = vmatpush1.msra.mxu0 %v519
  %544 = vmatprep.subr.mxu0 0.0
  %545 = vmatpush1.msra.mxu0 %v520
  %546 = vmatprep.subr.mxu0 0.0
  %547 = vmatpush1.msra.mxu0 %v521
  %548 = vmatprep.subr.mxu0 0.0
  %549 = vmatpush1.msra.mxu0 %v522
  %550 = vmatprep.subr.mxu0 0.0
  %551 = vmatpush1.msra.mxu0 %v523
  %552 = vmatprep.subr.mxu0 0.0
  %553 = vmatpush1.msra.mxu0 %v524
  %554 = vmatprep.subr.mxu0 0.0
  %555 = vmatpush1.msra.mxu0 %v525
  %556 = vmatprep.subr.mxu0 0.0
  %557 = vmatpush1.msra.mxu0 %v526
  %558 = vmatprep.subr.mxu0 0.0
  %559 = vmatpush1.msra.mxu0 %v527
  %560 = vmatprep.subr.mxu0 0.0
  %561 = vmatpush1.msra.mxu0 0.0
  %562 = vmatprep.subr.mxu0 0.0
  %563 = vmatpush1.msra.mxu0 0.0
  %564 = vmatprep.subr.mxu0 0.0
  %565 = vmatpush1.msra.mxu0 0.0
  %566 = vmatprep.subr.mxu0 0.0
  %567 = vmatpush1.msra.mxu0 0.0
  %568 = vmatprep.subr.mxu0 0.0
  %569 = vmatpush1.msra.mxu0 0.0
  %570 = vmatprep.subr.mxu0 0.0
  %571 = vmatpush1.msra.mxu0 0.0
  %572 = vmatprep.subr.mxu0 0.0
  %573 = vmatpush1.msra.mxu0 0.0
  %574 = vmatprep.subr.mxu0 0.0
  %575 = vmatpush1.msra.mxu0 0.0
  %576 = vmatprep.subr.mxu0 0.0
  %577 = vmatpush1.msra.mxu0 0.0
  %578 = vmatprep.subr.mxu0 0.0
  %579 = vmatpush1.msra.mxu0 0.0
  %580 = vmatprep.subr.mxu0 0.0
  %581 = vmatpush1.msra.mxu0 0.0
  %582 = vmatprep.subr.mxu0 0.0
  %583 = vmatpush1.msra.mxu0 0.0
  %584 = vmatprep.subr.mxu0 0.0
  %585 = vmatpush1.msra.mxu0 0.0
  %586 = vmatprep.subr.mxu0 0.0
  %587 = vmatpush1.msra.mxu0 0.0
  %588 = vmatprep.subr.mxu0 0.0
  %589 = vmatpush1.msra.mxu0 0.0
  %590 = vmatprep.subr.mxu0 0.0
  %591 = vmatpush1.msra.mxu0 0.0
  %592 = vmatprep.mubr.f32.mxu0 0.0
  %593 = vmatmul.mubr.f32.gmra.mrb[0].mxu0 %v507
  %v594 = vpop.f32.mrb[0].mxu0
  %v595 = vadd.f32 0.0, %v594
  %v596 = vpop.f32.mrb[0].mxu0
  %597 = vmatprep.mubr.f32.mxu0 0.0
  %598 = vmatmul.mubr.f32.gmra.mrb[0].mxu0 %v508
  %v599 = vpop.f32.mrb[0].mxu0
  %v600 = vpop.f32.mrb[0].mxu0
  %601 = vmatprep.mubr.f32.mxu0 0.0
  %602 = vmatmul.mubr.f32.gmra.mrb[0].mxu0 %v509
  %v603 = vpop.f32.mrb[0].mxu0
  %v604 = vpop.f32.mrb[0].mxu0
  %605 = vmatprep.mubr.f32.mxu0 0.0
  %606 = vmatmul.mubr.f32.gmra.mrb[0].mxu0 %v510
  %v607 = vpop.f32.mrb[0].mxu0
  %v608 = vadd.f32 0.0, %v607
  %v609 = vpop.f32.mrb[0].mxu0
  %610 = vdwg.mxu0
  %v611 = vld [vmem:[%s2] sm:$0x1]
  %v613 = vlaneseq
  %v614 = vshrl.u32 %v613, 7
  %v615 = vsub.s32 0, %v614
  %v616 = vrot.slane %v611, %v615
  %v618 = vmul.f32 %v595, %v616
  %v619 = vmul.f32 %v608, %v616
  %v620 = vld [vmem:[%s3] sm:$0x1]
  %v622 = vlaneseq
  %v623 = vshrl.u32 %v622, 7
  %v624 = vsub.s32 0, %v623
  %v625 = vrot.slane %v620, %v624
  %v627 = vadd.f32 %v618, %v625
  %v628 = vadd.f32 %v619, %v625
  %v629 = vmax.f32 %v627, 0.0
  %v630 = vmax.f32 %v628, 0.0
  %s631 = scalar_lea.vmem %s4, 24
  %632 = vst.msk [vmem:[%s631] sm:$0xff] %vm22, %v629
  %s633 = scalar_lea.vmem %s4, 56
  %634 = vst.msk [vmem:[%s633] sm:$0xff] %vm22, %v630
  // Predicated region
  $region18: #{hourglass_forward.9} parent=0 // pred_check
    _
  $region19: #{hourglass_forward.9} parent=0 // pred_check_branch
    %636 = sbr.rel (0) target = $region21
  $region20: #{hourglass_forward.9} parent=0 // pred_region
    _
  $region21: #{hourglass_forward.9} parent=0 // pred_fallthru
    _
  // Predicated region
  $region22: #{hourglass_forward.9} parent=0 // pred_check
    _
  $region23: #{hourglass_forward.9} parent=0 // pred_check_branch
    %638 = sbr.rel (0) target = $region25
  $region24: #{hourglass_forward.9} parent=0 // pred_region
    _
  $region25: #{hourglass_forward.9} parent=0 // pred_fallthru
    _

// kernel: hourglass_forward.8
$region0: #{hourglass_forward.8}
  #allocation0 [shape = 'u32[]', space=smem, size = 0x4, offset = 0x4, fixed_abs, tag = 'smem constant byte address 0x4 - core index']
  #allocation1 [shape = 'u32[144,128]{1,0:T(1,128)}', space=vmem, size = 0x12000, scoped, tag = 'internal scratch']
  #allocation2 [shape = 'f32[84,96]{1,0:T(8,128)}', space=vmem, size = 0xb000, scoped, tag = 'scratch operand']
  #allocation3 [shape = 'f32[72,32]{1,0:T(8,128)}', space=vmem, size = 0x9000, scoped, tag = 'scratch operand']
  %s0 = inlined_call_operand.vmem [shape: f32[96,32], index: 0, kind: input, shape index: {}]
  %s1 = inlined_call_operand.vmem [shape: f32[3,96,32], index: 1, kind: input, shape index: {}]
  %s2 = inlined_call_operand.vmem [shape: f32[1,32], index: 2, kind: input, shape index: {}]
  %s3 = inlined_call_operand.vmem [shape: f32[1,32], index: 3, kind: input, shape index: {}]
  %s4 = inlined_call_operand.vmem [shape: f32[2,2,2,32], index: 4, kind: output, shape index: {}]
  %s5 = sld [smem:[#allocation0]]
  $region26: #{hourglass_forward.8} parent=0
    _
  %s7 = ssub.s32 1, %s5
  %s8 = scalar_select 0, %s7, %s5
  // Predicated region
  $region2: #{hourglass_forward.8} parent=0 // pred_check
    _
  $region3: #{hourglass_forward.8} parent=0 // pred_check_branch
    %10 = sbr.rel (0) target = $region5
  $region4: #{hourglass_forward.8} parent=0 // pred_region
    _
  $region5: #{hourglass_forward.8} parent=0 // pred_fallthru
    _
  // Predicated region
  $region6: #{hourglass_forward.8} parent=0 // pred_check
    _
  $region7: #{hourglass_forward.8} parent=0 // pred_check_branch
    %12 = sbr.rel (0) target = $region9
  $region8: #{hourglass_forward.8} parent=0 // pred_region
    _
  $region9: #{hourglass_forward.8} parent=0 // pred_fallthru
    _
  // Predicated region
  $region10: #{hourglass_forward.8} parent=0 // pred_check
    _
  $region11: #{hourglass_forward.8} parent=0 // pred_check_branch
    %14 = sbr.rel (0) target = $region13
  $region12: #{hourglass_forward.8} parent=0 // pred_region
    _
  $region13: #{hourglass_forward.8} parent=0 // pred_fallthru
    _
  // Predicated region
  $region14: #{hourglass_forward.8} parent=0 // pred_check
    _
  $region15: #{hourglass_forward.8} parent=0 // pred_check_branch
    %16 = sbr.rel (0) target = $region17
  $region16: #{hourglass_forward.8} parent=0 // pred_region
    _
  $region17: #{hourglass_forward.8} parent=0 // pred_fallthru
    _
  %v17 = vld [vmem:[%s0] sm:$0xff]
  %v18 = vld [vmem:[%s0 + $0x8] sm:$0xff]
  %v19 = vld [vmem:[%s0 + $0x10] sm:$0xff]
  %v20 = vld [vmem:[%s0 + $0x18] sm:$0xff]
  %v21 = vld [vmem:[%s0 + $0x20] sm:$0xff]
  %v22 = vld [vmem:[%s0 + $0x28] sm:$0xff]
  %v23 = vld [vmem:[%s0 + $0x30] sm:$0xff]
  %v24 = vld [vmem:[%s0 + $0x38] sm:$0xff]
  %v25 = vld [vmem:[%s0 + $0x40] sm:$0xff]
  %v26 = vld [vmem:[%s0 + $0x48] sm:$0xff]
  %v27 = vld [vmem:[%s0 + $0x50] sm:$0xf]
  %vm28 = vcmask 261120
  %29 = vst.msk [vmem:[#allocation2] sm:$0xff] %vm28, %v17
  %30 = vst.msk [vmem:[#allocation2 + $0x8] sm:$0xff] %vm28, %v18
  %31 = vst.msk [vmem:[#allocation2 + $0x10] sm:$0xff] %vm28, %v19
  %32 = vst.msk [vmem:[#allocation2 + $0x18] sm:$0xff] %vm28, %v20
  %33 = vst.msk [vmem:[#allocation2 + $0x20] sm:$0xff] %vm28, %v21
  %34 = vst.msk [vmem:[#allocation2 + $0x28] sm:$0xff] %vm28, %v22
  %35 = vst.msk [vmem:[#allocation2 + $0x30] sm:$0xff] %vm28, %v23
  %36 = vst.msk [vmem:[#allocation2 + $0x38] sm:$0xff] %vm28, %v24
  %37 = vst.msk [vmem:[#allocation2 + $0x40] sm:$0xff] %vm28, %v25
  %38 = vst.msk [vmem:[#allocation2 + $0x48] sm:$0xff] %vm28, %v26
  %vm39 = vcmask 257024
  %40 = vst.msk [vmem:[#allocation2 + $0x50] sm:$0xf] %vm39, %v27
  %v41 = vld [vmem:[%s0 + $0x1] sm:$0xff]
  %v42 = vld [vmem:[%s0 + $0x9] sm:$0xff]
  %v43 = vld [vmem:[%s0 + $0x11] sm:$0xff]
  %v44 = vld [vmem:[%s0 + $0x19] sm:$0xff]
  %v45 = vld [vmem:[%s0 + $0x21] sm:$0xff]
  %v46 = vld [vmem:[%s0 + $0x29] sm:$0xff]
  %v47 = vld [vmem:[%s0 + $0x31] sm:$0xff]
  %v48 = vld [vmem:[%s0 + $0x39] sm:$0xff]
  %v49 = vld [vmem:[%s0 + $0x41] sm:$0xff]
  %v50 = vld [vmem:[%s0 + $0x49] sm:$0xff]
  %v51 = vld [vmem:[%s0 + $0x51] sm:$0xf]
  %63 = vrot.lane.b32.xlu0 %v41, 32
  %v64 = vpop.permute.xlu0 %63
  %65 = vrot.lane.b32.xlu0 %v42, 32
  %v66 = vpop.permute.xlu0 %65
  %67 = vrot.lane.b32.xlu0 %v43, 32
  %v68 = vpop.permute.xlu0 %67
  %69 = vrot.lane.b32.xlu0 %v44, 32
  %v70 = vpop.permute.xlu0 %69
  %71 = vrot.lane.b32.xlu0 %v45, 32
  %v72 = vpop.permute.xlu0 %71
  %73 = vrot.lane.b32.xlu0 %v46, 32
  %v74 = vpop.permute.xlu0 %73
  %75 = vrot.lane.b32.xlu0 %v47, 32
  %v76 = vpop.permute.xlu0 %75
  %77 = vrot.lane.b32.xlu0 %v48, 32
  %v78 = vpop.permute.xlu0 %77
  %79 = vrot.lane.b32.xlu0 %v49, 32
  %v80 = vpop.permute.xlu0 %79
  %81 = vrot.lane.b32.xlu0 %v50, 32
  %v82 = vpop.permute.xlu0 %81
  %83 = vrot.lane.b32.xlu0 %v51, 32
  %v84 = vpop.permute.xlu0 %83
  %vm96 = vcmask 523520
  %97 = vst.msk [vmem:[#allocation2] sm:$0xff] %vm96, %v64
  %98 = vst.msk [vmem:[#allocation2 + $0x8] sm:$0xff] %vm96, %v66
  %99 = vst.msk [vmem:[#allocation2 + $0x10] sm:$0xff] %vm96, %v68
  %100 = vst.msk [vmem:[#allocation2 + $0x18] sm:$0xff] %vm96, %v70
  %101 = vst.msk [vmem:[#allocation2 + $0x20] sm:$0xff] %vm96, %v72
  %102 = vst.msk [vmem:[#allocation2 + $0x28] sm:$0xff] %vm96, %v74
  %103 = vst.msk [vmem:[#allocation2 + $0x30] sm:$0xff] %vm96, %v76
  %104 = vst.msk [vmem:[#allocation2 + $0x38] sm:$0xff] %vm96, %v78
  %105 = vst.msk [vmem:[#allocation2 + $0x40] sm:$0xff] %vm96, %v80
  %106 = vst.msk [vmem:[#allocation2 + $0x48] sm:$0xff] %vm96, %v82
  %vm107 = vcmask 519424
  %108 = vst.msk [vmem:[#allocation2 + $0x50] sm:$0xf] %vm107, %v84
  %v109 = vld [vmem:[%s0 + $0x2] sm:$0xff]
  %v110 = vld [vmem:[%s0 + $0xa] sm:$0xff]
  %v111 = vld [vmem:[%s0 + $0x12] sm:$0xff]
  %v112 = vld [vmem:[%s0 + $0x1a] sm:$0xff]
  %v113 = vld [vmem:[%s0 + $0x22] sm:$0xff]
  %v114 = vld [vmem:[%s0 + $0x2a] sm:$0xff]
  %v115 = vld [vmem:[%s0 + $0x32] sm:$0xff]
  %v116 = vld [vmem:[%s0 + $0x3a] sm:$0xff]
  %v117 = vld [vmem:[%s0 + $0x42] sm:$0xff]
  %v118 = vld [vmem:[%s0 + $0x4a] sm:$0xff]
  %v119 = vld [vmem:[%s0 + $0x52] sm:$0xf]
  %131 = vrot.lane.b32.xlu0 %v109, 64
  %v132 = vpop.permute.xlu0 %131
  %133 = vrot.lane.b32.xlu0 %v110, 64
  %v134 = vpop.permute.xlu0 %133
  %135 = vrot.lane.b32.xlu0 %v111, 64
  %v136 = vpop.permute.xlu0 %135
  %137 = vrot.lane.b32.xlu0 %v112, 64
  %v138 = vpop.permute.xlu0 %137
  %139 = vrot.lane.b32.xlu0 %v113, 64
  %v140 = vpop.permute.xlu0 %139
  %141 = vrot.lane.b32.xlu0 %v114, 64
  %v142 = vpop.permute.xlu0 %141
  %143 = vrot.lane.b32.xlu0 %v115, 64
  %v144 = vpop.permute.xlu0 %143
  %145 = vrot.lane.b32.xlu0 %v116, 64
  %v146 = vpop.permute.xlu0 %145
  %147 = vrot.lane.b32.xlu0 %v117, 64
  %v148 = vpop.permute.xlu0 %147
  %149 = vrot.lane.b32.xlu0 %v118, 64
  %v150 = vpop.permute.xlu0 %149
  %151 = vrot.lane.b32.xlu0 %v119, 64
  %v152 = vpop.permute.xlu0 %151
  %vm164 = vcmask 785920
  %165 = vst.msk [vmem:[#allocation2] sm:$0xff] %vm164, %v132
  %166 = vst.msk [vmem:[#allocation2 + $0x8] sm:$0xff] %vm164, %v134
  %167 = vst.msk [vmem:[#allocation2 + $0x10] sm:$0xff] %vm164, %v136
  %168 = vst.msk [vmem:[#allocation2 + $0x18] sm:$0xff] %vm164, %v138
  %169 = vst.msk [vmem:[#allocation2 + $0x20] sm:$0xff] %vm164, %v140
  %170 = vst.msk [vmem:[#allocation2 + $0x28] sm:$0xff] %vm164, %v142
  %171 = vst.msk [vmem:[#allocation2 + $0x30] sm:$0xff] %vm164, %v144
  %172 = vst.msk [vmem:[#allocation2 + $0x38] sm:$0xff] %vm164, %v146
  %173 = vst.msk [vmem:[#allocation2 + $0x40] sm:$0xff] %vm164, %v148
  %174 = vst.msk [vmem:[#allocation2 + $0x48] sm:$0xff] %vm164, %v150
  %vm175 = vcmask 781824
  %176 = vst.msk [vmem:[#allocation2 + $0x50] sm:$0xf] %vm175, %v152
  %v177 = vld [vmem:[#allocation2] sm:$0xff]
  %v178 = vld [vmem:[#allocation2 + $0x8] sm:$0xff]
  %v179 = vld [vmem:[#allocation2 + $0x10] sm:$0xff]
  %v180 = vld [vmem:[#allocation2 + $0x18] sm:$0xff]
  %v181 = vld [vmem:[#allocation2 + $0x20] sm:$0xff]
  %v182 = vld [vmem:[#allocation2 + $0x28] sm:$0xff]
  %v183 = vld [vmem:[#allocation2 + $0x30] sm:$0xff]
  %v184 = vld [vmem:[#allocation2 + $0x38] sm:$0xff]
  %v185 = vld [vmem:[#allocation2 + $0x40] sm:$0xff]
  %v186 = vld [vmem:[%s1] sm:$0xff]
  %v187 = vld [vmem:[%s1 + $0x8] sm:$0xff]
  %v188 = vld [vmem:[%s1 + $0x10] sm:$0xff]
  %v189 = vld [vmem:[%s1 + $0x18] sm:$0xff]
  %v190 = vld [vmem:[%s1 + $0x20] sm:$0xff]
  %v191 = vld [vmem:[%s1 + $0x28] sm:$0xff]
  %v192 = vld [vmem:[%s1 + $0x30] sm:$0xff]
  %v193 = vld [vmem:[%s1 + $0x38] sm:$0xff]
  %v194 = vld [vmem:[%s1 + $0x40] sm:$0xff]
  %v195 = vld [vmem:[%s1 + $0x48] sm:$0xff]
  %v196 = vld [vmem:[%s1 + $0x50] sm:$0xff]
  %v197 = vld [vmem:[%s1 + $0x58] sm:$0xff]
  %v198 = vld [vmem:[#allocation2 + $0x6] sm:$0xff]
  %v199 = vld [vmem:[#allocation2 + $0xe] sm:$0xff]
  %v200 = vld [vmem:[#allocation2 + $0x16] sm:$0xff]
  %v201 = vld [vmem:[#allocation2 + $0x1e] sm:$0xff]
  %v202 = vld [vmem:[#allocation2 + $0x26] sm:$0xff]
  %v203 = vld [vmem:[#allocation2 + $0x2e] sm:$0xff]
  %v204 = vld [vmem:[#allocation2 + $0x36] sm:$0xff]
  %v205 = vld [vmem:[#allocation2 + $0x3e] sm:$0xff]
  %v206 = vld [vmem:[#allocation2 + $0x46] sm:$0xff]
  %s207 = scalar_lea.vmem %s1, 96
  %v208 = vld [vmem:[%s207] sm:$0xff]
  %v209 = vld [vmem:[%s207 + $0x8] sm:$0xff]
  %v210 = vld [vmem:[%s207 + $0x10] sm:$0xff]
  %v211 = vld [vmem:[%s207 + $0x18] sm:$0xff]
  %v212 = vld [vmem:[%s207 + $0x20] sm:$0xff]
  %v213 = vld [vmem:[%s207 + $0x28] sm:$0xff]
  %v214 = vld [vmem:[%s207 + $0x30] sm:$0xff]
  %v215 = vld [vmem:[%s207 + $0x38] sm:$0xff]
  %v216 = vld [vmem:[%s207 + $0x40] sm:$0xff]
  %v217 = vld [vmem:[%s207 + $0x48] sm:$0xff]
  %v218 = vld [vmem:[%s207 + $0x50] sm:$0xff]
  %v219 = vld [vmem:[%s207 + $0x58] sm:$0xff]
  %vm220 = vcmask 785408
  %v222 = vsel %vm220, %v198, 0
  %v225 = vsel %vm220, %v199, 0
  %v228 = vsel %vm220, %v200, 0
  %v231 = vsel %vm220, %v201, 0
  %v234 = vsel %vm220, %v202, 0
  %v237 = vsel %vm220, %v203, 0
  %v240 = vsel %vm220, %v204, 0
  %v243 = vsel %vm220, %v205, 0
  %v246 = vsel %vm220, %v206, 0
  %248 = vmatprep.subr.mxu0 0.0
  %249 = vmatpush1.msra.mxu0 %v208
  %250 = vmatprep.subr.mxu0 0.0
  %251 = vmatpush1.msra.mxu0 %v209
  %252 = vmatprep.subr.mxu0 0.0
  %253 = vmatpush1.msra.mxu0 %v210
  %254 = vmatprep.subr.mxu0 0.0
  %255 = vmatpush1.msra.mxu0 %v211
  %256 = vmatprep.subr.mxu0 0.0
  %257 = vmatpush1.msra.mxu0 %v212
  %258 = vmatprep.subr.mxu0 0.0
  %259 = vmatpush1.msra.mxu0 %v213
  %260 = vmatprep.subr.mxu0 0.0
  %261 = vmatpush1.msra.mxu0 %v214
  %262 = vmatprep.subr.mxu0 0.0
  %263 = vmatpush1.msra.mxu0 %v215
  %264 = vmatprep.subr.mxu0 0.0
  %265 = vmatpush1.msra.mxu0 %v216
  %266 = vmatprep.subr.mxu0 0.0
  %267 = vmatpush1.msra.mxu0 %v217
  %268 = vmatprep.subr.mxu0 0.0
  %269 = vmatpush1.msra.mxu0 %v218
  %270 = vmatprep.subr.mxu0 0.0
  %271 = vmatpush1.msra.mxu0 %v219
  %272 = vmatprep.subr.mxu0 0.0
  %273 = vmatpush1.msra.mxu0 0.0
  %274 = vmatprep.subr.mxu0 0.0
  %275 = vmatpush1.msra.mxu0 0.0
  %276 = vmatprep.subr.mxu0 0.0
  %277 = vmatpush1.msra.mxu0 0.0
  %278 = vmatprep.subr.mxu0 0.0
  %279 = vmatpush1.msra.mxu0 0.0
  %280 = vmatprep.subr.mxu0 0.0
  %281 = vmatpush1.msra.mxu0 0.0
  %282 = vmatprep.subr.mxu0 0.0
  %283 = vmatpush1.msra.mxu0 0.0
  %284 = vmatprep.subr.mxu0 0.0
  %285 = vmatpush1.msra.mxu0 0.0
  %286 = vmatprep.subr.mxu0 0.0
  %287 = vmatpush1.msra.mxu0 0.0
  %288 = vmatprep.subr.mxu0 0.0
  %289 = vmatpush1.msra.mxu0 0.0
  %290 = vmatprep.subr.mxu0 0.0
  %291 = vmatpush1.msra.mxu0 0.0
  %292 = vmatprep.subr.mxu0 0.0
  %293 = vmatpush1.msra.mxu0 0.0
  %294 = vmatprep.subr.mxu0 0.0
  %295 = vmatpush1.msra.mxu0 0.0
  %296 = vmatprep.subr.mxu0 0.0
  %297 = vmatpush1.msra.mxu0 0.0
  %298 = vmatprep.subr.mxu0 0.0
  %299 = vmatpush1.msra.mxu0 0.0
  %300 = vmatprep.subr.mxu0 0.0
  %301 = vmatpush1.msra.mxu0 0.0
  %302 = vmatprep.subr.mxu0 0.0
  %303 = vmatpush1.msra.mxu0 0.0
  %304 = vmatprep.subr.mxu0 0.0
  %305 = vmatpush1.msra.mxu0 0.0
  %306 = vmatprep.subr.mxu0 0.0
  %307 = vmatpush1.msra.mxu0 0.0
  %308 = vmatprep.subr.mxu0 0.0
  %309 = vmatpush1.msra.mxu0 0.0
  %310 = vmatprep.subr.mxu0 0.0
  %311 = vmatpush1.msra.mxu0 0.0
  %312 = vmatprep.mubr.f32.mxu0 0.0
  %313 = vmatmul.mubr.f32.gmra.mrb[0].mxu0 %v222
  %v314 = vpop.f32.mrb[0].mxu0
  %v315 = vadd.f32 0.0, %v314
  %v316 = vpop.f32.mrb[0].mxu0
  %317 = vmatprep.mubr.f32.mxu0 0.0
  %318 = vmatmul.mubr.f32.gmra.mrb[0].mxu0 %v225
  %v319 = vpop.f32.mrb[0].mxu0
  %v320 = vadd.f32 0.0, %v319
  %v321 = vpop.f32.mrb[0].mxu0
  %322 = vmatprep.mubr.f32.mxu0 0.0
  %323 = vmatmul.mubr.f32.gmra.mrb[0].mxu0 %v228
  %v324 = vpop.f32.mrb[0].mxu0
  %v325 = vadd.f32 0.0, %v324
  %v326 = vpop.f32.mrb[0].mxu0
  %327 = vmatprep.mubr.f32.mxu0 0.0
  %328 = vmatmul.mubr.f32.gmra.mrb[0].mxu0 %v231
  %v329 = vpop.f32.mrb[0].mxu0
  %v330 = vadd.f32 0.0, %v329
  %v331 = vpop.f32.mrb[0].mxu0
  %332 = vmatprep.mubr.f32.mxu0 0.0
  %333 = vmatmul.mubr.f32.gmra.mrb[0].mxu0 %v234
  %v334 = vpop.f32.mrb[0].mxu0
  %v335 = vadd.f32 0.0, %v334
  %v336 = vpop.f32.mrb[0].mxu0
  %337 = vmatprep.mubr.f32.mxu0 0.0
  %338 = vmatmul.mubr.f32.gmra.mrb[0].mxu0 %v237
  %v339 = vpop.f32.mrb[0].mxu0
  %v340 = vadd.f32 0.0, %v339
  %v341 = vpop.f32.mrb[0].mxu0
  %342 = vmatprep.mubr.f32.mxu0 0.0
  %343 = vmatmul.mubr.f32.gmra.mrb[0].mxu0 %v240
  %v344 = vpop.f32.mrb[0].mxu0
  %v345 = vadd.f32 0.0, %v344
  %v346 = vpop.f32.mrb[0].mxu0
  %347 = vmatprep.mubr.f32.mxu0 0.0
  %348 = vmatmul.mubr.f32.gmra.mrb[0].mxu0 %v243
  %v349 = vpop.f32.mrb[0].mxu0
  %v350 = vadd.f32 0.0, %v349
  %v351 = vpop.f32.mrb[0].mxu0
  %352 = vmatprep.mubr.f32.mxu0 0.0
  %353 = vmatmul.mubr.f32.gmra.mrb[0].mxu0 %v246
  %v354 = vpop.f32.mrb[0].mxu0
  %v355 = vadd.f32 0.0, %v354
  %v356 = vpop.f32.mrb[0].mxu0
  %357 = vdwg.mxu0
  %v359 = vsel %vm220, %v177, 0
  %v362 = vsel %vm220, %v178, 0
  %v365 = vsel %vm220, %v179, 0
  %v368 = vsel %vm220, %v180, 0
  %v371 = vsel %vm220, %v181, 0
  %v374 = vsel %vm220, %v182, 0
  %v377 = vsel %vm220, %v183, 0
  %v380 = vsel %vm220, %v184, 0
  %v383 = vsel %vm220, %v185, 0
  %385 = vmatprep.subr.mxu0 0.0
  %386 = vmatpush1.msra.mxu0 %v186
  %387 = vmatprep.subr.mxu0 0.0
  %388 = vmatpush1.msra.mxu0 %v187
  %389 = vmatprep.subr.mxu0 0.0
  %390 = vmatpush1.msra.mxu0 %v188
  %391 = vmatprep.subr.mxu0 0.0
  %392 = vmatpush1.msra.mxu0 %v189
  %393 = vmatprep.subr.mxu0 0.0
  %394 = vmatpush1.msra.mxu0 %v190
  %395 = vmatprep.subr.mxu0 0.0
  %396 = vmatpush1.msra.mxu0 %v191
  %397 = vmatprep.subr.mxu0 0.0
  %398 = vmatpush1.msra.mxu0 %v192
  %399 = vmatprep.subr.mxu0 0.0
  %400 = vmatpush1.msra.mxu0 %v193
  %401 = vmatprep.subr.mxu0 0.0
  %402 = vmatpush1.msra.mxu0 %v194
  %403 = vmatprep.subr.mxu0 0.0
  %404 = vmatpush1.msra.mxu0 %v195
  %405 = vmatprep.subr.mxu0 0.0
  %406 = vmatpush1.msra.mxu0 %v196
  %407 = vmatprep.subr.mxu0 0.0
  %408 = vmatpush1.msra.mxu0 %v197
  %409 = vmatprep.subr.mxu0 0.0
  %410 = vmatpush1.msra.mxu0 0.0
  %411 = vmatprep.subr.mxu0 0.0
  %412 = vmatpush1.msra.mxu0 0.0
  %413 = vmatprep.subr.mxu0 0.0
  %414 = vmatpush1.msra.mxu0 0.0
  %415 = vmatprep.subr.mxu0 0.0
  %416 = vmatpush1.msra.mxu0 0.0
  %417 = vmatprep.subr.mxu0 0.0
  %418 = vmatpush1.msra.mxu0 0.0
  %419 = vmatprep.subr.mxu0 0.0
  %420 = vmatpush1.msra.mxu0 0.0
  %421 = vmatprep.subr.mxu0 0.0
  %422 = vmatpush1.msra.mxu0 0.0
  %423 = vmatprep.subr.mxu0 0.0
  %424 = vmatpush1.msra.mxu0 0.0
  %425 = vmatprep.subr.mxu0 0.0
  %426 = vmatpush1.msra.mxu0 0.0
  %427 = vmatprep.subr.mxu0 0.0
  %428 = vmatpush1.msra.mxu0 0.0
  %429 = vmatprep.subr.mxu0 0.0
  %430 = vmatpush1.msra.mxu0 0.0
  %431 = vmatprep.subr.mxu0 0.0
  %432 = vmatpush1.msra.mxu0 0.0
  %433 = vmatprep.subr.mxu0 0.0
  %434 = vmatpush1.msra.mxu0 0.0
  %435 = vmatprep.subr.mxu0 0.0
  %436 = vmatpush1.msra.mxu0 0.0
  %437 = vmatprep.subr.mxu0 0.0
  %438 = vmatpush1.msra.mxu0 0.0
  %439 = vmatprep.subr.mxu0 0.0
  %440 = vmatpush1.msra.mxu0 0.0
  %441 = vmatprep.subr.mxu0 0.0
  %442 = vmatpush1.msra.mxu0 0.0
  %443 = vmatprep.subr.mxu0 0.0
  %444 = vmatpush1.msra.mxu0 0.0
  %445 = vmatprep.subr.mxu0 0.0
  %446 = vmatpush1.msra.mxu0 0.0
  %447 = vmatprep.subr.mxu0 0.0
  %448 = vmatpush1.msra.mxu0 0.0
  %449 = vmatprep.mubr.f32.mxu0 0.0
  %450 = vmatmul.mubr.f32.gmra.mrb[0].mxu0 %v359
  %v451 = vpop.f32.mrb[0].mxu0
  %v452 = vadd.f32 %v315, %v451
  %v453 = vpop.f32.mrb[0].mxu0
  %454 = vmatprep.mubr.f32.mxu0 0.0
  %455 = vmatmul.mubr.f32.gmra.mrb[0].mxu0 %v362
  %v456 = vpop.f32.mrb[0].mxu0
  %v457 = vadd.f32 %v320, %v456
  %v458 = vpop.f32.mrb[0].mxu0
  %459 = vmatprep.mubr.f32.mxu0 0.0
  %460 = vmatmul.mubr.f32.gmra.mrb[0].mxu0 %v365
  %v461 = vpop.f32.mrb[0].mxu0
  %v462 = vadd.f32 %v325, %v461
  %v463 = vpop.f32.mrb[0].mxu0
  %464 = vmatprep.mubr.f32.mxu0 0.0
  %465 = vmatmul.mubr.f32.gmra.mrb[0].mxu0 %v368
  %v466 = vpop.f32.mrb[0].mxu0
  %v467 = vadd.f32 %v330, %v466
  %v468 = vpop.f32.mrb[0].mxu0
  %469 = vmatprep.mubr.f32.mxu0 0.0
  %470 = vmatmul.mubr.f32.gmra.mrb[0].mxu0 %v371
  %v471 = vpop.f32.mrb[0].mxu0
  %v472 = vadd.f32 %v335, %v471
  %v473 = vpop.f32.mrb[0].mxu0
  %474 = vmatprep.mubr.f32.mxu0 0.0
  %475 = vmatmul.mubr.f32.gmra.mrb[0].mxu0 %v374
  %v476 = vpop.f32.mrb[0].mxu0
  %v477 = vadd.f32 %v340, %v476
  %v478 = vpop.f32.mrb[0].mxu0
  %479 = vmatprep.mubr.f32.mxu0 0.0
  %480 = vmatmul.mubr.f32.gmra.mrb[0].mxu0 %v377
  %v481 = vpop.f32.mrb[0].mxu0
  %v482 = vadd.f32 %v345, %v481
  %v483 = vpop.f32.mrb[0].mxu0
  %484 = vmatprep.mubr.f32.mxu0 0.0
  %485 = vmatmul.mubr.f32.gmra.mrb[0].mxu0 %v380
  %v486 = vpop.f32.mrb[0].mxu0
  %v487 = vadd.f32 %v350, %v486
  %v488 = vpop.f32.mrb[0].mxu0
  %489 = vmatprep.mubr.f32.mxu0 0.0
  %490 = vmatmul.mubr.f32.gmra.mrb[0].mxu0 %v383
  %v491 = vpop.f32.mrb[0].mxu0
  %v492 = vadd.f32 %v355, %v491
  %v493 = vpop.f32.mrb[0].mxu0
  %494 = vdwg.mxu0
  %v495 = vld [vmem:[#allocation2 + $0xc] sm:$0xff]
  %v496 = vld [vmem:[#allocation2 + $0x14] sm:$0xff]
  %v497 = vld [vmem:[#allocation2 + $0x1c] sm:$0xff]
  %v498 = vld [vmem:[#allocation2 + $0x24] sm:$0xff]
  %v499 = vld [vmem:[#allocation2 + $0x2c] sm:$0xff]
  %v500 = vld [vmem:[#allocation2 + $0x34] sm:$0xff]
  %v501 = vld [vmem:[#allocation2 + $0x3c] sm:$0xff]
  %v502 = vld [vmem:[#allocation2 + $0x44] sm:$0xff]
  %v503 = vld [vmem:[#allocation2 + $0x4c] sm:$0xff]
  %s504 = scalar_lea.vmem %s1, 192
  %v505 = vld [vmem:[%s504] sm:$0xff]
  %v506 = vld [vmem:[%s504 + $0x8] sm:$0xff]
  %v507 = vld [vmem:[%s504 + $0x10] sm:$0xff]
  %v508 = vld [vmem:[%s504 + $0x18] sm:$0xff]
  %v509 = vld [vmem:[%s504 + $0x20] sm:$0xff]
  %v510 = vld [vmem:[%s504 + $0x28] sm:$0xff]
  %v511 = vld [vmem:[%s504 + $0x30] sm:$0xff]
  %v512 = vld [vmem:[%s504 + $0x38] sm:$0xff]
  %v513 = vld [vmem:[%s504 + $0x40] sm:$0xff]
  %v514 = vld [vmem:[%s504 + $0x48] sm:$0xff]
  %v515 = vld [vmem:[%s504 + $0x50] sm:$0xff]
  %v516 = vld [vmem:[%s504 + $0x58] sm:$0xff]
  %v518 = vsel %vm220, %v495, 0
  %v521 = vsel %vm220, %v496, 0
  %v524 = vsel %vm220, %v497, 0
  %v527 = vsel %vm220, %v498, 0
  %v530 = vsel %vm220, %v499, 0
  %v533 = vsel %vm220, %v500, 0
  %v536 = vsel %vm220, %v501, 0
  %v539 = vsel %vm220, %v502, 0
  %v542 = vsel %vm220, %v503, 0
  %544 = vmatprep.subr.mxu0 0.0
  %545 = vmatpush1.msra.mxu0 %v505
  %546 = vmatprep.subr.mxu0 0.0
  %547 = vmatpush1.msra.mxu0 %v506
  %548 = vmatprep.subr.mxu0 0.0
  %549 = vmatpush1.msra.mxu0 %v507
  %550 = vmatprep.subr.mxu0 0.0
  %551 = vmatpush1.msra.mxu0 %v508
  %552 = vmatprep.subr.mxu0 0.0
  %553 = vmatpush1.msra.mxu0 %v509
  %554 = vmatprep.subr.mxu0 0.0
  %555 = vmatpush1.msra.mxu0 %v510
  %556 = vmatprep.subr.mxu0 0.0
  %557 = vmatpush1.msra.mxu0 %v511
  %558 = vmatprep.subr.mxu0 0.0
  %559 = vmatpush1.msra.mxu0 %v512
  %560 = vmatprep.subr.mxu0 0.0
  %561 = vmatpush1.msra.mxu0 %v513
  %562 = vmatprep.subr.mxu0 0.0
  %563 = vmatpush1.msra.mxu0 %v514
  %564 = vmatprep.subr.mxu0 0.0
  %565 = vmatpush1.msra.mxu0 %v515
  %566 = vmatprep.subr.mxu0 0.0
  %567 = vmatpush1.msra.mxu0 %v516
  %568 = vmatprep.subr.mxu0 0.0
  %569 = vmatpush1.msra.mxu0 0.0
  %570 = vmatprep.subr.mxu0 0.0
  %571 = vmatpush1.msra.mxu0 0.0
  %572 = vmatprep.subr.mxu0 0.0
  %573 = vmatpush1.msra.mxu0 0.0
  %574 = vmatprep.subr.mxu0 0.0
  %575 = vmatpush1.msra.mxu0 0.0
  %576 = vmatprep.subr.mxu0 0.0
  %577 = vmatpush1.msra.mxu0 0.0
  %578 = vmatprep.subr.mxu0 0.0
  %579 = vmatpush1.msra.mxu0 0.0
  %580 = vmatprep.subr.mxu0 0.0
  %581 = vmatpush1.msra.mxu0 0.0
  %582 = vmatprep.subr.mxu0 0.0
  %583 = vmatpush1.msra.mxu0 0.0
  %584 = vmatprep.subr.mxu0 0.0
  %585 = vmatpush1.msra.mxu0 0.0
  %586 = vmatprep.subr.mxu0 0.0
  %587 = vmatpush1.msra.mxu0 0.0
  %588 = vmatprep.subr.mxu0 0.0
  %589 = vmatpush1.msra.mxu0 0.0
  %590 = vmatprep.subr.mxu0 0.0
  %591 = vmatpush1.msra.mxu0 0.0
  %592 = vmatprep.subr.mxu0 0.0
  %593 = vmatpush1.msra.mxu0 0.0
  %594 = vmatprep.subr.mxu0 0.0
  %595 = vmatpush1.msra.mxu0 0.0
  %596 = vmatprep.subr.mxu0 0.0
  %597 = vmatpush1.msra.mxu0 0.0
  %598 = vmatprep.subr.mxu0 0.0
  %599 = vmatpush1.msra.mxu0 0.0
  %600 = vmatprep.subr.mxu0 0.0
  %601 = vmatpush1.msra.mxu0 0.0
  %602 = vmatprep.subr.mxu0 0.0
  %603 = vmatpush1.msra.mxu0 0.0
  %604 = vmatprep.subr.mxu0 0.0
  %605 = vmatpush1.msra.mxu0 0.0
  %606 = vmatprep.subr.mxu0 0.0
  %607 = vmatpush1.msra.mxu0 0.0
  %608 = vmatprep.mubr.f32.mxu0 0.0
  %609 = vmatmul.mubr.f32.gmra.mrb[0].mxu0 %v518
  %v610 = vpop.f32.mrb[0].mxu0
  %v611 = vadd.f32 0.0, %v610
  %v612 = vpop.f32.mrb[0].mxu0
  %613 = vmatprep.mubr.f32.mxu0 0.0
  %614 = vmatmul.mubr.f32.gmra.mrb[0].mxu0 %v521
  %v615 = vpop.f32.mrb[0].mxu0
  %v616 = vadd.f32 0.0, %v615
  %v617 = vpop.f32.mrb[0].mxu0
  %618 = vmatprep.mubr.f32.mxu0 0.0
  %619 = vmatmul.mubr.f32.gmra.mrb[0].mxu0 %v524
  %v620 = vpop.f32.mrb[0].mxu0
  %v621 = vadd.f32 0.0, %v620
  %v622 = vpop.f32.mrb[0].mxu0
  %623 = vmatprep.mubr.f32.mxu0 0.0
  %624 = vmatmul.mubr.f32.gmra.mrb[0].mxu0 %v527
  %v625 = vpop.f32.mrb[0].mxu0
  %v626 = vadd.f32 0.0, %v625
  %v627 = vpop.f32.mrb[0].mxu0
  %628 = vmatprep.mubr.f32.mxu0 0.0
  %629 = vmatmul.mubr.f32.gmra.mrb[0].mxu0 %v530
  %v630 = vpop.f32.mrb[0].mxu0
  %v631 = vadd.f32 0.0, %v630
  %v632 = vpop.f32.mrb[0].mxu0
  %633 = vmatprep.mubr.f32.mxu0 0.0
  %634 = vmatmul.mubr.f32.gmra.mrb[0].mxu0 %v533
  %v635 = vpop.f32.mrb[0].mxu0
  %v636 = vadd.f32 0.0, %v635
  %v637 = vpop.f32.mrb[0].mxu0
  %638 = vmatprep.mubr.f32.mxu0 0.0
  %639 = vmatmul.mubr.f32.gmra.mrb[0].mxu0 %v536
  %v640 = vpop.f32.mrb[0].mxu0
  %v641 = vadd.f32 0.0, %v640
  %v642 = vpop.f32.mrb[0].mxu0
  %643 = vmatprep.mubr.f32.mxu0 0.0
  %644 = vmatmul.mubr.f32.gmra.mrb[0].mxu0 %v539
  %v645 = vpop.f32.mrb[0].mxu0
  %v646 = vadd.f32 0.0, %v645
  %v647 = vpop.f32.mrb[0].mxu0
  %648 = vmatprep.mubr.f32.mxu0 0.0
  %649 = vmatmul.mubr.f32.gmra.mrb[0].mxu0 %v542
  %v650 = vpop.f32.mrb[0].mxu0
  %v651 = vadd.f32 0.0, %v650
  %v652 = vpop.f32.mrb[0].mxu0
  %653 = vdwg.mxu0
  %v654 = vadd.f32 %v452, %v611
  %v655 = vadd.f32 %v457, %v616
  %v656 = vadd.f32 %v462, %v621
  %v657 = vadd.f32 %v467, %v626
  %v658 = vadd.f32 %v472, %v631
  %v659 = vadd.f32 %v477, %v636
  %v660 = vadd.f32 %v482, %v641
  %v661 = vadd.f32 %v487, %v646
  %v662 = vadd.f32 %v492, %v651
  %v663 = vld [vmem:[%s2] sm:$0x1]
  %v665 = vlaneseq
  %v666 = vshrl.u32 %v665, 7
  %v667 = vsub.s32 0, %v666
  %v668 = vrot.slane %v663, %v667
  %v670 = vmul.f32 %v654, %v668
  %v671 = vmul.f32 %v655, %v668
  %v672 = vmul.f32 %v656, %v668
  %v673 = vmul.f32 %v657, %v668
  %v674 = vmul.f32 %v658, %v668
  %v675 = vmul.f32 %v659, %v668
  %v676 = vmul.f32 %v660, %v668
  %v677 = vmul.f32 %v661, %v668
  %v678 = vmul.f32 %v662, %v668
  %v679 = vld [vmem:[%s3] sm:$0x1]
  %v681 = vlaneseq
  %v682 = vshrl.u32 %v681, 7
  %v683 = vsub.s32 0, %v682
  %v684 = vrot.slane %v679, %v683
  %v686 = vadd.f32 %v670, %v684
  %v687 = vadd.f32 %v671, %v684
  %v688 = vadd.f32 %v672, %v684
  %v689 = vadd.f32 %v673, %v684
  %v690 = vadd.f32 %v674, %v684
  %v691 = vadd.f32 %v675, %v684
  %v692 = vadd.f32 %v676, %v684
  %v693 = vadd.f32 %v677, %v684
  %v694 = vadd.f32 %v678, %v684
  %v695 = vmax.f32 %v686, 0.0
  %v696 = vmax.f32 %v687, 0.0
  %v697 = vmax.f32 %v688, 0.0
  %v698 = vmax.f32 %v689, 0.0
  %v699 = vmax.f32 %v690, 0.0
  %v700 = vmax.f32 %v691, 0.0
  %v701 = vmax.f32 %v692, 0.0
  %v702 = vmax.f32 %v693, 0.0
  %v703 = vmax.f32 %v694, 0.0
  %704 = vst.msk [vmem:[#allocation3] sm:$0xff] %vm28, %v695
  %705 = vst.msk [vmem:[#allocation3 + $0x8] sm:$0xff] %vm28, %v696
  %706 = vst.msk [vmem:[#allocation3 + $0x10] sm:$0xff] %vm28, %v697
  %707 = vst.msk [vmem:[#allocation3 + $0x18] sm:$0xff] %vm28, %v698
  %708 = vst.msk [vmem:[#allocation3 + $0x20] sm:$0xff] %vm28, %v699
  %709 = vst.msk [vmem:[#allocation3 + $0x28] sm:$0xff] %vm28, %v700
  %710 = vst.msk [vmem:[#allocation3 + $0x30] sm:$0xff] %vm28, %v701
  %711 = vst.msk [vmem:[#allocation3 + $0x38] sm:$0xff] %vm28, %v702
  %712 = vst.msk [vmem:[#allocation3 + $0x40] sm:$0xff] %vm28, %v703
  %v713 = vld [vmem:[#allocation3] ss:$2 sm:$0x3]
  %s714 = scalar_lea.vmem [#allocation3], 1
  %v715 = vld [vmem:[%s714] ss:$2 sm:$0x3]
  %v716 = vadd.f32 %v713, %v715
  %s717 = scalar_lea.vmem [#allocation3], 6
  %v718 = vld [vmem:[%s717] ss:$2 sm:$0x3]
  %v719 = vadd.f32 %v716, %v718
  %s720 = scalar_lea.vmem [#allocation3], 7
  %v721 = vld [vmem:[%s720] ss:$2 sm:$0x3]
  %v722 = vadd.f32 %v719, %v721
  %v723 = vmul.f32 %v722, 0.25
  %vm724 = vcmask 254976
  %725 = vst.msk [vmem:[%s4] sm:$0x3] %vm724, %v723
  %s726 = scalar_lea.vmem [#allocation3], 12
  %v727 = vld [vmem:[%s726] ss:$2 sm:$0x3]
  %s728 = scalar_lea.vmem [#allocation3], 13
  %v729 = vld [vmem:[%s728] ss:$2 sm:$0x3]
  %v730 = vadd.f32 %v727, %v729
  %s731 = scalar_lea.vmem [#allocation3], 18
  %v732 = vld [vmem:[%s731] ss:$2 sm:$0x3]
  %v733 = vadd.f32 %v730, %v732
  %s734 = scalar_lea.vmem [#allocation3], 19
  %v735 = vld [vmem:[%s734] ss:$2 sm:$0x3]
  %v736 = vadd.f32 %v733, %v735
  %v737 = vmul.f32 %v736, 0.25
  %s738 = scalar_lea.vmem %s4, 2
  %739 = vst.msk [vmem:[%s738] sm:$0x3] %vm724, %v737
  %s740 = scalar_lea.vmem [#allocation3], 48
  %v741 = vld [vmem:[%s740] ss:$2 sm:$0x3]
  %s742 = scalar_lea.vmem [#allocation3], 49
  %v743 = vld [vmem:[%s742] ss:$2 sm:$0x3]
  %v744 = vadd.f32 %v741, %v743
  %s745 = scalar_lea.vmem [#allocation3], 54
  %v746 = vld [vmem:[%s745] ss:$2 sm:$0x3]
  %v747 = vadd.f32 %v744, %v746
  %s748 = scalar_lea.vmem [#allocation3], 55
  %v749 = vld [vmem:[%s748] ss:$2 sm:$0x3]
  %v750 = vadd.f32 %v747, %v749
  %v751 = vmul.f32 %v750, 0.25
  %s752 = scalar_lea.vmem %s4, 4
  %753 = vst.msk [vmem:[%s752] sm:$0x3] %vm724, %v751
  %s754 = scalar_lea.vmem [#allocation3], 60
  %v755 = vld [vmem:[%s754] ss:$2 sm:$0x3]
  %s756 = scalar_lea.vmem [#allocation3], 61
  %v757 = vld [vmem:[%s756] ss:$2 sm:$0x3]
  %v758 = vadd.f32 %v755, %v757
  %s759 = scalar_lea.vmem [#allocation3], 66
  %v760 = vld [vmem:[%s759] ss:$2 sm:$0x3]
  %v761 = vadd.f32 %v758, %v760
  %s762 = scalar_lea.vmem [#allocation3], 67
  %v763 = vld [vmem:[%s762] ss:$2 sm:$0x3]
  %v764 = vadd.f32 %v761, %v763
  %v765 = vmul.f32 %v764, 0.25
  %s766 = scalar_lea.vmem %s4, 6
  %767 = vst.msk [vmem:[%s766] sm:$0x3] %vm724, %v765
  // Predicated region
  $region18: #{hourglass_forward.8} parent=0 // pred_check
    _
  $region19: #{hourglass_forward.8} parent=0 // pred_check_branch
    %769 = sbr.rel (0) target = $region21
  $region20: #{hourglass_forward.8} parent=0 // pred_region
    _
  $region21: #{hourglass_forward.8} parent=0 // pred_fallthru
    _
  // Predicated region
  $region22: #{hourglass_forward.8} parent=0 // pred_check
    _
  $region23: #{hourglass_forward.8} parent=0 // pred_check_branch
    %771 = sbr.rel (0) target = $region25
  $region24: #{hourglass_forward.8} parent=0 // pred_region
    _
  $region25: #{hourglass_forward.8} parent=0 // pred_fallthru
    _

// kernel: hourglass_forward.7
$region0: #{hourglass_forward.7}
  #allocation0 [shape = 'u32[]', space=smem, size = 0x4, offset = 0x4, fixed_abs, tag = 'smem constant byte address 0x4 - core index']
  #allocation1 [shape = 'u32[144,128]{1,0:T(1,128)}', space=vmem, size = 0x12000, scoped, tag = 'internal scratch']
  #allocation2 [shape = 'f32[212,48]{1,0:T(8,128)}', space=vmem, size = 0x1b000, scoped, tag = 'scratch operand']
  #allocation3 [shape = 'f32[192,32]{1,0:T(8,128)}', space=vmem, size = 0x18000, scoped, tag = 'scratch operand']
  %s0 = inlined_call_operand.vmem [shape: f32[224,16], index: 0, kind: input, shape index: {}]
  %s1 = inlined_call_operand.vmem [shape: f32[3,48,32], index: 1, kind: input, shape index: {}]
  %s2 = inlined_call_operand.vmem [shape: f32[1,32], index: 2, kind: input, shape index: {}]
  %s3 = inlined_call_operand.vmem [shape: f32[1,32], index: 3, kind: input, shape index: {}]
  %s4 = inlined_call_operand.vmem [shape: f32[2,4,4,32], index: 4, kind: output, shape index: {}]
  %s5 = sld [smem:[#allocation0]]
  $region26: #{hourglass_forward.7} parent=0
    _
  %s7 = ssub.s32 1, %s5
  %s8 = scalar_select 0, %s7, %s5
  // Predicated region
  $region2: #{hourglass_forward.7} parent=0 // pred_check
    _
  $region3: #{hourglass_forward.7} parent=0 // pred_check_branch
    %10 = sbr.rel (0) target = $region5
  $region4: #{hourglass_forward.7} parent=0 // pred_region
    _
  $region5: #{hourglass_forward.7} parent=0 // pred_fallthru
    _
  // Predicated region
  $region6: #{hourglass_forward.7} parent=0 // pred_check
    _
  $region7: #{hourglass_forward.7} parent=0 // pred_check_branch
    %12 = sbr.rel (0) target = $region9
  $region8: #{hourglass_forward.7} parent=0 // pred_region
    _
  $region9: #{hourglass_forward.7} parent=0 // pred_fallthru
    _
  // Predicated region
  $region10: #{hourglass_forward.7} parent=0 // pred_check
    _
  $region11: #{hourglass_forward.7} parent=0 // pred_check_branch
    %14 = sbr.rel (0) target = $region13
  $region12: #{hourglass_forward.7} parent=0 // pred_region
    _
  $region13: #{hourglass_forward.7} parent=0 // pred_fallthru
    _
  // Predicated region
  $region14: #{hourglass_forward.7} parent=0 // pred_check
    _
  $region15: #{hourglass_forward.7} parent=0 // pred_check_branch
    %16 = sbr.rel (0) target = $region17
  $region16: #{hourglass_forward.7} parent=0 // pred_region
    _
  $region17: #{hourglass_forward.7} parent=0 // pred_fallthru
    _
  %v17 = vld [vmem:[%s0] sm:$0xff]
  %v18 = vld [vmem:[%s0 + $0x8] sm:$0xff]
  %v19 = vld [vmem:[%s0 + $0x10] sm:$0xff]
  %v20 = vld [vmem:[%s0 + $0x18] sm:$0xff]
  %v21 = vld [vmem:[%s0 + $0x20] sm:$0xff]
  %v22 = vld [vmem:[%s0 + $0x28] sm:$0xff]
  %v23 = vld [vmem:[%s0 + $0x30] sm:$0xff]
  %v24 = vld [vmem:[%s0 + $0x38] sm:$0xff]
  %v25 = vld [vmem:[%s0 + $0x40] sm:$0xff]
  %v26 = vld [vmem:[%s0 + $0x48] sm:$0xff]
  %v27 = vld [vmem:[%s0 + $0x50] sm:$0xff]
  %v28 = vld [vmem:[%s0 + $0x58] sm:$0xff]
  %v29 = vld [vmem:[%s0 + $0x60] sm:$0xff]
  %v30 = vld [vmem:[%s0 + $0x68] sm:$0xff]
  %v31 = vld [vmem:[%s0 + $0x70] sm:$0xff]
  %v32 = vld [vmem:[%s0 + $0x78] sm:$0xff]
  %v33 = vld [vmem:[%s0 + $0x80] sm:$0xff]
  %v34 = vld [vmem:[%s0 + $0x88] sm:$0xff]
  %v35 = vld [vmem:[%s0 + $0x90] sm:$0xff]
  %v36 = vld [vmem:[%s0 + $0x98] sm:$0xff]
  %v37 = vld [vmem:[%s0 + $0xa0] sm:$0xff]
  %v38 = vld [vmem:[%s0 + $0xa8] sm:$0xff]
  %v39 = vld [vmem:[%s0 + $0xb0] sm:$0xff]
  %v40 = vld [vmem:[%s0 + $0xb8] sm:$0xff]
  %v41 = vld [vmem:[%s0 + $0xc0] sm:$0xff]
  %v42 = vld [vmem:[%s0 + $0xc8] sm:$0xff]
  %v43 = vld [vmem:[%s0 + $0xd0] sm:$0xf]
  %vm44 = vcmask 130048
  %45 = vst.msk [vmem:[#allocation2] sm:$0xff] %vm44, %v17
  %46 = vst.msk [vmem:[#allocation2 + $0x8] sm:$0xff] %vm44, %v18
  %47 = vst.msk [vmem:[#allocation2 + $0x10] sm:$0xff] %vm44, %v19
  %48 = vst.msk [vmem:[#allocation2 + $0x18] sm:$0xff] %vm44, %v20
  %49 = vst.msk [vmem:[#allocation2 + $0x20] sm:$0xff] %vm44, %v21
  %50 = vst.msk [vmem:[#allocation2 + $0x28] sm:$0xff] %vm44, %v22
  %51 = vst.msk [vmem:[#allocation2 + $0x30] sm:$0xff] %vm44, %v23
  %52 = vst.msk [vmem:[#allocation2 + $0x38] sm:$0xff] %vm44, %v24
  %53 = vst.msk [vmem:[#allocation2 + $0x40] sm:$0xff] %vm44, %v25
  %54 = vst.msk [vmem:[#allocation2 + $0x48] sm:$0xff] %vm44, %v26
  %55 = vst.msk [vmem:[#allocation2 + $0x50] sm:$0xff] %vm44, %v27
  %56 = vst.msk [vmem:[#allocation2 + $0x58] sm:$0xff] %vm44, %v28
  %57 = vst.msk [vmem:[#allocation2 + $0x60] sm:$0xff] %vm44, %v29
  %58 = vst.msk [vmem:[#allocation2 + $0x68] sm:$0xff] %vm44, %v30
  %59 = vst.msk [vmem:[#allocation2 + $0x70] sm:$0xff] %vm44, %v31
  %60 = vst.msk [vmem:[#allocation2 + $0x78] sm:$0xff] %vm44, %v32
  %61 = vst.msk [vmem:[#allocation2 + $0x80] sm:$0xff] %vm44, %v33
  %62 = vst.msk [vmem:[#allocation2 + $0x88] sm:$0xff] %vm44, %v34
  %63 = vst.msk [vmem:[#allocation2 + $0x90] sm:$0xff] %vm44, %v35
  %64 = vst.msk [vmem:[#allocation2 + $0x98] sm:$0xff] %vm44, %v36
  %65 = vst.msk [vmem:[#allocation2 + $0xa0] sm:$0xff] %vm44, %v37
  %66 = vst.msk [vmem:[#allocation2 + $0xa8] sm:$0xff] %vm44, %v38
  %67 = vst.msk [vmem:[#allocation2 + $0xb0] sm:$0xff] %vm44, %v39
  %68 = vst.msk [vmem:[#allocation2 + $0xb8] sm:$0xff] %vm44, %v40
  %69 = vst.msk [vmem:[#allocation2 + $0xc0] sm:$0xff] %vm44, %v41
  %70 = vst.msk [vmem:[#allocation2 + $0xc8] sm:$0xff] %vm44, %v42
  %vm71 = vcmask 125952
  %72 = vst.msk [vmem:[#allocation2 + $0xd0] sm:$0xf] %vm71, %v43
  %v73 = vld [vmem:[%s0 + $0x1] sm:$0xff]
  %v74 = vld [vmem:[%s0 + $0x9] sm:$0xff]
  %v75 = vld [vmem:[%s0 + $0x11] sm:$0xff]
  %v76 = vld [vmem:[%s0 + $0x19] sm:$0xff]
  %v77 = vld [vmem:[%s0 + $0x21] sm:$0xff]
  %v78 = vld [vmem:[%s0 + $0x29] sm:$0xff]
  %v79 = vld [vmem:[%s0 + $0x31] sm:$0xff]
  %v80 = vld [vmem:[%s0 + $0x39] sm:$0xff]
  %v81 = vld [vmem:[%s0 + $0x41] sm:$0xff]
  %v82 = vld [vmem:[%s0 + $0x49] sm:$0xff]
  %v83 = vld [vmem:[%s0 + $0x51] sm:$0xff]
  %v84 = vld [vmem:[%s0 + $0x59] sm:$0xff]
  %v85 = vld [vmem:[%s0 + $0x61] sm:$0xff]
  %v86 = vld [vmem:[%s0 + $0x69] sm:$0xff]
  %v87 = vld [vmem:[%s0 + $0x71] sm:$0xff]
  %v88 = vld [vmem:[%s0 + $0x79] sm:$0xff]
  %v89 = vld [vmem:[%s0 + $0x81] sm:$0xff]
  %v90 = vld [vmem:[%s0 + $0x89] sm:$0xff]
  %v91 = vld [vmem:[%s0 + $0x91] sm:$0xff]
  %v92 = vld [vmem:[%s0 + $0x99] sm:$0xff]
  %v93 = vld [vmem:[%s0 + $0xa1] sm:$0xff]
  %v94 = vld [vmem:[%s0 + $0xa9] sm:$0xff]
  %v95 = vld [vmem:[%s0 + $0xb1] sm:$0xff]
  %v96 = vld [vmem:[%s0 + $0xb9] sm:$0xff]
  %v97 = vld [vmem:[%s0 + $0xc1] sm:$0xff]
  %v98 = vld [vmem:[%s0 + $0xc9] sm:$0xff]
  %v99 = vld [vmem:[%s0 + $0xd1] sm:$0xf]
  %127 = vrot.lane.b32.xlu0 %v73, 16
  %v128 = vpop.permute.xlu0 %127
  %129 = vrot.lane.b32.xlu0 %v74, 16
  %v130 = vpop.permute.xlu0 %129
  %131 = vrot.lane.b32.xlu0 %v75, 16
  %v132 = vpop.permute.xlu0 %131
  %133 = vrot.lane.b32.xlu0 %v76, 16
  %v134 = vpop.permute.xlu0 %133
  %135 = vrot.lane.b32.xlu0 %v77, 16
  %v136 = vpop.permute.xlu0 %135
  %137 = vrot.lane.b32.xlu0 %v78, 16
  %v138 = vpop.permute.xlu0 %137
  %139 = vrot.lane.b32.xlu0 %v79, 16
  %v140 = vpop.permute.xlu0 %139
  %141 = vrot.lane.b32.xlu0 %v80, 16
  %v142 = vpop.permute.xlu0 %141
  %143 = vrot.lane.b32.xlu0 %v81, 16
  %v144 = vpop.permute.xlu0 %143
  %145 = vrot.lane.b32.xlu0 %v82, 16
  %v146 = vpop.permute.xlu0 %145
  %147 = vrot.lane.b32.xlu0 %v83, 16
  %v148 = vpop.permute.xlu0 %147
  %149 = vrot.lane.b32.xlu0 %v84, 16
  %v150 = vpop.permute.xlu0 %149
  %151 = vrot.lane.b32.xlu0 %v85, 16
  %v152 = vpop.permute.xlu0 %151
  %153 = vrot.lane.b32.xlu0 %v86, 16
  %v154 = vpop.permute.xlu0 %153
  %155 = vrot.lane.b32.xlu0 %v87, 16
  %v156 = vpop.permute.xlu0 %155
  %157 = vrot.lane.b32.xlu0 %v88, 16
  %v158 = vpop.permute.xlu0 %157
  %159 = vrot.lane.b32.xlu0 %v89, 16
  %v160 = vpop.permute.xlu0 %159
  %161 = vrot.lane.b32.xlu0 %v90, 16
  %v162 = vpop.permute.xlu0 %161
  %163 = vrot.lane.b32.xlu0 %v91, 16
  %v164 = vpop.permute.xlu0 %163
  %165 = vrot.lane.b32.xlu0 %v92, 16
  %v166 = vpop.permute.xlu0 %165
  %167 = vrot.lane.b32.xlu0 %v93, 16
  %v168 = vpop.permute.xlu0 %167
  %169 = vrot.lane.b32.xlu0 %v94, 16
  %v170 = vpop.permute.xlu0 %169
  %171 = vrot.lane.b32.xlu0 %v95, 16
  %v172 = vpop.permute.xlu0 %171
  %173 = vrot.lane.b32.xlu0 %v96, 16
  %v174 = vpop.permute.xlu0 %173
  %175 = vrot.lane.b32.xlu0 %v97, 16
  %v176 = vpop.permute.xlu0 %175
  %177 = vrot.lane.b32.xlu0 %v98, 16
  %v178 = vpop.permute.xlu0 %177
  %179 = vrot.lane.b32.xlu0 %v99, 16
  %v180 = vpop.permute.xlu0 %179
  %vm208 = vcmask 261248
  %209 = vst.msk [vmem:[#allocation2] sm:$0xff] %vm208, %v128
  %210 = vst.msk [vmem:[#allocation2 + $0x8] sm:$0xff] %vm208, %v130
  %211 = vst.msk [vmem:[#allocation2 + $0x10] sm:$0xff] %vm208, %v132
  %212 = vst.msk [vmem:[#allocation2 + $0x18] sm:$0xff] %vm208, %v134
  %213 = vst.msk [vmem:[#allocation2 + $0x20] sm:$0xff] %vm208, %v136
  %214 = vst.msk [vmem:[#allocation2 + $0x28] sm:$0xff] %vm208, %v138
  %215 = vst.msk [vmem:[#allocation2 + $0x30] sm:$0xff] %vm208, %v140
  %216 = vst.msk [vmem:[#allocation2 + $0x38] sm:$0xff] %vm208, %v142
  %217 = vst.msk [vmem:[#allocation2 + $0x40] sm:$0xff] %vm208, %v144
  %218 = vst.msk [vmem:[#allocation2 + $0x48] sm:$0xff] %vm208, %v146
  %219 = vst.msk [vmem:[#allocation2 + $0x50] sm:$0xff] %vm208, %v148
  %220 = vst.msk [vmem:[#allocation2 + $0x58] sm:$0xff] %vm208, %v150
  %221 = vst.msk [vmem:[#allocation2 + $0x60] sm:$0xff] %vm208, %v152
  %222 = vst.msk [vmem:[#allocation2 + $0x68] sm:$0xff] %vm208, %v154
  %223 = vst.msk [vmem:[#allocation2 + $0x70] sm:$0xff] %vm208, %v156
  %224 = vst.msk [vmem:[#allocation2 + $0x78] sm:$0xff] %vm208, %v158
  %225 = vst.msk [vmem:[#allocation2 + $0x80] sm:$0xff] %vm208, %v160
  %226 = vst.msk [vmem:[#allocation2 + $0x88] sm:$0xff] %vm208, %v162
  %227 = vst.msk [vmem:[#allocation2 + $0x90] sm:$0xff] %vm208, %v164
  %228 = vst.msk [vmem:[#allocation2 + $0x98] sm:$0xff] %vm208, %v166
  %229 = vst.msk [vmem:[#allocation2 + $0xa0] sm:$0xff] %vm208, %v168
  %230 = vst.msk [vmem:[#allocation2 + $0xa8] sm:$0xff] %vm208, %v170
  %231 = vst.msk [vmem:[#allocation2 + $0xb0] sm:$0xff] %vm208, %v172
  %232 = vst.msk [vmem:[#allocation2 + $0xb8] sm:$0xff] %vm208, %v174
  %233 = vst.msk [vmem:[#allocation2 + $0xc0] sm:$0xff] %vm208, %v176
  %234 = vst.msk [vmem:[#allocation2 + $0xc8] sm:$0xff] %vm208, %v178
  %vm235 = vcmask 257152
  %236 = vst.msk [vmem:[#allocation2 + $0xd0] sm:$0xf] %vm235, %v180
  %v237 = vld [vmem:[%s0 + $0x2] sm:$0xff]
  %v238 = vld [vmem:[%s0 + $0xa] sm:$0xff]
  %v239 = vld [vmem:[%s0 + $0x12] sm:$0xff]
  %v240 = vld [vmem:[%s0 + $0x1a] sm:$0xff]
  %v241 = vld [vmem:[%s0 + $0x22] sm:$0xff]
  %v242 = vld [vmem:[%s0 + $0x2a] sm:$0xff]
  %v243 = vld [vmem:[%s0 + $0x32] sm:$0xff]
  %v244 = vld [vmem:[%s0 + $0x3a] sm:$0xff]
  %v245 = vld [vmem:[%s0 + $0x42] sm:$0xff]
  %v246 = vld [vmem:[%s0 + $0x4a] sm:$0xff]
  %v247 = vld [vmem:[%s0 + $0x52] sm:$0xff]
  %v248 = vld [vmem:[%s0 + $0x5a] sm:$0xff]
  %v249 = vld [vmem:[%s0 + $0x62] sm:$0xff]
  %v250 = vld [vmem:[%s0 + $0x6a] sm:$0xff]
  %v251 = vld [vmem:[%s0 + $0x72] sm:$0xff]
  %v252 = vld [vmem:[%s0 + $0x7a] sm:$0xff]
  %v253 = vld [vmem:[%s0 + $0x82] sm:$0xff]
  %v254 = vld [vmem:[%s0 + $0x8a] sm:$0xff]
  %v255 = vld [vmem:[%s0 + $0x92] sm:$0xff]
  %v256 = vld [vmem:[%s0 + $0x9a] sm:$0xff]
  %v257 = vld [vmem:[%s0 + $0xa2] sm:$0xff]
  %v258 = vld [vmem:[%s0 + $0xaa] sm:$0xff]
  %v259 = vld [vmem:[%s0 + $0xb2] sm:$0xff]
  %v260 = vld [vmem:[%s0 + $0xba] sm:$0xff]
  %v261 = vld [vmem:[%s0 + $0xc2] sm:$0xff]
  %v262 = vld [vmem:[%s0 + $0xca] sm:$0xff]
  %v263 = vld [vmem:[%s0 + $0xd2] sm:$0xf]
  %291 = vrot.lane.b32.xlu0 %v237, 32
  %v292 = vpop.permute.xlu0 %291
  %293 = vrot.lane.b32.xlu0 %v238, 32
  %v294 = vpop.permute.xlu0 %293
  %295 = vrot.lane.b32.xlu0 %v239, 32
  %v296 = vpop.permute.xlu0 %295
  %297 = vrot.lane.b32.xlu0 %v240, 32
  %v298 = vpop.permute.xlu0 %297
  %299 = vrot.lane.b32.xlu0 %v241, 32
  %v300 = vpop.permute.xlu0 %299
  %301 = vrot.lane.b32.xlu0 %v242, 32
  %v302 = vpop.permute.xlu0 %301
  %303 = vrot.lane.b32.xlu0 %v243, 32
  %v304 = vpop.permute.xlu0 %303
  %305 = vrot.lane.b32.xlu0 %v244, 32
  %v306 = vpop.permute.xlu0 %305
  %307 = vrot.lane.b32.xlu0 %v245, 32
  %v308 = vpop.permute.xlu0 %307
  %309 = vrot.lane.b32.xlu0 %v246, 32
  %v310 = vpop.permute.xlu0 %309
  %311 = vrot.lane.b32.xlu0 %v247, 32
  %v312 = vpop.permute.xlu0 %311
  %313 = vrot.lane.b32.xlu0 %v248, 32
  %v314 = vpop.permute.xlu0 %313
  %315 = vrot.lane.b32.xlu0 %v249, 32
  %v316 = vpop.permute.xlu0 %315
  %317 = vrot.lane.b32.xlu0 %v250, 32
  %v318 = vpop.permute.xlu0 %317
  %319 = vrot.lane.b32.xlu0 %v251, 32
  %v320 = vpop.permute.xlu0 %319
  %321 = vrot.lane.b32.xlu0 %v252, 32
  %v322 = vpop.permute.xlu0 %321
  %323 = vrot.lane.b32.xlu0 %v253, 32
  %v324 = vpop.permute.xlu0 %323
  %325 = vrot.lane.b32.xlu0 %v254, 32
  %v326 = vpop.permute.xlu0 %325
  %327 = vrot.lane.b32.xlu0 %v255, 32
  %v328 = vpop.permute.xlu0 %327
  %329 = vrot.lane.b32.xlu0 %v256, 32
  %v330 = vpop.permute.xlu0 %329
  %331 = vrot.lane.b32.xlu0 %v257, 32
  %v332 = vpop.permute.xlu0 %331
  %333 = vrot.lane.b32.xlu0 %v258, 32
  %v334 = vpop.permute.xlu0 %333
  %335 = vrot.lane.b32.xlu0 %v259, 32
  %v336 = vpop.permute.xlu0 %335
  %337 = vrot.lane.b32.xlu0 %v260, 32
  %v338 = vpop.permute.xlu0 %337
  %339 = vrot.lane.b32.xlu0 %v261, 32
  %v340 = vpop.permute.xlu0 %339
  %341 = vrot.lane.b32.xlu0 %v262, 32
  %v342 = vpop.permute.xlu0 %341
  %343 = vrot.lane.b32.xlu0 %v263, 32
  %v344 = vpop.permute.xlu0 %343
  %vm372 = vcmask 392448
  %373 = vst.msk [vmem:[#allocation2] sm:$0xff] %vm372, %v292
  %374 = vst.msk [vmem:[#allocation2 + $0x8] sm:$0xff] %vm372, %v294
  %375 = vst.msk [vmem:[#allocation2 + $0x10] sm:$0xff] %vm372, %v296
  %376 = vst.msk [vmem:[#allocation2 + $0x18] sm:$0xff] %vm372, %v298
  %377 = vst.msk [vmem:[#allocation2 + $0x20] sm:$0xff] %vm372, %v300
  %378 = vst.msk [vmem:[#allocation2 + $0x28] sm:$0xff] %vm372, %v302
  %379 = vst.msk [vmem:[#allocation2 + $0x30] sm:$0xff] %vm372, %v304
  %380 = vst.msk [vmem:[#allocation2 + $0x38] sm:$0xff] %vm372, %v306
  %381 = vst.msk [vmem:[#allocation2 + $0x40] sm:$0xff] %vm372, %v308
  %382 = vst.msk [vmem:[#allocation2 + $0x48] sm:$0xff] %vm372, %v310
  %383 = vst.msk [vmem:[#allocation2 + $0x50] sm:$0xff] %vm372, %v312
  %384 = vst.msk [vmem:[#allocation2 + $0x58] sm:$0xff] %vm372, %v314
  %385 = vst.msk [vmem:[#allocation2 + $0x60] sm:$0xff] %vm372, %v316
  %386 = vst.msk [vmem:[#allocation2 + $0x68] sm:$0xff] %vm372, %v318
  %387 = vst.msk [vmem:[#allocation2 + $0x70] sm:$0xff] %vm372, %v320
  %388 = vst.msk [vmem:[#allocation2 + $0x78] sm:$0xff] %vm372, %v322
  %389 = vst.msk [vmem:[#allocation2 + $0x80] sm:$0xff] %vm372, %v324
  %390 = vst.msk [vmem:[#allocation2 + $0x88] sm:$0xff] %vm372, %v326
  %391 = vst.msk [vmem:[#allocation2 + $0x90] sm:$0xff] %vm372, %v328
  %392 = vst.msk [vmem:[#allocation2 + $0x98] sm:$0xff] %vm372, %v330
  %393 = vst.msk [vmem:[#allocation2 + $0xa0] sm:$0xff] %vm372, %v332
  %394 = vst.msk [vmem:[#allocation2 + $0xa8] sm:$0xff] %vm372, %v334
  %395 = vst.msk [vmem:[#allocation2 + $0xb0] sm:$0xff] %vm372, %v336
  %396 = vst.msk [vmem:[#allocation2 + $0xb8] sm:$0xff] %vm372, %v338
  %397 = vst.msk [vmem:[#allocation2 + $0xc0] sm:$0xff] %vm372, %v340
  %398 = vst.msk [vmem:[#allocation2 + $0xc8] sm:$0xff] %vm372, %v342
  %vm399 = vcmask 388352
  %400 = vst.msk [vmem:[#allocation2 + $0xd0] sm:$0xf] %vm399, %v344
  %v401 = vld [vmem:[#allocation2] sm:$0xff]
  %v402 = vld [vmem:[#allocation2 + $0x8] sm:$0xff]
  %v403 = vld [vmem:[#allocation2 + $0x10] sm:$0xff]
  %v404 = vld [vmem:[#allocation2 + $0x18] sm:$0xff]
  %v405 = vld [vmem:[#allocation2 + $0x20] sm:$0xff]
  %v406 = vld [vmem:[#allocation2 + $0x28] sm:$0xff]
  %v407 = vld [vmem:[#allocation2 + $0x30] sm:$0xff]
  %v408 = vld [vmem:[#allocation2 + $0x38] sm:$0xff]
  %v409 = vld [vmem:[#allocation2 + $0x40] sm:$0xff]
  %v410 = vld [vmem:[#allocation2 + $0x48] sm:$0xff]
  %v411 = vld [vmem:[#allocation2 + $0x50] sm:$0xff]
  %v412 = vld [vmem:[#allocation2 + $0x58] sm:$0xff]
  %v413 = vld [vmem:[#allocation2 + $0x60] sm:$0xff]
  %v414 = vld [vmem:[#allocation2 + $0x68] sm:$0xff]
  %v415 = vld [vmem:[#allocation2 + $0x70] sm:$0xff]
  %v416 = vld [vmem:[#allocation2 + $0x78] sm:$0xff]
  %v417 = vld [vmem:[#allocation2 + $0x80] sm:$0xff]
  %v418 = vld [vmem:[#allocation2 + $0x88] sm:$0xff]
  %v419 = vld [vmem:[#allocation2 + $0x90] sm:$0xff]
  %v420 = vld [vmem:[#allocation2 + $0x98] sm:$0xff]
  %v421 = vld [vmem:[#allocation2 + $0xa0] sm:$0xff]
  %v422 = vld [vmem:[#allocation2 + $0xa8] sm:$0xff]
  %v423 = vld [vmem:[#allocation2 + $0xb0] sm:$0xff]
  %v424 = vld [vmem:[#allocation2 + $0xb8] sm:$0xff]
  %v425 = vld [vmem:[%s1] sm:$0xff]
  %v426 = vld [vmem:[%s1 + $0x8] sm:$0xff]
  %v427 = vld [vmem:[%s1 + $0x10] sm:$0xff]
  %v428 = vld [vmem:[%s1 + $0x18] sm:$0xff]
  %v429 = vld [vmem:[%s1 + $0x20] sm:$0xff]
  %v430 = vld [vmem:[%s1 + $0x28] sm:$0xff]
  %v431 = vld [vmem:[#allocation2 + $0xa] sm:$0xff]
  %v432 = vld [vmem:[#allocation2 + $0x12] sm:$0xff]
  %v433 = vld [vmem:[#allocation2 + $0x1a] sm:$0xff]
  %v434 = vld [vmem:[#allocation2 + $0x22] sm:$0xff]
  %v435 = vld [vmem:[#allocation2 + $0x2a] sm:$0xff]
  %v436 = vld [vmem:[#allocation2 + $0x32] sm:$0xff]
  %v437 = vld [vmem:[#allocation2 + $0x3a] sm:$0xff]
  %v438 = vld [vmem:[#allocation2 + $0x42] sm:$0xff]
  %v439 = vld [vmem:[#allocation2 + $0x4a] sm:$0xff]
  %v440 = vld [vmem:[#allocation2 + $0x52] sm:$0xff]
  %v441 = vld [vmem:[#allocation2 + $0x5a] sm:$0xff]
  %v442 = vld [vmem:[#allocation2 + $0x62] sm:$0xff]
  %v443 = vld [vmem:[#allocation2 + $0x6a] sm:$0xff]
  %v444 = vld [vmem:[#allocation2 + $0x72] sm:$0xff]
  %v445 = vld [vmem:[#allocation2 + $0x7a] sm:$0xff]
  %v446 = vld [vmem:[#allocation2 + $0x82] sm:$0xff]
  %v447 = vld [vmem:[#allocation2 + $0x8a] sm:$0xff]
  %v448 = vld [vmem:[#allocation2 + $0x92] sm:$0xff]
  %v449 = vld [vmem:[#allocation2 + $0x9a] sm:$0xff]
  %v450 = vld [vmem:[#allocation2 + $0xa2] sm:$0xff]
  %v451 = vld [vmem:[#allocation2 + $0xaa] sm:$0xff]
  %v452 = vld [vmem:[#allocation2 + $0xb2] sm:$0xff]
  %v453 = vld [vmem:[#allocation2 + $0xba] sm:$0xff]
  %v454 = vld [vmem:[#allocation2 + $0xc2] sm:$0xff]
  %s455 = scalar_lea.vmem %s1, 48
  %v456 = vld [vmem:[%s455] sm:$0xff]
  %v457 = vld [vmem:[%s455 + $0x8] sm:$0xff]
  %v458 = vld [vmem:[%s455 + $0x10] sm:$0xff]
  %v459 = vld [vmem:[%s455 + $0x18] sm:$0xff]
  %v460 = vld [vmem:[%s455 + $0x20] sm:$0xff]
  %v461 = vld [vmem:[%s455 + $0x28] sm:$0xff]
  %vm462 = vcmask 392192
  %v464 = vsel %vm462, %v431, 0
  %v467 = vsel %vm462, %v432, 0
  %v470 = vsel %vm462, %v433, 0
  %v473 = vsel %vm462, %v434, 0
  %v476 = vsel %vm462, %v435, 0
  %v479 = vsel %vm462, %v436, 0
  %v482 = vsel %vm462, %v437, 0
  %v485 = vsel %vm462, %v438, 0
  %v488 = vsel %vm462, %v439, 0
  %v491 = vsel %vm462, %v440, 0
  %v494 = vsel %vm462, %v441, 0
  %v497 = vsel %vm462, %v442, 0
  %v500 = vsel %vm462, %v443, 0
  %v503 = vsel %vm462, %v444, 0
  %v506 = vsel %vm462, %v445, 0
  %v509 = vsel %vm462, %v446, 0
  %v512 = vsel %vm462, %v447, 0
  %v515 = vsel %vm462, %v448, 0
  %v518 = vsel %vm462, %v449, 0
  %v521 = vsel %vm462, %v450, 0
  %v524 = vsel %vm462, %v451, 0
  %v527 = vsel %vm462, %v452, 0
  %v530 = vsel %vm462, %v453, 0
  %v533 = vsel %vm462, %v454, 0
  %535 = vmatprep.subr.mxu0 0.0
  %536 = vmatpush1.msra.mxu0 %v456
  %537 = vmatprep.subr.mxu0 0.0
  %538 = vmatpush1.msra.mxu0 %v457
  %539 = vmatprep.subr.mxu0 0.0
  %540 = vmatpush1.msra.mxu0 %v458
  %541 = vmatprep.subr.mxu0 0.0
  %542 = vmatpush1.msra.mxu0 %v459
  %543 = vmatprep.subr.mxu0 0.0
  %544 = vmatpush1.msra.mxu0 %v460
  %545 = vmatprep.subr.mxu0 0.0
  %546 = vmatpush1.msra.mxu0 %v461
  %547 = vmatprep.subr.mxu0 0.0
  %548 = vmatpush1.msra.mxu0 0.0
  %549 = vmatprep.subr.mxu0 0.0
  %550 = vmatpush1.msra.mxu0 0.0
  %551 = vmatprep.subr.mxu0 0.0
  %552 = vmatpush1.msra.mxu0 0.0
  %553 = vmatprep.subr.mxu0 0.0
  %554 = vmatpush1.msra.mxu0 0.0
  %555 = vmatprep.subr.mxu0 0.0
  %556 = vmatpush1.msra.mxu0 0.0
  %557 = vmatprep.subr.mxu0 0.0
  %558 = vmatpush1.msra.mxu0 0.0
  %559 = vmatprep.subr.mxu0 0.0
  %560 = vmatpush1.msra.mxu0 0.0
  %561 = vmatprep.subr.mxu0 0.0
  %562 = vmatpush1.msra.mxu0 0.0
  %563 = vmatprep.subr.mxu0 0.0
  %564 = vmatpush1.msra.mxu0 0.0
  %565 = vmatprep.subr.mxu0 0.0
  %566 = vmatpush1.msra.mxu0 0.0
  %567 = vmatprep.subr.mxu0 0.0
  %568 = vmatpush1.msra.mxu0 0.0
  %569 = vmatprep.subr.mxu0 0.0
  %570 = vmatpush1.msra.mxu0 0.0
  %571 = vmatprep.subr.mxu0 0.0
  %572 = vmatpush1.msra.mxu0 0.0
  %573 = vmatprep.subr.mxu0 0.0
  %574 = vmatpush1.msra.mxu0 0.0
  %575 = vmatprep.subr.mxu0 0.0
  %576 = vmatpush1.msra.mxu0 0.0
  %577 = vmatprep.subr.mxu0 0.0
  %578 = vmatpush1.msra.mxu0 0.0
  %579 = vmatprep.subr.mxu0 0.0
  %580 = vmatpush1.msra.mxu0 0.0
  %581 = vmatprep.subr.mxu0 0.0
  %582 = vmatpush1.msra.mxu0 0.0
  %583 = vmatprep.subr.mxu0 0.0
  %584 = vmatpush1.msra.mxu0 0.0
  %585 = vmatprep.subr.mxu0 0.0
  %586 = vmatpush1.msra.mxu0 0.0
  %587 = vmatprep.subr.mxu0 0.0
  %588 = vmatpush1.msra.mxu0 0.0
  %589 = vmatprep.subr.mxu0 0.0
  %590 = vmatpush1.msra.mxu0 0.0
  %591 = vmatprep.subr.mxu0 0.0
  %592 = vmatpush1.msra.mxu0 0.0
  %593 = vmatprep.subr.mxu0 0.0
  %594 = vmatpush1.msra.mxu0 0.0
  %595 = vmatprep.subr.mxu0 0.0
  %596 = vmatpush1.msra.mxu0 0.0
  %597 = vmatprep.subr.mxu0 0.0
  %598 = vmatpush1.msra.mxu0 0.0
  %599 = vmatprep.mubr.f32.mxu0 0.0
  %600 = vmatmul.mubr.f32.gmra.mrb[0].mxu0 %v464
  %v601 = vpop.f32.mrb[0].mxu0
  %v602 = vadd.f32 0.0, %v601
  %v603 = vpop.f32.mrb[0].mxu0
  %604 = vmatprep.mubr.f32.mxu0 0.0
  %605 = vmatmul.mubr.f32.gmra.mrb[0].mxu0 %v467
  %v606 = vpop.f32.mrb[0].mxu0
  %v607 = vadd.f32 0.0, %v606
  %v608 = vpop.f32.mrb[0].mxu0
  %609 = vmatprep.mubr.f32.mxu0 0.0
  %610 = vmatmul.mubr.f32.gmra.mrb[0].mxu0 %v470
  %v611 = vpop.f32.mrb[0].mxu0
  %v612 = vadd.f32 0.0, %v611
  %v613 = vpop.f32.mrb[0].mxu0
  %614 = vmatprep.mubr.f32.mxu0 0.0
  %615 = vmatmul.mubr.f32.gmra.mrb[0].mxu0 %v473
  %v616 = vpop.f32.mrb[0].mxu0
  %v617 = vadd.f32 0.0, %v616
  %v618 = vpop.f32.mrb[0].mxu0
  %619 = vmatprep.mubr.f32.mxu0 0.0
  %620 = vmatmul.mubr.f32.gmra.mrb[0].mxu0 %v476
  %v621 = vpop.f32.mrb[0].mxu0
  %v622 = vadd.f32 0.0, %v621
  %v623 = vpop.f32.mrb[0].mxu0
  %624 = vmatprep.mubr.f32.mxu0 0.0
  %625 = vmatmul.mubr.f32.gmra.mrb[0].mxu0 %v479
  %v626 = vpop.f32.mrb[0].mxu0
  %v627 = vadd.f32 0.0, %v626
  %v628 = vpop.f32.mrb[0].mxu0
  %629 = vmatprep.mubr.f32.mxu0 0.0
  %630 = vmatmul.mubr.f32.gmra.mrb[0].mxu0 %v482
  %v631 = vpop.f32.mrb[0].mxu0
  %v632 = vadd.f32 0.0, %v631
  %v633 = vpop.f32.mrb[0].mxu0
  %634 = vmatprep.mubr.f32.mxu0 0.0
  %635 = vmatmul.mubr.f32.gmra.mrb[0].mxu0 %v485
  %v636 = vpop.f32.mrb[0].mxu0
  %v637 = vadd.f32 0.0, %v636
  %v638 = vpop.f32.mrb[0].mxu0
  %639 = vmatprep.mubr.f32.mxu0 0.0
  %640 = vmatmul.mubr.f32.gmra.mrb[0].mxu0 %v488
  %v641 = vpop.f32.mrb[0].mxu0
  %v642 = vadd.f32 0.0, %v641
  %v643 = vpop.f32.mrb[0].mxu0
  %644 = vmatprep.mubr.f32.mxu0 0.0
  %645 = vmatmul.mubr.f32.gmra.mrb[0].mxu0 %v491
  %v646 = vpop.f32.mrb[0].mxu0
  %v647 = vadd.f32 0.0, %v646
  %v648 = vpop.f32.mrb[0].mxu0
  %649 = vmatprep.mubr.f32.mxu0 0.0
  %650 = vmatmul.mubr.f32.gmra.mrb[0].mxu0 %v494
  %v651 = vpop.f32.mrb[0].mxu0
  %v652 = vadd.f32 0.0, %v651
  %v653 = vpop.f32.mrb[0].mxu0
  %654 = vmatprep.mubr.f32.mxu0 0.0
  %655 = vmatmul.mubr.f32.gmra.mrb[0].mxu0 %v497
  %v656 = vpop.f32.mrb[0].mxu0
  %v657 = vadd.f32 0.0, %v656
  %v658 = vpop.f32.mrb[0].mxu0
  %659 = vmatprep.mubr.f32.mxu0 0.0
  %660 = vmatmul.mubr.f32.gmra.mrb[0].mxu0 %v500
  %v661 = vpop.f32.mrb[0].mxu0
  %v662 = vadd.f32 0.0, %v661
  %v663 = vpop.f32.mrb[0].mxu0
  %664 = vmatprep.mubr.f32.mxu0 0.0
  %665 = vmatmul.mubr.f32.gmra.mrb[0].mxu0 %v503
  %v666 = vpop.f32.mrb[0].mxu0
  %v667 = vadd.f32 0.0, %v666
  %v668 = vpop.f32.mrb[0].mxu0
  %669 = vmatprep.mubr.f32.mxu0 0.0
  %670 = vmatmul.mubr.f32.gmra.mrb[0].mxu0 %v506
  %v671 = vpop.f32.mrb[0].mxu0
  %v672 = vadd.f32 0.0, %v671
  %v673 = vpop.f32.mrb[0].mxu0
  %674 = vmatprep.mubr.f32.mxu0 0.0
  %675 = vmatmul.mubr.f32.gmra.mrb[0].mxu0 %v509
  %v676 = vpop.f32.mrb[0].mxu0
  %v677 = vadd.f32 0.0, %v676
  %v678 = vpop.f32.mrb[0].mxu0
  %679 = vmatprep.mubr.f32.mxu0 0.0
  %680 = vmatmul.mubr.f32.gmra.mrb[0].mxu0 %v512
  %v681 = vpop.f32.mrb[0].mxu0
  %v682 = vadd.f32 0.0, %v681
  %v683 = vpop.f32.mrb[0].mxu0
  %684 = vmatprep.mubr.f32.mxu0 0.0
  %685 = vmatmul.mubr.f32.gmra.mrb[0].mxu0 %v515
  %v686 = vpop.f32.mrb[0].mxu0
  %v687 = vadd.f32 0.0, %v686
  %v688 = vpop.f32.mrb[0].mxu0
  %689 = vmatprep.mubr.f32.mxu0 0.0
  %690 = vmatmul.mubr.f32.gmra.mrb[0].mxu0 %v518
  %v691 = vpop.f32.mrb[0].mxu0
  %v692 = vadd.f32 0.0, %v691
  %v693 = vpop.f32.mrb[0].mxu0
  %694 = vmatprep.mubr.f32.mxu0 0.0
  %695 = vmatmul.mubr.f32.gmra.mrb[0].mxu0 %v521
  %v696 = vpop.f32.mrb[0].mxu0
  %v697 = vadd.f32 0.0, %v696
  %v698 = vpop.f32.mrb[0].mxu0
  %699 = vmatprep.mubr.f32.mxu0 0.0
  %700 = vmatmul.mubr.f32.gmra.mrb[0].mxu0 %v524
  %v701 = vpop.f32.mrb[0].mxu0
  %v702 = vadd.f32 0.0, %v701
  %v703 = vpop.f32.mrb[0].mxu0
  %704 = vmatprep.mubr.f32.mxu0 0.0
  %705 = vmatmul.mubr.f32.gmra.mrb[0].mxu0 %v527
  %v706 = vpop.f32.mrb[0].mxu0
  %v707 = vadd.f32 0.0, %v706
  %v708 = vpop.f32.mrb[0].mxu0
  %709 = vmatprep.mubr.f32.mxu0 0.0
  %710 = vmatmul.mubr.f32.gmra.mrb[0].mxu0 %v530
  %v711 = vpop.f32.mrb[0].mxu0
  %v712 = vadd.f32 0.0, %v711
  %v713 = vpop.f32.mrb[0].mxu0
  %714 = vmatprep.mubr.f32.mxu0 0.0
  %715 = vmatmul.mubr.f32.gmra.mrb[0].mxu0 %v533
  %v716 = vpop.f32.mrb[0].mxu0
  %v717 = vadd.f32 0.0, %v716
  %v718 = vpop.f32.mrb[0].mxu0
  %719 = vdwg.mxu0
  %v721 = vsel %vm462, %v401, 0
  %v724 = vsel %vm462, %v402, 0
  %v727 = vsel %vm462, %v403, 0
  %v730 = vsel %vm462, %v404, 0
  %v733 = vsel %vm462, %v405, 0
  %v736 = vsel %vm462, %v406, 0
  %v739 = vsel %vm462, %v407, 0
  %v742 = vsel %vm462, %v408, 0
  %v745 = vsel %vm462, %v409, 0
  %v748 = vsel %vm462, %v410, 0
  %v751 = vsel %vm462, %v411, 0
  %v754 = vsel %vm462, %v412, 0
  %v757 = vsel %vm462, %v413, 0
  %v760 = vsel %vm462, %v414, 0
  %v763 = vsel %vm462, %v415, 0
  %v766 = vsel %vm462, %v416, 0
  %v769 = vsel %vm462, %v417, 0
  %v772 = vsel %vm462, %v418, 0
  %v775 = vsel %vm462, %v419, 0
  %v778 = vsel %vm462, %v420, 0
  %v781 = vsel %vm462, %v421, 0
  %v784 = vsel %vm462, %v422, 0
  %v787 = vsel %vm462, %v423, 0
  %v790 = vsel %vm462, %v424, 0
  %792 = vmatprep.subr.mxu0 0.0
  %793 = vmatpush1.msra.mxu0 %v425
  %794 = vmatprep.subr.mxu0 0.0
  %795 = vmatpush1.msra.mxu0 %v426
  %796 = vmatprep.subr.mxu0 0.0
  %797 = vmatpush1.msra.mxu0 %v427
  %798 = vmatprep.subr.mxu0 0.0
  %799 = vmatpush1.msra.mxu0 %v428
  %800 = vmatprep.subr.mxu0 0.0
  %801 = vmatpush1.msra.mxu0 %v429
  %802 = vmatprep.subr.mxu0 0.0
  %803 = vmatpush1.msra.mxu0 %v430
  %804 = vmatprep.subr.mxu0 0.0
  %805 = vmatpush1.msra.mxu0 0.0
  %806 = vmatprep.subr.mxu0 0.0
  %807 = vmatpush1.msra.mxu0 0.0
  %808 = vmatprep.subr.mxu0 0.0
  %809 = vmatpush1.msra.mxu0 0.0
  %810 = vmatprep.subr.mxu0 0.0
  %811 = vmatpush1.msra.mxu0 0.0
  %812 = vmatprep.subr.mxu0 0.0
  %813 = vmatpush1.msra.mxu0 0.0
  %814 = vmatprep.subr.mxu0 0.0
  %815 = vmatpush1.msra.mxu0 0.0
  %816 = vmatprep.subr.mxu0 0.0
  %817 = vmatpush1.msra.mxu0 0.0
  %818 = vmatprep.subr.mxu0 0.0
  %819 = vmatpush1.msra.mxu0 0.0
  %820 = vmatprep.subr.mxu0 0.0
  %821 = vmatpush1.msra.mxu0 0.0
  %822 = vmatprep.subr.mxu0 0.0
  %823 = vmatpush1.msra.mxu0 0.0
  %824 = vmatprep.subr.mxu0 0.0
  %825 = vmatpush1.msra.mxu0 0.0
  %826 = vmatprep.subr.mxu0 0.0
  %827 = vmatpush1.msra.mxu0 0.0
  %828 = vmatprep.subr.mxu0 0.0
  %829 = vmatpush1.msra.mxu0 0.0
  %830 = vmatprep.subr.mxu0 0.0
  %831 = vmatpush1.msra.mxu0 0.0
  %832 = vmatprep.subr.mxu0 0.0
  %833 = vmatpush1.msra.mxu0 0.0
  %834 = vmatprep.subr.mxu0 0.0
  %835 = vmatpush1.msra.mxu0 0.0
  %836 = vmatprep.subr.mxu0 0.0
  %837 = vmatpush1.msra.mxu0 0.0
  %838 = vmatprep.subr.mxu0 0.0
  %839 = vmatpush1.msra.mxu0 0.0
  %840 = vmatprep.subr.mxu0 0.0
  %841 = vmatpush1.msra.mxu0 0.0
  %842 = vmatprep.subr.mxu0 0.0
  %843 = vmatpush1.msra.mxu0 0.0
  %844 = vmatprep.subr.mxu0 0.0
  %845 = vmatpush1.msra.mxu0 0.0
  %846 = vmatprep.subr.mxu0 0.0
  %847 = vmatpush1.msra.mxu0 0.0
  %848 = vmatprep.subr.mxu0 0.0
  %849 = vmatpush1.msra.mxu0 0.0
  %850 = vmatprep.subr.mxu0 0.0
  %851 = vmatpush1.msra.mxu0 0.0
  %852 = vmatprep.subr.mxu0 0.0
  %853 = vmatpush1.msra.mxu0 0.0
  %854 = vmatprep.subr.mxu0 0.0
  %855 = vmatpush1.msra.mxu0 0.0
  %856 = vmatprep.mubr.f32.mxu0 0.0
  %857 = vmatmul.mubr.f32.gmra.mrb[0].mxu0 %v721
  %v858 = vpop.f32.mrb[0].mxu0
  %v859 = vadd.f32 %v602, %v858
  %v860 = vpop.f32.mrb[0].mxu0
  %861 = vmatprep.mubr.f32.mxu0 0.0
  %862 = vmatmul.mubr.f32.gmra.mrb[0].mxu0 %v724
  %v863 = vpop.f32.mrb[0].mxu0
  %v864 = vadd.f32 %v607, %v863
  %v865 = vpop.f32.mrb[0].mxu0
  %866 = vmatprep.mubr.f32.mxu0 0.0
  %867 = vmatmul.mubr.f32.gmra.mrb[0].mxu0 %v727
  %v868 = vpop.f32.mrb[0].mxu0
  %v869 = vadd.f32 %v612, %v868
  %v870 = vpop.f32.mrb[0].mxu0
  %871 = vmatprep.mubr.f32.mxu0 0.0
  %872 = vmatmul.mubr.f32.gmra.mrb[0].mxu0 %v730
  %v873 = vpop.f32.mrb[0].mxu0
  %v874 = vadd.f32 %v617, %v873
  %v875 = vpop.f32.mrb[0].mxu0
  %876 = vmatprep.mubr.f32.mxu0 0.0
  %877 = vmatmul.mubr.f32.gmra.mrb[0].mxu0 %v733
  %v878 = vpop.f32.mrb[0].mxu0
  %v879 = vadd.f32 %v622, %v878
  %v880 = vpop.f32.mrb[0].mxu0
  %881 = vmatprep.mubr.f32.mxu0 0.0
  %882 = vmatmul.mubr.f32.gmra.mrb[0].mxu0 %v736
  %v883 = vpop.f32.mrb[0].mxu0
  %v884 = vadd.f32 %v627, %v883
  %v885 = vpop.f32.mrb[0].mxu0
  %886 = vmatprep.mubr.f32.mxu0 0.0
  %887 = vmatmul.mubr.f32.gmra.mrb[0].mxu0 %v739
  %v888 = vpop.f32.mrb[0].mxu0
  %v889 = vadd.f32 %v632, %v888
  %v890 = vpop.f32.mrb[0].mxu0
  %891 = vmatprep.mubr.f32.mxu0 0.0
  %892 = vmatmul.mubr.f32.gmra.mrb[0].mxu0 %v742
  %v893 = vpop.f32.mrb[0].mxu0
  %v894 = vadd.f32 %v637, %v893
  %v895 = vpop.f32.mrb[0].mxu0
  %896 = vmatprep.mubr.f32.mxu0 0.0
  %897 = vmatmul.mubr.f32.gmra.mrb[0].mxu0 %v745
  %v898 = vpop.f32.mrb[0].mxu0
  %v899 = vadd.f32 %v642, %v898
  %v900 = vpop.f32.mrb[0].mxu0
  %901 = vmatprep.mubr.f32.mxu0 0.0
  %902 = vmatmul.mubr.f32.gmra.mrb[0].mxu0 %v748
  %v903 = vpop.f32.mrb[0].mxu0
  %v904 = vadd.f32 %v647, %v903
  %v905 = vpop.f32.mrb[0].mxu0
  %906 = vmatprep.mubr.f32.mxu0 0.0
  %907 = vmatmul.mubr.f32.gmra.mrb[0].mxu0 %v751
  %v908 = vpop.f32.mrb[0].mxu0
  %v909 = vadd.f32 %v652, %v908
  %v910 = vpop.f32.mrb[0].mxu0
  %911 = vmatprep.mubr.f32.mxu0 0.0
  %912 = vmatmul.mubr.f32.gmra.mrb[0].mxu0 %v754
  %v913 = vpop.f32.mrb[0].mxu0
  %v914 = vadd.f32 %v657, %v913
  %v915 = vpop.f32.mrb[0].mxu0
  %916 = vmatprep.mubr.f32.mxu0 0.0
  %917 = vmatmul.mubr.f32.gmra.mrb[0].mxu0 %v757
  %v918 = vpop.f32.mrb[0].mxu0
  %v919 = vadd.f32 %v662, %v918
  %v920 = vpop.f32.mrb[0].mxu0
  %921 = vmatprep.mubr.f32.mxu0 0.0
  %922 = vmatmul.mubr.f32.gmra.mrb[0].mxu0 %v760
  %v923 = vpop.f32.mrb[0].mxu0
  %v924 = vadd.f32 %v667, %v923
  %v925 = vpop.f32.mrb[0].mxu0
  %926 = vmatprep.mubr.f32.mxu0 0.0
  %927 = vmatmul.mubr.f32.gmra.mrb[0].mxu0 %v763
  %v928 = vpop.f32.mrb[0].mxu0
  %v929 = vadd.f32 %v672, %v928
  %v930 = vpop.f32.mrb[0].mxu0
  %931 = vmatprep.mubr.f32.mxu0 0.0
  %932 = vmatmul.mubr.f32.gmra.mrb[0].mxu0 %v766
  %v933 = vpop.f32.mrb[0].mxu0
  %v934 = vadd.f32 %v677, %v933
  %v935 = vpop.f32.mrb[0].mxu0
  %936 = vmatprep.mubr.f32.mxu0 0.0
  %937 = vmatmul.mubr.f32.gmra.mrb[0].mxu0 %v769
  %v938 = vpop.f32.mrb[0].mxu0
  %v939 = vadd.f32 %v682, %v938
  %v940 = vpop.f32.mrb[0].mxu0
  %941 = vmatprep.mubr.f32.mxu0 0.0
  %942 = vmatmul.mubr.f32.gmra.mrb[0].mxu0 %v772
  %v943 = vpop.f32.mrb[0].mxu0
  %v944 = vadd.f32 %v687, %v943
  %v945 = vpop.f32.mrb[0].mxu0
  %946 = vmatprep.mubr.f32.mxu0 0.0
  %947 = vmatmul.mubr.f32.gmra.mrb[0].mxu0 %v775
  %v948 = vpop.f32.mrb[0].mxu0
  %v949 = vadd.f32 %v692, %v948
  %v950 = vpop.f32.mrb[0].mxu0
  %951 = vmatprep.mubr.f32.mxu0 0.0
  %952 = vmatmul.mubr.f32.gmra.mrb[0].mxu0 %v778
  %v953 = vpop.f32.mrb[0].mxu0
  %v954 = vadd.f32 %v697, %v953
  %v955 = vpop.f32.mrb[0].mxu0
  %956 = vmatprep.mubr.f32.mxu0 0.0
  %957 = vmatmul.mubr.f32.gmra.mrb[0].mxu0 %v781
  %v958 = vpop.f32.mrb[0].mxu0
  %v959 = vadd.f32 %v702, %v958
  %v960 = vpop.f32.mrb[0].mxu0
  %961 = vmatprep.mubr.f32.mxu0 0.0
  %962 = vmatmul.mubr.f32.gmra.mrb[0].mxu0 %v784
  %v963 = vpop.f32.mrb[0].mxu0
  %v964 = vadd.f32 %v707, %v963
  %v965 = vpop.f32.mrb[0].mxu0
  %966 = vmatprep.mubr.f32.mxu0 0.0
  %967 = vmatmul.mubr.f32.gmra.mrb[0].mxu0 %v787
  %v968 = vpop.f32.mrb[0].mxu0
  %v969 = vadd.f32 %v712, %v968
  %v970 = vpop.f32.mrb[0].mxu0
  %971 = vmatprep.mubr.f32.mxu0 0.0
  %972 = vmatmul.mubr.f32.gmra.mrb[0].mxu0 %v790
  %v973 = vpop.f32.mrb[0].mxu0
  %v974 = vadd.f32 %v717, %v973
  %v975 = vpop.f32.mrb[0].mxu0
  %976 = vdwg.mxu0
  %v977 = vld [vmem:[#allocation2 + $0x14] sm:$0xff]
  %v978 = vld [vmem:[#allocation2 + $0x1c] sm:$0xff]
  %v979 = vld [vmem:[#allocation2 + $0x24] sm:$0xff]
  %v980 = vld [vmem:[#allocation2 + $0x2c] sm:$0xff]
  %v981 = vld [vmem:[#allocation2 + $0x34] sm:$0xff]
  %v982 = vld [vmem:[#allocation2 + $0x3c] sm:$0xff]
  %v983 = vld [vmem:[#allocation2 + $0x44] sm:$0xff]
  %v984 = vld [vmem:[#allocation2 + $0x4c] sm:$0xff]
  %v985 = vld [vmem:[#allocation2 + $0x54] sm:$0xff]
  %v986 = vld [vmem:[#allocation2 + $0x5c] sm:$0xff]
  %v987 = vld [vmem:[#allocation2 + $0x64] sm:$0xff]
  %v988 = vld [vmem:[#allocation2 + $0x6c] sm:$0xff]
  %v989 = vld [vmem:[#allocation2 + $0x74] sm:$0xff]
  %v990 = vld [vmem:[#allocation2 + $0x7c] sm:$0xff]
  %v991 = vld [vmem:[#allocation2 + $0x84] sm:$0xff]
  %v992 = vld [vmem:[#allocation2 + $0x8c] sm:$0xff]
  %v993 = vld [vmem:[#allocation2 + $0x94] sm:$0xff]
  %v994 = vld [vmem:[#allocation2 + $0x9c] sm:$0xff]
  %v995 = vld [vmem:[#allocation2 + $0xa4] sm:$0xff]
  %v996 = vld [vmem:[#allocation2 + $0xac] sm:$0xff]
  %v997 = vld [vmem:[#allocation2 + $0xb4] sm:$0xff]
  %v998 = vld [vmem:[#allocation2 + $0xbc] sm:$0xff]
  %v999 = vld [vmem:[#allocation2 + $0xc4] sm:$0xff]
  %v1000 = vld [vmem:[#allocation2 + $0xcc] sm:$0xff]
  %s1001 = scalar_lea.vmem %s1, 96
  %v1002 = vld [vmem:[%s1001] sm:$0xff]
  %v1003 = vld [vmem:[%s1001 + $0x8] sm:$0xff]
  %v1004 = vld [vmem:[%s1001 + $0x10] sm:$0xff]
  %v1005 = vld [vmem:[%s1001 + $0x18] sm:$0xff]
  %v1006 = vld [vmem:[%s1001 + $0x20] sm:$0xff]
  %v1007 = vld [vmem:[%s1001 + $0x28] sm:$0xff]
  %v1009 = vsel %vm462, %v977, 0
  %v1012 = vsel %vm462, %v978, 0
  %v1015 = vsel %vm462, %v979, 0
  %v1018 = vsel %vm462, %v980, 0
  %v1021 = vsel %vm462, %v981, 0
  %v1024 = vsel %vm462, %v982, 0
  %v1027 = vsel %vm462, %v983, 0
  %v1030 = vsel %vm462, %v984, 0
  %v1033 = vsel %vm462, %v985, 0
  %v1036 = vsel %vm462, %v986, 0
  %v1039 = vsel %vm462, %v987, 0
  %v1042 = vsel %vm462, %v988, 0
  %v1045 = vsel %vm462, %v989, 0
  %v1048 = vsel %vm462, %v990, 0
  %v1051 = vsel %vm462, %v991, 0
  %v1054 = vsel %vm462, %v992, 0
  %v1057 = vsel %vm462, %v993, 0
  %v1060 = vsel %vm462, %v994, 0
  %v1063 = vsel %vm462, %v995, 0
  %v1066 = vsel %vm462, %v996, 0
  %v1069 = vsel %vm462, %v997, 0
  %v1072 = vsel %vm462, %v998, 0
  %v1075 = vsel %vm462, %v999, 0
  %v1078 = vsel %vm462, %v1000, 0
  %1080 = vmatprep.subr.mxu0 0.0
  %1081 = vmatpush1.msra.mxu0 %v1002
  %1082 = vmatprep.subr.mxu0 0.0
  %1083 = vmatpush1.msra.mxu0 %v1003
  %1084 = vmatprep.subr.mxu0 0.0
  %1085 = vmatpush1.msra.mxu0 %v1004
  %1086 = vmatprep.subr.mxu0 0.0
  %1087 = vmatpush1.msra.mxu0 %v1005
  %1088 = vmatprep.subr.mxu0 0.0
  %1089 = vmatpush1.msra.mxu0 %v1006
  %1090 = vmatprep.subr.mxu0 0.0
  %1091 = vmatpush1.msra.mxu0 %v1007
  %1092 = vmatprep.subr.mxu0 0.0
  %1093 = vmatpush1.msra.mxu0 0.0
  %1094 = vmatprep.subr.mxu0 0.0
  %1095 = vmatpush1.msra.mxu0 0.0
  %1096 = vmatprep.subr.mxu0 0.0
  %1097 = vmatpush1.msra.mxu0 0.0
  %1098 = vmatprep.subr.mxu0 0.0
  %1099 = vmatpush1.msra.mxu0 0.0
  %1100 = vmatprep.subr.mxu0 0.0
  %1101 = vmatpush1.msra.mxu0 0.0
  %1102 = vmatprep.subr.mxu0 0.0
  %1103 = vmatpush1.msra.mxu0 0.0
  %1104 = vmatprep.subr.mxu0 0.0
  %1105 = vmatpush1.msra.mxu0 0.0
  %1106 = vmatprep.subr.mxu0 0.0
  %1107 = vmatpush1.msra.mxu0 0.0
  %1108 = vmatprep.subr.mxu0 0.0
  %1109 = vmatpush1.msra.mxu0 0.0
  %1110 = vmatprep.subr.mxu0 0.0
  %1111 = vmatpush1.msra.mxu0 0.0
  %1112 = vmatprep.subr.mxu0 0.0
  %1113 = vmatpush1.msra.mxu0 0.0
  %1114 = vmatprep.subr.mxu0 0.0
  %1115 = vmatpush1.msra.mxu0 0.0
  %1116 = vmatprep.subr.mxu0 0.0
  %1117 = vmatpush1.msra.mxu0 0.0
  %1118 = vmatprep.subr.mxu0 0.0
  %1119 = vmatpush1.msra.mxu0 0.0
  %1120 = vmatprep.subr.mxu0 0.0
  %1121 = vmatpush1.msra.mxu0 0.0
  %1122 = vmatprep.subr.mxu0 0.0
  %1123 = vmatpush1.msra.mxu0 0.0
  %1124 = vmatprep.subr.mxu0 0.0
  %1125 = vmatpush1.msra.mxu0 0.0
  %1126 = vmatprep.subr.mxu0 0.0
  %1127 = vmatpush1.msra.mxu0 0.0
  %1128 = vmatprep.subr.mxu0 0.0
  %1129 = vmatpush1.msra.mxu0 0.0
  %1130 = vmatprep.subr.mxu0 0.0
  %1131 = vmatpush1.msra.mxu0 0.0
  %1132 = vmatprep.subr.mxu0 0.0
  %1133 = vmatpush1.msra.mxu0 0.0
  %1134 = vmatprep.subr.mxu0 0.0
  %1135 = vmatpush1.msra.mxu0 0.0
  %1136 = vmatprep.subr.mxu0 0.0
  %1137 = vmatpush1.msra.mxu0 0.0
  %1138 = vmatprep.subr.mxu0 0.0
  %1139 = vmatpush1.msra.mxu0 0.0
  %1140 = vmatprep.subr.mxu0 0.0
  %1141 = vmatpush1.msra.mxu0 0.0
  %1142 = vmatprep.subr.mxu0 0.0
  %1143 = vmatpush1.msra.mxu0 0.0
  %1144 = vmatprep.mubr.f32.mxu0 0.0
  %1145 = vmatmul.mubr.f32.gmra.mrb[0].mxu0 %v1009
  %v1146 = vpop.f32.mrb[0].mxu0
  %v1147 = vadd.f32 0.0, %v1146
  %v1148 = vpop.f32.mrb[0].mxu0
  %1149 = vmatprep.mubr.f32.mxu0 0.0
  %1150 = vmatmul.mubr.f32.gmra.mrb[0].mxu0 %v1012
  %v1151 = vpop.f32.mrb[0].mxu0
  %v1152 = vadd.f32 0.0, %v1151
  %v1153 = vpop.f32.mrb[0].mxu0
  %1154 = vmatprep.mubr.f32.mxu0 0.0
  %1155 = vmatmul.mubr.f32.gmra.mrb[0].mxu0 %v1015
  %v1156 = vpop.f32.mrb[0].mxu0
  %v1157 = vadd.f32 0.0, %v1156
  %v1158 = vpop.f32.mrb[0].mxu0
  %1159 = vmatprep.mubr.f32.mxu0 0.0
  %1160 = vmatmul.mubr.f32.gmra.mrb[0].mxu0 %v1018
  %v1161 = vpop.f32.mrb[0].mxu0
  %v1162 = vadd.f32 0.0, %v1161
  %v1163 = vpop.f32.mrb[0].mxu0
  %1164 = vmatprep.mubr.f32.mxu0 0.0
  %1165 = vmatmul.mubr.f32.gmra.mrb[0].mxu0 %v1021
  %v1166 = vpop.f32.mrb[0].mxu0
  %v1167 = vadd.f32 0.0, %v1166
  %v1168 = vpop.f32.mrb[0].mxu0
  %1169 = vmatprep.mubr.f32.mxu0 0.0
  %1170 = vmatmul.mubr.f32.gmra.mrb[0].mxu0 %v1024
  %v1171 = vpop.f32.mrb[0].mxu0
  %v1172 = vadd.f32 0.0, %v1171
  %v1173 = vpop.f32.mrb[0].mxu0
  %1174 = vmatprep.mubr.f32.mxu0 0.0
  %1175 = vmatmul.mubr.f32.gmra.mrb[0].mxu0 %v1027
  %v1176 = vpop.f32.mrb[0].mxu0
  %v1177 = vadd.f32 0.0, %v1176
  %v1178 = vpop.f32.mrb[0].mxu0
  %1179 = vmatprep.mubr.f32.mxu0 0.0
  %1180 = vmatmul.mubr.f32.gmra.mrb[0].mxu0 %v1030
  %v1181 = vpop.f32.mrb[0].mxu0
  %v1182 = vadd.f32 0.0, %v1181
  %v1183 = vpop.f32.mrb[0].mxu0
  %1184 = vmatprep.mubr.f32.mxu0 0.0
  %1185 = vmatmul.mubr.f32.gmra.mrb[0].mxu0 %v1033
  %v1186 = vpop.f32.mrb[0].mxu0
  %v1187 = vadd.f32 0.0, %v1186
  %v1188 = vpop.f32.mrb[0].mxu0
  %1189 = vmatprep.mubr.f32.mxu0 0.0
  %1190 = vmatmul.mubr.f32.gmra.mrb[0].mxu0 %v1036
  %v1191 = vpop.f32.mrb[0].mxu0
  %v1192 = vadd.f32 0.0, %v1191
  %v1193 = vpop.f32.mrb[0].mxu0
  %1194 = vmatprep.mubr.f32.mxu0 0.0
  %1195 = vmatmul.mubr.f32.gmra.mrb[0].mxu0 %v1039
  %v1196 = vpop.f32.mrb[0].mxu0
  %v1197 = vadd.f32 0.0, %v1196
  %v1198 = vpop.f32.mrb[0].mxu0
  %1199 = vmatprep.mubr.f32.mxu0 0.0
  %1200 = vmatmul.mubr.f32.gmra.mrb[0].mxu0 %v1042
  %v1201 = vpop.f32.mrb[0].mxu0
  %v1202 = vadd.f32 0.0, %v1201
  %v1203 = vpop.f32.mrb[0].mxu0
  %1204 = vmatprep.mubr.f32.mxu0 0.0
  %1205 = vmatmul.mubr.f32.gmra.mrb[0].mxu0 %v1045
  %v1206 = vpop.f32.mrb[0].mxu0
  %v1207 = vadd.f32 0.0, %v1206
  %v1208 = vpop.f32.mrb[0].mxu0
  %1209 = vmatprep.mubr.f32.mxu0 0.0
  %1210 = vmatmul.mubr.f32.gmra.mrb[0].mxu0 %v1048
  %v1211 = vpop.f32.mrb[0].mxu0
  %v1212 = vadd.f32 0.0, %v1211
  %v1213 = vpop.f32.mrb[0].mxu0
  %1214 = vmatprep.mubr.f32.mxu0 0.0
  %1215 = vmatmul.mubr.f32.gmra.mrb[0].mxu0 %v1051
  %v1216 = vpop.f32.mrb[0].mxu0
  %v1217 = vadd.f32 0.0, %v1216
  %v1218 = vpop.f32.mrb[0].mxu0
  %1219 = vmatprep.mubr.f32.mxu0 0.0
  %1220 = vmatmul.mubr.f32.gmra.mrb[0].mxu0 %v1054
  %v1221 = vpop.f32.mrb[0].mxu0
  %v1222 = vadd.f32 0.0, %v1221
  %v1223 = vpop.f32.mrb[0].mxu0
  %1224 = vmatprep.mubr.f32.mxu0 0.0
  %1225 = vmatmul.mubr.f32.gmra.mrb[0].mxu0 %v1057
  %v1226 = vpop.f32.mrb[0].mxu0
  %v1227 = vadd.f32 0.0, %v1226
  %v1228 = vpop.f32.mrb[0].mxu0
  %1229 = vmatprep.mubr.f32.mxu0 0.0
  %1230 = vmatmul.mubr.f32.gmra.mrb[0].mxu0 %v1060
  %v1231 = vpop.f32.mrb[0].mxu0
  %v1232 = vadd.f32 0.0, %v1231
  %v1233 = vpop.f32.mrb[0].mxu0
  %1234 = vmatprep.mubr.f32.mxu0 0.0
  %1235 = vmatmul.mubr.f32.gmra.mrb[0].mxu0 %v1063
  %v1236 = vpop.f32.mrb[0].mxu0
  %v1237 = vadd.f32 0.0, %v1236
  %v1238 = vpop.f32.mrb[0].mxu0
  %1239 = vmatprep.mubr.f32.mxu0 0.0
  %1240 = vmatmul.mubr.f32.gmra.mrb[0].mxu0 %v1066
  %v1241 = vpop.f32.mrb[0].mxu0
  %v1242 = vadd.f32 0.0, %v1241
  %v1243 = vpop.f32.mrb[0].mxu0
  %1244 = vmatprep.mubr.f32.mxu0 0.0
  %1245 = vmatmul.mubr.f32.gmra.mrb[0].mxu0 %v1069
  %v1246 = vpop.f32.mrb[0].mxu0
  %v1247 = vadd.f32 0.0, %v1246
  %v1248 = vpop.f32.mrb[0].mxu0
  %1249 = vmatprep.mubr.f32.mxu0 0.0
  %1250 = vmatmul.mubr.f32.gmra.mrb[0].mxu0 %v1072
  %v1251 = vpop.f32.mrb[0].mxu0
  %v1252 = vadd.f32 0.0, %v1251
  %v1253 = vpop.f32.mrb[0].mxu0
  %1254 = vmatprep.mubr.f32.mxu0 0.0
  %1255 = vmatmul.mubr.f32.gmra.mrb[0].mxu0 %v1075
  %v1256 = vpop.f32.mrb[0].mxu0
  %v1257 = vadd.f32 0.0, %v1256
  %v1258 = vpop.f32.mrb[0].mxu0
  %1259 = vmatprep.mubr.f32.mxu0 0.0
  %1260 = vmatmul.mubr.f32.gmra.mrb[0].mxu0 %v1078
  %v1261 = vpop.f32.mrb[0].mxu0
  %v1262 = vadd.f32 0.0, %v1261
  %v1263 = vpop.f32.mrb[0].mxu0
  %1264 = vdwg.mxu0
  %v1265 = vadd.f32 %v859, %v1147
  %v1266 = vadd.f32 %v864, %v1152
  %v1267 = vadd.f32 %v869, %v1157
  %v1268 = vadd.f32 %v874, %v1162
  %v1269 = vadd.f32 %v879, %v1167
  %v1270 = vadd.f32 %v884, %v1172
  %v1271 = vadd.f32 %v889, %v1177
  %v1272 = vadd.f32 %v894, %v1182
  %v1273 = vadd.f32 %v899, %v1187
  %v1274 = vadd.f32 %v904, %v1192
  %v1275 = vadd.f32 %v909, %v1197
  %v1276 = vadd.f32 %v914, %v1202
  %v1277 = vadd.f32 %v919, %v1207
  %v1278 = vadd.f32 %v924, %v1212
  %v1279 = vadd.f32 %v929, %v1217
  %v1280 = vadd.f32 %v934, %v1222
  %v1281 = vadd.f32 %v939, %v1227
  %v1282 = vadd.f32 %v944, %v1232
  %v1283 = vadd.f32 %v949, %v1237
  %v1284 = vadd.f32 %v954, %v1242
  %v1285 = vadd.f32 %v959, %v1247
  %v1286 = vadd.f32 %v964, %v1252
  %v1287 = vadd.f32 %v969, %v1257
  %v1288 = vadd.f32 %v974, %v1262
  %v1289 = vld [vmem:[%s2] sm:$0x1]
  %v1291 = vlaneseq
  %v1292 = vshrl.u32 %v1291, 7
  %v1293 = vsub.s32 0, %v1292
  %v1294 = vrot.slane %v1289, %v1293
  %v1296 = vmul.f32 %v1265, %v1294
  %v1297 = vmul.f32 %v1266, %v1294
  %v1298 = vmul.f32 %v1267, %v1294
  %v1299 = vmul.f32 %v1268, %v1294
  %v1300 = vmul.f32 %v1269, %v1294
  %v1301 = vmul.f32 %v1270, %v1294
  %v1302 = vmul.f32 %v1271, %v1294
  %v1303 = vmul.f32 %v1272, %v1294
  %v1304 = vmul.f32 %v1273, %v1294
  %v1305 = vmul.f32 %v1274, %v1294
  %v1306 = vmul.f32 %v1275, %v1294
  %v1307 = vmul.f32 %v1276, %v1294
  %v1308 = vmul.f32 %v1277, %v1294
  %v1309 = vmul.f32 %v1278, %v1294
  %v1310 = vmul.f32 %v1279, %v1294
  %v1311 = vmul.f32 %v1280, %v1294
  %v1312 = vmul.f32 %v1281, %v1294
  %v1313 = vmul.f32 %v1282, %v1294
  %v1314 = vmul.f32 %v1283, %v1294
  %v1315 = vmul.f32 %v1284, %v1294
  %v1316 = vmul.f32 %v1285, %v1294
  %v1317 = vmul.f32 %v1286, %v1294
  %v1318 = vmul.f32 %v1287, %v1294
  %v1319 = vmul.f32 %v1288, %v1294
  %v1320 = vld [vmem:[%s3] sm:$0x1]
  %v1322 = vlaneseq
  %v1323 = vshrl.u32 %v1322, 7
  %v1324 = vsub.s32 0, %v1323
  %v1325 = vrot.slane %v1320, %v1324
  %v1327 = vadd.f32 %v1296, %v1325
  %v1328 = vadd.f32 %v1297, %v1325
  %v1329 = vadd.f32 %v1298, %v1325
  %v1330 = vadd.f32 %v1299, %v1325
  %v1331 = vadd.f32 %v1300, %v1325
  %v1332 = vadd.f32 %v1301, %v1325
  %v1333 = vadd.f32 %v1302, %v1325
  %v1334 = vadd.f32 %v1303, %v1325
  %v1335 = vadd.f32 %v1304, %v1325
  %v1336 = vadd.f32 %v1305, %v1325
  %v1337 = vadd.f32 %v1306, %v1325
  %v1338 = vadd.f32 %v1307, %v1325
  %v1339 = vadd.f32 %v1308, %v1325
  %v1340 = vadd.f32 %v1309, %v1325
  %v1341 = vadd.f32 %v1310, %v1325
  %v1342 = vadd.f32 %v1311, %v1325
  %v1343 = vadd.f32 %v1312, %v1325
  %v1344 = vadd.f32 %v1313, %v1325
  %v1345 = vadd.f32 %v1314, %v1325
  %v1346 = vadd.f32 %v1315, %v1325
  %v1347 = vadd.f32 %v1316, %v1325
  %v1348 = vadd.f32 %v1317, %v1325
  %v1349 = vadd.f32 %v1318, %v1325
  %v1350 = vadd.f32 %v1319, %v1325
  %v1351 = vmax.f32 %v1327, 0.0
  %v1352 = vmax.f32 %v1328, 0.0
  %v1353 = vmax.f32 %v1329, 0.0
  %v1354 = vmax.f32 %v1330, 0.0
  %v1355 = vmax.f32 %v1331, 0.0
  %v1356 = vmax.f32 %v1332, 0.0
  %v1357 = vmax.f32 %v1333, 0.0
  %v1358 = vmax.f32 %v1334, 0.0
  %v1359 = vmax.f32 %v1335, 0.0
  %v1360 = vmax.f32 %v1336, 0.0
  %v1361 = vmax.f32 %v1337, 0.0
  %v1362 = vmax.f32 %v1338, 0.0
  %v1363 = vmax.f32 %v1339, 0.0
  %v1364 = vmax.f32 %v1340, 0.0
  %v1365 = vmax.f32 %v1341, 0.0
  %v1366 = vmax.f32 %v1342, 0.0
  %v1367 = vmax.f32 %v1343, 0.0
  %v1368 = vmax.f32 %v1344, 0.0
  %v1369 = vmax.f32 %v1345, 0.0
  %v1370 = vmax.f32 %v1346, 0.0
  %v1371 = vmax.f32 %v1347, 0.0
  %v1372 = vmax.f32 %v1348, 0.0
  %v1373 = vmax.f32 %v1349, 0.0
  %v1374 = vmax.f32 %v1350, 0.0
  %vm1375 = vcmask 261120
  %1376 = vst.msk [vmem:[#allocation3] sm:$0xff] %vm1375, %v1351
  %1377 = vst.msk [vmem:[#allocation3 + $0x8] sm:$0xff] %vm1375, %v1352
  %1378 = vst.msk [vmem:[#allocation3 + $0x10] sm:$0xff] %vm1375, %v1353
  %1379 = vst.msk [vmem:[#allocation3 + $0x18] sm:$0xff] %vm1375, %v1354
  %1380 = vst.msk [vmem:[#allocation3 + $0x20] sm:$0xff] %vm1375, %v1355
  %1381 = vst.msk [vmem:[#allocation3 + $0x28] sm:$0xff] %vm1375, %v1356
  %1382 = vst.msk [vmem:[#allocation3 + $0x30] sm:$0xff] %vm1375, %v1357
  %1383 = vst.msk [vmem:[#allocation3 + $0x38] sm:$0xff] %vm1375, %v1358
  %1384 = vst.msk [vmem:[#allocation3 + $0x40] sm:$0xff] %vm1375, %v1359
  %1385 = vst.msk [vmem:[#allocation3 + $0x48] sm:$0xff] %vm1375, %v1360
  %1386 = vst.msk [vmem:[#allocation3 + $0x50] sm:$0xff] %vm1375, %v1361
  %1387 = vst.msk [vmem:[#allocation3 + $0x58] sm:$0xff] %vm1375, %v1362
  %1388 = vst.msk [vmem:[#allocation3 + $0x60] sm:$0xff] %vm1375, %v1363
  %1389 = vst.msk [vmem:[#allocation3 + $0x68] sm:$0xff] %vm1375, %v1364
  %1390 = vst.msk [vmem:[#allocation3 + $0x70] sm:$0xff] %vm1375, %v1365
  %1391 = vst.msk [vmem:[#allocation3 + $0x78] sm:$0xff] %vm1375, %v1366
  %1392 = vst.msk [vmem:[#allocation3 + $0x80] sm:$0xff] %vm1375, %v1367
  %1393 = vst.msk [vmem:[#allocation3 + $0x88] sm:$0xff] %vm1375, %v1368
  %1394 = vst.msk [vmem:[#allocation3 + $0x90] sm:$0xff] %vm1375, %v1369
  %1395 = vst.msk [vmem:[#allocation3 + $0x98] sm:$0xff] %vm1375, %v1370
  %1396 = vst.msk [vmem:[#allocation3 + $0xa0] sm:$0xff] %vm1375, %v1371
  %1397 = vst.msk [vmem:[#allocation3 + $0xa8] sm:$0xff] %vm1375, %v1372
  %1398 = vst.msk [vmem:[#allocation3 + $0xb0] sm:$0xff] %vm1375, %v1373
  %1399 = vst.msk [vmem:[#allocation3 + $0xb8] sm:$0xff] %vm1375, %v1374
  %v1400 = vld [vmem:[#allocation3] ss:$2 sm:$0xf]
  %s1401 = scalar_lea.vmem [#allocation3], 1
  %v1402 = vld [vmem:[%s1401] ss:$2 sm:$0xf]
  %v1403 = vadd.f32 %v1400, %v1402
  %s1404 = scalar_lea.vmem [#allocation3], 10
  %v1405 = vld [vmem:[%s1404] ss:$2 sm:$0xf]
  %v1406 = vadd.f32 %v1403, %v1405
  %s1407 = scalar_lea.vmem [#allocation3], 11
  %v1408 = vld [vmem:[%s1407] ss:$2 sm:$0xf]
  %v1409 = vadd.f32 %v1406, %v1408
  %v1410 = vmul.f32 %v1409, 0.25
  %vm1411 = vcmask 257024
  %1412 = vst.msk [vmem:[%s4] sm:$0xf] %vm1411, %v1410
  %s1413 = scalar_lea.vmem [#allocation3], 20
  %v1414 = vld [vmem:[%s1413] ss:$2 sm:$0xf]
  %s1415 = scalar_lea.vmem [#allocation3], 21
  %v1416 = vld [vmem:[%s1415] ss:$2 sm:$0xf]
  %v1417 = vadd.f32 %v1414, %v1416
  %s1418 = scalar_lea.vmem [#allocation3], 30
  %v1419 = vld [vmem:[%s1418] ss:$2 sm:$0xf]
  %v1420 = vadd.f32 %v1417, %v1419
  %s1421 = scalar_lea.vmem [#allocation3], 31
  %v1422 = vld [vmem:[%s1421] ss:$2 sm:$0xf]
  %v1423 = vadd.f32 %v1420, %v1422
  %v1424 = vmul.f32 %v1423, 0.25
  %s1425 = scalar_lea.vmem %s4, 4
  %1426 = vst.msk [vmem:[%s1425] sm:$0xf] %vm1411, %v1424
  %s1427 = scalar_lea.vmem [#allocation3], 40
  %v1428 = vld [vmem:[%s1427] ss:$2 sm:$0xf]
  %s1429 = scalar_lea.vmem [#allocation3], 41
  %v1430 = vld [vmem:[%s1429] ss:$2 sm:$0xf]
  %v1431 = vadd.f32 %v1428, %v1430
  %s1432 = scalar_lea.vmem [#allocation3], 50
  %v1433 = vld [vmem:[%s1432] ss:$2 sm:$0xf]
  %v1434 = vadd.f32 %v1431, %v1433
  %s1435 = scalar_lea.vmem [#allocation3], 51
  %v1436 = vld [vmem:[%s1435] ss:$2 sm:$0xf]
  %v1437 = vadd.f32 %v1434, %v1436
  %v1438 = vmul.f32 %v1437, 0.25
  %s1439 = scalar_lea.vmem %s4, 8
  %1440 = vst.msk [vmem:[%s1439] sm:$0xf] %vm1411, %v1438
  %s1441 = scalar_lea.vmem [#allocation3], 60
  %v1442 = vld [vmem:[%s1441] ss:$2 sm:$0xf]
  %s1443 = scalar_lea.vmem [#allocation3], 61
  %v1444 = vld [vmem:[%s1443] ss:$2 sm:$0xf]
  %v1445 = vadd.f32 %v1442, %v1444
  %s1446 = scalar_lea.vmem [#allocation3], 70
  %v1447 = vld [vmem:[%s1446] ss:$2 sm:$0xf]
  %v1448 = vadd.f32 %v1445, %v1447
  %s1449 = scalar_lea.vmem [#allocation3], 71
  %v1450 = vld [vmem:[%s1449] ss:$2 sm:$0xf]
  %v1451 = vadd.f32 %v1448, %v1450
  %v1452 = vmul.f32 %v1451, 0.25
  %s1453 = scalar_lea.vmem %s4, 12
  %1454 = vst.msk [vmem:[%s1453] sm:$0xf] %vm1411, %v1452
  %s1455 = scalar_lea.vmem [#allocation3], 112
  %v1456 = vld [vmem:[%s1455] ss:$2 sm:$0xf]
  %s1457 = scalar_lea.vmem [#allocation3], 113
  %v1458 = vld [vmem:[%s1457] ss:$2 sm:$0xf]
  %v1459 = vadd.f32 %v1456, %v1458
  %s1460 = scalar_lea.vmem [#allocation3], 122
  %v1461 = vld [vmem:[%s1460] ss:$2 sm:$0xf]
  %v1462 = vadd.f32 %v1459, %v1461
  %s1463 = scalar_lea.vmem [#allocation3], 123
  %v1464 = vld [vmem:[%s1463] ss:$2 sm:$0xf]
  %v1465 = vadd.f32 %v1462, %v1464
  %v1466 = vmul.f32 %v1465, 0.25
  %s1467 = scalar_lea.vmem %s4, 16
  %1468 = vst.msk [vmem:[%s1467] sm:$0xf] %vm1411, %v1466
  %s1469 = scalar_lea.vmem [#allocation3], 132
  %v1470 = vld [vmem:[%s1469] ss:$2 sm:$0xf]
  %s1471 = scalar_lea.vmem [#allocation3], 133
  %v1472 = vld [vmem:[%s1471] ss:$2 sm:$0xf]
  %v1473 = vadd.f32 %v1470, %v1472
  %s1474 = scalar_lea.vmem [#allocation3], 142
  %v1475 = vld [vmem:[%s1474] ss:$2 sm:$0xf]
  %v1476 = vadd.f32 %v1473, %v1475
  %s1477 = scalar_lea.vmem [#allocation3], 143
  %v1478 = vld [vmem:[%s1477] ss:$2 sm:$0xf]
  %v1479 = vadd.f32 %v1476, %v1478
  %v1480 = vmul.f32 %v1479, 0.25
  %s1481 = scalar_lea.vmem %s4, 20
  %1482 = vst.msk [vmem:[%s1481] sm:$0xf] %vm1411, %v1480
  %s1483 = scalar_lea.vmem [#allocation3], 152
  %v1484 = vld [vmem:[%s1483] ss:$2 sm:$0xf]
  %s1485 = scalar_lea.vmem [#allocation3], 153
  %v1486 = vld [vmem:[%s1485] ss:$2 sm:$0xf]
  %v1487 = vadd.f32 %v1484, %v1486
  %s1488 = scalar_lea.vmem [#allocation3], 162
  %v1489 = vld [vmem:[%s1488] ss:$2 sm:$0xf]
  %v1490 = vadd.f32 %v1487, %v1489
  %s1491 = scalar_lea.vmem [#allocation3], 163
  %v1492 = vld [vmem:[%s1491] ss:$2 sm:$0xf]
  %v1493 = vadd.f32 %v1490, %v1492
  %v1494 = vmul.f32 %v1493, 0.25
  %s1495 = scalar_lea.vmem %s4, 24
  %1496 = vst.msk [vmem:[%s1495] sm:$0xf] %vm1411, %v1494
  %s1497 = scalar_lea.vmem [#allocation3], 172
  %v1498 = vld [vmem:[%s1497] ss:$2 sm:$0xf]
  %s1499 = scalar_lea.vmem [#allocation3], 173
  %v1500 = vld [vmem:[%s1499] ss:$2 sm:$0xf]
  %v1501 = vadd.f32 %v1498, %v1500
  %s1502 = scalar_lea.vmem [#allocation3], 182
  %v1503 = vld [vmem:[%s1502] ss:$2 sm:$0xf]
  %v1504 = vadd.f32 %v1501, %v1503
  %s1505 = scalar_lea.vmem [#allocation3], 183
  %v1506 = vld [vmem:[%s1505] ss:$2 sm:$0xf]
  %v1507 = vadd.f32 %v1504, %v1506
  %v1508 = vmul.f32 %v1507, 0.25
  %s1509 = scalar_lea.vmem %s4, 28
  %1510 = vst.msk [vmem:[%s1509] sm:$0xf] %vm1411, %v1508
  // Predicated region
  $region18: #{hourglass_forward.7} parent=0 // pred_check
    _
  $region19: #{hourglass_forward.7} parent=0 // pred_check_branch
    %1512 = sbr.rel (0) target = $region21
  $region20: #{hourglass_forward.7} parent=0 // pred_region
    _
  $region21: #{hourglass_forward.7} parent=0 // pred_fallthru
    _
  // Predicated region
  $region22: #{hourglass_forward.7} parent=0 // pred_check
    _
  $region23: #{hourglass_forward.7} parent=0 // pred_check_branch
    %1514 = sbr.rel (0) target = $region25
  $region24: #{hourglass_forward.7} parent=0 // pred_region
    _
  $region25: #{hourglass_forward.7} parent=0 // pred_fallthru
    _

// kernel: hourglass_forward.6
$region0: #{hourglass_forward.6}
  #allocation0 [shape = 'u32[]', space=smem, size = 0x4, offset = 0x4, fixed_abs, tag = 'smem constant byte address 0x4 - core index']
  #allocation1 [shape = 'u32[144,128]{1,0:T(1,128)}', space=vmem, size = 0x12000, scoped, tag = 'internal scratch']
  #allocation2 [shape = 'f32[668,12]{1,0:T(8,128)}', space=vmem, size = 0x54000, scoped, tag = 'scratch operand']
  #allocation3 [shape = 'f32[632,16]{1,0:T(8,128)}', space=vmem, size = 0x4f000, scoped, tag = 'scratch operand']
  %s0 = inlined_call_operand.vmem [shape: f32[688,4], index: 0, kind: input, shape index: {}]
  %s1 = inlined_call_operand.vmem [shape: f32[3,12,16], index: 1, kind: input, shape index: {}]
  %s2 = inlined_call_operand.vmem [shape: f32[1,16], index: 2, kind: input, shape index: {}]
  %s3 = inlined_call_operand.vmem [shape: f32[1,16], index: 3, kind: input, shape index: {}]
  %s4 = inlined_call_operand.vmem [shape: f32[2,8,8,16], index: 4, kind: output, shape index: {}]
  %s5 = sld [smem:[#allocation0]]
  $region26: #{hourglass_forward.6} parent=0
    _
  %s7 = ssub.s32 1, %s5
  %s8 = scalar_select 0, %s7, %s5
  // Predicated region
  $region2: #{hourglass_forward.6} parent=0 // pred_check
    _
  $region3: #{hourglass_forward.6} parent=0 // pred_check_branch
    %10 = sbr.rel (0) target = $region5
  $region4: #{hourglass_forward.6} parent=0 // pred_region
    _
  $region5: #{hourglass_forward.6} parent=0 // pred_fallthru
    _
  // Predicated region
  $region6: #{hourglass_forward.6} parent=0 // pred_check
    _
  $region7: #{hourglass_forward.6} parent=0 // pred_check_branch
    %12 = sbr.rel (0) target = $region9
  $region8: #{hourglass_forward.6} parent=0 // pred_region
    _
  $region9: #{hourglass_forward.6} parent=0 // pred_fallthru
    _
  // Predicated region
  $region10: #{hourglass_forward.6} parent=0 // pred_check
    _
  $region11: #{hourglass_forward.6} parent=0 // pred_check_branch
    %14 = sbr.rel (0) target = $region13
  $region12: #{hourglass_forward.6} parent=0 // pred_region
    _
  $region13: #{hourglass_forward.6} parent=0 // pred_fallthru
    _
  // Predicated region
  $region14: #{hourglass_forward.6} parent=0 // pred_check
    _
  $region15: #{hourglass_forward.6} parent=0 // pred_check_branch
    %16 = sbr.rel (0) target = $region17
  $region16: #{hourglass_forward.6} parent=0 // pred_region
    _
  $region17: #{hourglass_forward.6} parent=0 // pred_fallthru
    _
  %v17 = vld [vmem:[%s0] sm:$0xff]
  %v18 = vld [vmem:[%s0 + $0x8] sm:$0xff]
  %v19 = vld [vmem:[%s0 + $0x10] sm:$0xff]
  %v20 = vld [vmem:[%s0 + $0x18] sm:$0xff]
  %v21 = vld [vmem:[%s0 + $0x20] sm:$0xff]
  %v22 = vld [vmem:[%s0 + $0x28] sm:$0xff]
  %v23 = vld [vmem:[%s0 + $0x30] sm:$0xff]
  %v24 = vld [vmem:[%s0 + $0x38] sm:$0xff]
  %v25 = vld [vmem:[%s0 + $0x40] sm:$0xff]
  %v26 = vld [vmem:[%s0 + $0x48] sm:$0xff]
  %v27 = vld [vmem:[%s0 + $0x50] sm:$0xff]
  %v28 = vld [vmem:[%s0 + $0x58] sm:$0xff]
  %v29 = vld [vmem:[%s0 + $0x60] sm:$0xff]
  %v30 = vld [vmem:[%s0 + $0x68] sm:$0xff]
  %v31 = vld [vmem:[%s0 + $0x70] sm:$0xff]
  %v32 = vld [vmem:[%s0 + $0x78] sm:$0xff]
  %v33 = vld [vmem:[%s0 + $0x80] sm:$0xff]
  %v34 = vld [vmem:[%s0 + $0x88] sm:$0xff]
  %v35 = vld [vmem:[%s0 + $0x90] sm:$0xff]
  %v36 = vld [vmem:[%s0 + $0x98] sm:$0xff]
  %v37 = vld [vmem:[%s0 + $0xa0] sm:$0xff]
  %v38 = vld [vmem:[%s0 + $0xa8] sm:$0xff]
  %v39 = vld [vmem:[%s0 + $0xb0] sm:$0xff]
  %v40 = vld [vmem:[%s0 + $0xb8] sm:$0xff]
  %v41 = vld [vmem:[%s0 + $0xc0] sm:$0xff]
  %v42 = vld [vmem:[%s0 + $0xc8] sm:$0xff]
  %v43 = vld [vmem:[%s0 + $0xd0] sm:$0xff]
  %v44 = vld [vmem:[%s0 + $0xd8] sm:$0xff]
  %v45 = vld [vmem:[%s0 + $0xe0] sm:$0xff]
  %v46 = vld [vmem:[%s0 + $0xe8] sm:$0xff]
  %v47 = vld [vmem:[%s0 + $0xf0] sm:$0xff]
  %v48 = vld [vmem:[%s0 + $0xf8] sm:$0xff]
  %v49 = vld [vmem:[%s0 + $0x100] sm:$0xff]
  %v50 = vld [vmem:[%s0 + $0x108] sm:$0xff]
  %v51 = vld [vmem:[%s0 + $0x110] sm:$0xff]
  %v52 = vld [vmem:[%s0 + $0x118] sm:$0xff]
  %v53 = vld [vmem:[%s0 + $0x120] sm:$0xff]
  %v54 = vld [vmem:[%s0 + $0x128] sm:$0xff]
  %v55 = vld [vmem:[%s0 + $0x130] sm:$0xff]
  %v56 = vld [vmem:[%s0 + $0x138] sm:$0xff]
  %v57 = vld [vmem:[%s0 + $0x140] sm:$0xff]
  %v58 = vld [vmem:[%s0 + $0x148] sm:$0xff]
  %v59 = vld [vmem:[%s0 + $0x150] sm:$0xff]
  %v60 = vld [vmem:[%s0 + $0x158] sm:$0xff]
  %v61 = vld [vmem:[%s0 + $0x160] sm:$0xff]
  %v62 = vld [vmem:[%s0 + $0x168] sm:$0xff]
  %v63 = vld [vmem:[%s0 + $0x170] sm:$0xff]
  %v64 = vld [vmem:[%s0 + $0x178] sm:$0xff]
  %v65 = vld [vmem:[%s0 + $0x180] sm:$0xff]
  %v66 = vld [vmem:[%s0 + $0x188] sm:$0xff]
  %v67 = vld [vmem:[%s0 + $0x190] sm:$0xff]
  %v68 = vld [vmem:[%s0 + $0x198] sm:$0xff]
  %v69 = vld [vmem:[%s0 + $0x1a0] sm:$0xff]
  %v70 = vld [vmem:[%s0 + $0x1a8] sm:$0xff]
  %v71 = vld [vmem:[%s0 + $0x1b0] sm:$0xff]
  %v72 = vld [vmem:[%s0 + $0x1b8] sm:$0xff]
  %v73 = vld [vmem:[%s0 + $0x1c0] sm:$0xff]
  %v74 = vld [vmem:[%s0 + $0x1c8] sm:$0xff]
  %v75 = vld [vmem:[%s0 + $0x1d0] sm:$0xff]
  %v76 = vld [vmem:[%s0 + $0x1d8] sm:$0xff]
  %v77 = vld [vmem:[%s0 + $0x1e0] sm:$0xff]
  %v78 = vld [vmem:[%s0 + $0x1e8] sm:$0xff]
  %v79 = vld [vmem:[%s0 + $0x1f0] sm:$0xff]
  %v80 = vld [vmem:[%s0 + $0x1f8] sm:$0xff]
  %v81 = vld [vmem:[%s0 + $0x200] sm:$0xff]
  %v82 = vld [vmem:[%s0 + $0x208] sm:$0xff]
  %v83 = vld [vmem:[%s0 + $0x210] sm:$0xff]
  %v84 = vld [vmem:[%s0 + $0x218] sm:$0xff]
  %v85 = vld [vmem:[%s0 + $0x220] sm:$0xff]
  %v86 = vld [vmem:[%s0 + $0x228] sm:$0xff]
  %v87 = vld [vmem:[%s0 + $0x230] sm:$0xff]
  %v88 = vld [vmem:[%s0 + $0x238] sm:$0xff]
  %v89 = vld [vmem:[%s0 + $0x240] sm:$0xff]
  %v90 = vld [vmem:[%s0 + $0x248] sm:$0xff]
  %v91 = vld [vmem:[%s0 + $0x250] sm:$0xff]
  %v92 = vld [vmem:[%s0 + $0x258] sm:$0xff]
  %v93 = vld [vmem:[%s0 + $0x260] sm:$0xff]
  %v94 = vld [vmem:[%s0 + $0x268] sm:$0xff]
  %v95 = vld [vmem:[%s0 + $0x270] sm:$0xff]
  %v96 = vld [vmem:[%s0 + $0x278] sm:$0xff]
  %v97 = vld [vmem:[%s0 + $0x280] sm:$0xff]
  %v98 = vld [vmem:[%s0 + $0x288] sm:$0xff]
  %v99 = vld [vmem:[%s0 + $0x290] sm:$0xff]
  %v100 = vld [vmem:[%s0 + $0x298] sm:$0xf]
  %vm101 = vcmask 31744
  %102 = vst.msk [vmem:[#allocation2] sm:$0xff] %vm101, %v17
  %103 = vst.msk [vmem:[#allocation2 + $0x8] sm:$0xff] %vm101, %v18
  %104 = vst.msk [vmem:[#allocation2 + $0x10] sm:$0xff] %vm101, %v19
  %105 = vst.msk [vmem:[#allocation2 + $0x18] sm:$0xff] %vm101, %v20
  %106 = vst.msk [vmem:[#allocation2 + $0x20] sm:$0xff] %vm101, %v21
  %107 = vst.msk [vmem:[#allocation2 + $0x28] sm:$0xff] %vm101, %v22
  %108 = vst.msk [vmem:[#allocation2 + $0x30] sm:$0xff] %vm101, %v23
  %109 = vst.msk [vmem:[#allocation2 + $0x38] sm:$0xff] %vm101, %v24
  %110 = vst.msk [vmem:[#allocation2 + $0x40] sm:$0xff] %vm101, %v25
  %111 = vst.msk [vmem:[#allocation2 + $0x48] sm:$0xff] %vm101, %v26
  %112 = vst.msk [vmem:[#allocation2 + $0x50] sm:$0xff] %vm101, %v27
  %113 = vst.msk [vmem:[#allocation2 + $0x58] sm:$0xff] %vm101, %v28
  %114 = vst.msk [vmem:[#allocation2 + $0x60] sm:$0xff] %vm101, %v29
  %115 = vst.msk [vmem:[#allocation2 + $0x68] sm:$0xff] %vm101, %v30
  %116 = vst.msk [vmem:[#allocation2 + $0x70] sm:$0xff] %vm101, %v31
  %117 = vst.msk [vmem:[#allocation2 + $0x78] sm:$0xff] %vm101, %v32
  %118 = vst.msk [vmem:[#allocation2 + $0x80] sm:$0xff] %vm101, %v33
  %119 = vst.msk [vmem:[#allocation2 + $0x88] sm:$0xff] %vm101, %v34
  %120 = vst.msk [vmem:[#allocation2 + $0x90] sm:$0xff] %vm101, %v35
  %121 = vst.msk [vmem:[#allocation2 + $0x98] sm:$0xff] %vm101, %v36
  %122 = vst.msk [vmem:[#allocation2 + $0xa0] sm:$0xff] %vm101, %v37
  %123 = vst.msk [vmem:[#allocation2 + $0xa8] sm:$0xff] %vm101, %v38
  %124 = vst.msk [vmem:[#allocation2 + $0xb0] sm:$0xff] %vm101, %v39
  %125 = vst.msk [vmem:[#allocation2 + $0xb8] sm:$0xff] %vm101, %v40
  %126 = vst.msk [vmem:[#allocation2 + $0xc0] sm:$0xff] %vm101, %v41
  %127 = vst.msk [vmem:[#allocation2 + $0xc8] sm:$0xff] %vm101, %v42
  %128 = vst.msk [vmem:[#allocation2 + $0xd0] sm:$0xff] %vm101, %v43
  %129 = vst.msk [vmem:[#allocation2 + $0xd8] sm:$0xff] %vm101, %v44
  %130 = vst.msk [vmem:[#allocation2 + $0xe0] sm:$0xff] %vm101, %v45
  %131 = vst.msk [vmem:[#allocation2 + $0xe8] sm:$0xff] %vm101, %v46
  %132 = vst.msk [vmem:[#allocation2 + $0xf0] sm:$0xff] %vm101, %v47
  %133 = vst.msk [vmem:[#allocation2 + $0xf8] sm:$0xff] %vm101, %v48
  %134 = vst.msk [vmem:[#allocation2 + $0x100] sm:$0xff] %vm101, %v49
  %135 = vst.msk [vmem:[#allocation2 + $0x108] sm:$0xff] %vm101, %v50
  %136 = vst.msk [vmem:[#allocation2 + $0x110] sm:$0xff] %vm101, %v51
  %137 = vst.msk [vmem:[#allocation2 + $0x118] sm:$0xff] %vm101, %v52
  %138 = vst.msk [vmem:[#allocation2 + $0x120] sm:$0xff] %vm101, %v53
  %139 = vst.msk [vmem:[#allocation2 + $0x128] sm:$0xff] %vm101, %v54
  %140 = vst.msk [vmem:[#allocation2 + $0x130] sm:$0xff] %vm101, %v55
  %141 = vst.msk [vmem:[#allocation2 + $0x138] sm:$0xff] %vm101, %v56
  %142 = vst.msk [vmem:[#allocation2 + $0x140] sm:$0xff] %vm101, %v57
  %143 = vst.msk [vmem:[#allocation2 + $0x148] sm:$0xff] %vm101, %v58
  %144 = vst.msk [vmem:[#allocation2 + $0x150] sm:$0xff] %vm101, %v59
  %145 = vst.msk [vmem:[#allocation2 + $0x158] sm:$0xff] %vm101, %v60
  %146 = vst.msk [vmem:[#allocation2 + $0x160] sm:$0xff] %vm101, %v61
  %147 = vst.msk [vmem:[#allocation2 + $0x168] sm:$0xff] %vm101, %v62
  %148 = vst.msk [vmem:[#allocation2 + $0x170] sm:$0xff] %vm101, %v63
  %149 = vst.msk [vmem:[#allocation2 + $0x178] sm:$0xff] %vm101, %v64
  %150 = vst.msk [vmem:[#allocation2 + $0x180] sm:$0xff] %vm101, %v65
  %151 = vst.msk [vmem:[#allocation2 + $0x188] sm:$0xff] %vm101, %v66
  %152 = vst.msk [vmem:[#allocation2 + $0x190] sm:$0xff] %vm101, %v67
  %153 = vst.msk [vmem:[#allocation2 + $0x198] sm:$0xff] %vm101, %v68
  %154 = vst.msk [vmem:[#allocation2 + $0x1a0] sm:$0xff] %vm101, %v69
  %155 = vst.msk [vmem:[#allocation2 + $0x1a8] sm:$0xff] %vm101, %v70
  %156 = vst.msk [vmem:[#allocation2 + $0x1b0] sm:$0xff] %vm101, %v71
  %157 = vst.msk [vmem:[#allocation2 + $0x1b8] sm:$0xff] %vm101, %v72
  %158 = vst.msk [vmem:[#allocation2 + $0x1c0] sm:$0xff] %vm101, %v73
  %159 = vst.msk [vmem:[#allocation2 + $0x1c8] sm:$0xff] %vm101, %v74
  %160 = vst.msk [vmem:[#allocation2 + $0x1d0] sm:$0xff] %vm101, %v75
  %161 = vst.msk [vmem:[#allocation2 + $0x1d8] sm:$0xff] %vm101, %v76
  %162 = vst.msk [vmem:[#allocation2 + $0x1e0] sm:$0xff] %vm101, %v77
  %163 = vst.msk [vmem:[#allocation2 + $0x1e8] sm:$0xff] %vm101, %v78
  %164 = vst.msk [vmem:[#allocation2 + $0x1f0] sm:$0xff] %vm101, %v79
  %165 = vst.msk [vmem:[#allocation2 + $0x1f8] sm:$0xff] %vm101, %v80
  %166 = vst.msk [vmem:[#allocation2 + $0x200] sm:$0xff] %vm101, %v81
  %167 = vst.msk [vmem:[#allocation2 + $0x208] sm:$0xff] %vm101, %v82
  %168 = vst.msk [vmem:[#allocation2 + $0x210] sm:$0xff] %vm101, %v83
  %169 = vst.msk [vmem:[#allocation2 + $0x218] sm:$0xff] %vm101, %v84
  %170 = vst.msk [vmem:[#allocation2 + $0x220] sm:$0xff] %vm101, %v85
  %171 = vst.msk [vmem:[#allocation2 + $0x228] sm:$0xff] %vm101, %v86
  %172 = vst.msk [vmem:[#allocation2 + $0x230] sm:$0xff] %vm101, %v87
  %173 = vst.msk [vmem:[#allocation2 + $0x238] sm:$0xff] %vm101, %v88
  %174 = vst.msk [vmem:[#allocation2 + $0x240] sm:$0xff] %vm101, %v89
  %175 = vst.msk [vmem:[#allocation2 + $0x248] sm:$0xff] %vm101, %v90
  %176 = vst.msk [vmem:[#allocation2 + $0x250] sm:$0xff] %vm101, %v91
  %177 = vst.msk [vmem:[#allocation2 + $0x258] sm:$0xff] %vm101, %v92
  %178 = vst.msk [vmem:[#allocation2 + $0x260] sm:$0xff] %vm101, %v93
  %179 = vst.msk [vmem:[#allocation2 + $0x268] sm:$0xff] %vm101, %v94
  %180 = vst.msk [vmem:[#allocation2 + $0x270] sm:$0xff] %vm101, %v95
  %181 = vst.msk [vmem:[#allocation2 + $0x278] sm:$0xff] %vm101, %v96
  %182 = vst.msk [vmem:[#allocation2 + $0x280] sm:$0xff] %vm101, %v97
  %183 = vst.msk [vmem:[#allocation2 + $0x288] sm:$0xff] %vm101, %v98
  %184 = vst.msk [vmem:[#allocation2 + $0x290] sm:$0xff] %vm101, %v99
  %vm185 = vcmask 27648
  %186 = vst.msk [vmem:[#allocation2 + $0x298] sm:$0xf] %vm185, %v100
  %v187 = vld [vmem:[%s0 + $0x1] sm:$0xff]
  %v188 = vld [vmem:[%s0 + $0x9] sm:$0xff]
  %v189 = vld [vmem:[%s0 + $0x11] sm:$0xff]
  %v190 = vld [vmem:[%s0 + $0x19] sm:$0xff]
  %v191 = vld [vmem:[%s0 + $0x21] sm:$0xff]
  %v192 = vld [vmem:[%s0 + $0x29] sm:$0xff]
  %v193 = vld [vmem:[%s0 + $0x31] sm:$0xff]
  %v194 = vld [vmem:[%s0 + $0x39] sm:$0xff]
  %v195 = vld [vmem:[%s0 + $0x41] sm:$0xff]
  %v196 = vld [vmem:[%s0 + $0x49] sm:$0xff]
  %v197 = vld [vmem:[%s0 + $0x51] sm:$0xff]
  %v198 = vld [vmem:[%s0 + $0x59] sm:$0xff]
  %v199 = vld [vmem:[%s0 + $0x61] sm:$0xff]
  %v200 = vld [vmem:[%s0 + $0x69] sm:$0xff]
  %v201 = vld [vmem:[%s0 + $0x71] sm:$0xff]
  %v202 = vld [vmem:[%s0 + $0x79] sm:$0xff]
  %v203 = vld [vmem:[%s0 + $0x81] sm:$0xff]
  %v204 = vld [vmem:[%s0 + $0x89] sm:$0xff]
  %v205 = vld [vmem:[%s0 + $0x91] sm:$0xff]
  %v206 = vld [vmem:[%s0 + $0x99] sm:$0xff]
  %v207 = vld [vmem:[%s0 + $0xa1] sm:$0xff]
  %v208 = vld [vmem:[%s0 + $0xa9] sm:$0xff]
  %v209 = vld [vmem:[%s0 + $0xb1] sm:$0xff]
  %v210 = vld [vmem:[%s0 + $0xb9] sm:$0xff]
  %v211 = vld [vmem:[%s0 + $0xc1] sm:$0xff]
  %v212 = vld [vmem:[%s0 + $0xc9] sm:$0xff]
  %v213 = vld [vmem:[%s0 + $0xd1] sm:$0xff]
  %v214 = vld [vmem:[%s0 + $0xd9] sm:$0xff]
  %v215 = vld [vmem:[%s0 + $0xe1] sm:$0xff]
  %v216 = vld [vmem:[%s0 + $0xe9] sm:$0xff]
  %v217 = vld [vmem:[%s0 + $0xf1] sm:$0xff]
  %v218 = vld [vmem:[%s0 + $0xf9] sm:$0xff]
  %v219 = vld [vmem:[%s0 + $0x101] sm:$0xff]
  %v220 = vld [vmem:[%s0 + $0x109] sm:$0xff]
  %v221 = vld [vmem:[%s0 + $0x111] sm:$0xff]
  %v222 = vld [vmem:[%s0 + $0x119] sm:$0xff]
  %v223 = vld [vmem:[%s0 + $0x121] sm:$0xff]
  %v224 = vld [vmem:[%s0 + $0x129] sm:$0xff]
  %v225 = vld [vmem:[%s0 + $0x131] sm:$0xff]
  %v226 = vld [vmem:[%s0 + $0x139] sm:$0xff]
  %v227 = vld [vmem:[%s0 + $0x141] sm:$0xff]
  %v228 = vld [vmem:[%s0 + $0x149] sm:$0xff]
  %v229 = vld [vmem:[%s0 + $0x151] sm:$0xff]
  %v230 = vld [vmem:[%s0 + $0x159] sm:$0xff]
  %v231 = vld [vmem:[%s0 + $0x161] sm:$0xff]
  %v232 = vld [vmem:[%s0 + $0x169] sm:$0xff]
  %v233 = vld [vmem:[%s0 + $0x171] sm:$0xff]
  %v234 = vld [vmem:[%s0 + $0x179] sm:$0xff]
  %v235 = vld [vmem:[%s0 + $0x181] sm:$0xff]
  %v236 = vld [vmem:[%s0 + $0x189] sm:$0xff]
  %v237 = vld [vmem:[%s0 + $0x191] sm:$0xff]
  %v238 = vld [vmem:[%s0 + $0x199] sm:$0xff]
  %v239 = vld [vmem:[%s0 + $0x1a1] sm:$0xff]
  %v240 = vld [vmem:[%s0 + $0x1a9] sm:$0xff]
  %v241 = vld [vmem:[%s0 + $0x1b1] sm:$0xff]
  %v242 = vld [vmem:[%s0 + $0x1b9] sm:$0xff]
  %v243 = vld [vmem:[%s0 + $0x1c1] sm:$0xff]
  %v244 = vld [vmem:[%s0 + $0x1c9] sm:$0xff]
  %v245 = vld [vmem:[%s0 + $0x1d1] sm:$0xff]
  %v246 = vld [vmem:[%s0 + $0x1d9] sm:$0xff]
  %v247 = vld [vmem:[%s0 + $0x1e1] sm:$0xff]
  %v248 = vld [vmem:[%s0 + $0x1e9] sm:$0xff]
  %v249 = vld [vmem:[%s0 + $0x1f1] sm:$0xff]
  %v250 = vld [vmem:[%s0 + $0x1f9] sm:$0xff]
  %v251 = vld [vmem:[%s0 + $0x201] sm:$0xff]
  %v252 = vld [vmem:[%s0 + $0x209] sm:$0xff]
  %v253 = vld [vmem:[%s0 + $0x211] sm:$0xff]
  %v254 = vld [vmem:[%s0 + $0x219] sm:$0xff]
  %v255 = vld [vmem:[%s0 + $0x221] sm:$0xff]
  %v256 = vld [vmem:[%s0 + $0x229] sm:$0xff]
  %v257 = vld [vmem:[%s0 + $0x231] sm:$0xff]
  %v258 = vld [vmem:[%s0 + $0x239] sm:$0xff]
  %v259 = vld [vmem:[%s0 + $0x241] sm:$0xff]
  %v260 = vld [vmem:[%s0 + $0x249] sm:$0xff]
  %v261 = vld [vmem:[%s0 + $0x251] sm:$0xff]
  %v262 = vld [vmem:[%s0 + $0x259] sm:$0xff]
  %v263 = vld [vmem:[%s0 + $0x261] sm:$0xff]
  %v264 = vld [vmem:[%s0 + $0x269] sm:$0xff]
  %v265 = vld [vmem:[%s0 + $0x271] sm:$0xff]
  %v266 = vld [vmem:[%s0 + $0x279] sm:$0xff]
  %v267 = vld [vmem:[%s0 + $0x281] sm:$0xff]
  %v268 = vld [vmem:[%s0 + $0x289] sm:$0xff]
  %v269 = vld [vmem:[%s0 + $0x291] sm:$0xff]
  %v270 = vld [vmem:[%s0 + $0x299] sm:$0xf]
  %355 = vrot.lane.b32.xlu0 %v187, 4
  %v356 = vpop.permute.xlu0 %355
  %357 = vrot.lane.b32.xlu0 %v188, 4
  %v358 = vpop.permute.xlu0 %357
  %359 = vrot.lane.b32.xlu0 %v189, 4
  %v360 = vpop.permute.xlu0 %359
  %361 = vrot.lane.b32.xlu0 %v190, 4
  %v362 = vpop.permute.xlu0 %361
  %363 = vrot.lane.b32.xlu0 %v191, 4
  %v364 = vpop.permute.xlu0 %363
  %365 = vrot.lane.b32.xlu0 %v192, 4
  %v366 = vpop.permute.xlu0 %365
  %367 = vrot.lane.b32.xlu0 %v193, 4
  %v368 = vpop.permute.xlu0 %367
  %369 = vrot.lane.b32.xlu0 %v194, 4
  %v370 = vpop.permute.xlu0 %369
  %371 = vrot.lane.b32.xlu0 %v195, 4
  %v372 = vpop.permute.xlu0 %371
  %373 = vrot.lane.b32.xlu0 %v196, 4
  %v374 = vpop.permute.xlu0 %373
  %375 = vrot.lane.b32.xlu0 %v197, 4
  %v376 = vpop.permute.xlu0 %375
  %377 = vrot.lane.b32.xlu0 %v198, 4
  %v378 = vpop.permute.xlu0 %377
  %379 = vrot.lane.b32.xlu0 %v199, 4
  %v380 = vpop.permute.xlu0 %379
  %381 = vrot.lane.b32.xlu0 %v200, 4
  %v382 = vpop.permute.xlu0 %381
  %383 = vrot.lane.b32.xlu0 %v201, 4
  %v384 = vpop.permute.xlu0 %383
  %385 = vrot.lane.b32.xlu0 %v202, 4
  %v386 = vpop.permute.xlu0 %385
  %387 = vrot.lane.b32.xlu0 %v203, 4
  %v388 = vpop.permute.xlu0 %387
  %389 = vrot.lane.b32.xlu0 %v204, 4
  %v390 = vpop.permute.xlu0 %389
  %391 = vrot.lane.b32.xlu0 %v205, 4
  %v392 = vpop.permute.xlu0 %391
  %393 = vrot.lane.b32.xlu0 %v206, 4
  %v394 = vpop.permute.xlu0 %393
  %395 = vrot.lane.b32.xlu0 %v207, 4
  %v396 = vpop.permute.xlu0 %395
  %397 = vrot.lane.b32.xlu0 %v208, 4
  %v398 = vpop.permute.xlu0 %397
  %399 = vrot.lane.b32.xlu0 %v209, 4
  %v400 = vpop.permute.xlu0 %399
  %401 = vrot.lane.b32.xlu0 %v210, 4
  %v402 = vpop.permute.xlu0 %401
  %403 = vrot.lane.b32.xlu0 %v211, 4
  %v404 = vpop.permute.xlu0 %403
  %405 = vrot.lane.b32.xlu0 %v212, 4
  %v406 = vpop.permute.xlu0 %405
  %407 = vrot.lane.b32.xlu0 %v213, 4
  %v408 = vpop.permute.xlu0 %407
  %409 = vrot.lane.b32.xlu0 %v214, 4
  %v410 = vpop.permute.xlu0 %409
  %411 = vrot.lane.b32.xlu0 %v215, 4
  %v412 = vpop.permute.xlu0 %411
  %413 = vrot.lane.b32.xlu0 %v216, 4
  %v414 = vpop.permute.xlu0 %413
  %415 = vrot.lane.b32.xlu0 %v217, 4
  %v416 = vpop.permute.xlu0 %415
  %417 = vrot.lane.b32.xlu0 %v218, 4
  %v418 = vpop.permute.xlu0 %417
  %419 = vrot.lane.b32.xlu0 %v219, 4
  %v420 = vpop.permute.xlu0 %419
  %421 = vrot.lane.b32.xlu0 %v220, 4
  %v422 = vpop.permute.xlu0 %421
  %423 = vrot.lane.b32.xlu0 %v221, 4
  %v424 = vpop.permute.xlu0 %423
  %425 = vrot.lane.b32.xlu0 %v222, 4
  %v426 = vpop.permute.xlu0 %425
  %427 = vrot.lane.b32.xlu0 %v223, 4
  %v428 = vpop.permute.xlu0 %427
  %429 = vrot.lane.b32.xlu0 %v224, 4
  %v430 = vpop.permute.xlu0 %429
  %431 = vrot.lane.b32.xlu0 %v225, 4
  %v432 = vpop.permute.xlu0 %431
  %433 = vrot.lane.b32.xlu0 %v226, 4
  %v434 = vpop.permute.xlu0 %433
  %435 = vrot.lane.b32.xlu0 %v227, 4
  %v436 = vpop.permute.xlu0 %435
  %437 = vrot.lane.b32.xlu0 %v228, 4
  %v438 = vpop.permute.xlu0 %437
  %439 = vrot.lane.b32.xlu0 %v229, 4
  %v440 = vpop.permute.xlu0 %439
  %441 = vrot.lane.b32.xlu0 %v230, 4
  %v442 = vpop.permute.xlu0 %441
  %443 = vrot.lane.b32.xlu0 %v231, 4
  %v444 = vpop.permute.xlu0 %443
  %445 = vrot.lane.b32.xlu0 %v232, 4
  %v446 = vpop.permute.xlu0 %445
  %447 = vrot.lane.b32.xlu0 %v233, 4
  %v448 = vpop.permute.xlu0 %447
  %449 = vrot.lane.b32.xlu0 %v234, 4
  %v450 = vpop.permute.xlu0 %449
  %451 = vrot.lane.b32.xlu0 %v235, 4
  %v452 = vpop.permute.xlu0 %451
  %453 = vrot.lane.b32.xlu0 %v236, 4
  %v454 = vpop.permute.xlu0 %453
  %455 = vrot.lane.b32.xlu0 %v237, 4
  %v456 = vpop.permute.xlu0 %455
  %457 = vrot.lane.b32.xlu0 %v238, 4
  %v458 = vpop.permute.xlu0 %457
  %459 = vrot.lane.b32.xlu0 %v239, 4
  %v460 = vpop.permute.xlu0 %459
  %461 = vrot.lane.b32.xlu0 %v240, 4
  %v462 = vpop.permute.xlu0 %461
  %463 = vrot.lane.b32.xlu0 %v241, 4
  %v464 = vpop.permute.xlu0 %463
  %465 = vrot.lane.b32.xlu0 %v242, 4
  %v466 = vpop.permute.xlu0 %465
  %467 = vrot.lane.b32.xlu0 %v243, 4
  %v468 = vpop.permute.xlu0 %467
  %469 = vrot.lane.b32.xlu0 %v244, 4
  %v470 = vpop.permute.xlu0 %469
  %471 = vrot.lane.b32.xlu0 %v245, 4
  %v472 = vpop.permute.xlu0 %471
  %473 = vrot.lane.b32.xlu0 %v246, 4
  %v474 = vpop.permute.xlu0 %473
  %475 = vrot.lane.b32.xlu0 %v247, 4
  %v476 = vpop.permute.xlu0 %475
  %477 = vrot.lane.b32.xlu0 %v248, 4
  %v478 = vpop.permute.xlu0 %477
  %479 = vrot.lane.b32.xlu0 %v249, 4
  %v480 = vpop.permute.xlu0 %479
  %481 = vrot.lane.b32.xlu0 %v250, 4
  %v482 = vpop.permute.xlu0 %481
  %483 = vrot.lane.b32.xlu0 %v251, 4
  %v484 = vpop.permute.xlu0 %483
  %485 = vrot.lane.b32.xlu0 %v252, 4
  %v486 = vpop.permute.xlu0 %485
  %487 = vrot.lane.b32.xlu0 %v253, 4
  %v488 = vpop.permute.xlu0 %487
  %489 = vrot.lane.b32.xlu0 %v254, 4
  %v490 = vpop.permute.xlu0 %489
  %491 = vrot.lane.b32.xlu0 %v255, 4
  %v492 = vpop.permute.xlu0 %491
  %493 = vrot.lane.b32.xlu0 %v256, 4
  %v494 = vpop.permute.xlu0 %493
  %495 = vrot.lane.b32.xlu0 %v257, 4
  %v496 = vpop.permute.xlu0 %495
  %497 = vrot.lane.b32.xlu0 %v258, 4
  %v498 = vpop.permute.xlu0 %497
  %499 = vrot.lane.b32.xlu0 %v259, 4
  %v500 = vpop.permute.xlu0 %499
  %501 = vrot.lane.b32.xlu0 %v260, 4
  %v502 = vpop.permute.xlu0 %501
  %503 = vrot.lane.b32.xlu0 %v261, 4
  %v504 = vpop.permute.xlu0 %503
  %505 = vrot.lane.b32.xlu0 %v262, 4
  %v506 = vpop.permute.xlu0 %505
  %507 = vrot.lane.b32.xlu0 %v263, 4
  %v508 = vpop.permute.xlu0 %507
  %509 = vrot.lane.b32.xlu0 %v264, 4
  %v510 = vpop.permute.xlu0 %509
  %511 = vrot.lane.b32.xlu0 %v265, 4
  %v512 = vpop.permute.xlu0 %511
  %513 = vrot.lane.b32.xlu0 %v266, 4
  %v514 = vpop.permute.xlu0 %513
  %515 = vrot.lane.b32.xlu0 %v267, 4
  %v516 = vpop.permute.xlu0 %515
  %517 = vrot.lane.b32.xlu0 %v268, 4
  %v518 = vpop.permute.xlu0 %517
  %519 = vrot.lane.b32.xlu0 %v269, 4
  %v520 = vpop.permute.xlu0 %519
  %521 = vrot.lane.b32.xlu0 %v270, 4
  %v522 = vpop.permute.xlu0 %521
  %vm607 = vcmask 64544
  %608 = vst.msk [vmem:[#allocation2] sm:$0xff] %vm607, %v356
  %609 = vst.msk [vmem:[#allocation2 + $0x8] sm:$0xff] %vm607, %v358
  %610 = vst.msk [vmem:[#allocation2 + $0x10] sm:$0xff] %vm607, %v360
  %611 = vst.msk [vmem:[#allocation2 + $0x18] sm:$0xff] %vm607, %v362
  %612 = vst.msk [vmem:[#allocation2 + $0x20] sm:$0xff] %vm607, %v364
  %613 = vst.msk [vmem:[#allocation2 + $0x28] sm:$0xff] %vm607, %v366
  %614 = vst.msk [vmem:[#allocation2 + $0x30] sm:$0xff] %vm607, %v368
  %615 = vst.msk [vmem:[#allocation2 + $0x38] sm:$0xff] %vm607, %v370
  %616 = vst.msk [vmem:[#allocation2 + $0x40] sm:$0xff] %vm607, %v372
  %617 = vst.msk [vmem:[#allocation2 + $0x48] sm:$0xff] %vm607, %v374
  %618 = vst.msk [vmem:[#allocation2 + $0x50] sm:$0xff] %vm607, %v376
  %619 = vst.msk [vmem:[#allocation2 + $0x58] sm:$0xff] %vm607, %v378
  %620 = vst.msk [vmem:[#allocation2 + $0x60] sm:$0xff] %vm607, %v380
  %621 = vst.msk [vmem:[#allocation2 + $0x68] sm:$0xff] %vm607, %v382
  %622 = vst.msk [vmem:[#allocation2 + $0x70] sm:$0xff] %vm607, %v384
  %623 = vst.msk [vmem:[#allocation2 + $0x78] sm:$0xff] %vm607, %v386
  %624 = vst.msk [vmem:[#allocation2 + $0x80] sm:$0xff] %vm607, %v388
  %625 = vst.msk [vmem:[#allocation2 + $0x88] sm:$0xff] %vm607, %v390
  %626 = vst.msk [vmem:[#allocation2 + $0x90] sm:$0xff] %vm607, %v392
  %627 = vst.msk [vmem:[#allocation2 + $0x98] sm:$0xff] %vm607, %v394
  %628 = vst.msk [vmem:[#allocation2 + $0xa0] sm:$0xff] %vm607, %v396
  %629 = vst.msk [vmem:[#allocation2 + $0xa8] sm:$0xff] %vm607, %v398
  %630 = vst.msk [vmem:[#allocation2 + $0xb0] sm:$0xff] %vm607, %v400
  %631 = vst.msk [vmem:[#allocation2 + $0xb8] sm:$0xff] %vm607, %v402
  %632 = vst.msk [vmem:[#allocation2 + $0xc0] sm:$0xff] %vm607, %v404
  %633 = vst.msk [vmem:[#allocation2 + $0xc8] sm:$0xff] %vm607, %v406
  %634 = vst.msk [vmem:[#allocation2 + $0xd0] sm:$0xff] %vm607, %v408
  %635 = vst.msk [vmem:[#allocation2 + $0xd8] sm:$0xff] %vm607, %v410
  %636 = vst.msk [vmem:[#allocation2 + $0xe0] sm:$0xff] %vm607, %v412
  %637 = vst.msk [vmem:[#allocation2 + $0xe8] sm:$0xff] %vm607, %v414
  %638 = vst.msk [vmem:[#allocation2 + $0xf0] sm:$0xff] %vm607, %v416
  %639 = vst.msk [vmem:[#allocation2 + $0xf8] sm:$0xff] %vm607, %v418
  %640 = vst.msk [vmem:[#allocation2 + $0x100] sm:$0xff] %vm607, %v420
  %641 = vst.msk [vmem:[#allocation2 + $0x108] sm:$0xff] %vm607, %v422
  %642 = vst.msk [vmem:[#allocation2 + $0x110] sm:$0xff] %vm607, %v424
  %643 = vst.msk [vmem:[#allocation2 + $0x118] sm:$0xff] %vm607, %v426
  %644 = vst.msk [vmem:[#allocation2 + $0x120] sm:$0xff] %vm607, %v428
  %645 = vst.msk [vmem:[#allocation2 + $0x128] sm:$0xff] %vm607, %v430
  %646 = vst.msk [vmem:[#allocation2 + $0x130] sm:$0xff] %vm607, %v432
  %647 = vst.msk [vmem:[#allocation2 + $0x138] sm:$0xff] %vm607, %v434
  %648 = vst.msk [vmem:[#allocation2 + $0x140] sm:$0xff] %vm607, %v436
  %649 = vst.msk [vmem:[#allocation2 + $0x148] sm:$0xff] %vm607, %v438
  %650 = vst.msk [vmem:[#allocation2 + $0x150] sm:$0xff] %vm607, %v440
  %651 = vst.msk [vmem:[#allocation2 + $0x158] sm:$0xff] %vm607, %v442
  %652 = vst.msk [vmem:[#allocation2 + $0x160] sm:$0xff] %vm607, %v444
  %653 = vst.msk [vmem:[#allocation2 + $0x168] sm:$0xff] %vm607, %v446
  %654 = vst.msk [vmem:[#allocation2 + $0x170] sm:$0xff] %vm607, %v448
  %655 = vst.msk [vmem:[#allocation2 + $0x178] sm:$0xff] %vm607, %v450
  %656 = vst.msk [vmem:[#allocation2 + $0x180] sm:$0xff] %vm607, %v452
  %657 = vst.msk [vmem:[#allocation2 + $0x188] sm:$0xff] %vm607, %v454
  %658 = vst.msk [vmem:[#allocation2 + $0x190] sm:$0xff] %vm607, %v456
  %659 = vst.msk [vmem:[#allocation2 + $0x198] sm:$0xff] %vm607, %v458
  %660 = vst.msk [vmem:[#allocation2 + $0x1a0] sm:$0xff] %vm607, %v460
  %661 = vst.msk [vmem:[#allocation2 + $0x1a8] sm:$0xff] %vm607, %v462
  %662 = vst.msk [vmem:[#allocation2 + $0x1b0] sm:$0xff] %vm607, %v464
  %663 = vst.msk [vmem:[#allocation2 + $0x1b8] sm:$0xff] %vm607, %v466
  %664 = vst.msk [vmem:[#allocation2 + $0x1c0] sm:$0xff] %vm607, %v468
  %665 = vst.msk [vmem:[#allocation2 + $0x1c8] sm:$0xff] %vm607, %v470
  %666 = vst.msk [vmem:[#allocation2 + $0x1d0] sm:$0xff] %vm607, %v472
  %667 = vst.msk [vmem:[#allocation2 + $0x1d8] sm:$0xff] %vm607, %v474
  %668 = vst.msk [vmem:[#allocation2 + $0x1e0] sm:$0xff] %vm607, %v476
  %669 = vst.msk [vmem:[#allocation2 + $0x1e8] sm:$0xff] %vm607, %v478
  %670 = vst.msk [vmem:[#allocation2 + $0x1f0] sm:$0xff] %vm607, %v480
  %671 = vst.msk [vmem:[#allocation2 + $0x1f8] sm:$0xff] %vm607, %v482
  %672 = vst.msk [vmem:[#allocation2 + $0x200] sm:$0xff] %vm607, %v484
  %673 = vst.msk [vmem:[#allocation2 + $0x208] sm:$0xff] %vm607, %v486
  %674 = vst.msk [vmem:[#allocation2 + $0x210] sm:$0xff] %vm607, %v488
  %675 = vst.msk [vmem:[#allocation2 + $0x218] sm:$0xff] %vm607, %v490
  %676 = vst.msk [vmem:[#allocation2 + $0x220] sm:$0xff] %vm607, %v492
  %677 = vst.msk [vmem:[#allocation2 + $0x228] sm:$0xff] %vm607, %v494
  %678 = vst.msk [vmem:[#allocation2 + $0x230] sm:$0xff] %vm607, %v496
  %679 = vst.msk [vmem:[#allocation2 + $0x238] sm:$0xff] %vm607, %v498
  %680 = vst.msk [vmem:[#allocation2 + $0x240] sm:$0xff] %vm607, %v500
  %681 = vst.msk [vmem:[#allocation2 + $0x248] sm:$0xff] %vm607, %v502
  %682 = vst.msk [vmem:[#allocation2 + $0x250] sm:$0xff] %vm607, %v504
  %683 = vst.msk [vmem:[#allocation2 + $0x258] sm:$0xff] %vm607, %v506
  %684 = vst.msk [vmem:[#allocation2 + $0x260] sm:$0xff] %vm607, %v508
  %685 = vst.msk [vmem:[#allocation2 + $0x268] sm:$0xff] %vm607, %v510
  %686 = vst.msk [vmem:[#allocation2 + $0x270] sm:$0xff] %vm607, %v512
  %687 = vst.msk [vmem:[#allocation2 + $0x278] sm:$0xff] %vm607, %v514
  %688 = vst.msk [vmem:[#allocation2 + $0x280] sm:$0xff] %vm607, %v516
  %689 = vst.msk [vmem:[#allocation2 + $0x288] sm:$0xff] %vm607, %v518
  %690 = vst.msk [vmem:[#allocation2 + $0x290] sm:$0xff] %vm607, %v520
  %vm691 = vcmask 60448
  %692 = vst.msk [vmem:[#allocation2 + $0x298] sm:$0xf] %vm691, %v522
  %v693 = vld [vmem:[%s0 + $0x2] sm:$0xff]
  %v694 = vld [vmem:[%s0 + $0xa] sm:$0xff]
  %v695 = vld [vmem:[%s0 + $0x12] sm:$0xff]
  %v696 = vld [vmem:[%s0 + $0x1a] sm:$0xff]
  %v697 = vld [vmem:[%s0 + $0x22] sm:$0xff]
  %v698 = vld [vmem:[%s0 + $0x2a] sm:$0xff]
  %v699 = vld [vmem:[%s0 + $0x32] sm:$0xff]
  %v700 = vld [vmem:[%s0 + $0x3a] sm:$0xff]
  %v701 = vld [vmem:[%s0 + $0x42] sm:$0xff]
  %v702 = vld [vmem:[%s0 + $0x4a] sm:$0xff]
  %v703 = vld [vmem:[%s0 + $0x52] sm:$0xff]
  %v704 = vld [vmem:[%s0 + $0x5a] sm:$0xff]
  %v705 = vld [vmem:[%s0 + $0x62] sm:$0xff]
  %v706 = vld [vmem:[%s0 + $0x6a] sm:$0xff]
  %v707 = vld [vmem:[%s0 + $0x72] sm:$0xff]
  %v708 = vld [vmem:[%s0 + $0x7a] sm:$0xff]
  %v709 = vld [vmem:[%s0 + $0x82] sm:$0xff]
  %v710 = vld [vmem:[%s0 + $0x8a] sm:$0xff]
  %v711 = vld [vmem:[%s0 + $0x92] sm:$0xff]
  %v712 = vld [vmem:[%s0 + $0x9a] sm:$0xff]
  %v713 = vld [vmem:[%s0 + $0xa2] sm:$0xff]
  %v714 = vld [vmem:[%s0 + $0xaa] sm:$0xff]
  %v715 = vld [vmem:[%s0 + $0xb2] sm:$0xff]
  %v716 = vld [vmem:[%s0 + $0xba] sm:$0xff]
  %v717 = vld [vmem:[%s0 + $0xc2] sm:$0xff]
  %v718 = vld [vmem:[%s0 + $0xca] sm:$0xff]
  %v719 = vld [vmem:[%s0 + $0xd2] sm:$0xff]
  %v720 = vld [vmem:[%s0 + $0xda] sm:$0xff]
  %v721 = vld [vmem:[%s0 + $0xe2] sm:$0xff]
  %v722 = vld [vmem:[%s0 + $0xea] sm:$0xff]
  %v723 = vld [vmem:[%s0 + $0xf2] sm:$0xff]
  %v724 = vld [vmem:[%s0 + $0xfa] sm:$0xff]
  %v725 = vld [vmem:[%s0 + $0x102] sm:$0xff]
  %v726 = vld [vmem:[%s0 + $0x10a] sm:$0xff]
  %v727 = vld [vmem:[%s0 + $0x112] sm:$0xff]
  %v728 = vld [vmem:[%s0 + $0x11a] sm:$0xff]
  %v729 = vld [vmem:[%s0 + $0x122] sm:$0xff]
  %v730 = vld [vmem:[%s0 + $0x12a] sm:$0xff]
  %v731 = vld [vmem:[%s0 + $0x132] sm:$0xff]
  %v732 = vld [vmem:[%s0 + $0x13a] sm:$0xff]
  %v733 = vld [vmem:[%s0 + $0x142] sm:$0xff]
  %v734 = vld [vmem:[%s0 + $0x14a] sm:$0xff]
  %v735 = vld [vmem:[%s0 + $0x152] sm:$0xff]
  %v736 = vld [vmem:[%s0 + $0x15a] sm:$0xff]
  %v737 = vld [vmem:[%s0 + $0x162] sm:$0xff]
  %v738 = vld [vmem:[%s0 + $0x16a] sm:$0xff]
  %v739 = vld [vmem:[%s0 + $0x172] sm:$0xff]
  %v740 = vld [vmem:[%s0 + $0x17a] sm:$0xff]
  %v741 = vld [vmem:[%s0 + $0x182] sm:$0xff]
  %v742 = vld [vmem:[%s0 + $0x18a] sm:$0xff]
  %v743 = vld [vmem:[%s0 + $0x192] sm:$0xff]
  %v744 = vld [vmem:[%s0 + $0x19a] sm:$0xff]
  %v745 = vld [vmem:[%s0 + $0x1a2] sm:$0xff]
  %v746 = vld [vmem:[%s0 + $0x1aa] sm:$0xff]
  %v747 = vld [vmem:[%s0 + $0x1b2] sm:$0xff]
  %v748 = vld [vmem:[%s0 + $0x1ba] sm:$0xff]
  %v749 = vld [vmem:[%s0 + $0x1c2] sm:$0xff]
  %v750 = vld [vmem:[%s0 + $0x1ca] sm:$0xff]
  %v751 = vld [vmem:[%s0 + $0x1d2] sm:$0xff]
  %v752 = vld [vmem:[%s0 + $0x1da] sm:$0xff]
  %v753 = vld [vmem:[%s0 + $0x1e2] sm:$0xff]
  %v754 = vld [vmem:[%s0 + $0x1ea] sm:$0xff]
  %v755 = vld [vmem:[%s0 + $0x1f2] sm:$0xff]
  %v756 = vld [vmem:[%s0 + $0x1fa] sm:$0xff]
  %v757 = vld [vmem:[%s0 + $0x202] sm:$0xff]
  %v758 = vld [vmem:[%s0 + $0x20a] sm:$0xff]
  %v759 = vld [vmem:[%s0 + $0x212] sm:$0xff]
  %v760 = vld [vmem:[%s0 + $0x21a] sm:$0xff]
  %v761 = vld [vmem:[%s0 + $0x222] sm:$0xff]
  %v762 = vld [vmem:[%s0 + $0x22a] sm:$0xff]
  %v763 = vld [vmem:[%s0 + $0x232] sm:$0xff]
  %v764 = vld [vmem:[%s0 + $0x23a] sm:$0xff]
  %v765 = vld [vmem:[%s0 + $0x242] sm:$0xff]
  %v766 = vld [vmem:[%s0 + $0x24a] sm:$0xff]
  %v767 = vld [vmem:[%s0 + $0x252] sm:$0xff]
  %v768 = vld [vmem:[%s0 + $0x25a] sm:$0xff]
  %v769 = vld [vmem:[%s0 + $0x262] sm:$0xff]
  %v770 = vld [vmem:[%s0 + $0x26a] sm:$0xff]
  %v771 = vld [vmem:[%s0 + $0x272] sm:$0xff]
  %v772 = vld [vmem:[%s0 + $0x27a] sm:$0xff]
  %v773 = vld [vmem:[%s0 + $0x282] sm:$0xff]
  %v774 = vld [vmem:[%s0 + $0x28a] sm:$0xff]
  %v775 = vld [vmem:[%s0 + $0x292] sm:$0xff]
  %v776 = vld [vmem:[%s0 + $0x29a] sm:$0xf]
  %861 = vrot.lane.b32.xlu0 %v693, 8
  %v862 = vpop.permute.xlu0 %861
  %863 = vrot.lane.b32.xlu0 %v694, 8
  %v864 = vpop.permute.xlu0 %863
  %865 = vrot.lane.b32.xlu0 %v695, 8
  %v866 = vpop.permute.xlu0 %865
  %867 = vrot.lane.b32.xlu0 %v696, 8
  %v868 = vpop.permute.xlu0 %867
  %869 = vrot.lane.b32.xlu0 %v697, 8
  %v870 = vpop.permute.xlu0 %869
  %871 = vrot.lane.b32.xlu0 %v698, 8
  %v872 = vpop.permute.xlu0 %871
  %873 = vrot.lane.b32.xlu0 %v699, 8
  %v874 = vpop.permute.xlu0 %873
  %875 = vrot.lane.b32.xlu0 %v700, 8
  %v876 = vpop.permute.xlu0 %875
  %877 = vrot.lane.b32.xlu0 %v701, 8
  %v878 = vpop.permute.xlu0 %877
  %879 = vrot.lane.b32.xlu0 %v702, 8
  %v880 = vpop.permute.xlu0 %879
  %881 = vrot.lane.b32.xlu0 %v703, 8
  %v882 = vpop.permute.xlu0 %881
  %883 = vrot.lane.b32.xlu0 %v704, 8
  %v884 = vpop.permute.xlu0 %883
  %885 = vrot.lane.b32.xlu0 %v705, 8
  %v886 = vpop.permute.xlu0 %885
  %887 = vrot.lane.b32.xlu0 %v706, 8
  %v888 = vpop.permute.xlu0 %887
  %889 = vrot.lane.b32.xlu0 %v707, 8
  %v890 = vpop.permute.xlu0 %889
  %891 = vrot.lane.b32.xlu0 %v708, 8
  %v892 = vpop.permute.xlu0 %891
  %893 = vrot.lane.b32.xlu0 %v709, 8
  %v894 = vpop.permute.xlu0 %893
  %895 = vrot.lane.b32.xlu0 %v710, 8
  %v896 = vpop.permute.xlu0 %895
  %897 = vrot.lane.b32.xlu0 %v711, 8
  %v898 = vpop.permute.xlu0 %897
  %899 = vrot.lane.b32.xlu0 %v712, 8
  %v900 = vpop.permute.xlu0 %899
  %901 = vrot.lane.b32.xlu0 %v713, 8
  %v902 = vpop.permute.xlu0 %901
  %903 = vrot.lane.b32.xlu0 %v714, 8
  %v904 = vpop.permute.xlu0 %903
  %905 = vrot.lane.b32.xlu0 %v715, 8
  %v906 = vpop.permute.xlu0 %905
  %907 = vrot.lane.b32.xlu0 %v716, 8
  %v908 = vpop.permute.xlu0 %907
  %909 = vrot.lane.b32.xlu0 %v717, 8
  %v910 = vpop.permute.xlu0 %909
  %911 = vrot.lane.b32.xlu0 %v718, 8
  %v912 = vpop.permute.xlu0 %911
  %913 = vrot.lane.b32.xlu0 %v719, 8
  %v914 = vpop.permute.xlu0 %913
  %915 = vrot.lane.b32.xlu0 %v720, 8
  %v916 = vpop.permute.xlu0 %915
  %917 = vrot.lane.b32.xlu0 %v721, 8
  %v918 = vpop.permute.xlu0 %917
  %919 = vrot.lane.b32.xlu0 %v722, 8
  %v920 = vpop.permute.xlu0 %919
  %921 = vrot.lane.b32.xlu0 %v723, 8
  %v922 = vpop.permute.xlu0 %921
  %923 = vrot.lane.b32.xlu0 %v724, 8
  %v924 = vpop.permute.xlu0 %923
  %925 = vrot.lane.b32.xlu0 %v725, 8
  %v926 = vpop.permute.xlu0 %925
  %927 = vrot.lane.b32.xlu0 %v726, 8
  %v928 = vpop.permute.xlu0 %927
  %929 = vrot.lane.b32.xlu0 %v727, 8
  %v930 = vpop.permute.xlu0 %929
  %931 = vrot.lane.b32.xlu0 %v728, 8
  %v932 = vpop.permute.xlu0 %931
  %933 = vrot.lane.b32.xlu0 %v729, 8
  %v934 = vpop.permute.xlu0 %933
  %935 = vrot.lane.b32.xlu0 %v730, 8
  %v936 = vpop.permute.xlu0 %935
  %937 = vrot.lane.b32.xlu0 %v731, 8
  %v938 = vpop.permute.xlu0 %937
  %939 = vrot.lane.b32.xlu0 %v732, 8
  %v940 = vpop.permute.xlu0 %939
  %941 = vrot.lane.b32.xlu0 %v733, 8
  %v942 = vpop.permute.xlu0 %941
  %943 = vrot.lane.b32.xlu0 %v734, 8
  %v944 = vpop.permute.xlu0 %943
  %945 = vrot.lane.b32.xlu0 %v735, 8
  %v946 = vpop.permute.xlu0 %945
  %947 = vrot.lane.b32.xlu0 %v736, 8
  %v948 = vpop.permute.xlu0 %947
  %949 = vrot.lane.b32.xlu0 %v737, 8
  %v950 = vpop.permute.xlu0 %949
  %951 = vrot.lane.b32.xlu0 %v738, 8
  %v952 = vpop.permute.xlu0 %951
  %953 = vrot.lane.b32.xlu0 %v739, 8
  %v954 = vpop.permute.xlu0 %953
  %955 = vrot.lane.b32.xlu0 %v740, 8
  %v956 = vpop.permute.xlu0 %955
  %957 = vrot.lane.b32.xlu0 %v741, 8
  %v958 = vpop.permute.xlu0 %957
  %959 = vrot.lane.b32.xlu0 %v742, 8
  %v960 = vpop.permute.xlu0 %959
  %961 = vrot.lane.b32.xlu0 %v743, 8
  %v962 = vpop.permute.xlu0 %961
  %963 = vrot.lane.b32.xlu0 %v744, 8
  %v964 = vpop.permute.xlu0 %963
  %965 = vrot.lane.b32.xlu0 %v745, 8
  %v966 = vpop.permute.xlu0 %965
  %967 = vrot.lane.b32.xlu0 %v746, 8
  %v968 = vpop.permute.xlu0 %967
  %969 = vrot.lane.b32.xlu0 %v747, 8
  %v970 = vpop.permute.xlu0 %969
  %971 = vrot.lane.b32.xlu0 %v748, 8
  %v972 = vpop.permute.xlu0 %971
  %973 = vrot.lane.b32.xlu0 %v749, 8
  %v974 = vpop.permute.xlu0 %973
  %975 = vrot.lane.b32.xlu0 %v750, 8
  %v976 = vpop.permute.xlu0 %975
  %977 = vrot.lane.b32.xlu0 %v751, 8
  %v978 = vpop.permute.xlu0 %977
  %979 = vrot.lane.b32.xlu0 %v752, 8
  %v980 = vpop.permute.xlu0 %979
  %981 = vrot.lane.b32.xlu0 %v753, 8
  %v982 = vpop.permute.xlu0 %981
  %983 = vrot.lane.b32.xlu0 %v754, 8
  %v984 = vpop.permute.xlu0 %983
  %985 = vrot.lane.b32.xlu0 %v755, 8
  %v986 = vpop.permute.xlu0 %985
  %987 = vrot.lane.b32.xlu0 %v756, 8
  %v988 = vpop.permute.xlu0 %987
  %989 = vrot.lane.b32.xlu0 %v757, 8
  %v990 = vpop.permute.xlu0 %989
  %991 = vrot.lane.b32.xlu0 %v758, 8
  %v992 = vpop.permute.xlu0 %991
  %993 = vrot.lane.b32.xlu0 %v759, 8
  %v994 = vpop.permute.xlu0 %993
  %995 = vrot.lane.b32.xlu0 %v760, 8
  %v996 = vpop.permute.xlu0 %995
  %997 = vrot.lane.b32.xlu0 %v761, 8
  %v998 = vpop.permute.xlu0 %997
  %999 = vrot.lane.b32.xlu0 %v762, 8
  %v1000 = vpop.permute.xlu0 %999
  %1001 = vrot.lane.b32.xlu0 %v763, 8
  %v1002 = vpop.permute.xlu0 %1001
  %1003 = vrot.lane.b32.xlu0 %v764, 8
  %v1004 = vpop.permute.xlu0 %1003
  %1005 = vrot.lane.b32.xlu0 %v765, 8
  %v1006 = vpop.permute.xlu0 %1005
  %1007 = vrot.lane.b32.xlu0 %v766, 8
  %v1008 = vpop.permute.xlu0 %1007
  %1009 = vrot.lane.b32.xlu0 %v767, 8
  %v1010 = vpop.permute.xlu0 %1009
  %1011 = vrot.lane.b32.xlu0 %v768, 8
  %v1012 = vpop.permute.xlu0 %1011
  %1013 = vrot.lane.b32.xlu0 %v769, 8
  %v1014 = vpop.permute.xlu0 %1013
  %1015 = vrot.lane.b32.xlu0 %v770, 8
  %v1016 = vpop.permute.xlu0 %1015
  %1017 = vrot.lane.b32.xlu0 %v771, 8
  %v1018 = vpop.permute.xlu0 %1017
  %1019 = vrot.lane.b32.xlu0 %v772, 8
  %v1020 = vpop.permute.xlu0 %1019
  %1021 = vrot.lane.b32.xlu0 %v773, 8
  %v1022 = vpop.permute.xlu0 %1021
  %1023 = vrot.lane.b32.xlu0 %v774, 8
  %v1024 = vpop.permute.xlu0 %1023
  %1025 = vrot.lane.b32.xlu0 %v775, 8
  %v1026 = vpop.permute.xlu0 %1025
  %1027 = vrot.lane.b32.xlu0 %v776, 8
  %v1028 = vpop.permute.xlu0 %1027
  %vm1113 = vcmask 97344
  %1114 = vst.msk [vmem:[#allocation2] sm:$0xff] %vm1113, %v862
  %1115 = vst.msk [vmem:[#allocation2 + $0x8] sm:$0xff] %vm1113, %v864
  %1116 = vst.msk [vmem:[#allocation2 + $0x10] sm:$0xff] %vm1113, %v866
  %1117 = vst.msk [vmem:[#allocation2 + $0x18] sm:$0xff] %vm1113, %v868
  %1118 = vst.msk [vmem:[#allocation2 + $0x20] sm:$0xff] %vm1113, %v870
  %1119 = vst.msk [vmem:[#allocation2 + $0x28] sm:$0xff] %vm1113, %v872
  %1120 = vst.msk [vmem:[#allocation2 + $0x30] sm:$0xff] %vm1113, %v874
  %1121 = vst.msk [vmem:[#allocation2 + $0x38] sm:$0xff] %vm1113, %v876
  %1122 = vst.msk [vmem:[#allocation2 + $0x40] sm:$0xff] %vm1113, %v878
  %1123 = vst.msk [vmem:[#allocation2 + $0x48] sm:$0xff] %vm1113, %v880
  %1124 = vst.msk [vmem:[#allocation2 + $0x50] sm:$0xff] %vm1113, %v882
  %1125 = vst.msk [vmem:[#allocation2 + $0x58] sm:$0xff] %vm1113, %v884
  %1126 = vst.msk [vmem:[#allocation2 + $0x60] sm:$0xff] %vm1113, %v886
  %1127 = vst.msk [vmem:[#allocation2 + $0x68] sm:$0xff] %vm1113, %v888
  %1128 = vst.msk [vmem:[#allocation2 + $0x70] sm:$0xff] %vm1113, %v890
  %1129 = vst.msk [vmem:[#allocation2 + $0x78] sm:$0xff] %vm1113, %v892
  %1130 = vst.msk [vmem:[#allocation2 + $0x80] sm:$0xff] %vm1113, %v894
  %1131 = vst.msk [vmem:[#allocation2 + $0x88] sm:$0xff] %vm1113, %v896
  %1132 = vst.msk [vmem:[#allocation2 + $0x90] sm:$0xff] %vm1113, %v898
  %1133 = vst.msk [vmem:[#allocation2 + $0x98] sm:$0xff] %vm1113, %v900
  %1134 = vst.msk [vmem:[#allocation2 + $0xa0] sm:$0xff] %vm1113, %v902
  %1135 = vst.msk [vmem:[#allocation2 + $0xa8] sm:$0xff] %vm1113, %v904
  %1136 = vst.msk [vmem:[#allocation2 + $0xb0] sm:$0xff] %vm1113, %v906
  %1137 = vst.msk [vmem:[#allocation2 + $0xb8] sm:$0xff] %vm1113, %v908
  %1138 = vst.msk [vmem:[#allocation2 + $0xc0] sm:$0xff] %vm1113, %v910
  %1139 = vst.msk [vmem:[#allocation2 + $0xc8] sm:$0xff] %vm1113, %v912
  %1140 = vst.msk [vmem:[#allocation2 + $0xd0] sm:$0xff] %vm1113, %v914
  %1141 = vst.msk [vmem:[#allocation2 + $0xd8] sm:$0xff] %vm1113, %v916
  %1142 = vst.msk [vmem:[#allocation2 + $0xe0] sm:$0xff] %vm1113, %v918
  %1143 = vst.msk [vmem:[#allocation2 + $0xe8] sm:$0xff] %vm1113, %v920
  %1144 = vst.msk [vmem:[#allocation2 + $0xf0] sm:$0xff] %vm1113, %v922
  %1145 = vst.msk [vmem:[#allocation2 + $0xf8] sm:$0xff] %vm1113, %v924
  %1146 = vst.msk [vmem:[#allocation2 + $0x100] sm:$0xff] %vm1113, %v926
  %1147 = vst.msk [vmem:[#allocation2 + $0x108] sm:$0xff] %vm1113, %v928
  %1148 = vst.msk [vmem:[#allocation2 + $0x110] sm:$0xff] %vm1113, %v930
  %1149 = vst.msk [vmem:[#allocation2 + $0x118] sm:$0xff] %vm1113, %v932
  %1150 = vst.msk [vmem:[#allocation2 + $0x120] sm:$0xff] %vm1113, %v934
  %1151 = vst.msk [vmem:[#allocation2 + $0x128] sm:$0xff] %vm1113, %v936
  %1152 = vst.msk [vmem:[#allocation2 + $0x130] sm:$0xff] %vm1113, %v938
  %1153 = vst.msk [vmem:[#allocation2 + $0x138] sm:$0xff] %vm1113, %v940
  %1154 = vst.msk [vmem:[#allocation2 + $0x140] sm:$0xff] %vm1113, %v942
  %1155 = vst.msk [vmem:[#allocation2 + $0x148] sm:$0xff] %vm1113, %v944
  %1156 = vst.msk [vmem:[#allocation2 + $0x150] sm:$0xff] %vm1113, %v946
  %1157 = vst.msk [vmem:[#allocation2 + $0x158] sm:$0xff] %vm1113, %v948
  %1158 = vst.msk [vmem:[#allocation2 + $0x160] sm:$0xff] %vm1113, %v950
  %1159 = vst.msk [vmem:[#allocation2 + $0x168] sm:$0xff] %vm1113, %v952
  %1160 = vst.msk [vmem:[#allocation2 + $0x170] sm:$0xff] %vm1113, %v954
  %1161 = vst.msk [vmem:[#allocation2 + $0x178] sm:$0xff] %vm1113, %v956
  %1162 = vst.msk [vmem:[#allocation2 + $0x180] sm:$0xff] %vm1113, %v958
  %1163 = vst.msk [vmem:[#allocation2 + $0x188] sm:$0xff] %vm1113, %v960
  %1164 = vst.msk [vmem:[#allocation2 + $0x190] sm:$0xff] %vm1113, %v962
  %1165 = vst.msk [vmem:[#allocation2 + $0x198] sm:$0xff] %vm1113, %v964
  %1166 = vst.msk [vmem:[#allocation2 + $0x1a0] sm:$0xff] %vm1113, %v966
  %1167 = vst.msk [vmem:[#allocation2 + $0x1a8] sm:$0xff] %vm1113, %v968
  %1168 = vst.msk [vmem:[#allocation2 + $0x1b0] sm:$0xff] %vm1113, %v970
  %1169 = vst.msk [vmem:[#allocation2 + $0x1b8] sm:$0xff] %vm1113, %v972
  %1170 = vst.msk [vmem:[#allocation2 + $0x1c0] sm:$0xff] %vm1113, %v974
  %1171 = vst.msk [vmem:[#allocation2 + $0x1c8] sm:$0xff] %vm1113, %v976
  %1172 = vst.msk [vmem:[#allocation2 + $0x1d0] sm:$0xff] %vm1113, %v978
  %1173 = vst.msk [vmem:[#allocation2 + $0x1d8] sm:$0xff] %vm1113, %v980
  %1174 = vst.msk [vmem:[#allocation2 + $0x1e0] sm:$0xff] %vm1113, %v982
  %1175 = vst.msk [vmem:[#allocation2 + $0x1e8] sm:$0xff] %vm1113, %v984
  %1176 = vst.msk [vmem:[#allocation2 + $0x1f0] sm:$0xff] %vm1113, %v986
  %1177 = vst.msk [vmem:[#allocation2 + $0x1f8] sm:$0xff] %vm1113, %v988
  %1178 = vst.msk [vmem:[#allocation2 + $0x200] sm:$0xff] %vm1113, %v990
  %1179 = vst.msk [vmem:[#allocation2 + $0x208] sm:$0xff] %vm1113, %v992
  %1180 = vst.msk [vmem:[#allocation2 + $0x210] sm:$0xff] %vm1113, %v994
  %1181 = vst.msk [vmem:[#allocation2 + $0x218] sm:$0xff] %vm1113, %v996
  %1182 = vst.msk [vmem:[#allocation2 + $0x220] sm:$0xff] %vm1113, %v998
  %1183 = vst.msk [vmem:[#allocation2 + $0x228] sm:$0xff] %vm1113, %v1000
  %1184 = vst.msk [vmem:[#allocation2 + $0x230] sm:$0xff] %vm1113, %v1002
  %1185 = vst.msk [vmem:[#allocation2 + $0x238] sm:$0xff] %vm1113, %v1004
  %1186 = vst.msk [vmem:[#allocation2 + $0x240] sm:$0xff] %vm1113, %v1006
  %1187 = vst.msk [vmem:[#allocation2 + $0x248] sm:$0xff] %vm1113, %v1008
  %1188 = vst.msk [vmem:[#allocation2 + $0x250] sm:$0xff] %vm1113, %v1010
  %1189 = vst.msk [vmem:[#allocation2 + $0x258] sm:$0xff] %vm1113, %v1012
  %1190 = vst.msk [vmem:[#allocation2 + $0x260] sm:$0xff] %vm1113, %v1014
  %1191 = vst.msk [vmem:[#allocation2 + $0x268] sm:$0xff] %vm1113, %v1016
  %1192 = vst.msk [vmem:[#allocation2 + $0x270] sm:$0xff] %vm1113, %v1018
  %1193 = vst.msk [vmem:[#allocation2 + $0x278] sm:$0xff] %vm1113, %v1020
  %1194 = vst.msk [vmem:[#allocation2 + $0x280] sm:$0xff] %vm1113, %v1022
  %1195 = vst.msk [vmem:[#allocation2 + $0x288] sm:$0xff] %vm1113, %v1024
  %1196 = vst.msk [vmem:[#allocation2 + $0x290] sm:$0xff] %vm1113, %v1026
  %vm1197 = vcmask 93248
  %1198 = vst.msk [vmem:[#allocation2 + $0x298] sm:$0xf] %vm1197, %v1028
  %v1199 = vld [vmem:[#allocation2] sm:$0xff]
  %v1200 = vld [vmem:[#allocation2 + $0x8] sm:$0xff]
  %v1201 = vld [vmem:[#allocation2 + $0x10] sm:$0xff]
  %v1202 = vld [vmem:[#allocation2 + $0x18] sm:$0xff]
  %v1203 = vld [vmem:[#allocation2 + $0x20] sm:$0xff]
  %v1204 = vld [vmem:[#allocation2 + $0x28] sm:$0xff]
  %v1205 = vld [vmem:[#allocation2 + $0x30] sm:$0xff]
  %v1206 = vld [vmem:[#allocation2 + $0x38] sm:$0xff]
  %v1207 = vld [vmem:[#allocation2 + $0x40] sm:$0xff]
  %v1208 = vld [vmem:[#allocation2 + $0x48] sm:$0xff]
  %v1209 = vld [vmem:[#allocation2 + $0x50] sm:$0xff]
  %v1210 = vld [vmem:[#allocation2 + $0x58] sm:$0xff]
  %v1211 = vld [vmem:[#allocation2 + $0x60] sm:$0xff]
  %v1212 = vld [vmem:[#allocation2 + $0x68] sm:$0xff]
  %v1213 = vld [vmem:[#allocation2 + $0x70] sm:$0xff]
  %v1214 = vld [vmem:[#allocation2 + $0x78] sm:$0xff]
  %v1215 = vld [vmem:[#allocation2 + $0x80] sm:$0xff]
  %v1216 = vld [vmem:[#allocation2 + $0x88] sm:$0xff]
  %v1217 = vld [vmem:[#allocation2 + $0x90] sm:$0xff]
  %v1218 = vld [vmem:[#allocation2 + $0x98] sm:$0xff]
  %v1219 = vld [vmem:[#allocation2 + $0xa0] sm:$0xff]
  %v1220 = vld [vmem:[#allocation2 + $0xa8] sm:$0xff]
  %v1221 = vld [vmem:[#allocation2 + $0xb0] sm:$0xff]
  %v1222 = vld [vmem:[#allocation2 + $0xb8] sm:$0xff]
  %v1223 = vld [vmem:[#allocation2 + $0xc0] sm:$0xff]
  %v1224 = vld [vmem:[#allocation2 + $0xc8] sm:$0xff]
  %v1225 = vld [vmem:[#allocation2 + $0xd0] sm:$0xff]
  %v1226 = vld [vmem:[#allocation2 + $0xd8] sm:$0xff]
  %v1227 = vld [vmem:[#allocation2 + $0xe0] sm:$0xff]
  %v1228 = vld [vmem:[#allocation2 + $0xe8] sm:$0xff]
  %v1229 = vld [vmem:[#allocation2 + $0xf0] sm:$0xff]
  %v1230 = vld [vmem:[#allocation2 + $0xf8] sm:$0xff]
  %v1231 = vld [vmem:[#allocation2 + $0x100] sm:$0xff]
  %v1232 = vld [vmem:[#allocation2 + $0x108] sm:$0xff]
  %v1233 = vld [vmem:[#allocation2 + $0x110] sm:$0xff]
  %v1234 = vld [vmem:[#allocation2 + $0x118] sm:$0xff]
  %v1235 = vld [vmem:[#allocation2 + $0x120] sm:$0xff]
  %v1236 = vld [vmem:[#allocation2 + $0x128] sm:$0xff]
  %v1237 = vld [vmem:[#allocation2 + $0x130] sm:$0xff]
  %v1238 = vld [vmem:[#allocation2 + $0x138] sm:$0xff]
  %v1239 = vld [vmem:[#allocation2 + $0x140] sm:$0xff]
  %v1240 = vld [vmem:[#allocation2 + $0x148] sm:$0xff]
  %v1241 = vld [vmem:[#allocation2 + $0x150] sm:$0xff]
  %v1242 = vld [vmem:[#allocation2 + $0x158] sm:$0xff]
  %v1243 = vld [vmem:[#allocation2 + $0x160] sm:$0xff]
  %v1244 = vld [vmem:[#allocation2 + $0x168] sm:$0xff]
  %v1245 = vld [vmem:[#allocation2 + $0x170] sm:$0xff]
  %v1246 = vld [vmem:[#allocation2 + $0x178] sm:$0xff]
  %v1247 = vld [vmem:[#allocation2 + $0x180] sm:$0xff]
  %v1248 = vld [vmem:[#allocation2 + $0x188] sm:$0xff]
  %v1249 = vld [vmem:[#allocation2 + $0x190] sm:$0xff]
  %v1250 = vld [vmem:[#allocation2 + $0x198] sm:$0xff]
  %v1251 = vld [vmem:[#allocation2 + $0x1a0] sm:$0xff]
  %v1252 = vld [vmem:[#allocation2 + $0x1a8] sm:$0xff]
  %v1253 = vld [vmem:[#allocation2 + $0x1b0] sm:$0xff]
  %v1254 = vld [vmem:[#allocation2 + $0x1b8] sm:$0xff]
  %v1255 = vld [vmem:[#allocation2 + $0x1c0] sm:$0xff]
  %v1256 = vld [vmem:[#allocation2 + $0x1c8] sm:$0xff]
  %v1257 = vld [vmem:[#allocation2 + $0x1d0] sm:$0xff]
  %v1258 = vld [vmem:[#allocation2 + $0x1d8] sm:$0xff]
  %v1259 = vld [vmem:[#allocation2 + $0x1e0] sm:$0xff]
  %v1260 = vld [vmem:[#allocation2 + $0x1e8] sm:$0xff]
  %v1261 = vld [vmem:[#allocation2 + $0x1f0] sm:$0xff]
  %v1262 = vld [vmem:[#allocation2 + $0x1f8] sm:$0xff]
  %v1263 = vld [vmem:[#allocation2 + $0x200] sm:$0xff]
  %v1264 = vld [vmem:[#allocation2 + $0x208] sm:$0xff]
  %v1265 = vld [vmem:[#allocation2 + $0x210] sm:$0xff]
  %v1266 = vld [vmem:[#allocation2 + $0x218] sm:$0xff]
  %v1267 = vld [vmem:[#allocation2 + $0x220] sm:$0xff]
  %v1268 = vld [vmem:[#allocation2 + $0x228] sm:$0xff]
  %v1269 = vld [vmem:[#allocation2 + $0x230] sm:$0xff]
  %v1270 = vld [vmem:[#allocation2 + $0x238] sm:$0xff]
  %v1271 = vld [vmem:[#allocation2 + $0x240] sm:$0xff]
  %v1272 = vld [vmem:[#allocation2 + $0x248] sm:$0xff]
  %v1273 = vld [vmem:[#allocation2 + $0x250] sm:$0xff]
  %v1274 = vld [vmem:[#allocation2 + $0x258] sm:$0xff]
  %v1275 = vld [vmem:[#allocation2 + $0x260] sm:$0xff]
  %v1276 = vld [vmem:[#allocation2 + $0x268] sm:$0xff]
  %v1277 = vld [vmem:[#allocation2 + $0x270] sm:$0xff]
  %v1278 = vld [vmem:[%s1] sm:$0xff]
  %v1279 = vld [vmem:[%s1 + $0x8] sm:$0xf]
  %v1280 = vld [vmem:[#allocation2 + $0x12] sm:$0xff]
  %v1281 = vld [vmem:[#allocation2 + $0x1a] sm:$0xff]
  %v1282 = vld [vmem:[#allocation2 + $0x22] sm:$0xff]
  %v1283 = vld [vmem:[#allocation2 + $0x2a] sm:$0xff]
  %v1284 = vld [vmem:[#allocation2 + $0x32] sm:$0xff]
  %v1285 = vld [vmem:[#allocation2 + $0x3a] sm:$0xff]
  %v1286 = vld [vmem:[#allocation2 + $0x42] sm:$0xff]
  %v1287 = vld [vmem:[#allocation2 + $0x4a] sm:$0xff]
  %v1288 = vld [vmem:[#allocation2 + $0x52] sm:$0xff]
  %v1289 = vld [vmem:[#allocation2 + $0x5a] sm:$0xff]
  %v1290 = vld [vmem:[#allocation2 + $0x62] sm:$0xff]
  %v1291 = vld [vmem:[#allocation2 + $0x6a] sm:$0xff]
  %v1292 = vld [vmem:[#allocation2 + $0x72] sm:$0xff]
  %v1293 = vld [vmem:[#allocation2 + $0x7a] sm:$0xff]
  %v1294 = vld [vmem:[#allocation2 + $0x82] sm:$0xff]
  %v1295 = vld [vmem:[#allocation2 + $0x8a] sm:$0xff]
  %v1296 = vld [vmem:[#allocation2 + $0x92] sm:$0xff]
  %v1297 = vld [vmem:[#allocation2 + $0x9a] sm:$0xff]
  %v1298 = vld [vmem:[#allocation2 + $0xa2] sm:$0xff]
  %v1299 = vld [vmem:[#allocation2 + $0xaa] sm:$0xff]
  %v1300 = vld [vmem:[#allocation2 + $0xb2] sm:$0xff]
  %v1301 = vld [vmem:[#allocation2 + $0xba] sm:$0xff]
  %v1302 = vld [vmem:[#allocation2 + $0xc2] sm:$0xff]
  %v1303 = vld [vmem:[#allocation2 + $0xca] sm:$0xff]
  %v1304 = vld [vmem:[#allocation2 + $0xd2] sm:$0xff]
  %v1305 = vld [vmem:[#allocation2 + $0xda] sm:$0xff]
  %v1306 = vld [vmem:[#allocation2 + $0xe2] sm:$0xff]
  %v1307 = vld [vmem:[#allocation2 + $0xea] sm:$0xff]
  %v1308 = vld [vmem:[#allocation2 + $0xf2] sm:$0xff]
  %v1309 = vld [vmem:[#allocation2 + $0xfa] sm:$0xff]
  %v1310 = vld [vmem:[#allocation2 + $0x102] sm:$0xff]
  %v1311 = vld [vmem:[#allocation2 + $0x10a] sm:$0xff]
  %v1312 = vld [vmem:[#allocation2 + $0x112] sm:$0xff]
  %v1313 = vld [vmem:[#allocation2 + $0x11a] sm:$0xff]
  %v1314 = vld [vmem:[#allocation2 + $0x122] sm:$0xff]
  %v1315 = vld [vmem:[#allocation2 + $0x12a] sm:$0xff]
  %v1316 = vld [vmem:[#allocation2 + $0x132] sm:$0xff]
  %v1317 = vld [vmem:[#allocation2 + $0x13a] sm:$0xff]
  %v1318 = vld [vmem:[#allocation2 + $0x142] sm:$0xff]
  %v1319 = vld [vmem:[#allocation2 + $0x14a] sm:$0xff]
  %v1320 = vld [vmem:[#allocation2 + $0x152] sm:$0xff]
  %v1321 = vld [vmem:[#allocation2 + $0x15a] sm:$0xff]
  %v1322 = vld [vmem:[#allocation2 + $0x162] sm:$0xff]
  %v1323 = vld [vmem:[#allocation2 + $0x16a] sm:$0xff]
  %v1324 = vld [vmem:[#allocation2 + $0x172] sm:$0xff]
  %v1325 = vld [vmem:[#allocation2 + $0x17a] sm:$0xff]
  %v1326 = vld [vmem:[#allocation2 + $0x182] sm:$0xff]
  %v1327 = vld [vmem:[#allocation2 + $0x18a] sm:$0xff]
  %v1328 = vld [vmem:[#allocation2 + $0x192] sm:$0xff]
  %v1329 = vld [vmem:[#allocation2 + $0x19a] sm:$0xff]
  %v1330 = vld [vmem:[#allocation2 + $0x1a2] sm:$0xff]
  %v1331 = vld [vmem:[#allocation2 + $0x1aa] sm:$0xff]
  %v1332 = vld [vmem:[#allocation2 + $0x1b2] sm:$0xff]
  %v1333 = vld [vmem:[#allocation2 + $0x1ba] sm:$0xff]
  %v1334 = vld [vmem:[#allocation2 + $0x1c2] sm:$0xff]
  %v1335 = vld [vmem:[#allocation2 + $0x1ca] sm:$0xff]
  %v1336 = vld [vmem:[#allocation2 + $0x1d2] sm:$0xff]
  %v1337 = vld [vmem:[#allocation2 + $0x1da] sm:$0xff]
  %v1338 = vld [vmem:[#allocation2 + $0x1e2] sm:$0xff]
  %v1339 = vld [vmem:[#allocation2 + $0x1ea] sm:$0xff]
  %v1340 = vld [vmem:[#allocation2 + $0x1f2] sm:$0xff]
  %v1341 = vld [vmem:[#allocation2 + $0x1fa] sm:$0xff]
  %v1342 = vld [vmem:[#allocation2 + $0x202] sm:$0xff]
  %v1343 = vld [vmem:[#allocation2 + $0x20a] sm:$0xff]
  %v1344 = vld [vmem:[#allocation2 + $0x212] sm:$0xff]
  %v1345 = vld [vmem:[#allocation2 + $0x21a] sm:$0xff]
  %v1346 = vld [vmem:[#allocation2 + $0x222] sm:$0xff]
  %v1347 = vld [vmem:[#allocation2 + $0x22a] sm:$0xff]
  %v1348 = vld [vmem:[#allocation2 + $0x232] sm:$0xff]
  %v1349 = vld [vmem:[#allocation2 + $0x23a] sm:$0xff]
  %v1350 = vld [vmem:[#allocation2 + $0x242] sm:$0xff]
  %v1351 = vld [vmem:[#allocation2 + $0x24a] sm:$0xff]
  %v1352 = vld [vmem:[#allocation2 + $0x252] sm:$0xff]
  %v1353 = vld [vmem:[#allocation2 + $0x25a] sm:$0xff]
  %v1354 = vld [vmem:[#allocation2 + $0x262] sm:$0xff]
  %v1355 = vld [vmem:[#allocation2 + $0x26a] sm:$0xff]
  %v1356 = vld [vmem:[#allocation2 + $0x272] sm:$0xff]
  %v1357 = vld [vmem:[#allocation2 + $0x27a] sm:$0xff]
  %v1358 = vld [vmem:[#allocation2 + $0x282] sm:$0xff]
  %s1359 = scalar_lea.vmem %s1, 16
  %v1360 = vld [vmem:[%s1359] sm:$0xff]
  %v1361 = vld [vmem:[%s1359 + $0x8] sm:$0xf]
  %vm1362 = vcmask 97280
  %v1364 = vsel %vm1362, %v1280, 0
  %v1367 = vsel %vm1362, %v1281, 0
  %v1370 = vsel %vm1362, %v1282, 0
  %v1373 = vsel %vm1362, %v1283, 0
  %v1376 = vsel %vm1362, %v1284, 0
  %v1379 = vsel %vm1362, %v1285, 0
  %v1382 = vsel %vm1362, %v1286, 0
  %v1385 = vsel %vm1362, %v1287, 0
  %v1388 = vsel %vm1362, %v1288, 0
  %v1391 = vsel %vm1362, %v1289, 0
  %v1394 = vsel %vm1362, %v1290, 0
  %v1397 = vsel %vm1362, %v1291, 0
  %v1400 = vsel %vm1362, %v1292, 0
  %v1403 = vsel %vm1362, %v1293, 0
  %v1406 = vsel %vm1362, %v1294, 0
  %v1409 = vsel %vm1362, %v1295, 0
  %v1412 = vsel %vm1362, %v1296, 0
  %v1415 = vsel %vm1362, %v1297, 0
  %v1418 = vsel %vm1362, %v1298, 0
  %v1421 = vsel %vm1362, %v1299, 0
  %v1424 = vsel %vm1362, %v1300, 0
  %v1427 = vsel %vm1362, %v1301, 0
  %v1430 = vsel %vm1362, %v1302, 0
  %v1433 = vsel %vm1362, %v1303, 0
  %v1436 = vsel %vm1362, %v1304, 0
  %v1439 = vsel %vm1362, %v1305, 0
  %v1442 = vsel %vm1362, %v1306, 0
  %v1445 = vsel %vm1362, %v1307, 0
  %v1448 = vsel %vm1362, %v1308, 0
  %v1451 = vsel %vm1362, %v1309, 0
  %v1454 = vsel %vm1362, %v1310, 0
  %v1457 = vsel %vm1362, %v1311, 0
  %v1460 = vsel %vm1362, %v1312, 0
  %v1463 = vsel %vm1362, %v1313, 0
  %v1466 = vsel %vm1362, %v1314, 0
  %v1469 = vsel %vm1362, %v1315, 0
  %v1472 = vsel %vm1362, %v1316, 0
  %v1475 = vsel %vm1362, %v1317, 0
  %v1478 = vsel %vm1362, %v1318, 0
  %v1481 = vsel %vm1362, %v1319, 0
  %v1484 = vsel %vm1362, %v1320, 0
  %v1487 = vsel %vm1362, %v1321, 0
  %v1490 = vsel %vm1362, %v1322, 0
  %v1493 = vsel %vm1362, %v1323, 0
  %v1496 = vsel %vm1362, %v1324, 0
  %v1499 = vsel %vm1362, %v1325, 0
  %v1502 = vsel %vm1362, %v1326, 0
  %v1505 = vsel %vm1362, %v1327, 0
  %v1508 = vsel %vm1362, %v1328, 0
  %v1511 = vsel %vm1362, %v1329, 0
  %v1514 = vsel %vm1362, %v1330, 0
  %v1517 = vsel %vm1362, %v1331, 0
  %v1520 = vsel %vm1362, %v1332, 0
  %v1523 = vsel %vm1362, %v1333, 0
  %v1526 = vsel %vm1362, %v1334, 0
  %v1529 = vsel %vm1362, %v1335, 0
  %v1532 = vsel %vm1362, %v1336, 0
  %v1535 = vsel %vm1362, %v1337, 0
  %v1538 = vsel %vm1362, %v1338, 0
  %v1541 = vsel %vm1362, %v1339, 0
  %v1544 = vsel %vm1362, %v1340, 0
  %v1547 = vsel %vm1362, %v1341, 0
  %v1550 = vsel %vm1362, %v1342, 0
  %v1553 = vsel %vm1362, %v1343, 0
  %v1556 = vsel %vm1362, %v1344, 0
  %v1559 = vsel %vm1362, %v1345, 0
  %v1562 = vsel %vm1362, %v1346, 0
  %v1565 = vsel %vm1362, %v1347, 0
  %v1568 = vsel %vm1362, %v1348, 0
  %v1571 = vsel %vm1362, %v1349, 0
  %v1574 = vsel %vm1362, %v1350, 0
  %v1577 = vsel %vm1362, %v1351, 0
  %v1580 = vsel %vm1362, %v1352, 0
  %v1583 = vsel %vm1362, %v1353, 0
  %v1586 = vsel %vm1362, %v1354, 0
  %v1589 = vsel %vm1362, %v1355, 0
  %v1592 = vsel %vm1362, %v1356, 0
  %v1595 = vsel %vm1362, %v1357, 0
  %v1598 = vsel %vm1362, %v1358, 0
  %vm1600 = vcmask 1043456
  %v1602 = vsel %vm1600, %v1361, 0
  %1604 = vmatprep.subr.mxu0 0.0
  %1605 = vmatpush1.msra.mxu0 %v1360
  %1606 = vmatprep.subr.mxu0 0.0
  %1607 = vmatpush1.msra.mxu0 %v1602
  %1608 = vmatprep.subr.mxu0 0.0
  %1609 = vmatpush1.msra.mxu0 0.0
  %1610 = vmatprep.subr.mxu0 0.0
  %1611 = vmatpush1.msra.mxu0 0.0
  %1612 = vmatprep.subr.mxu0 0.0
  %1613 = vmatpush1.msra.mxu0 0.0
  %1614 = vmatprep.subr.mxu0 0.0
  %1615 = vmatpush1.msra.mxu0 0.0
  %1616 = vmatprep.subr.mxu0 0.0
  %1617 = vmatpush1.msra.mxu0 0.0
  %1618 = vmatprep.subr.mxu0 0.0
  %1619 = vmatpush1.msra.mxu0 0.0
  %1620 = vmatprep.subr.mxu0 0.0
  %1621 = vmatpush1.msra.mxu0 0.0
  %1622 = vmatprep.subr.mxu0 0.0
  %1623 = vmatpush1.msra.mxu0 0.0
  %1624 = vmatprep.subr.mxu0 0.0
  %1625 = vmatpush1.msra.mxu0 0.0
  %1626 = vmatprep.subr.mxu0 0.0
  %1627 = vmatpush1.msra.mxu0 0.0
  %1628 = vmatprep.subr.mxu0 0.0
  %1629 = vmatpush1.msra.mxu0 0.0
  %1630 = vmatprep.subr.mxu0 0.0
  %1631 = vmatpush1.msra.mxu0 0.0
  %1632 = vmatprep.subr.mxu0 0.0
  %1633 = vmatpush1.msra.mxu0 0.0
  %1634 = vmatprep.subr.mxu0 0.0
  %1635 = vmatpush1.msra.mxu0 0.0
  %1636 = vmatprep.subr.mxu0 0.0
  %1637 = vmatpush1.msra.mxu0 0.0
  %1638 = vmatprep.subr.mxu0 0.0
  %1639 = vmatpush1.msra.mxu0 0.0
  %1640 = vmatprep.subr.mxu0 0.0
  %1641 = vmatpush1.msra.mxu0 0.0
  %1642 = vmatprep.subr.mxu0 0.0
  %1643 = vmatpush1.msra.mxu0 0.0
  %1644 = vmatprep.subr.mxu0 0.0
  %1645 = vmatpush1.msra.mxu0 0.0
  %1646 = vmatprep.subr.mxu0 0.0
  %1647 = vmatpush1.msra.mxu0 0.0
  %1648 = vmatprep.subr.mxu0 0.0
  %1649 = vmatpush1.msra.mxu0 0.0
  %1650 = vmatprep.subr.mxu0 0.0
  %1651 = vmatpush1.msra.mxu0 0.0
  %1652 = vmatprep.subr.mxu0 0.0
  %1653 = vmatpush1.msra.mxu0 0.0
  %1654 = vmatprep.subr.mxu0 0.0
  %1655 = vmatpush1.msra.mxu0 0.0
  %1656 = vmatprep.subr.mxu0 0.0
  %1657 = vmatpush1.msra.mxu0 0.0
  %1658 = vmatprep.subr.mxu0 0.0
  %1659 = vmatpush1.msra.mxu0 0.0
  %1660 = vmatprep.subr.mxu0 0.0
  %1661 = vmatpush1.msra.mxu0 0.0
  %1662 = vmatprep.subr.mxu0 0.0
  %1663 = vmatpush1.msra.mxu0 0.0
  %1664 = vmatprep.subr.mxu0 0.0
  %1665 = vmatpush1.msra.mxu0 0.0
  %1666 = vmatprep.subr.mxu0 0.0
  %1667 = vmatpush1.msra.mxu0 0.0
  %1668 = vmatprep.mubr.f32.mxu0 0.0
  %1669 = vmatmul.mubr.f32.gmra.mrb[0].mxu0 %v1364
  %v1670 = vpop.f32.mrb[0].mxu0
  %v1671 = vadd.f32 0.0, %v1670
  %v1672 = vpop.f32.mrb[0].mxu0
  %1673 = vmatprep.mubr.f32.mxu0 0.0
  %1674 = vmatmul.mubr.f32.gmra.mrb[0].mxu0 %v1367
  %v1675 = vpop.f32.mrb[0].mxu0
  %v1676 = vadd.f32 0.0, %v1675
  %v1677 = vpop.f32.mrb[0].mxu0
  %1678 = vmatprep.mubr.f32.mxu0 0.0
  %1679 = vmatmul.mubr.f32.gmra.mrb[0].mxu0 %v1370
  %v1680 = vpop.f32.mrb[0].mxu0
  %v1681 = vadd.f32 0.0, %v1680
  %v1682 = vpop.f32.mrb[0].mxu0
  %1683 = vmatprep.mubr.f32.mxu0 0.0
  %1684 = vmatmul.mubr.f32.gmra.mrb[0].mxu0 %v1373
  %v1685 = vpop.f32.mrb[0].mxu0
  %v1686 = vadd.f32 0.0, %v1685
  %v1687 = vpop.f32.mrb[0].mxu0
  %1688 = vmatprep.mubr.f32.mxu0 0.0
  %1689 = vmatmul.mubr.f32.gmra.mrb[0].mxu0 %v1376
  %v1690 = vpop.f32.mrb[0].mxu0
  %v1691 = vadd.f32 0.0, %v1690
  %v1692 = vpop.f32.mrb[0].mxu0
  %1693 = vmatprep.mubr.f32.mxu0 0.0
  %1694 = vmatmul.mubr.f32.gmra.mrb[0].mxu0 %v1379
  %v1695 = vpop.f32.mrb[0].mxu0
  %v1696 = vadd.f32 0.0, %v1695
  %v1697 = vpop.f32.mrb[0].mxu0
  %1698 = vmatprep.mubr.f32.mxu0 0.0
  %1699 = vmatmul.mubr.f32.gmra.mrb[0].mxu0 %v1382
  %v1700 = vpop.f32.mrb[0].mxu0
  %v1701 = vadd.f32 0.0, %v1700
  %v1702 = vpop.f32.mrb[0].mxu0
  %1703 = vmatprep.mubr.f32.mxu0 0.0
  %1704 = vmatmul.mubr.f32.gmra.mrb[0].mxu0 %v1385
  %v1705 = vpop.f32.mrb[0].mxu0
  %v1706 = vadd.f32 0.0, %v1705
  %v1707 = vpop.f32.mrb[0].mxu0
  %1708 = vmatprep.mubr.f32.mxu0 0.0
  %1709 = vmatmul.mubr.f32.gmra.mrb[0].mxu0 %v1388
  %v1710 = vpop.f32.mrb[0].mxu0
  %v1711 = vadd.f32 0.0, %v1710
  %v1712 = vpop.f32.mrb[0].mxu0
  %1713 = vmatprep.mubr.f32.mxu0 0.0
  %1714 = vmatmul.mubr.f32.gmra.mrb[0].mxu0 %v1391
  %v1715 = vpop.f32.mrb[0].mxu0
  %v1716 = vadd.f32 0.0, %v1715
  %v1717 = vpop.f32.mrb[0].mxu0
  %1718 = vmatprep.mubr.f32.mxu0 0.0
  %1719 = vmatmul.mubr.f32.gmra.mrb[0].mxu0 %v1394
  %v1720 = vpop.f32.mrb[0].mxu0
  %v1721 = vadd.f32 0.0, %v1720
  %v1722 = vpop.f32.mrb[0].mxu0
  %1723 = vmatprep.mubr.f32.mxu0 0.0
  %1724 = vmatmul.mubr.f32.gmra.mrb[0].mxu0 %v1397
  %v1725 = vpop.f32.mrb[0].mxu0
  %v1726 = vadd.f32 0.0, %v1725
  %v1727 = vpop.f32.mrb[0].mxu0
  %1728 = vmatprep.mubr.f32.mxu0 0.0
  %1729 = vmatmul.mubr.f32.gmra.mrb[0].mxu0 %v1400
  %v1730 = vpop.f32.mrb[0].mxu0
  %v1731 = vadd.f32 0.0, %v1730
  %v1732 = vpop.f32.mrb[0].mxu0
  %1733 = vmatprep.mubr.f32.mxu0 0.0
  %1734 = vmatmul.mubr.f32.gmra.mrb[0].mxu0 %v1403
  %v1735 = vpop.f32.mrb[0].mxu0
  %v1736 = vadd.f32 0.0, %v1735
  %v1737 = vpop.f32.mrb[0].mxu0
  %1738 = vmatprep.mubr.f32.mxu0 0.0
  %1739 = vmatmul.mubr.f32.gmra.mrb[0].mxu0 %v1406
  %v1740 = vpop.f32.mrb[0].mxu0
  %v1741 = vadd.f32 0.0, %v1740
  %v1742 = vpop.f32.mrb[0].mxu0
  %1743 = vmatprep.mubr.f32.mxu0 0.0
  %1744 = vmatmul.mubr.f32.gmra.mrb[0].mxu0 %v1409
  %v1745 = vpop.f32.mrb[0].mxu0
  %v1746 = vadd.f32 0.0, %v1745
  %v1747 = vpop.f32.mrb[0].mxu0
  %1748 = vmatprep.mubr.f32.mxu0 0.0
  %1749 = vmatmul.mubr.f32.gmra.mrb[0].mxu0 %v1412
  %v1750 = vpop.f32.mrb[0].mxu0
  %v1751 = vadd.f32 0.0, %v1750
  %v1752 = vpop.f32.mrb[0].mxu0
  %1753 = vmatprep.mubr.f32.mxu0 0.0
  %1754 = vmatmul.mubr.f32.gmra.mrb[0].mxu0 %v1415
  %v1755 = vpop.f32.mrb[0].mxu0
  %v1756 = vadd.f32 0.0, %v1755
  %v1757 = vpop.f32.mrb[0].mxu0
  %1758 = vmatprep.mubr.f32.mxu0 0.0
  %1759 = vmatmul.mubr.f32.gmra.mrb[0].mxu0 %v1418
  %v1760 = vpop.f32.mrb[0].mxu0
  %v1761 = vadd.f32 0.0, %v1760
  %v1762 = vpop.f32.mrb[0].mxu0
  %1763 = vmatprep.mubr.f32.mxu0 0.0
  %1764 = vmatmul.mubr.f32.gmra.mrb[0].mxu0 %v1421
  %v1765 = vpop.f32.mrb[0].mxu0
  %v1766 = vadd.f32 0.0, %v1765
  %v1767 = vpop.f32.mrb[0].mxu0
  %1768 = vmatprep.mubr.f32.mxu0 0.0
  %1769 = vmatmul.mubr.f32.gmra.mrb[0].mxu0 %v1424
  %v1770 = vpop.f32.mrb[0].mxu0
  %v1771 = vadd.f32 0.0, %v1770
  %v1772 = vpop.f32.mrb[0].mxu0
  %1773 = vmatprep.mubr.f32.mxu0 0.0
  %1774 = vmatmul.mubr.f32.gmra.mrb[0].mxu0 %v1427
  %v1775 = vpop.f32.mrb[0].mxu0
  %v1776 = vadd.f32 0.0, %v1775
  %v1777 = vpop.f32.mrb[0].mxu0
  %1778 = vmatprep.mubr.f32.mxu0 0.0
  %1779 = vmatmul.mubr.f32.gmra.mrb[0].mxu0 %v1430
  %v1780 = vpop.f32.mrb[0].mxu0
  %v1781 = vadd.f32 0.0, %v1780
  %v1782 = vpop.f32.mrb[0].mxu0
  %1783 = vmatprep.mubr.f32.mxu0 0.0
  %1784 = vmatmul.mubr.f32.gmra.mrb[0].mxu0 %v1433
  %v1785 = vpop.f32.mrb[0].mxu0
  %v1786 = vadd.f32 0.0, %v1785
  %v1787 = vpop.f32.mrb[0].mxu0
  %1788 = vmatprep.mubr.f32.mxu0 0.0
  %1789 = vmatmul.mubr.f32.gmra.mrb[0].mxu0 %v1436
  %v1790 = vpop.f32.mrb[0].mxu0
  %v1791 = vadd.f32 0.0, %v1790
  %v1792 = vpop.f32.mrb[0].mxu0
  %1793 = vmatprep.mubr.f32.mxu0 0.0
  %1794 = vmatmul.mubr.f32.gmra.mrb[0].mxu0 %v1439
  %v1795 = vpop.f32.mrb[0].mxu0
  %v1796 = vadd.f32 0.0, %v1795
  %v1797 = vpop.f32.mrb[0].mxu0
  %1798 = vmatprep.mubr.f32.mxu0 0.0
  %1799 = vmatmul.mubr.f32.gmra.mrb[0].mxu0 %v1442
  %v1800 = vpop.f32.mrb[0].mxu0
  %v1801 = vadd.f32 0.0, %v1800
  %v1802 = vpop.f32.mrb[0].mxu0
  %1803 = vmatprep.mubr.f32.mxu0 0.0
  %1804 = vmatmul.mubr.f32.gmra.mrb[0].mxu0 %v1445
  %v1805 = vpop.f32.mrb[0].mxu0
  %v1806 = vadd.f32 0.0, %v1805
  %v1807 = vpop.f32.mrb[0].mxu0
  %1808 = vmatprep.mubr.f32.mxu0 0.0
  %1809 = vmatmul.mubr.f32.gmra.mrb[0].mxu0 %v1448
  %v1810 = vpop.f32.mrb[0].mxu0
  %v1811 = vadd.f32 0.0, %v1810
  %v1812 = vpop.f32.mrb[0].mxu0
  %1813 = vmatprep.mubr.f32.mxu0 0.0
  %1814 = vmatmul.mubr.f32.gmra.mrb[0].mxu0 %v1451
  %v1815 = vpop.f32.mrb[0].mxu0
  %v1816 = vadd.f32 0.0, %v1815
  %v1817 = vpop.f32.mrb[0].mxu0
  %1818 = vmatprep.mubr.f32.mxu0 0.0
  %1819 = vmatmul.mubr.f32.gmra.mrb[0].mxu0 %v1454
  %v1820 = vpop.f32.mrb[0].mxu0
  %v1821 = vadd.f32 0.0, %v1820
  %v1822 = vpop.f32.mrb[0].mxu0
  %1823 = vmatprep.mubr.f32.mxu0 0.0
  %1824 = vmatmul.mubr.f32.gmra.mrb[0].mxu0 %v1457
  %v1825 = vpop.f32.mrb[0].mxu0
  %v1826 = vadd.f32 0.0, %v1825
  %v1827 = vpop.f32.mrb[0].mxu0
  %1828 = vmatprep.mubr.f32.mxu0 0.0
  %1829 = vmatmul.mubr.f32.gmra.mrb[0].mxu0 %v1460
  %v1830 = vpop.f32.mrb[0].mxu0
  %v1831 = vadd.f32 0.0, %v1830
  %v1832 = vpop.f32.mrb[0].mxu0
  %1833 = vmatprep.mubr.f32.mxu0 0.0
  %1834 = vmatmul.mubr.f32.gmra.mrb[0].mxu0 %v1463
  %v1835 = vpop.f32.mrb[0].mxu0
  %v1836 = vadd.f32 0.0, %v1835
  %v1837 = vpop.f32.mrb[0].mxu0
  %1838 = vmatprep.mubr.f32.mxu0 0.0
  %1839 = vmatmul.mubr.f32.gmra.mrb[0].mxu0 %v1466
  %v1840 = vpop.f32.mrb[0].mxu0
  %v1841 = vadd.f32 0.0, %v1840
  %v1842 = vpop.f32.mrb[0].mxu0
  %1843 = vmatprep.mubr.f32.mxu0 0.0
  %1844 = vmatmul.mubr.f32.gmra.mrb[0].mxu0 %v1469
  %v1845 = vpop.f32.mrb[0].mxu0
  %v1846 = vadd.f32 0.0, %v1845
  %v1847 = vpop.f32.mrb[0].mxu0
  %1848 = vmatprep.mubr.f32.mxu0 0.0
  %1849 = vmatmul.mubr.f32.gmra.mrb[0].mxu0 %v1472
  %v1850 = vpop.f32.mrb[0].mxu0
  %v1851 = vadd.f32 0.0, %v1850
  %v1852 = vpop.f32.mrb[0].mxu0
  %1853 = vmatprep.mubr.f32.mxu0 0.0
  %1854 = vmatmul.mubr.f32.gmra.mrb[0].mxu0 %v1475
  %v1855 = vpop.f32.mrb[0].mxu0
  %v1856 = vadd.f32 0.0, %v1855
  %v1857 = vpop.f32.mrb[0].mxu0
  %1858 = vmatprep.mubr.f32.mxu0 0.0
  %1859 = vmatmul.mubr.f32.gmra.mrb[0].mxu0 %v1478
  %v1860 = vpop.f32.mrb[0].mxu0
  %v1861 = vadd.f32 0.0, %v1860
  %v1862 = vpop.f32.mrb[0].mxu0
  %1863 = vmatprep.mubr.f32.mxu0 0.0
  %1864 = vmatmul.mubr.f32.gmra.mrb[0].mxu0 %v1481
  %v1865 = vpop.f32.mrb[0].mxu0
  %v1866 = vadd.f32 0.0, %v1865
  %v1867 = vpop.f32.mrb[0].mxu0
  %1868 = vmatprep.mubr.f32.mxu0 0.0
  %1869 = vmatmul.mubr.f32.gmra.mrb[0].mxu0 %v1484
  %v1870 = vpop.f32.mrb[0].mxu0
  %v1871 = vadd.f32 0.0, %v1870
  %v1872 = vpop.f32.mrb[0].mxu0
  %1873 = vmatprep.mubr.f32.mxu0 0.0
  %1874 = vmatmul.mubr.f32.gmra.mrb[0].mxu0 %v1487
  %v1875 = vpop.f32.mrb[0].mxu0
  %v1876 = vadd.f32 0.0, %v1875
  %v1877 = vpop.f32.mrb[0].mxu0
  %1878 = vmatprep.mubr.f32.mxu0 0.0
  %1879 = vmatmul.mubr.f32.gmra.mrb[0].mxu0 %v1490
  %v1880 = vpop.f32.mrb[0].mxu0
  %v1881 = vadd.f32 0.0, %v1880
  %v1882 = vpop.f32.mrb[0].mxu0
  %1883 = vmatprep.mubr.f32.mxu0 0.0
  %1884 = vmatmul.mubr.f32.gmra.mrb[0].mxu0 %v1493
  %v1885 = vpop.f32.mrb[0].mxu0
  %v1886 = vadd.f32 0.0, %v1885
  %v1887 = vpop.f32.mrb[0].mxu0
  %1888 = vmatprep.mubr.f32.mxu0 0.0
  %1889 = vmatmul.mubr.f32.gmra.mrb[0].mxu0 %v1496
  %v1890 = vpop.f32.mrb[0].mxu0
  %v1891 = vadd.f32 0.0, %v1890
  %v1892 = vpop.f32.mrb[0].mxu0
  %1893 = vmatprep.mubr.f32.mxu0 0.0
  %1894 = vmatmul.mubr.f32.gmra.mrb[0].mxu0 %v1499
  %v1895 = vpop.f32.mrb[0].mxu0
  %v1896 = vadd.f32 0.0, %v1895
  %v1897 = vpop.f32.mrb[0].mxu0
  %1898 = vmatprep.mubr.f32.mxu0 0.0
  %1899 = vmatmul.mubr.f32.gmra.mrb[0].mxu0 %v1502
  %v1900 = vpop.f32.mrb[0].mxu0
  %v1901 = vadd.f32 0.0, %v1900
  %v1902 = vpop.f32.mrb[0].mxu0
  %1903 = vmatprep.mubr.f32.mxu0 0.0
  %1904 = vmatmul.mubr.f32.gmra.mrb[0].mxu0 %v1505
  %v1905 = vpop.f32.mrb[0].mxu0
  %v1906 = vadd.f32 0.0, %v1905
  %v1907 = vpop.f32.mrb[0].mxu0
  %1908 = vmatprep.mubr.f32.mxu0 0.0
  %1909 = vmatmul.mubr.f32.gmra.mrb[0].mxu0 %v1508
  %v1910 = vpop.f32.mrb[0].mxu0
  %v1911 = vadd.f32 0.0, %v1910
  %v1912 = vpop.f32.mrb[0].mxu0
  %1913 = vmatprep.mubr.f32.mxu0 0.0
  %1914 = vmatmul.mubr.f32.gmra.mrb[0].mxu0 %v1511
  %v1915 = vpop.f32.mrb[0].mxu0
  %v1916 = vadd.f32 0.0, %v1915
  %v1917 = vpop.f32.mrb[0].mxu0
  %1918 = vmatprep.mubr.f32.mxu0 0.0
  %1919 = vmatmul.mubr.f32.gmra.mrb[0].mxu0 %v1514
  %v1920 = vpop.f32.mrb[0].mxu0
  %v1921 = vadd.f32 0.0, %v1920
  %v1922 = vpop.f32.mrb[0].mxu0
  %1923 = vmatprep.mubr.f32.mxu0 0.0
  %1924 = vmatmul.mubr.f32.gmra.mrb[0].mxu0 %v1517
  %v1925 = vpop.f32.mrb[0].mxu0
  %v1926 = vadd.f32 0.0, %v1925
  %v1927 = vpop.f32.mrb[0].mxu0
  %1928 = vmatprep.mubr.f32.mxu0 0.0
  %1929 = vmatmul.mubr.f32.gmra.mrb[0].mxu0 %v1520
  %v1930 = vpop.f32.mrb[0].mxu0
  %v1931 = vadd.f32 0.0, %v1930
  %v1932 = vpop.f32.mrb[0].mxu0
  %1933 = vmatprep.mubr.f32.mxu0 0.0
  %1934 = vmatmul.mubr.f32.gmra.mrb[0].mxu0 %v1523
  %v1935 = vpop.f32.mrb[0].mxu0
  %v1936 = vadd.f32 0.0, %v1935
  %v1937 = vpop.f32.mrb[0].mxu0
  %1938 = vmatprep.mubr.f32.mxu0 0.0
  %1939 = vmatmul.mubr.f32.gmra.mrb[0].mxu0 %v1526
  %v1940 = vpop.f32.mrb[0].mxu0
  %v1941 = vadd.f32 0.0, %v1940
  %v1942 = vpop.f32.mrb[0].mxu0
  %1943 = vmatprep.mubr.f32.mxu0 0.0
  %1944 = vmatmul.mubr.f32.gmra.mrb[0].mxu0 %v1529
  %v1945 = vpop.f32.mrb[0].mxu0
  %v1946 = vadd.f32 0.0, %v1945
  %v1947 = vpop.f32.mrb[0].mxu0
  %1948 = vmatprep.mubr.f32.mxu0 0.0
  %1949 = vmatmul.mubr.f32.gmra.mrb[0].mxu0 %v1532
  %v1950 = vpop.f32.mrb[0].mxu0
  %v1951 = vadd.f32 0.0, %v1950
  %v1952 = vpop.f32.mrb[0].mxu0
  %1953 = vmatprep.mubr.f32.mxu0 0.0
  %1954 = vmatmul.mubr.f32.gmra.mrb[0].mxu0 %v1535
  %v1955 = vpop.f32.mrb[0].mxu0
  %v1956 = vadd.f32 0.0, %v1955
  %v1957 = vpop.f32.mrb[0].mxu0
  %1958 = vmatprep.mubr.f32.mxu0 0.0
  %1959 = vmatmul.mubr.f32.gmra.mrb[0].mxu0 %v1538
  %v1960 = vpop.f32.mrb[0].mxu0
  %v1961 = vadd.f32 0.0, %v1960
  %v1962 = vpop.f32.mrb[0].mxu0
  %1963 = vmatprep.mubr.f32.mxu0 0.0
  %1964 = vmatmul.mubr.f32.gmra.mrb[0].mxu0 %v1541
  %v1965 = vpop.f32.mrb[0].mxu0
  %v1966 = vadd.f32 0.0, %v1965
  %v1967 = vpop.f32.mrb[0].mxu0
  %1968 = vmatprep.mubr.f32.mxu0 0.0
  %1969 = vmatmul.mubr.f32.gmra.mrb[0].mxu0 %v1544
  %v1970 = vpop.f32.mrb[0].mxu0
  %v1971 = vadd.f32 0.0, %v1970
  %v1972 = vpop.f32.mrb[0].mxu0
  %1973 = vmatprep.mubr.f32.mxu0 0.0
  %1974 = vmatmul.mubr.f32.gmra.mrb[0].mxu0 %v1547
  %v1975 = vpop.f32.mrb[0].mxu0
  %v1976 = vadd.f32 0.0, %v1975
  %v1977 = vpop.f32.mrb[0].mxu0
  %1978 = vmatprep.mubr.f32.mxu0 0.0
  %1979 = vmatmul.mubr.f32.gmra.mrb[0].mxu0 %v1550
  %v1980 = vpop.f32.mrb[0].mxu0
  %v1981 = vadd.f32 0.0, %v1980
  %v1982 = vpop.f32.mrb[0].mxu0
  %1983 = vmatprep.mubr.f32.mxu0 0.0
  %1984 = vmatmul.mubr.f32.gmra.mrb[0].mxu0 %v1553
  %v1985 = vpop.f32.mrb[0].mxu0
  %v1986 = vadd.f32 0.0, %v1985
  %v1987 = vpop.f32.mrb[0].mxu0
  %1988 = vmatprep.mubr.f32.mxu0 0.0
  %1989 = vmatmul.mubr.f32.gmra.mrb[0].mxu0 %v1556
  %v1990 = vpop.f32.mrb[0].mxu0
  %v1991 = vadd.f32 0.0, %v1990
  %v1992 = vpop.f32.mrb[0].mxu0
  %1993 = vmatprep.mubr.f32.mxu0 0.0
  %1994 = vmatmul.mubr.f32.gmra.mrb[0].mxu0 %v1559
  %v1995 = vpop.f32.mrb[0].mxu0
  %v1996 = vadd.f32 0.0, %v1995
  %v1997 = vpop.f32.mrb[0].mxu0
  %1998 = vmatprep.mubr.f32.mxu0 0.0
  %1999 = vmatmul.mubr.f32.gmra.mrb[0].mxu0 %v1562
  %v2000 = vpop.f32.mrb[0].mxu0
  %v2001 = vadd.f32 0.0, %v2000
  %v2002 = vpop.f32.mrb[0].mxu0
  %2003 = vmatprep.mubr.f32.mxu0 0.0
  %2004 = vmatmul.mubr.f32.gmra.mrb[0].mxu0 %v1565
  %v2005 = vpop.f32.mrb[0].mxu0
  %v2006 = vadd.f32 0.0, %v2005
  %v2007 = vpop.f32.mrb[0].mxu0
  %2008 = vmatprep.mubr.f32.mxu0 0.0
  %2009 = vmatmul.mubr.f32.gmra.mrb[0].mxu0 %v1568
  %v2010 = vpop.f32.mrb[0].mxu0
  %v2011 = vadd.f32 0.0, %v2010
  %v2012 = vpop.f32.mrb[0].mxu0
  %2013 = vmatprep.mubr.f32.mxu0 0.0
  %2014 = vmatmul.mubr.f32.gmra.mrb[0].mxu0 %v1571
  %v2015 = vpop.f32.mrb[0].mxu0
  %v2016 = vadd.f32 0.0, %v2015
  %v2017 = vpop.f32.mrb[0].mxu0
  %2018 = vmatprep.mubr.f32.mxu0 0.0
  %2019 = vmatmul.mubr.f32.gmra.mrb[0].mxu0 %v1574
  %v2020 = vpop.f32.mrb[0].mxu0
  %v2021 = vadd.f32 0.0, %v2020
  %v2022 = vpop.f32.mrb[0].mxu0
  %2023 = vmatprep.mubr.f32.mxu0 0.0
  %2024 = vmatmul.mubr.f32.gmra.mrb[0].mxu0 %v1577
  %v2025 = vpop.f32.mrb[0].mxu0
  %v2026 = vadd.f32 0.0, %v2025
  %v2027 = vpop.f32.mrb[0].mxu0
  %2028 = vmatprep.mubr.f32.mxu0 0.0
  %2029 = vmatmul.mubr.f32.gmra.mrb[0].mxu0 %v1580
  %v2030 = vpop.f32.mrb[0].mxu0
  %v2031 = vadd.f32 0.0, %v2030
  %v2032 = vpop.f32.mrb[0].mxu0
  %2033 = vmatprep.mubr.f32.mxu0 0.0
  %2034 = vmatmul.mubr.f32.gmra.mrb[0].mxu0 %v1583
  %v2035 = vpop.f32.mrb[0].mxu0
  %v2036 = vadd.f32 0.0, %v2035
  %v2037 = vpop.f32.mrb[0].mxu0
  %2038 = vmatprep.mubr.f32.mxu0 0.0
  %2039 = vmatmul.mubr.f32.gmra.mrb[0].mxu0 %v1586
  %v2040 = vpop.f32.mrb[0].mxu0
  %v2041 = vadd.f32 0.0, %v2040
  %v2042 = vpop.f32.mrb[0].mxu0
  %2043 = vmatprep.mubr.f32.mxu0 0.0
  %2044 = vmatmul.mubr.f32.gmra.mrb[0].mxu0 %v1589
  %v2045 = vpop.f32.mrb[0].mxu0
  %v2046 = vadd.f32 0.0, %v2045
  %v2047 = vpop.f32.mrb[0].mxu0
  %2048 = vmatprep.mubr.f32.mxu0 0.0
  %2049 = vmatmul.mubr.f32.gmra.mrb[0].mxu0 %v1592
  %v2050 = vpop.f32.mrb[0].mxu0
  %v2051 = vadd.f32 0.0, %v2050
  %v2052 = vpop.f32.mrb[0].mxu0
  %2053 = vmatprep.mubr.f32.mxu0 0.0
  %2054 = vmatmul.mubr.f32.gmra.mrb[0].mxu0 %v1595
  %v2055 = vpop.f32.mrb[0].mxu0
  %v2056 = vadd.f32 0.0, %v2055
  %v2057 = vpop.f32.mrb[0].mxu0
  %2058 = vmatprep.mubr.f32.mxu0 0.0
  %2059 = vmatmul.mubr.f32.gmra.mrb[0].mxu0 %v1598
  %v2060 = vpop.f32.mrb[0].mxu0
  %v2061 = vadd.f32 0.0, %v2060
  %v2062 = vpop.f32.mrb[0].mxu0
  %2063 = vdwg.mxu0
  %v2065 = vsel %vm1362, %v1199, 0
  %v2068 = vsel %vm1362, %v1200, 0
  %v2071 = vsel %vm1362, %v1201, 0
  %v2074 = vsel %vm1362, %v1202, 0
  %v2077 = vsel %vm1362, %v1203, 0
  %v2080 = vsel %vm1362, %v1204, 0
  %v2083 = vsel %vm1362, %v1205, 0
  %v2086 = vsel %vm1362, %v1206, 0
  %v2089 = vsel %vm1362, %v1207, 0
  %v2092 = vsel %vm1362, %v1208, 0
  %v2095 = vsel %vm1362, %v1209, 0
  %v2098 = vsel %vm1362, %v1210, 0
  %v2101 = vsel %vm1362, %v1211, 0
  %v2104 = vsel %vm1362, %v1212, 0
  %v2107 = vsel %vm1362, %v1213, 0
  %v2110 = vsel %vm1362, %v1214, 0
  %v2113 = vsel %vm1362, %v1215, 0
  %v2116 = vsel %vm1362, %v1216, 0
  %v2119 = vsel %vm1362, %v1217, 0
  %v2122 = vsel %vm1362, %v1218, 0
  %v2125 = vsel %vm1362, %v1219, 0
  %v2128 = vsel %vm1362, %v1220, 0
  %v2131 = vsel %vm1362, %v1221, 0
  %v2134 = vsel %vm1362, %v1222, 0
  %v2137 = vsel %vm1362, %v1223, 0
  %v2140 = vsel %vm1362, %v1224, 0
  %v2143 = vsel %vm1362, %v1225, 0
  %v2146 = vsel %vm1362, %v1226, 0
  %v2149 = vsel %vm1362, %v1227, 0
  %v2152 = vsel %vm1362, %v1228, 0
  %v2155 = vsel %vm1362, %v1229, 0
  %v2158 = vsel %vm1362, %v1230, 0
  %v2161 = vsel %vm1362, %v1231, 0
  %v2164 = vsel %vm1362, %v1232, 0
  %v2167 = vsel %vm1362, %v1233, 0
  %v2170 = vsel %vm1362, %v1234, 0
  %v2173 = vsel %vm1362, %v1235, 0
  %v2176 = vsel %vm1362, %v1236, 0
  %v2179 = vsel %vm1362, %v1237, 0
  %v2182 = vsel %vm1362, %v1238, 0
  %v2185 = vsel %vm1362, %v1239, 0
  %v2188 = vsel %vm1362, %v1240, 0
  %v2191 = vsel %vm1362, %v1241, 0
  %v2194 = vsel %vm1362, %v1242, 0
  %v2197 = vsel %vm1362, %v1243, 0
  %v2200 = vsel %vm1362, %v1244, 0
  %v2203 = vsel %vm1362, %v1245, 0
  %v2206 = vsel %vm1362, %v1246, 0
  %v2209 = vsel %vm1362, %v1247, 0
  %v2212 = vsel %vm1362, %v1248, 0
  %v2215 = vsel %vm1362, %v1249, 0
  %v2218 = vsel %vm1362, %v1250, 0
  %v2221 = vsel %vm1362, %v1251, 0
  %v2224 = vsel %vm1362, %v1252, 0
  %v2227 = vsel %vm1362, %v1253, 0
  %v2230 = vsel %vm1362, %v1254, 0
  %v2233 = vsel %vm1362, %v1255, 0
  %v2236 = vsel %vm1362, %v1256, 0
  %v2239 = vsel %vm1362, %v1257, 0
  %v2242 = vsel %vm1362, %v1258, 0
  %v2245 = vsel %vm1362, %v1259, 0
  %v2248 = vsel %vm1362, %v1260, 0
  %v2251 = vsel %vm1362, %v1261, 0
  %v2254 = vsel %vm1362, %v1262, 0
  %v2257 = vsel %vm1362, %v1263, 0
  %v2260 = vsel %vm1362, %v1264, 0
  %v2263 = vsel %vm1362, %v1265, 0
  %v2266 = vsel %vm1362, %v1266, 0
  %v2269 = vsel %vm1362, %v1267, 0
  %v2272 = vsel %vm1362, %v1268, 0
  %v2275 = vsel %vm1362, %v1269, 0
  %v2278 = vsel %vm1362, %v1270, 0
  %v2281 = vsel %vm1362, %v1271, 0
  %v2284 = vsel %vm1362, %v1272, 0
  %v2287 = vsel %vm1362, %v1273, 0
  %v2290 = vsel %vm1362, %v1274, 0
  %v2293 = vsel %vm1362, %v1275, 0
  %v2296 = vsel %vm1362, %v1276, 0
  %v2299 = vsel %vm1362, %v1277, 0
  %v2302 = vsel %vm1600, %v1279, 0
  %2304 = vmatprep.subr.mxu0 0.0
  %2305 = vmatpush1.msra.mxu0 %v1278
  %2306 = vmatprep.subr.mxu0 0.0
  %2307 = vmatpush1.msra.mxu0 %v2302
  %2308 = vmatprep.subr.mxu0 0.0
  %2309 = vmatpush1.msra.mxu0 0.0
  %2310 = vmatprep.subr.mxu0 0.0
  %2311 = vmatpush1.msra.mxu0 0.0
  %2312 = vmatprep.subr.mxu0 0.0
  %2313 = vmatpush1.msra.mxu0 0.0
  %2314 = vmatprep.subr.mxu0 0.0
  %2315 = vmatpush1.msra.mxu0 0.0
  %2316 = vmatprep.subr.mxu0 0.0
  %2317 = vmatpush1.msra.mxu0 0.0
  %2318 = vmatprep.subr.mxu0 0.0
  %2319 = vmatpush1.msra.mxu0 0.0
  %2320 = vmatprep.subr.mxu0 0.0
  %2321 = vmatpush1.msra.mxu0 0.0
  %2322 = vmatprep.subr.mxu0 0.0
  %2323 = vmatpush1.msra.mxu0 0.0
  %2324 = vmatprep.subr.mxu0 0.0
  %2325 = vmatpush1.msra.mxu0 0.0
  %2326 = vmatprep.subr.mxu0 0.0
  %2327 = vmatpush1.msra.mxu0 0.0
  %2328 = vmatprep.subr.mxu0 0.0
  %2329 = vmatpush1.msra.mxu0 0.0
  %2330 = vmatprep.subr.mxu0 0.0
  %2331 = vmatpush1.msra.mxu0 0.0
  %2332 = vmatprep.subr.mxu0 0.0
  %2333 = vmatpush1.msra.mxu0 0.0
  %2334 = vmatprep.subr.mxu0 0.0
  %2335 = vmatpush1.msra.mxu0 0.0
  %2336 = vmatprep.subr.mxu0 0.0
  %2337 = vmatpush1.msra.mxu0 0.0
  %2338 = vmatprep.subr.mxu0 0.0
  %2339 = vmatpush1.msra.mxu0 0.0
  %2340 = vmatprep.subr.mxu0 0.0
  %2341 = vmatpush1.msra.mxu0 0.0
  %2342 = vmatprep.subr.mxu0 0.0
  %2343 = vmatpush1.msra.mxu0 0.0
  %2344 = vmatprep.subr.mxu0 0.0
  %2345 = vmatpush1.msra.mxu0 0.0
  %2346 = vmatprep.subr.mxu0 0.0
  %2347 = vmatpush1.msra.mxu0 0.0
  %2348 = vmatprep.subr.mxu0 0.0
  %2349 = vmatpush1.msra.mxu0 0.0
  %2350 = vmatprep.subr.mxu0 0.0
  %2351 = vmatpush1.msra.mxu0 0.0
  %2352 = vmatprep.subr.mxu0 0.0
  %2353 = vmatpush1.msra.mxu0 0.0
  %2354 = vmatprep.subr.mxu0 0.0
  %2355 = vmatpush1.msra.mxu0 0.0
  %2356 = vmatprep.subr.mxu0 0.0
  %2357 = vmatpush1.msra.mxu0 0.0
  %2358 = vmatprep.subr.mxu0 0.0
  %2359 = vmatpush1.msra.mxu0 0.0
  %2360 = vmatprep.subr.mxu0 0.0
  %2361 = vmatpush1.msra.mxu0 0.0
  %2362 = vmatprep.subr.mxu0 0.0
  %2363 = vmatpush1.msra.mxu0 0.0
  %2364 = vmatprep.subr.mxu0 0.0
  %2365 = vmatpush1.msra.mxu0 0.0
  %2366 = vmatprep.subr.mxu0 0.0
  %2367 = vmatpush1.msra.mxu0 0.0
  %2368 = vmatprep.mubr.f32.mxu0 0.0
  %2369 = vmatmul.mubr.f32.gmra.mrb[0].mxu0 %v2065
  %v2370 = vpop.f32.mrb[0].mxu0
  %v2371 = vadd.f32 %v1671, %v2370
  %v2372 = vpop.f32.mrb[0].mxu0
  %2373 = vmatprep.mubr.f32.mxu0 0.0
  %2374 = vmatmul.mubr.f32.gmra.mrb[0].mxu0 %v2068
  %v2375 = vpop.f32.mrb[0].mxu0
  %v2376 = vadd.f32 %v1676, %v2375
  %v2377 = vpop.f32.mrb[0].mxu0
  %2378 = vmatprep.mubr.f32.mxu0 0.0
  %2379 = vmatmul.mubr.f32.gmra.mrb[0].mxu0 %v2071
  %v2380 = vpop.f32.mrb[0].mxu0
  %v2381 = vadd.f32 %v1681, %v2380
  %v2382 = vpop.f32.mrb[0].mxu0
  %2383 = vmatprep.mubr.f32.mxu0 0.0
  %2384 = vmatmul.mubr.f32.gmra.mrb[0].mxu0 %v2074
  %v2385 = vpop.f32.mrb[0].mxu0
  %v2386 = vadd.f32 %v1686, %v2385
  %v2387 = vpop.f32.mrb[0].mxu0
  %2388 = vmatprep.mubr.f32.mxu0 0.0
  %2389 = vmatmul.mubr.f32.gmra.mrb[0].mxu0 %v2077
  %v2390 = vpop.f32.mrb[0].mxu0
  %v2391 = vadd.f32 %v1691, %v2390
  %v2392 = vpop.f32.mrb[0].mxu0
  %2393 = vmatprep.mubr.f32.mxu0 0.0
  %2394 = vmatmul.mubr.f32.gmra.mrb[0].mxu0 %v2080
  %v2395 = vpop.f32.mrb[0].mxu0
  %v2396 = vadd.f32 %v1696, %v2395
  %v2397 = vpop.f32.mrb[0].mxu0
  %2398 = vmatprep.mubr.f32.mxu0 0.0
  %2399 = vmatmul.mubr.f32.gmra.mrb[0].mxu0 %v2083
  %v2400 = vpop.f32.mrb[0].mxu0
  %v2401 = vadd.f32 %v1701, %v2400
  %v2402 = vpop.f32.mrb[0].mxu0
  %2403 = vmatprep.mubr.f32.mxu0 0.0
  %2404 = vmatmul.mubr.f32.gmra.mrb[0].mxu0 %v2086
  %v2405 = vpop.f32.mrb[0].mxu0
  %v2406 = vadd.f32 %v1706, %v2405
  %v2407 = vpop.f32.mrb[0].mxu0
  %2408 = vmatprep.mubr.f32.mxu0 0.0
  %2409 = vmatmul.mubr.f32.gmra.mrb[0].mxu0 %v2089
  %v2410 = vpop.f32.mrb[0].mxu0
  %v2411 = vadd.f32 %v1711, %v2410
  %v2412 = vpop.f32.mrb[0].mxu0
  %2413 = vmatprep.mubr.f32.mxu0 0.0
  %2414 = vmatmul.mubr.f32.gmra.mrb[0].mxu0 %v2092
  %v2415 = vpop.f32.mrb[0].mxu0
  %v2416 = vadd.f32 %v1716, %v2415
  %v2417 = vpop.f32.mrb[0].mxu0
  %2418 = vmatprep.mubr.f32.mxu0 0.0
  %2419 = vmatmul.mubr.f32.gmra.mrb[0].mxu0 %v2095
  %v2420 = vpop.f32.mrb[0].mxu0
  %v2421 = vadd.f32 %v1721, %v2420
  %v2422 = vpop.f32.mrb[0].mxu0
  %2423 = vmatprep.mubr.f32.mxu0 0.0
  %2424 = vmatmul.mubr.f32.gmra.mrb[0].mxu0 %v2098
  %v2425 = vpop.f32.mrb[0].mxu0
  %v2426 = vadd.f32 %v1726, %v2425
  %v2427 = vpop.f32.mrb[0].mxu0
  %2428 = vmatprep.mubr.f32.mxu0 0.0
  %2429 = vmatmul.mubr.f32.gmra.mrb[0].mxu0 %v2101
  %v2430 = vpop.f32.mrb[0].mxu0
  %v2431 = vadd.f32 %v1731, %v2430
  %v2432 = vpop.f32.mrb[0].mxu0
  %2433 = vmatprep.mubr.f32.mxu0 0.0
  %2434 = vmatmul.mubr.f32.gmra.mrb[0].mxu0 %v2104
  %v2435 = vpop.f32.mrb[0].mxu0
  %v2436 = vadd.f32 %v1736, %v2435
  %v2437 = vpop.f32.mrb[0].mxu0
  %2438 = vmatprep.mubr.f32.mxu0 0.0
  %2439 = vmatmul.mubr.f32.gmra.mrb[0].mxu0 %v2107
  %v2440 = vpop.f32.mrb[0].mxu0
  %v2441 = vadd.f32 %v1741, %v2440
  %v2442 = vpop.f32.mrb[0].mxu0
  %2443 = vmatprep.mubr.f32.mxu0 0.0
  %2444 = vmatmul.mubr.f32.gmra.mrb[0].mxu0 %v2110
  %v2445 = vpop.f32.mrb[0].mxu0
  %v2446 = vadd.f32 %v1746, %v2445
  %v2447 = vpop.f32.mrb[0].mxu0
  %2448 = vmatprep.mubr.f32.mxu0 0.0
  %2449 = vmatmul.mubr.f32.gmra.mrb[0].mxu0 %v2113
  %v2450 = vpop.f32.mrb[0].mxu0
  %v2451 = vadd.f32 %v1751, %v2450
  %v2452 = vpop.f32.mrb[0].mxu0
  %2453 = vmatprep.mubr.f32.mxu0 0.0
  %2454 = vmatmul.mubr.f32.gmra.mrb[0].mxu0 %v2116
  %v2455 = vpop.f32.mrb[0].mxu0
  %v2456 = vadd.f32 %v1756, %v2455
  %v2457 = vpop.f32.mrb[0].mxu0
  %2458 = vmatprep.mubr.f32.mxu0 0.0
  %2459 = vmatmul.mubr.f32.gmra.mrb[0].mxu0 %v2119
  %v2460 = vpop.f32.mrb[0].mxu0
  %v2461 = vadd.f32 %v1761, %v2460
  %v2462 = vpop.f32.mrb[0].mxu0
  %2463 = vmatprep.mubr.f32.mxu0 0.0
  %2464 = vmatmul.mubr.f32.gmra.mrb[0].mxu0 %v2122
  %v2465 = vpop.f32.mrb[0].mxu0
  %v2466 = vadd.f32 %v1766, %v2465
  %v2467 = vpop.f32.mrb[0].mxu0
  %2468 = vmatprep.mubr.f32.mxu0 0.0
  %2469 = vmatmul.mubr.f32.gmra.mrb[0].mxu0 %v2125
  %v2470 = vpop.f32.mrb[0].mxu0
  %v2471 = vadd.f32 %v1771, %v2470
  %v2472 = vpop.f32.mrb[0].mxu0
  %2473 = vmatprep.mubr.f32.mxu0 0.0
  %2474 = vmatmul.mubr.f32.gmra.mrb[0].mxu0 %v2128
  %v2475 = vpop.f32.mrb[0].mxu0
  %v2476 = vadd.f32 %v1776, %v2475
  %v2477 = vpop.f32.mrb[0].mxu0
  %2478 = vmatprep.mubr.f32.mxu0 0.0
  %2479 = vmatmul.mubr.f32.gmra.mrb[0].mxu0 %v2131
  %v2480 = vpop.f32.mrb[0].mxu0
  %v2481 = vadd.f32 %v1781, %v2480
  %v2482 = vpop.f32.mrb[0].mxu0
  %2483 = vmatprep.mubr.f32.mxu0 0.0
  %2484 = vmatmul.mubr.f32.gmra.mrb[0].mxu0 %v2134
  %v2485 = vpop.f32.mrb[0].mxu0
  %v2486 = vadd.f32 %v1786, %v2485
  %v2487 = vpop.f32.mrb[0].mxu0
  %2488 = vmatprep.mubr.f32.mxu0 0.0
  %2489 = vmatmul.mubr.f32.gmra.mrb[0].mxu0 %v2137
  %v2490 = vpop.f32.mrb[0].mxu0
  %v2491 = vadd.f32 %v1791, %v2490
  %v2492 = vpop.f32.mrb[0].mxu0
  %2493 = vmatprep.mubr.f32.mxu0 0.0
  %2494 = vmatmul.mubr.f32.gmra.mrb[0].mxu0 %v2140
  %v2495 = vpop.f32.mrb[0].mxu0
  %v2496 = vadd.f32 %v1796, %v2495
  %v2497 = vpop.f32.mrb[0].mxu0
  %2498 = vmatprep.mubr.f32.mxu0 0.0
  %2499 = vmatmul.mubr.f32.gmra.mrb[0].mxu0 %v2143
  %v2500 = vpop.f32.mrb[0].mxu0
  %v2501 = vadd.f32 %v1801, %v2500
  %v2502 = vpop.f32.mrb[0].mxu0
  %2503 = vmatprep.mubr.f32.mxu0 0.0
  %2504 = vmatmul.mubr.f32.gmra.mrb[0].mxu0 %v2146
  %v2505 = vpop.f32.mrb[0].mxu0
  %v2506 = vadd.f32 %v1806, %v2505
  %v2507 = vpop.f32.mrb[0].mxu0
  %2508 = vmatprep.mubr.f32.mxu0 0.0
  %2509 = vmatmul.mubr.f32.gmra.mrb[0].mxu0 %v2149
  %v2510 = vpop.f32.mrb[0].mxu0
  %v2511 = vadd.f32 %v1811, %v2510
  %v2512 = vpop.f32.mrb[0].mxu0
  %2513 = vmatprep.mubr.f32.mxu0 0.0
  %2514 = vmatmul.mubr.f32.gmra.mrb[0].mxu0 %v2152
  %v2515 = vpop.f32.mrb[0].mxu0
  %v2516 = vadd.f32 %v1816, %v2515
  %v2517 = vpop.f32.mrb[0].mxu0
  %2518 = vmatprep.mubr.f32.mxu0 0.0
  %2519 = vmatmul.mubr.f32.gmra.mrb[0].mxu0 %v2155
  %v2520 = vpop.f32.mrb[0].mxu0
  %v2521 = vadd.f32 %v1821, %v2520
  %v2522 = vpop.f32.mrb[0].mxu0
  %2523 = vmatprep.mubr.f32.mxu0 0.0
  %2524 = vmatmul.mubr.f32.gmra.mrb[0].mxu0 %v2158
  %v2525 = vpop.f32.mrb[0].mxu0
  %v2526 = vadd.f32 %v1826, %v2525
  %v2527 = vpop.f32.mrb[0].mxu0
  %2528 = vmatprep.mubr.f32.mxu0 0.0
  %2529 = vmatmul.mubr.f32.gmra.mrb[0].mxu0 %v2161
  %v2530 = vpop.f32.mrb[0].mxu0
  %v2531 = vadd.f32 %v1831, %v2530
  %v2532 = vpop.f32.mrb[0].mxu0
  %2533 = vmatprep.mubr.f32.mxu0 0.0
  %2534 = vmatmul.mubr.f32.gmra.mrb[0].mxu0 %v2164
  %v2535 = vpop.f32.mrb[0].mxu0
  %v2536 = vadd.f32 %v1836, %v2535
  %v2537 = vpop.f32.mrb[0].mxu0
  %2538 = vmatprep.mubr.f32.mxu0 0.0
  %2539 = vmatmul.mubr.f32.gmra.mrb[0].mxu0 %v2167
  %v2540 = vpop.f32.mrb[0].mxu0
  %v2541 = vadd.f32 %v1841, %v2540
  %v2542 = vpop.f32.mrb[0].mxu0
  %2543 = vmatprep.mubr.f32.mxu0 0.0
  %2544 = vmatmul.mubr.f32.gmra.mrb[0].mxu0 %v2170
  %v2545 = vpop.f32.mrb[0].mxu0
  %v2546 = vadd.f32 %v1846, %v2545
  %v2547 = vpop.f32.mrb[0].mxu0
  %2548 = vmatprep.mubr.f32.mxu0 0.0
  %2549 = vmatmul.mubr.f32.gmra.mrb[0].mxu0 %v2173
  %v2550 = vpop.f32.mrb[0].mxu0
  %v2551 = vadd.f32 %v1851, %v2550
  %v2552 = vpop.f32.mrb[0].mxu0
  %2553 = vmatprep.mubr.f32.mxu0 0.0
  %2554 = vmatmul.mubr.f32.gmra.mrb[0].mxu0 %v2176
  %v2555 = vpop.f32.mrb[0].mxu0
  %v2556 = vadd.f32 %v1856, %v2555
  %v2557 = vpop.f32.mrb[0].mxu0
  %2558 = vmatprep.mubr.f32.mxu0 0.0
  %2559 = vmatmul.mubr.f32.gmra.mrb[0].mxu0 %v2179
  %v2560 = vpop.f32.mrb[0].mxu0
  %v2561 = vadd.f32 %v1861, %v2560
  %v2562 = vpop.f32.mrb[0].mxu0
  %2563 = vmatprep.mubr.f32.mxu0 0.0
  %2564 = vmatmul.mubr.f32.gmra.mrb[0].mxu0 %v2182
  %v2565 = vpop.f32.mrb[0].mxu0
  %v2566 = vadd.f32 %v1866, %v2565
  %v2567 = vpop.f32.mrb[0].mxu0
  %2568 = vmatprep.mubr.f32.mxu0 0.0
  %2569 = vmatmul.mubr.f32.gmra.mrb[0].mxu0 %v2185
  %v2570 = vpop.f32.mrb[0].mxu0
  %v2571 = vadd.f32 %v1871, %v2570
  %v2572 = vpop.f32.mrb[0].mxu0
  %2573 = vmatprep.mubr.f32.mxu0 0.0
  %2574 = vmatmul.mubr.f32.gmra.mrb[0].mxu0 %v2188
  %v2575 = vpop.f32.mrb[0].mxu0
  %v2576 = vadd.f32 %v1876, %v2575
  %v2577 = vpop.f32.mrb[0].mxu0
  %2578 = vmatprep.mubr.f32.mxu0 0.0
  %2579 = vmatmul.mubr.f32.gmra.mrb[0].mxu0 %v2191
  %v2580 = vpop.f32.mrb[0].mxu0
  %v2581 = vadd.f32 %v1881, %v2580
  %v2582 = vpop.f32.mrb[0].mxu0
  %2583 = vmatprep.mubr.f32.mxu0 0.0
  %2584 = vmatmul.mubr.f32.gmra.mrb[0].mxu0 %v2194
  %v2585 = vpop.f32.mrb[0].mxu0
  %v2586 = vadd.f32 %v1886, %v2585
  %v2587 = vpop.f32.mrb[0].mxu0
  %2588 = vmatprep.mubr.f32.mxu0 0.0
  %2589 = vmatmul.mubr.f32.gmra.mrb[0].mxu0 %v2197
  %v2590 = vpop.f32.mrb[0].mxu0
  %v2591 = vadd.f32 %v1891, %v2590
  %v2592 = vpop.f32.mrb[0].mxu0
  %2593 = vmatprep.mubr.f32.mxu0 0.0
  %2594 = vmatmul.mubr.f32.gmra.mrb[0].mxu0 %v2200
  %v2595 = vpop.f32.mrb[0].mxu0
  %v2596 = vadd.f32 %v1896, %v2595
  %v2597 = vpop.f32.mrb[0].mxu0
  %2598 = vmatprep.mubr.f32.mxu0 0.0
  %2599 = vmatmul.mubr.f32.gmra.mrb[0].mxu0 %v2203
  %v2600 = vpop.f32.mrb[0].mxu0
  %v2601 = vadd.f32 %v1901, %v2600
  %v2602 = vpop.f32.mrb[0].mxu0
  %2603 = vmatprep.mubr.f32.mxu0 0.0
  %2604 = vmatmul.mubr.f32.gmra.mrb[0].mxu0 %v2206
  %v2605 = vpop.f32.mrb[0].mxu0
  %v2606 = vadd.f32 %v1906, %v2605
  %v2607 = vpop.f32.mrb[0].mxu0
  %2608 = vmatprep.mubr.f32.mxu0 0.0
  %2609 = vmatmul.mubr.f32.gmra.mrb[0].mxu0 %v2209
  %v2610 = vpop.f32.mrb[0].mxu0
  %v2611 = vadd.f32 %v1911, %v2610
  %v2612 = vpop.f32.mrb[0].mxu0
  %2613 = vmatprep.mubr.f32.mxu0 0.0
  %2614 = vmatmul.mubr.f32.gmra.mrb[0].mxu0 %v2212
  %v2615 = vpop.f32.mrb[0].mxu0
  %v2616 = vadd.f32 %v1916, %v2615
  %v2617 = vpop.f32.mrb[0].mxu0
  %2618 = vmatprep.mubr.f32.mxu0 0.0
  %2619 = vmatmul.mubr.f32.gmra.mrb[0].mxu0 %v2215
  %v2620 = vpop.f32.mrb[0].mxu0
  %v2621 = vadd.f32 %v1921, %v2620
  %v2622 = vpop.f32.mrb[0].mxu0
  %2623 = vmatprep.mubr.f32.mxu0 0.0
  %2624 = vmatmul.mubr.f32.gmra.mrb[0].mxu0 %v2218
  %v2625 = vpop.f32.mrb[0].mxu0
  %v2626 = vadd.f32 %v1926, %v2625
  %v2627 = vpop.f32.mrb[0].mxu0
  %2628 = vmatprep.mubr.f32.mxu0 0.0
  %2629 = vmatmul.mubr.f32.gmra.mrb[0].mxu0 %v2221
  %v2630 = vpop.f32.mrb[0].mxu0
  %v2631 = vadd.f32 %v1931, %v2630
  %v2632 = vpop.f32.mrb[0].mxu0
  %2633 = vmatprep.mubr.f32.mxu0 0.0
  %2634 = vmatmul.mubr.f32.gmra.mrb[0].mxu0 %v2224
  %v2635 = vpop.f32.mrb[0].mxu0
  %v2636 = vadd.f32 %v1936, %v2635
  %v2637 = vpop.f32.mrb[0].mxu0
  %2638 = vmatprep.mubr.f32.mxu0 0.0
  %2639 = vmatmul.mubr.f32.gmra.mrb[0].mxu0 %v2227
  %v2640 = vpop.f32.mrb[0].mxu0
  %v2641 = vadd.f32 %v1941, %v2640
  %v2642 = vpop.f32.mrb[0].mxu0
  %2643 = vmatprep.mubr.f32.mxu0 0.0
  %2644 = vmatmul.mubr.f32.gmra.mrb[0].mxu0 %v2230
  %v2645 = vpop.f32.mrb[0].mxu0
  %v2646 = vadd.f32 %v1946, %v2645
  %v2647 = vpop.f32.mrb[0].mxu0
  %2648 = vmatprep.mubr.f32.mxu0 0.0
  %2649 = vmatmul.mubr.f32.gmra.mrb[0].mxu0 %v2233
  %v2650 = vpop.f32.mrb[0].mxu0
  %v2651 = vadd.f32 %v1951, %v2650
  %v2652 = vpop.f32.mrb[0].mxu0
  %2653 = vmatprep.mubr.f32.mxu0 0.0
  %2654 = vmatmul.mubr.f32.gmra.mrb[0].mxu0 %v2236
  %v2655 = vpop.f32.mrb[0].mxu0
  %v2656 = vadd.f32 %v1956, %v2655
  %v2657 = vpop.f32.mrb[0].mxu0
  %2658 = vmatprep.mubr.f32.mxu0 0.0
  %2659 = vmatmul.mubr.f32.gmra.mrb[0].mxu0 %v2239
  %v2660 = vpop.f32.mrb[0].mxu0
  %v2661 = vadd.f32 %v1961, %v2660
  %v2662 = vpop.f32.mrb[0].mxu0
  %2663 = vmatprep.mubr.f32.mxu0 0.0
  %2664 = vmatmul.mubr.f32.gmra.mrb[0].mxu0 %v2242
  %v2665 = vpop.f32.mrb[0].mxu0
  %v2666 = vadd.f32 %v1966, %v2665
  %v2667 = vpop.f32.mrb[0].mxu0
  %2668 = vmatprep.mubr.f32.mxu0 0.0
  %2669 = vmatmul.mubr.f32.gmra.mrb[0].mxu0 %v2245
  %v2670 = vpop.f32.mrb[0].mxu0
  %v2671 = vadd.f32 %v1971, %v2670
  %v2672 = vpop.f32.mrb[0].mxu0
  %2673 = vmatprep.mubr.f32.mxu0 0.0
  %2674 = vmatmul.mubr.f32.gmra.mrb[0].mxu0 %v2248
  %v2675 = vpop.f32.mrb[0].mxu0
  %v2676 = vadd.f32 %v1976, %v2675
  %v2677 = vpop.f32.mrb[0].mxu0
  %2678 = vmatprep.mubr.f32.mxu0 0.0
  %2679 = vmatmul.mubr.f32.gmra.mrb[0].mxu0 %v2251
  %v2680 = vpop.f32.mrb[0].mxu0
  %v2681 = vadd.f32 %v1981, %v2680
  %v2682 = vpop.f32.mrb[0].mxu0
  %2683 = vmatprep.mubr.f32.mxu0 0.0
  %2684 = vmatmul.mubr.f32.gmra.mrb[0].mxu0 %v2254
  %v2685 = vpop.f32.mrb[0].mxu0
  %v2686 = vadd.f32 %v1986, %v2685
  %v2687 = vpop.f32.mrb[0].mxu0
  %2688 = vmatprep.mubr.f32.mxu0 0.0
  %2689 = vmatmul.mubr.f32.gmra.mrb[0].mxu0 %v2257
  %v2690 = vpop.f32.mrb[0].mxu0
  %v2691 = vadd.f32 %v1991, %v2690
  %v2692 = vpop.f32.mrb[0].mxu0
  %2693 = vmatprep.mubr.f32.mxu0 0.0
  %2694 = vmatmul.mubr.f32.gmra.mrb[0].mxu0 %v2260
  %v2695 = vpop.f32.mrb[0].mxu0
  %v2696 = vadd.f32 %v1996, %v2695
  %v2697 = vpop.f32.mrb[0].mxu0
  %2698 = vmatprep.mubr.f32.mxu0 0.0
  %2699 = vmatmul.mubr.f32.gmra.mrb[0].mxu0 %v2263
  %v2700 = vpop.f32.mrb[0].mxu0
  %v2701 = vadd.f32 %v2001, %v2700
  %v2702 = vpop.f32.mrb[0].mxu0
  %2703 = vmatprep.mubr.f32.mxu0 0.0
  %2704 = vmatmul.mubr.f32.gmra.mrb[0].mxu0 %v2266
  %v2705 = vpop.f32.mrb[0].mxu0
  %v2706 = vadd.f32 %v2006, %v2705
  %v2707 = vpop.f32.mrb[0].mxu0
  %2708 = vmatprep.mubr.f32.mxu0 0.0
  %2709 = vmatmul.mubr.f32.gmra.mrb[0].mxu0 %v2269
  %v2710 = vpop.f32.mrb[0].mxu0
  %v2711 = vadd.f32 %v2011, %v2710
  %v2712 = vpop.f32.mrb[0].mxu0
  %2713 = vmatprep.mubr.f32.mxu0 0.0
  %2714 = vmatmul.mubr.f32.gmra.mrb[0].mxu0 %v2272
  %v2715 = vpop.f32.mrb[0].mxu0
  %v2716 = vadd.f32 %v2016, %v2715
  %v2717 = vpop.f32.mrb[0].mxu0
  %2718 = vmatprep.mubr.f32.mxu0 0.0
  %2719 = vmatmul.mubr.f32.gmra.mrb[0].mxu0 %v2275
  %v2720 = vpop.f32.mrb[0].mxu0
  %v2721 = vadd.f32 %v2021, %v2720
  %v2722 = vpop.f32.mrb[0].mxu0
  %2723 = vmatprep.mubr.f32.mxu0 0.0
  %2724 = vmatmul.mubr.f32.gmra.mrb[0].mxu0 %v2278
  %v2725 = vpop.f32.mrb[0].mxu0
  %v2726 = vadd.f32 %v2026, %v2725
  %v2727 = vpop.f32.mrb[0].mxu0
  %2728 = vmatprep.mubr.f32.mxu0 0.0
  %2729 = vmatmul.mubr.f32.gmra.mrb[0].mxu0 %v2281
  %v2730 = vpop.f32.mrb[0].mxu0
  %v2731 = vadd.f32 %v2031, %v2730
  %v2732 = vpop.f32.mrb[0].mxu0
  %2733 = vmatprep.mubr.f32.mxu0 0.0
  %2734 = vmatmul.mubr.f32.gmra.mrb[0].mxu0 %v2284
  %v2735 = vpop.f32.mrb[0].mxu0
  %v2736 = vadd.f32 %v2036, %v2735
  %v2737 = vpop.f32.mrb[0].mxu0
  %2738 = vmatprep.mubr.f32.mxu0 0.0
  %2739 = vmatmul.mubr.f32.gmra.mrb[0].mxu0 %v2287
  %v2740 = vpop.f32.mrb[0].mxu0
  %v2741 = vadd.f32 %v2041, %v2740
  %v2742 = vpop.f32.mrb[0].mxu0
  %2743 = vmatprep.mubr.f32.mxu0 0.0
  %2744 = vmatmul.mubr.f32.gmra.mrb[0].mxu0 %v2290
  %v2745 = vpop.f32.mrb[0].mxu0
  %v2746 = vadd.f32 %v2046, %v2745
  %v2747 = vpop.f32.mrb[0].mxu0
  %2748 = vmatprep.mubr.f32.mxu0 0.0
  %2749 = vmatmul.mubr.f32.gmra.mrb[0].mxu0 %v2293
  %v2750 = vpop.f32.mrb[0].mxu0
  %v2751 = vadd.f32 %v2051, %v2750
  %v2752 = vpop.f32.mrb[0].mxu0
  %2753 = vmatprep.mubr.f32.mxu0 0.0
  %2754 = vmatmul.mubr.f32.gmra.mrb[0].mxu0 %v2296
  %v2755 = vpop.f32.mrb[0].mxu0
  %v2756 = vadd.f32 %v2056, %v2755
  %v2757 = vpop.f32.mrb[0].mxu0
  %2758 = vmatprep.mubr.f32.mxu0 0.0
  %2759 = vmatmul.mubr.f32.gmra.mrb[0].mxu0 %v2299
  %v2760 = vpop.f32.mrb[0].mxu0
  %v2761 = vadd.f32 %v2061, %v2760
  %v2762 = vpop.f32.mrb[0].mxu0
  %2763 = vdwg.mxu0
  %v2764 = vld [vmem:[#allocation2 + $0x24] sm:$0xff]
  %v2765 = vld [vmem:[#allocation2 + $0x2c] sm:$0xff]
  %v2766 = vld [vmem:[#allocation2 + $0x34] sm:$0xff]
  %v2767 = vld [vmem:[#allocation2 + $0x3c] sm:$0xff]
  %v2768 = vld [vmem:[#allocation2 + $0x44] sm:$0xff]
  %v2769 = vld [vmem:[#allocation2 + $0x4c] sm:$0xff]
  %v2770 = vld [vmem:[#allocation2 + $0x54] sm:$0xff]
  %v2771 = vld [vmem:[#allocation2 + $0x5c] sm:$0xff]
  %v2772 = vld [vmem:[#allocation2 + $0x64] sm:$0xff]
  %v2773 = vld [vmem:[#allocation2 + $0x6c] sm:$0xff]
  %v2774 = vld [vmem:[#allocation2 + $0x74] sm:$0xff]
  %v2775 = vld [vmem:[#allocation2 + $0x7c] sm:$0xff]
  %v2776 = vld [vmem:[#allocation2 + $0x84] sm:$0xff]
  %v2777 = vld [vmem:[#allocation2 + $0x8c] sm:$0xff]
  %v2778 = vld [vmem:[#allocation2 + $0x94] sm:$0xff]
  %v2779 = vld [vmem:[#allocation2 + $0x9c] sm:$0xff]
  %v2780 = vld [vmem:[#allocation2 + $0xa4] sm:$0xff]
  %v2781 = vld [vmem:[#allocation2 + $0xac] sm:$0xff]
  %v2782 = vld [vmem:[#allocation2 + $0xb4] sm:$0xff]
  %v2783 = vld [vmem:[#allocation2 + $0xbc] sm:$0xff]
  %v2784 = vld [vmem:[#allocation2 + $0xc4] sm:$0xff]
  %v2785 = vld [vmem:[#allocation2 + $0xcc] sm:$0xff]
  %v2786 = vld [vmem:[#allocation2 + $0xd4] sm:$0xff]
  %v2787 = vld [vmem:[#allocation2 + $0xdc] sm:$0xff]
  %v2788 = vld [vmem:[#allocation2 + $0xe4] sm:$0xff]
  %v2789 = vld [vmem:[#allocation2 + $0xec] sm:$0xff]
  %v2790 = vld [vmem:[#allocation2 + $0xf4] sm:$0xff]
  %v2791 = vld [vmem:[#allocation2 + $0xfc] sm:$0xff]
  %v2792 = vld [vmem:[#allocation2 + $0x104] sm:$0xff]
  %v2793 = vld [vmem:[#allocation2 + $0x10c] sm:$0xff]
  %v2794 = vld [vmem:[#allocation2 + $0x114] sm:$0xff]
  %v2795 = vld [vmem:[#allocation2 + $0x11c] sm:$0xff]
  %v2796 = vld [vmem:[#allocation2 + $0x124] sm:$0xff]
  %v2797 = vld [vmem:[#allocation2 + $0x12c] sm:$0xff]
  %v2798 = vld [vmem:[#allocation2 + $0x134] sm:$0xff]
  %v2799 = vld [vmem:[#allocation2 + $0x13c] sm:$0xff]
  %v2800 = vld [vmem:[#allocation2 + $0x144] sm:$0xff]
  %v2801 = vld [vmem:[#allocation2 + $0x14c] sm:$0xff]
  %v2802 = vld [vmem:[#allocation2 + $0x154] sm:$0xff]
  %v2803 = vld [vmem:[#allocation2 + $0x15c] sm:$0xff]
  %v2804 = vld [vmem:[#allocation2 + $0x164] sm:$0xff]
  %v2805 = vld [vmem:[#allocation2 + $0x16c] sm:$0xff]
  %v2806 = vld [vmem:[#allocation2 + $0x174] sm:$0xff]
  %v2807 = vld [vmem:[#allocation2 + $0x17c] sm:$0xff]
  %v2808 = vld [vmem:[#allocation2 + $0x184] sm:$0xff]
  %v2809 = vld [vmem:[#allocation2 + $0x18c] sm:$0xff]
  %v2810 = vld [vmem:[#allocation2 + $0x194] sm:$0xff]
  %v2811 = vld [vmem:[#allocation2 + $0x19c] sm:$0xff]
  %v2812 = vld [vmem:[#allocation2 + $0x1a4] sm:$0xff]
  %v2813 = vld [vmem:[#allocation2 + $0x1ac] sm:$0xff]
  %v2814 = vld [vmem:[#allocation2 + $0x1b4] sm:$0xff]
  %v2815 = vld [vmem:[#allocation2 + $0x1bc] sm:$0xff]
  %v2816 = vld [vmem:[#allocation2 + $0x1c4] sm:$0xff]
  %v2817 = vld [vmem:[#allocation2 + $0x1cc] sm:$0xff]
  %v2818 = vld [vmem:[#allocation2 + $0x1d4] sm:$0xff]
  %v2819 = vld [vmem:[#allocation2 + $0x1dc] sm:$0xff]
  %v2820 = vld [vmem:[#allocation2 + $0x1e4] sm:$0xff]
  %v2821 = vld [vmem:[#allocation2 + $0x1ec] sm:$0xff]
  %v2822 = vld [vmem:[#allocation2 + $0x1f4] sm:$0xff]
  %v2823 = vld [vmem:[#allocation2 + $0x1fc] sm:$0xff]
  %v2824 = vld [vmem:[#allocation2 + $0x204] sm:$0xff]
  %v2825 = vld [vmem:[#allocation2 + $0x20c] sm:$0xff]
  %v2826 = vld [vmem:[#allocation2 + $0x214] sm:$0xff]
  %v2827 = vld [vmem:[#allocation2 + $0x21c] sm:$0xff]
  %v2828 = vld [vmem:[#allocation2 + $0x224] sm:$0xff]
  %v2829 = vld [vmem:[#allocation2 + $0x22c] sm:$0xff]
  %v2830 = vld [vmem:[#allocation2 + $0x234] sm:$0xff]
  %v2831 = vld [vmem:[#allocation2 + $0x23c] sm:$0xff]
  %v2832 = vld [vmem:[#allocation2 + $0x244] sm:$0xff]
  %v2833 = vld [vmem:[#allocation2 + $0x24c] sm:$0xff]
  %v2834 = vld [vmem:[#allocation2 + $0x254] sm:$0xff]
  %v2835 = vld [vmem:[#allocation2 + $0x25c] sm:$0xff]
  %v2836 = vld [vmem:[#allocation2 + $0x264] sm:$0xff]
  %v2837 = vld [vmem:[#allocation2 + $0x26c] sm:$0xff]
  %v2838 = vld [vmem:[#allocation2 + $0x274] sm:$0xff]
  %v2839 = vld [vmem:[#allocation2 + $0x27c] sm:$0xff]
  %v2840 = vld [vmem:[#allocation2 + $0x284] sm:$0xff]
  %v2841 = vld [vmem:[#allocation2 + $0x28c] sm:$0xff]
  %v2842 = vld [vmem:[#allocation2 + $0x294] sm:$0xff]
  %s2843 = scalar_lea.vmem %s1, 32
  %v2844 = vld [vmem:[%s2843] sm:$0xff]
  %v2845 = vld [vmem:[%s2843 + $0x8] sm:$0xf]
  %v2847 = vsel %vm1362, %v2764, 0
  %v2850 = vsel %vm1362, %v2765, 0
  %v2853 = vsel %vm1362, %v2766, 0
  %v2856 = vsel %vm1362, %v2767, 0
  %v2859 = vsel %vm1362, %v2768, 0
  %v2862 = vsel %vm1362, %v2769, 0
  %v2865 = vsel %vm1362, %v2770, 0
  %v2868 = vsel %vm1362, %v2771, 0
  %v2871 = vsel %vm1362, %v2772, 0
  %v2874 = vsel %vm1362, %v2773, 0
  %v2877 = vsel %vm1362, %v2774, 0
  %v2880 = vsel %vm1362, %v2775, 0
  %v2883 = vsel %vm1362, %v2776, 0
  %v2886 = vsel %vm1362, %v2777, 0
  %v2889 = vsel %vm1362, %v2778, 0
  %v2892 = vsel %vm1362, %v2779, 0
  %v2895 = vsel %vm1362, %v2780, 0
  %v2898 = vsel %vm1362, %v2781, 0
  %v2901 = vsel %vm1362, %v2782, 0
  %v2904 = vsel %vm1362, %v2783, 0
  %v2907 = vsel %vm1362, %v2784, 0
  %v2910 = vsel %vm1362, %v2785, 0
  %v2913 = vsel %vm1362, %v2786, 0
  %v2916 = vsel %vm1362, %v2787, 0
  %v2919 = vsel %vm1362, %v2788, 0
  %v2922 = vsel %vm1362, %v2789, 0
  %v2925 = vsel %vm1362, %v2790, 0
  %v2928 = vsel %vm1362, %v2791, 0
  %v2931 = vsel %vm1362, %v2792, 0
  %v2934 = vsel %vm1362, %v2793, 0
  %v2937 = vsel %vm1362, %v2794, 0
  %v2940 = vsel %vm1362, %v2795, 0
  %v2943 = vsel %vm1362, %v2796, 0
  %v2946 = vsel %vm1362, %v2797, 0
  %v2949 = vsel %vm1362, %v2798, 0
  %v2952 = vsel %vm1362, %v2799, 0
  %v2955 = vsel %vm1362, %v2800, 0
  %v2958 = vsel %vm1362, %v2801, 0
  %v2961 = vsel %vm1362, %v2802, 0
  %v2964 = vsel %vm1362, %v2803, 0
  %v2967 = vsel %vm1362, %v2804, 0
  %v2970 = vsel %vm1362, %v2805, 0
  %v2973 = vsel %vm1362, %v2806, 0
  %v2976 = vsel %vm1362, %v2807, 0
  %v2979 = vsel %vm1362, %v2808, 0
  %v2982 = vsel %vm1362, %v2809, 0
  %v2985 = vsel %vm1362, %v2810, 0
  %v2988 = vsel %vm1362, %v2811, 0
  %v2991 = vsel %vm1362, %v2812, 0
  %v2994 = vsel %vm1362, %v2813, 0
  %v2997 = vsel %vm1362, %v2814, 0
  %v3000 = vsel %vm1362, %v2815, 0
  %v3003 = vsel %vm1362, %v2816, 0
  %v3006 = vsel %vm1362, %v2817, 0
  %v3009 = vsel %vm1362, %v2818, 0
  %v3012 = vsel %vm1362, %v2819, 0
  %v3015 = vsel %vm1362, %v2820, 0
  %v3018 = vsel %vm1362, %v2821, 0
  %v3021 = vsel %vm1362, %v2822, 0
  %v3024 = vsel %vm1362, %v2823, 0
  %v3027 = vsel %vm1362, %v2824, 0
  %v3030 = vsel %vm1362, %v2825, 0
  %v3033 = vsel %vm1362, %v2826, 0
  %v3036 = vsel %vm1362, %v2827, 0
  %v3039 = vsel %vm1362, %v2828, 0
  %v3042 = vsel %vm1362, %v2829, 0
  %v3045 = vsel %vm1362, %v2830, 0
  %v3048 = vsel %vm1362, %v2831, 0
  %v3051 = vsel %vm1362, %v2832, 0
  %v3054 = vsel %vm1362, %v2833, 0
  %v3057 = vsel %vm1362, %v2834, 0
  %v3060 = vsel %vm1362, %v2835, 0
  %v3063 = vsel %vm1362, %v2836, 0
  %v3066 = vsel %vm1362, %v2837, 0
  %v3069 = vsel %vm1362, %v2838, 0
  %v3072 = vsel %vm1362, %v2839, 0
  %v3075 = vsel %vm1362, %v2840, 0
  %v3078 = vsel %vm1362, %v2841, 0
  %v3081 = vsel %vm1362, %v2842, 0
  %v3084 = vsel %vm1600, %v2845, 0
  %3086 = vmatprep.subr.mxu0 0.0
  %3087 = vmatpush1.msra.mxu0 %v2844
  %3088 = vmatprep.subr.mxu0 0.0
  %3089 = vmatpush1.msra.mxu0 %v3084
  %3090 = vmatprep.subr.mxu0 0.0
  %3091 = vmatpush1.msra.mxu0 0.0
  %3092 = vmatprep.subr.mxu0 0.0
  %3093 = vmatpush1.msra.mxu0 0.0
  %3094 = vmatprep.subr.mxu0 0.0
  %3095 = vmatpush1.msra.mxu0 0.0
  %3096 = vmatprep.subr.mxu0 0.0
  %3097 = vmatpush1.msra.mxu0 0.0
  %3098 = vmatprep.subr.mxu0 0.0
  %3099 = vmatpush1.msra.mxu0 0.0
  %3100 = vmatprep.subr.mxu0 0.0
  %3101 = vmatpush1.msra.mxu0 0.0
  %3102 = vmatprep.subr.mxu0 0.0
  %3103 = vmatpush1.msra.mxu0 0.0
  %3104 = vmatprep.subr.mxu0 0.0
  %3105 = vmatpush1.msra.mxu0 0.0
  %3106 = vmatprep.subr.mxu0 0.0
  %3107 = vmatpush1.msra.mxu0 0.0
  %3108 = vmatprep.subr.mxu0 0.0
  %3109 = vmatpush1.msra.mxu0 0.0
  %3110 = vmatprep.subr.mxu0 0.0
  %3111 = vmatpush1.msra.mxu0 0.0
  %3112 = vmatprep.subr.mxu0 0.0
  %3113 = vmatpush1.msra.mxu0 0.0
  %3114 = vmatprep.subr.mxu0 0.0
  %3115 = vmatpush1.msra.mxu0 0.0
  %3116 = vmatprep.subr.mxu0 0.0
  %3117 = vmatpush1.msra.mxu0 0.0
  %3118 = vmatprep.subr.mxu0 0.0
  %3119 = vmatpush1.msra.mxu0 0.0
  %3120 = vmatprep.subr.mxu0 0.0
  %3121 = vmatpush1.msra.mxu0 0.0
  %3122 = vmatprep.subr.mxu0 0.0
  %3123 = vmatpush1.msra.mxu0 0.0
  %3124 = vmatprep.subr.mxu0 0.0
  %3125 = vmatpush1.msra.mxu0 0.0
  %3126 = vmatprep.subr.mxu0 0.0
  %3127 = vmatpush1.msra.mxu0 0.0
  %3128 = vmatprep.subr.mxu0 0.0
  %3129 = vmatpush1.msra.mxu0 0.0
  %3130 = vmatprep.subr.mxu0 0.0
  %3131 = vmatpush1.msra.mxu0 0.0
  %3132 = vmatprep.subr.mxu0 0.0
  %3133 = vmatpush1.msra.mxu0 0.0
  %3134 = vmatprep.subr.mxu0 0.0
  %3135 = vmatpush1.msra.mxu0 0.0
  %3136 = vmatprep.subr.mxu0 0.0
  %3137 = vmatpush1.msra.mxu0 0.0
  %3138 = vmatprep.subr.mxu0 0.0
  %3139 = vmatpush1.msra.mxu0 0.0
  %3140 = vmatprep.subr.mxu0 0.0
  %3141 = vmatpush1.msra.mxu0 0.0
  %3142 = vmatprep.subr.mxu0 0.0
  %3143 = vmatpush1.msra.mxu0 0.0
  %3144 = vmatprep.subr.mxu0 0.0
  %3145 = vmatpush1.msra.mxu0 0.0
  %3146 = vmatprep.subr.mxu0 0.0
  %3147 = vmatpush1.msra.mxu0 0.0
  %3148 = vmatprep.subr.mxu0 0.0
  %3149 = vmatpush1.msra.mxu0 0.0
  %3150 = vmatprep.mubr.f32.mxu0 0.0
  %3151 = vmatmul.mubr.f32.gmra.mrb[0].mxu0 %v2847
  %v3152 = vpop.f32.mrb[0].mxu0
  %v3153 = vadd.f32 0.0, %v3152
  %v3154 = vpop.f32.mrb[0].mxu0
  %3155 = vmatprep.mubr.f32.mxu0 0.0
  %3156 = vmatmul.mubr.f32.gmra.mrb[0].mxu0 %v2850
  %v3157 = vpop.f32.mrb[0].mxu0
  %v3158 = vadd.f32 0.0, %v3157
  %v3159 = vpop.f32.mrb[0].mxu0
  %3160 = vmatprep.mubr.f32.mxu0 0.0
  %3161 = vmatmul.mubr.f32.gmra.mrb[0].mxu0 %v2853
  %v3162 = vpop.f32.mrb[0].mxu0
  %v3163 = vadd.f32 0.0, %v3162
  %v3164 = vpop.f32.mrb[0].mxu0
  %3165 = vmatprep.mubr.f32.mxu0 0.0
  %3166 = vmatmul.mubr.f32.gmra.mrb[0].mxu0 %v2856
  %v3167 = vpop.f32.mrb[0].mxu0
  %v3168 = vadd.f32 0.0, %v3167
  %v3169 = vpop.f32.mrb[0].mxu0
  %3170 = vmatprep.mubr.f32.mxu0 0.0
  %3171 = vmatmul.mubr.f32.gmra.mrb[0].mxu0 %v2859
  %v3172 = vpop.f32.mrb[0].mxu0
  %v3173 = vadd.f32 0.0, %v3172
  %v3174 = vpop.f32.mrb[0].mxu0
  %3175 = vmatprep.mubr.f32.mxu0 0.0
  %3176 = vmatmul.mubr.f32.gmra.mrb[0].mxu0 %v2862
  %v3177 = vpop.f32.mrb[0].mxu0
  %v3178 = vadd.f32 0.0, %v3177
  %v3179 = vpop.f32.mrb[0].mxu0
  %3180 = vmatprep.mubr.f32.mxu0 0.0
  %3181 = vmatmul.mubr.f32.gmra.mrb[0].mxu0 %v2865
  %v3182 = vpop.f32.mrb[0].mxu0
  %v3183 = vadd.f32 0.0, %v3182
  %v3184 = vpop.f32.mrb[0].mxu0
  %3185 = vmatprep.mubr.f32.mxu0 0.0
  %3186 = vmatmul.mubr.f32.gmra.mrb[0].mxu0 %v2868
  %v3187 = vpop.f32.mrb[0].mxu0
  %v3188 = vadd.f32 0.0, %v3187
  %v3189 = vpop.f32.mrb[0].mxu0
  %3190 = vmatprep.mubr.f32.mxu0 0.0
  %3191 = vmatmul.mubr.f32.gmra.mrb[0].mxu0 %v2871
  %v3192 = vpop.f32.mrb[0].mxu0
  %v3193 = vadd.f32 0.0, %v3192
  %v3194 = vpop.f32.mrb[0].mxu0
  %3195 = vmatprep.mubr.f32.mxu0 0.0
  %3196 = vmatmul.mubr.f32.gmra.mrb[0].mxu0 %v2874
  %v3197 = vpop.f32.mrb[0].mxu0
  %v3198 = vadd.f32 0.0, %v3197
  %v3199 = vpop.f32.mrb[0].mxu0
  %3200 = vmatprep.mubr.f32.mxu0 0.0
  %3201 = vmatmul.mubr.f32.gmra.mrb[0].mxu0 %v2877
  %v3202 = vpop.f32.mrb[0].mxu0
  %v3203 = vadd.f32 0.0, %v3202
  %v3204 = vpop.f32.mrb[0].mxu0
  %3205 = vmatprep.mubr.f32.mxu0 0.0
  %3206 = vmatmul.mubr.f32.gmra.mrb[0].mxu0 %v2880
  %v3207 = vpop.f32.mrb[0].mxu0
  %v3208 = vadd.f32 0.0, %v3207
  %v3209 = vpop.f32.mrb[0].mxu0
  %3210 = vmatprep.mubr.f32.mxu0 0.0
  %3211 = vmatmul.mubr.f32.gmra.mrb[0].mxu0 %v2883
  %v3212 = vpop.f32.mrb[0].mxu0
  %v3213 = vadd.f32 0.0, %v3212
  %v3214 = vpop.f32.mrb[0].mxu0
  %3215 = vmatprep.mubr.f32.mxu0 0.0
  %3216 = vmatmul.mubr.f32.gmra.mrb[0].mxu0 %v2886
  %v3217 = vpop.f32.mrb[0].mxu0
  %v3218 = vadd.f32 0.0, %v3217
  %v3219 = vpop.f32.mrb[0].mxu0
  %3220 = vmatprep.mubr.f32.mxu0 0.0
  %3221 = vmatmul.mubr.f32.gmra.mrb[0].mxu0 %v2889
  %v3222 = vpop.f32.mrb[0].mxu0
  %v3223 = vadd.f32 0.0, %v3222
  %v3224 = vpop.f32.mrb[0].mxu0
  %3225 = vmatprep.mubr.f32.mxu0 0.0
  %3226 = vmatmul.mubr.f32.gmra.mrb[0].mxu0 %v2892
  %v3227 = vpop.f32.mrb[0].mxu0
  %v3228 = vadd.f32 0.0, %v3227
  %v3229 = vpop.f32.mrb[0].mxu0
  %3230 = vmatprep.mubr.f32.mxu0 0.0
  %3231 = vmatmul.mubr.f32.gmra.mrb[0].mxu0 %v2895
  %v3232 = vpop.f32.mrb[0].mxu0
  %v3233 = vadd.f32 0.0, %v3232
  %v3234 = vpop.f32.mrb[0].mxu0
  %3235 = vmatprep.mubr.f32.mxu0 0.0
  %3236 = vmatmul.mubr.f32.gmra.mrb[0].mxu0 %v2898
  %v3237 = vpop.f32.mrb[0].mxu0
  %v3238 = vadd.f32 0.0, %v3237
  %v3239 = vpop.f32.mrb[0].mxu0
  %3240 = vmatprep.mubr.f32.mxu0 0.0
  %3241 = vmatmul.mubr.f32.gmra.mrb[0].mxu0 %v2901
  %v3242 = vpop.f32.mrb[0].mxu0
  %v3243 = vadd.f32 0.0, %v3242
  %v3244 = vpop.f32.mrb[0].mxu0
  %3245 = vmatprep.mubr.f32.mxu0 0.0
  %3246 = vmatmul.mubr.f32.gmra.mrb[0].mxu0 %v2904
  %v3247 = vpop.f32.mrb[0].mxu0
  %v3248 = vadd.f32 0.0, %v3247
  %v3249 = vpop.f32.mrb[0].mxu0
  %3250 = vmatprep.mubr.f32.mxu0 0.0
  %3251 = vmatmul.mubr.f32.gmra.mrb[0].mxu0 %v2907
  %v3252 = vpop.f32.mrb[0].mxu0
  %v3253 = vadd.f32 0.0, %v3252
  %v3254 = vpop.f32.mrb[0].mxu0
  %3255 = vmatprep.mubr.f32.mxu0 0.0
  %3256 = vmatmul.mubr.f32.gmra.mrb[0].mxu0 %v2910
  %v3257 = vpop.f32.mrb[0].mxu0
  %v3258 = vadd.f32 0.0, %v3257
  %v3259 = vpop.f32.mrb[0].mxu0
  %3260 = vmatprep.mubr.f32.mxu0 0.0
  %3261 = vmatmul.mubr.f32.gmra.mrb[0].mxu0 %v2913
  %v3262 = vpop.f32.mrb[0].mxu0
  %v3263 = vadd.f32 0.0, %v3262
  %v3264 = vpop.f32.mrb[0].mxu0
  %3265 = vmatprep.mubr.f32.mxu0 0.0
  %3266 = vmatmul.mubr.f32.gmra.mrb[0].mxu0 %v2916
  %v3267 = vpop.f32.mrb[0].mxu0
  %v3268 = vadd.f32 0.0, %v3267
  %v3269 = vpop.f32.mrb[0].mxu0
  %3270 = vmatprep.mubr.f32.mxu0 0.0
  %3271 = vmatmul.mubr.f32.gmra.mrb[0].mxu0 %v2919
  %v3272 = vpop.f32.mrb[0].mxu0
  %v3273 = vadd.f32 0.0, %v3272
  %v3274 = vpop.f32.mrb[0].mxu0
  %3275 = vmatprep.mubr.f32.mxu0 0.0
  %3276 = vmatmul.mubr.f32.gmra.mrb[0].mxu0 %v2922
  %v3277 = vpop.f32.mrb[0].mxu0
  %v3278 = vadd.f32 0.0, %v3277
  %v3279 = vpop.f32.mrb[0].mxu0
  %3280 = vmatprep.mubr.f32.mxu0 0.0
  %3281 = vmatmul.mubr.f32.gmra.mrb[0].mxu0 %v2925
  %v3282 = vpop.f32.mrb[0].mxu0
  %v3283 = vadd.f32 0.0, %v3282
  %v3284 = vpop.f32.mrb[0].mxu0
  %3285 = vmatprep.mubr.f32.mxu0 0.0
  %3286 = vmatmul.mubr.f32.gmra.mrb[0].mxu0 %v2928
  %v3287 = vpop.f32.mrb[0].mxu0
  %v3288 = vadd.f32 0.0, %v3287
  %v3289 = vpop.f32.mrb[0].mxu0
  %3290 = vmatprep.mubr.f32.mxu0 0.0
  %3291 = vmatmul.mubr.f32.gmra.mrb[0].mxu0 %v2931
  %v3292 = vpop.f32.mrb[0].mxu0
  %v3293 = vadd.f32 0.0, %v3292
  %v3294 = vpop.f32.mrb[0].mxu0
  %3295 = vmatprep.mubr.f32.mxu0 0.0
  %3296 = vmatmul.mubr.f32.gmra.mrb[0].mxu0 %v2934
  %v3297 = vpop.f32.mrb[0].mxu0
  %v3298 = vadd.f32 0.0, %v3297
  %v3299 = vpop.f32.mrb[0].mxu0
  %3300 = vmatprep.mubr.f32.mxu0 0.0
  %3301 = vmatmul.mubr.f32.gmra.mrb[0].mxu0 %v2937
  %v3302 = vpop.f32.mrb[0].mxu0
  %v3303 = vadd.f32 0.0, %v3302
  %v3304 = vpop.f32.mrb[0].mxu0
  %3305 = vmatprep.mubr.f32.mxu0 0.0
  %3306 = vmatmul.mubr.f32.gmra.mrb[0].mxu0 %v2940
  %v3307 = vpop.f32.mrb[0].mxu0
  %v3308 = vadd.f32 0.0, %v3307
  %v3309 = vpop.f32.mrb[0].mxu0
  %3310 = vmatprep.mubr.f32.mxu0 0.0
  %3311 = vmatmul.mubr.f32.gmra.mrb[0].mxu0 %v2943
  %v3312 = vpop.f32.mrb[0].mxu0
  %v3313 = vadd.f32 0.0, %v3312
  %v3314 = vpop.f32.mrb[0].mxu0
  %3315 = vmatprep.mubr.f32.mxu0 0.0
  %3316 = vmatmul.mubr.f32.gmra.mrb[0].mxu0 %v2946
  %v3317 = vpop.f32.mrb[0].mxu0
  %v3318 = vadd.f32 0.0, %v3317
  %v3319 = vpop.f32.mrb[0].mxu0
  %3320 = vmatprep.mubr.f32.mxu0 0.0
  %3321 = vmatmul.mubr.f32.gmra.mrb[0].mxu0 %v2949
  %v3322 = vpop.f32.mrb[0].mxu0
  %v3323 = vadd.f32 0.0, %v3322
  %v3324 = vpop.f32.mrb[0].mxu0
  %3325 = vmatprep.mubr.f32.mxu0 0.0
  %3326 = vmatmul.mubr.f32.gmra.mrb[0].mxu0 %v2952
  %v3327 = vpop.f32.mrb[0].mxu0
  %v3328 = vadd.f32 0.0, %v3327
  %v3329 = vpop.f32.mrb[0].mxu0
  %3330 = vmatprep.mubr.f32.mxu0 0.0
  %3331 = vmatmul.mubr.f32.gmra.mrb[0].mxu0 %v2955
  %v3332 = vpop.f32.mrb[0].mxu0
  %v3333 = vadd.f32 0.0, %v3332
  %v3334 = vpop.f32.mrb[0].mxu0
  %3335 = vmatprep.mubr.f32.mxu0 0.0
  %3336 = vmatmul.mubr.f32.gmra.mrb[0].mxu0 %v2958
  %v3337 = vpop.f32.mrb[0].mxu0
  %v3338 = vadd.f32 0.0, %v3337
  %v3339 = vpop.f32.mrb[0].mxu0
  %3340 = vmatprep.mubr.f32.mxu0 0.0
  %3341 = vmatmul.mubr.f32.gmra.mrb[0].mxu0 %v2961
  %v3342 = vpop.f32.mrb[0].mxu0
  %v3343 = vadd.f32 0.0, %v3342
  %v3344 = vpop.f32.mrb[0].mxu0
  %3345 = vmatprep.mubr.f32.mxu0 0.0
  %3346 = vmatmul.mubr.f32.gmra.mrb[0].mxu0 %v2964
  %v3347 = vpop.f32.mrb[0].mxu0
  %v3348 = vadd.f32 0.0, %v3347
  %v3349 = vpop.f32.mrb[0].mxu0
  %3350 = vmatprep.mubr.f32.mxu0 0.0
  %3351 = vmatmul.mubr.f32.gmra.mrb[0].mxu0 %v2967
  %v3352 = vpop.f32.mrb[0].mxu0
  %v3353 = vadd.f32 0.0, %v3352
  %v3354 = vpop.f32.mrb[0].mxu0
  %3355 = vmatprep.mubr.f32.mxu0 0.0
  %3356 = vmatmul.mubr.f32.gmra.mrb[0].mxu0 %v2970
  %v3357 = vpop.f32.mrb[0].mxu0
  %v3358 = vadd.f32 0.0, %v3357
  %v3359 = vpop.f32.mrb[0].mxu0
  %3360 = vmatprep.mubr.f32.mxu0 0.0
  %3361 = vmatmul.mubr.f32.gmra.mrb[0].mxu0 %v2973
  %v3362 = vpop.f32.mrb[0].mxu0
  %v3363 = vadd.f32 0.0, %v3362
  %v3364 = vpop.f32.mrb[0].mxu0
  %3365 = vmatprep.mubr.f32.mxu0 0.0
  %3366 = vmatmul.mubr.f32.gmra.mrb[0].mxu0 %v2976
  %v3367 = vpop.f32.mrb[0].mxu0
  %v3368 = vadd.f32 0.0, %v3367
  %v3369 = vpop.f32.mrb[0].mxu0
  %3370 = vmatprep.mubr.f32.mxu0 0.0
  %3371 = vmatmul.mubr.f32.gmra.mrb[0].mxu0 %v2979
  %v3372 = vpop.f32.mrb[0].mxu0
  %v3373 = vadd.f32 0.0, %v3372
  %v3374 = vpop.f32.mrb[0].mxu0
  %3375 = vmatprep.mubr.f32.mxu0 0.0
  %3376 = vmatmul.mubr.f32.gmra.mrb[0].mxu0 %v2982
  %v3377 = vpop.f32.mrb[0].mxu0
  %v3378 = vadd.f32 0.0, %v3377
  %v3379 = vpop.f32.mrb[0].mxu0
  %3380 = vmatprep.mubr.f32.mxu0 0.0
  %3381 = vmatmul.mubr.f32.gmra.mrb[0].mxu0 %v2985
  %v3382 = vpop.f32.mrb[0].mxu0
  %v3383 = vadd.f32 0.0, %v3382
  %v3384 = vpop.f32.mrb[0].mxu0
  %3385 = vmatprep.mubr.f32.mxu0 0.0
  %3386 = vmatmul.mubr.f32.gmra.mrb[0].mxu0 %v2988
  %v3387 = vpop.f32.mrb[0].mxu0
  %v3388 = vadd.f32 0.0, %v3387
  %v3389 = vpop.f32.mrb[0].mxu0
  %3390 = vmatprep.mubr.f32.mxu0 0.0
  %3391 = vmatmul.mubr.f32.gmra.mrb[0].mxu0 %v2991
  %v3392 = vpop.f32.mrb[0].mxu0
  %v3393 = vadd.f32 0.0, %v3392
  %v3394 = vpop.f32.mrb[0].mxu0
  %3395 = vmatprep.mubr.f32.mxu0 0.0
  %3396 = vmatmul.mubr.f32.gmra.mrb[0].mxu0 %v2994
  %v3397 = vpop.f32.mrb[0].mxu0
  %v3398 = vadd.f32 0.0, %v3397
  %v3399 = vpop.f32.mrb[0].mxu0
  %3400 = vmatprep.mubr.f32.mxu0 0.0
  %3401 = vmatmul.mubr.f32.gmra.mrb[0].mxu0 %v2997
  %v3402 = vpop.f32.mrb[0].mxu0
  %v3403 = vadd.f32 0.0, %v3402
  %v3404 = vpop.f32.mrb[0].mxu0
  %3405 = vmatprep.mubr.f32.mxu0 0.0
  %3406 = vmatmul.mubr.f32.gmra.mrb[0].mxu0 %v3000
  %v3407 = vpop.f32.mrb[0].mxu0
  %v3408 = vadd.f32 0.0, %v3407
  %v3409 = vpop.f32.mrb[0].mxu0
  %3410 = vmatprep.mubr.f32.mxu0 0.0
  %3411 = vmatmul.mubr.f32.gmra.mrb[0].mxu0 %v3003
  %v3412 = vpop.f32.mrb[0].mxu0
  %v3413 = vadd.f32 0.0, %v3412
  %v3414 = vpop.f32.mrb[0].mxu0
  %3415 = vmatprep.mubr.f32.mxu0 0.0
  %3416 = vmatmul.mubr.f32.gmra.mrb[0].mxu0 %v3006
  %v3417 = vpop.f32.mrb[0].mxu0
  %v3418 = vadd.f32 0.0, %v3417
  %v3419 = vpop.f32.mrb[0].mxu0
  %3420 = vmatprep.mubr.f32.mxu0 0.0
  %3421 = vmatmul.mubr.f32.gmra.mrb[0].mxu0 %v3009
  %v3422 = vpop.f32.mrb[0].mxu0
  %v3423 = vadd.f32 0.0, %v3422
  %v3424 = vpop.f32.mrb[0].mxu0
  %3425 = vmatprep.mubr.f32.mxu0 0.0
  %3426 = vmatmul.mubr.f32.gmra.mrb[0].mxu0 %v3012
  %v3427 = vpop.f32.mrb[0].mxu0
  %v3428 = vadd.f32 0.0, %v3427
  %v3429 = vpop.f32.mrb[0].mxu0
  %3430 = vmatprep.mubr.f32.mxu0 0.0
  %3431 = vmatmul.mubr.f32.gmra.mrb[0].mxu0 %v3015
  %v3432 = vpop.f32.mrb[0].mxu0
  %v3433 = vadd.f32 0.0, %v3432
  %v3434 = vpop.f32.mrb[0].mxu0
  %3435 = vmatprep.mubr.f32.mxu0 0.0
  %3436 = vmatmul.mubr.f32.gmra.mrb[0].mxu0 %v3018
  %v3437 = vpop.f32.mrb[0].mxu0
  %v3438 = vadd.f32 0.0, %v3437
  %v3439 = vpop.f32.mrb[0].mxu0
  %3440 = vmatprep.mubr.f32.mxu0 0.0
  %3441 = vmatmul.mubr.f32.gmra.mrb[0].mxu0 %v3021
  %v3442 = vpop.f32.mrb[0].mxu0
  %v3443 = vadd.f32 0.0, %v3442
  %v3444 = vpop.f32.mrb[0].mxu0
  %3445 = vmatprep.mubr.f32.mxu0 0.0
  %3446 = vmatmul.mubr.f32.gmra.mrb[0].mxu0 %v3024
  %v3447 = vpop.f32.mrb[0].mxu0
  %v3448 = vadd.f32 0.0, %v3447
  %v3449 = vpop.f32.mrb[0].mxu0
  %3450 = vmatprep.mubr.f32.mxu0 0.0
  %3451 = vmatmul.mubr.f32.gmra.mrb[0].mxu0 %v3027
  %v3452 = vpop.f32.mrb[0].mxu0
  %v3453 = vadd.f32 0.0, %v3452
  %v3454 = vpop.f32.mrb[0].mxu0
  %3455 = vmatprep.mubr.f32.mxu0 0.0
  %3456 = vmatmul.mubr.f32.gmra.mrb[0].mxu0 %v3030
  %v3457 = vpop.f32.mrb[0].mxu0
  %v3458 = vadd.f32 0.0, %v3457
  %v3459 = vpop.f32.mrb[0].mxu0
  %3460 = vmatprep.mubr.f32.mxu0 0.0
  %3461 = vmatmul.mubr.f32.gmra.mrb[0].mxu0 %v3033
  %v3462 = vpop.f32.mrb[0].mxu0
  %v3463 = vadd.f32 0.0, %v3462
  %v3464 = vpop.f32.mrb[0].mxu0
  %3465 = vmatprep.mubr.f32.mxu0 0.0
  %3466 = vmatmul.mubr.f32.gmra.mrb[0].mxu0 %v3036
  %v3467 = vpop.f32.mrb[0].mxu0
  %v3468 = vadd.f32 0.0, %v3467
  %v3469 = vpop.f32.mrb[0].mxu0
  %3470 = vmatprep.mubr.f32.mxu0 0.0
  %3471 = vmatmul.mubr.f32.gmra.mrb[0].mxu0 %v3039
  %v3472 = vpop.f32.mrb[0].mxu0
  %v3473 = vadd.f32 0.0, %v3472
  %v3474 = vpop.f32.mrb[0].mxu0
  %3475 = vmatprep.mubr.f32.mxu0 0.0
  %3476 = vmatmul.mubr.f32.gmra.mrb[0].mxu0 %v3042
  %v3477 = vpop.f32.mrb[0].mxu0
  %v3478 = vadd.f32 0.0, %v3477
  %v3479 = vpop.f32.mrb[0].mxu0
  %3480 = vmatprep.mubr.f32.mxu0 0.0
  %3481 = vmatmul.mubr.f32.gmra.mrb[0].mxu0 %v3045
  %v3482 = vpop.f32.mrb[0].mxu0
  %v3483 = vadd.f32 0.0, %v3482
  %v3484 = vpop.f32.mrb[0].mxu0
  %3485 = vmatprep.mubr.f32.mxu0 0.0
  %3486 = vmatmul.mubr.f32.gmra.mrb[0].mxu0 %v3048
  %v3487 = vpop.f32.mrb[0].mxu0
  %v3488 = vadd.f32 0.0, %v3487
  %v3489 = vpop.f32.mrb[0].mxu0
  %3490 = vmatprep.mubr.f32.mxu0 0.0
  %3491 = vmatmul.mubr.f32.gmra.mrb[0].mxu0 %v3051
  %v3492 = vpop.f32.mrb[0].mxu0
  %v3493 = vadd.f32 0.0, %v3492
  %v3494 = vpop.f32.mrb[0].mxu0
  %3495 = vmatprep.mubr.f32.mxu0 0.0
  %3496 = vmatmul.mubr.f32.gmra.mrb[0].mxu0 %v3054
  %v3497 = vpop.f32.mrb[0].mxu0
  %v3498 = vadd.f32 0.0, %v3497
  %v3499 = vpop.f32.mrb[0].mxu0
  %3500 = vmatprep.mubr.f32.mxu0 0.0
  %3501 = vmatmul.mubr.f32.gmra.mrb[0].mxu0 %v3057
  %v3502 = vpop.f32.mrb[0].mxu0
  %v3503 = vadd.f32 0.0, %v3502
  %v3504 = vpop.f32.mrb[0].mxu0
  %3505 = vmatprep.mubr.f32.mxu0 0.0
  %3506 = vmatmul.mubr.f32.gmra.mrb[0].mxu0 %v3060
  %v3507 = vpop.f32.mrb[0].mxu0
  %v3508 = vadd.f32 0.0, %v3507
  %v3509 = vpop.f32.mrb[0].mxu0
  %3510 = vmatprep.mubr.f32.mxu0 0.0
  %3511 = vmatmul.mubr.f32.gmra.mrb[0].mxu0 %v3063
  %v3512 = vpop.f32.mrb[0].mxu0
  %v3513 = vadd.f32 0.0, %v3512
  %v3514 = vpop.f32.mrb[0].mxu0
  %3515 = vmatprep.mubr.f32.mxu0 0.0
  %3516 = vmatmul.mubr.f32.gmra.mrb[0].mxu0 %v3066
  %v3517 = vpop.f32.mrb[0].mxu0
  %v3518 = vadd.f32 0.0, %v3517
  %v3519 = vpop.f32.mrb[0].mxu0
  %3520 = vmatprep.mubr.f32.mxu0 0.0
  %3521 = vmatmul.mubr.f32.gmra.mrb[0].mxu0 %v3069
  %v3522 = vpop.f32.mrb[0].mxu0
  %v3523 = vadd.f32 0.0, %v3522
  %v3524 = vpop.f32.mrb[0].mxu0
  %3525 = vmatprep.mubr.f32.mxu0 0.0
  %3526 = vmatmul.mubr.f32.gmra.mrb[0].mxu0 %v3072
  %v3527 = vpop.f32.mrb[0].mxu0
  %v3528 = vadd.f32 0.0, %v3527
  %v3529 = vpop.f32.mrb[0].mxu0
  %3530 = vmatprep.mubr.f32.mxu0 0.0
  %3531 = vmatmul.mubr.f32.gmra.mrb[0].mxu0 %v3075
  %v3532 = vpop.f32.mrb[0].mxu0
  %v3533 = vadd.f32 0.0, %v3532
  %v3534 = vpop.f32.mrb[0].mxu0
  %3535 = vmatprep.mubr.f32.mxu0 0.0
  %3536 = vmatmul.mubr.f32.gmra.mrb[0].mxu0 %v3078
  %v3537 = vpop.f32.mrb[0].mxu0
  %v3538 = vadd.f32 0.0, %v3537
  %v3539 = vpop.f32.mrb[0].mxu0
  %3540 = vmatprep.mubr.f32.mxu0 0.0
  %3541 = vmatmul.mubr.f32.gmra.mrb[0].mxu0 %v3081
  %v3542 = vpop.f32.mrb[0].mxu0
  %v3543 = vadd.f32 0.0, %v3542
  %v3544 = vpop.f32.mrb[0].mxu0
  %3545 = vdwg.mxu0
  %v3546 = vadd.f32 %v2371, %v3153
  %v3547 = vadd.f32 %v2376, %v3158
  %v3548 = vadd.f32 %v2381, %v3163
  %v3549 = vadd.f32 %v2386, %v3168
  %v3550 = vadd.f32 %v2391, %v3173
  %v3551 = vadd.f32 %v2396, %v3178
  %v3552 = vadd.f32 %v2401, %v3183
  %v3553 = vadd.f32 %v2406, %v3188
  %v3554 = vadd.f32 %v2411, %v3193
  %v3555 = vadd.f32 %v2416, %v3198
  %v3556 = vadd.f32 %v2421, %v3203
  %v3557 = vadd.f32 %v2426, %v3208
  %v3558 = vadd.f32 %v2431, %v3213
  %v3559 = vadd.f32 %v2436, %v3218
  %v3560 = vadd.f32 %v2441, %v3223
  %v3561 = vadd.f32 %v2446, %v3228
  %v3562 = vadd.f32 %v2451, %v3233
  %v3563 = vadd.f32 %v2456, %v3238
  %v3564 = vadd.f32 %v2461, %v3243
  %v3565 = vadd.f32 %v2466, %v3248
  %v3566 = vadd.f32 %v2471, %v3253
  %v3567 = vadd.f32 %v2476, %v3258
  %v3568 = vadd.f32 %v2481, %v3263
  %v3569 = vadd.f32 %v2486, %v3268
  %v3570 = vadd.f32 %v2491, %v3273
  %v3571 = vadd.f32 %v2496, %v3278
  %v3572 = vadd.f32 %v2501, %v3283
  %v3573 = vadd.f32 %v2506, %v3288
  %v3574 = vadd.f32 %v2511, %v3293
  %v3575 = vadd.f32 %v2516, %v3298
  %v3576 = vadd.f32 %v2521, %v3303
  %v3577 = vadd.f32 %v2526, %v3308
  %v3578 = vadd.f32 %v2531, %v3313
  %v3579 = vadd.f32 %v2536, %v3318
  %v3580 = vadd.f32 %v2541, %v3323
  %v3581 = vadd.f32 %v2546, %v3328
  %v3582 = vadd.f32 %v2551, %v3333
  %v3583 = vadd.f32 %v2556, %v3338
  %v3584 = vadd.f32 %v2561, %v3343
  %v3585 = vadd.f32 %v2566, %v3348
  %v3586 = vadd.f32 %v2571, %v3353
  %v3587 = vadd.f32 %v2576, %v3358
  %v3588 = vadd.f32 %v2581, %v3363
  %v3589 = vadd.f32 %v2586, %v3368
  %v3590 = vadd.f32 %v2591, %v3373
  %v3591 = vadd.f32 %v2596, %v3378
  %v3592 = vadd.f32 %v2601, %v3383
  %v3593 = vadd.f32 %v2606, %v3388
  %v3594 = vadd.f32 %v2611, %v3393
  %v3595 = vadd.f32 %v2616, %v3398
  %v3596 = vadd.f32 %v2621, %v3403
  %v3597 = vadd.f32 %v2626, %v3408
  %v3598 = vadd.f32 %v2631, %v3413
  %v3599 = vadd.f32 %v2636, %v3418
  %v3600 = vadd.f32 %v2641, %v3423
  %v3601 = vadd.f32 %v2646, %v3428
  %v3602 = vadd.f32 %v2651, %v3433
  %v3603 = vadd.f32 %v2656, %v3438
  %v3604 = vadd.f32 %v2661, %v3443
  %v3605 = vadd.f32 %v2666, %v3448
  %v3606 = vadd.f32 %v2671, %v3453
  %v3607 = vadd.f32 %v2676, %v3458
  %v3608 = vadd.f32 %v2681, %v3463
  %v3609 = vadd.f32 %v2686, %v3468
  %v3610 = vadd.f32 %v2691, %v3473
  %v3611 = vadd.f32 %v2696, %v3478
  %v3612 = vadd.f32 %v2701, %v3483
  %v3613 = vadd.f32 %v2706, %v3488
  %v3614 = vadd.f32 %v2711, %v3493
  %v3615 = vadd.f32 %v2716, %v3498
  %v3616 = vadd.f32 %v2721, %v3503
  %v3617 = vadd.f32 %v2726, %v3508
  %v3618 = vadd.f32 %v2731, %v3513
  %v3619 = vadd.f32 %v2736, %v3518
  %v3620 = vadd.f32 %v2741, %v3523
  %v3621 = vadd.f32 %v2746, %v3528
  %v3622 = vadd.f32 %v2751, %v3533
  %v3623 = vadd.f32 %v2756, %v3538
  %v3624 = vadd.f32 %v2761, %v3543
  %v3625 = vld [vmem:[%s2] sm:$0x1]
  %v3627 = vlaneseq
  %v3628 = vshrl.u32 %v3627, 7
  %v3629 = vsub.s32 0, %v3628
  %v3630 = vrot.slane %v3625, %v3629
  %v3632 = vmul.f32 %v3546, %v3630
  %v3633 = vmul.f32 %v3547, %v3630
  %v3634 = vmul.f32 %v3548, %v3630
  %v3635 = vmul.f32 %v3549, %v3630
  %v3636 = vmul.f32 %v3550, %v3630
  %v3637 = vmul.f32 %v3551, %v3630
  %v3638 = vmul.f32 %v3552, %v3630
  %v3639 = vmul.f32 %v3553, %v3630
  %v3640 = vmul.f32 %v3554, %v3630
  %v3641 = vmul.f32 %v3555, %v3630
  %v3642 = vmul.f32 %v3556, %v3630
  %v3643 = vmul.f32 %v3557, %v3630
  %v3644 = vmul.f32 %v3558, %v3630
  %v3645 = vmul.f32 %v3559, %v3630
  %v3646 = vmul.f32 %v3560, %v3630
  %v3647 = vmul.f32 %v3561, %v3630
  %v3648 = vmul.f32 %v3562, %v3630
  %v3649 = vmul.f32 %v3563, %v3630
  %v3650 = vmul.f32 %v3564, %v3630
  %v3651 = vmul.f32 %v3565, %v3630
  %v3652 = vmul.f32 %v3566, %v3630
  %v3653 = vmul.f32 %v3567, %v3630
  %v3654 = vmul.f32 %v3568, %v3630
  %v3655 = vmul.f32 %v3569, %v3630
  %v3656 = vmul.f32 %v3570, %v3630
  %v3657 = vmul.f32 %v3571, %v3630
  %v3658 = vmul.f32 %v3572, %v3630
  %v3659 = vmul.f32 %v3573, %v3630
  %v3660 = vmul.f32 %v3574, %v3630
  %v3661 = vmul.f32 %v3575, %v3630
  %v3662 = vmul.f32 %v3576, %v3630
  %v3663 = vmul.f32 %v3577, %v3630
  %v3664 = vmul.f32 %v3578, %v3630
  %v3665 = vmul.f32 %v3579, %v3630
  %v3666 = vmul.f32 %v3580, %v3630
  %v3667 = vmul.f32 %v3581, %v3630
  %v3668 = vmul.f32 %v3582, %v3630
  %v3669 = vmul.f32 %v3583, %v3630
  %v3670 = vmul.f32 %v3584, %v3630
  %v3671 = vmul.f32 %v3585, %v3630
  %v3672 = vmul.f32 %v3586, %v3630
  %v3673 = vmul.f32 %v3587, %v3630
  %v3674 = vmul.f32 %v3588, %v3630
  %v3675 = vmul.f32 %v3589, %v3630
  %v3676 = vmul.f32 %v3590, %v3630
  %v3677 = vmul.f32 %v3591, %v3630
  %v3678 = vmul.f32 %v3592, %v3630
  %v3679 = vmul.f32 %v3593, %v3630
  %v3680 = vmul.f32 %v3594, %v3630
  %v3681 = vmul.f32 %v3595, %v3630
  %v3682 = vmul.f32 %v3596, %v3630
  %v3683 = vmul.f32 %v3597, %v3630
  %v3684 = vmul.f32 %v3598, %v3630
  %v3685 = vmul.f32 %v3599, %v3630
  %v3686 = vmul.f32 %v3600, %v3630
  %v3687 = vmul.f32 %v3601, %v3630
  %v3688 = vmul.f32 %v3602, %v3630
  %v3689 = vmul.f32 %v3603, %v3630
  %v3690 = vmul.f32 %v3604, %v3630
  %v3691 = vmul.f32 %v3605, %v3630
  %v3692 = vmul.f32 %v3606, %v3630
  %v3693 = vmul.f32 %v3607, %v3630
  %v3694 = vmul.f32 %v3608, %v3630
  %v3695 = vmul.f32 %v3609, %v3630
  %v3696 = vmul.f32 %v3610, %v3630
  %v3697 = vmul.f32 %v3611, %v3630
  %v3698 = vmul.f32 %v3612, %v3630
  %v3699 = vmul.f32 %v3613, %v3630
  %v3700 = vmul.f32 %v3614, %v3630
  %v3701 = vmul.f32 %v3615, %v3630
  %v3702 = vmul.f32 %v3616, %v3630
  %v3703 = vmul.f32 %v3617, %v3630
  %v3704 = vmul.f32 %v3618, %v3630
  %v3705 = vmul.f32 %v3619, %v3630
  %v3706 = vmul.f32 %v3620, %v3630
  %v3707 = vmul.f32 %v3621, %v3630
  %v3708 = vmul.f32 %v3622, %v3630
  %v3709 = vmul.f32 %v3623, %v3630
  %v3710 = vmul.f32 %v3624, %v3630
  %v3711 = vld [vmem:[%s3] sm:$0x1]
  %v3713 = vlaneseq
  %v3714 = vshrl.u32 %v3713, 7
  %v3715 = vsub.s32 0, %v3714
  %v3716 = vrot.slane %v3711, %v3715
  %v3718 = vadd.f32 %v3632, %v3716
  %v3719 = vadd.f32 %v3633, %v3716
  %v3720 = vadd.f32 %v3634, %v3716
  %v3721 = vadd.f32 %v3635, %v3716
  %v3722 = vadd.f32 %v3636, %v3716
  %v3723 = vadd.f32 %v3637, %v3716
  %v3724 = vadd.f32 %v3638, %v3716
  %v3725 = vadd.f32 %v3639, %v3716
  %v3726 = vadd.f32 %v3640, %v3716
  %v3727 = vadd.f32 %v3641, %v3716
  %v3728 = vadd.f32 %v3642, %v3716
  %v3729 = vadd.f32 %v3643, %v3716
  %v3730 = vadd.f32 %v3644, %v3716
  %v3731 = vadd.f32 %v3645, %v3716
  %v3732 = vadd.f32 %v3646, %v3716
  %v3733 = vadd.f32 %v3647, %v3716
  %v3734 = vadd.f32 %v3648, %v3716
  %v3735 = vadd.f32 %v3649, %v3716
  %v3736 = vadd.f32 %v3650, %v3716
  %v3737 = vadd.f32 %v3651, %v3716
  %v3738 = vadd.f32 %v3652, %v3716
  %v3739 = vadd.f32 %v3653, %v3716
  %v3740 = vadd.f32 %v3654, %v3716
  %v3741 = vadd.f32 %v3655, %v3716
  %v3742 = vadd.f32 %v3656, %v3716
  %v3743 = vadd.f32 %v3657, %v3716
  %v3744 = vadd.f32 %v3658, %v3716
  %v3745 = vadd.f32 %v3659, %v3716
  %v3746 = vadd.f32 %v3660, %v3716
  %v3747 = vadd.f32 %v3661, %v3716
  %v3748 = vadd.f32 %v3662, %v3716
  %v3749 = vadd.f32 %v3663, %v3716
  %v3750 = vadd.f32 %v3664, %v3716
  %v3751 = vadd.f32 %v3665, %v3716
  %v3752 = vadd.f32 %v3666, %v3716
  %v3753 = vadd.f32 %v3667, %v3716
  %v3754 = vadd.f32 %v3668, %v3716
  %v3755 = vadd.f32 %v3669, %v3716
  %v3756 = vadd.f32 %v3670, %v3716
  %v3757 = vadd.f32 %v3671, %v3716
  %v3758 = vadd.f32 %v3672, %v3716
  %v3759 = vadd.f32 %v3673, %v3716
  %v3760 = vadd.f32 %v3674, %v3716
  %v3761 = vadd.f32 %v3675, %v3716
  %v3762 = vadd.f32 %v3676, %v3716
  %v3763 = vadd.f32 %v3677, %v3716
  %v3764 = vadd.f32 %v3678, %v3716
  %v3765 = vadd.f32 %v3679, %v3716
  %v3766 = vadd.f32 %v3680, %v3716
  %v3767 = vadd.f32 %v3681, %v3716
  %v3768 = vadd.f32 %v3682, %v3716
  %v3769 = vadd.f32 %v3683, %v3716
  %v3770 = vadd.f32 %v3684, %v3716
  %v3771 = vadd.f32 %v3685, %v3716
  %v3772 = vadd.f32 %v3686, %v3716
  %v3773 = vadd.f32 %v3687, %v3716
  %v3774 = vadd.f32 %v3688, %v3716
  %v3775 = vadd.f32 %v3689, %v3716
  %v3776 = vadd.f32 %v3690, %v3716
  %v3777 = vadd.f32 %v3691, %v3716
  %v3778 = vadd.f32 %v3692, %v3716
  %v3779 = vadd.f32 %v3693, %v3716
  %v3780 = vadd.f32 %v3694, %v3716
  %v3781 = vadd.f32 %v3695, %v3716
  %v3782 = vadd.f32 %v3696, %v3716
  %v3783 = vadd.f32 %v3697, %v3716
  %v3784 = vadd.f32 %v3698, %v3716
  %v3785 = vadd.f32 %v3699, %v3716
  %v3786 = vadd.f32 %v3700, %v3716
  %v3787 = vadd.f32 %v3701, %v3716
  %v3788 = vadd.f32 %v3702, %v3716
  %v3789 = vadd.f32 %v3703, %v3716
  %v3790 = vadd.f32 %v3704, %v3716
  %v3791 = vadd.f32 %v3705, %v3716
  %v3792 = vadd.f32 %v3706, %v3716
  %v3793 = vadd.f32 %v3707, %v3716
  %v3794 = vadd.f32 %v3708, %v3716
  %v3795 = vadd.f32 %v3709, %v3716
  %v3796 = vadd.f32 %v3710, %v3716
  %v3797 = vmax.f32 %v3718, 0.0
  %v3798 = vmax.f32 %v3719, 0.0
  %v3799 = vmax.f32 %v3720, 0.0
  %v3800 = vmax.f32 %v3721, 0.0
  %v3801 = vmax.f32 %v3722, 0.0
  %v3802 = vmax.f32 %v3723, 0.0
  %v3803 = vmax.f32 %v3724, 0.0
  %v3804 = vmax.f32 %v3725, 0.0
  %v3805 = vmax.f32 %v3726, 0.0
  %v3806 = vmax.f32 %v3727, 0.0
  %v3807 = vmax.f32 %v3728, 0.0
  %v3808 = vmax.f32 %v3729, 0.0
  %v3809 = vmax.f32 %v3730, 0.0
  %v3810 = vmax.f32 %v3731, 0.0
  %v3811 = vmax.f32 %v3732, 0.0
  %v3812 = vmax.f32 %v3733, 0.0
  %v3813 = vmax.f32 %v3734, 0.0
  %v3814 = vmax.f32 %v3735, 0.0
  %v3815 = vmax.f32 %v3736, 0.0
  %v3816 = vmax.f32 %v3737, 0.0
  %v3817 = vmax.f32 %v3738, 0.0
  %v3818 = vmax.f32 %v3739, 0.0
  %v3819 = vmax.f32 %v3740, 0.0
  %v3820 = vmax.f32 %v3741, 0.0
  %v3821 = vmax.f32 %v3742, 0.0
  %v3822 = vmax.f32 %v3743, 0.0
  %v3823 = vmax.f32 %v3744, 0.0
  %v3824 = vmax.f32 %v3745, 0.0
  %v3825 = vmax.f32 %v3746, 0.0
  %v3826 = vmax.f32 %v3747, 0.0
  %v3827 = vmax.f32 %v3748, 0.0
  %v3828 = vmax.f32 %v3749, 0.0
  %v3829 = vmax.f32 %v3750, 0.0
  %v3830 = vmax.f32 %v3751, 0.0
  %v3831 = vmax.f32 %v3752, 0.0
  %v3832 = vmax.f32 %v3753, 0.0
  %v3833 = vmax.f32 %v3754, 0.0
  %v3834 = vmax.f32 %v3755, 0.0
  %v3835 = vmax.f32 %v3756, 0.0
  %v3836 = vmax.f32 %v3757, 0.0
  %v3837 = vmax.f32 %v3758, 0.0
  %v3838 = vmax.f32 %v3759, 0.0
  %v3839 = vmax.f32 %v3760, 0.0
  %v3840 = vmax.f32 %v3761, 0.0
  %v3841 = vmax.f32 %v3762, 0.0
  %v3842 = vmax.f32 %v3763, 0.0
  %v3843 = vmax.f32 %v3764, 0.0
  %v3844 = vmax.f32 %v3765, 0.0
  %v3845 = vmax.f32 %v3766, 0.0
  %v3846 = vmax.f32 %v3767, 0.0
  %v3847 = vmax.f32 %v3768, 0.0
  %v3848 = vmax.f32 %v3769, 0.0
  %v3849 = vmax.f32 %v3770, 0.0
  %v3850 = vmax.f32 %v3771, 0.0
  %v3851 = vmax.f32 %v3772, 0.0
  %v3852 = vmax.f32 %v3773, 0.0
  %v3853 = vmax.f32 %v3774, 0.0
  %v3854 = vmax.f32 %v3775, 0.0
  %v3855 = vmax.f32 %v3776, 0.0
  %v3856 = vmax.f32 %v3777, 0.0
  %v3857 = vmax.f32 %v3778, 0.0
  %v3858 = vmax.f32 %v3779, 0.0
  %v3859 = vmax.f32 %v3780, 0.0
  %v3860 = vmax.f32 %v3781, 0.0
  %v3861 = vmax.f32 %v3782, 0.0
  %v3862 = vmax.f32 %v3783, 0.0
  %v3863 = vmax.f32 %v3784, 0.0
  %v3864 = vmax.f32 %v3785, 0.0
  %v3865 = vmax.f32 %v3786, 0.0
  %v3866 = vmax.f32 %v3787, 0.0
  %v3867 = vmax.f32 %v3788, 0.0
  %v3868 = vmax.f32 %v3789, 0.0
  %v3869 = vmax.f32 %v3790, 0.0
  %v3870 = vmax.f32 %v3791, 0.0
  %v3871 = vmax.f32 %v3792, 0.0
  %v3872 = vmax.f32 %v3793, 0.0
  %v3873 = vmax.f32 %v3794, 0.0
  %v3874 = vmax.f32 %v3795, 0.0
  %v3875 = vmax.f32 %v3796, 0.0
  %vm3876 = vcmask 130048
  %3877 = vst.msk [vmem:[#allocation3] sm:$0xff] %vm3876, %v3797
  %3878 = vst.msk [vmem:[#allocation3 + $0x8] sm:$0xff] %vm3876, %v3798
  %3879 = vst.msk [vmem:[#allocation3 + $0x10] sm:$0xff] %vm3876, %v3799
  %3880 = vst.msk [vmem:[#allocation3 + $0x18] sm:$0xff] %vm3876, %v3800
  %3881 = vst.msk [vmem:[#allocation3 + $0x20] sm:$0xff] %vm3876, %v3801
  %3882 = vst.msk [vmem:[#allocation3 + $0x28] sm:$0xff] %vm3876, %v3802
  %3883 = vst.msk [vmem:[#allocation3 + $0x30] sm:$0xff] %vm3876, %v3803
  %3884 = vst.msk [vmem:[#allocation3 + $0x38] sm:$0xff] %vm3876, %v3804
  %3885 = vst.msk [vmem:[#allocation3 + $0x40] sm:$0xff] %vm3876, %v3805
  %3886 = vst.msk [vmem:[#allocation3 + $0x48] sm:$0xff] %vm3876, %v3806
  %3887 = vst.msk [vmem:[#allocation3 + $0x50] sm:$0xff] %vm3876, %v3807
  %3888 = vst.msk [vmem:[#allocation3 + $0x58] sm:$0xff] %vm3876, %v3808
  %3889 = vst.msk [vmem:[#allocation3 + $0x60] sm:$0xff] %vm3876, %v3809
  %3890 = vst.msk [vmem:[#allocation3 + $0x68] sm:$0xff] %vm3876, %v3810
  %3891 = vst.msk [vmem:[#allocation3 + $0x70] sm:$0xff] %vm3876, %v3811
  %3892 = vst.msk [vmem:[#allocation3 + $0x78] sm:$0xff] %vm3876, %v3812
  %3893 = vst.msk [vmem:[#allocation3 + $0x80] sm:$0xff] %vm3876, %v3813
  %3894 = vst.msk [vmem:[#allocation3 + $0x88] sm:$0xff] %vm3876, %v3814
  %3895 = vst.msk [vmem:[#allocation3 + $0x90] sm:$0xff] %vm3876, %v3815
  %3896 = vst.msk [vmem:[#allocation3 + $0x98] sm:$0xff] %vm3876, %v3816
  %3897 = vst.msk [vmem:[#allocation3 + $0xa0] sm:$0xff] %vm3876, %v3817
  %3898 = vst.msk [vmem:[#allocation3 + $0xa8] sm:$0xff] %vm3876, %v3818
  %3899 = vst.msk [vmem:[#allocation3 + $0xb0] sm:$0xff] %vm3876, %v3819
  %3900 = vst.msk [vmem:[#allocation3 + $0xb8] sm:$0xff] %vm3876, %v3820
  %3901 = vst.msk [vmem:[#allocation3 + $0xc0] sm:$0xff] %vm3876, %v3821
  %3902 = vst.msk [vmem:[#allocation3 + $0xc8] sm:$0xff] %vm3876, %v3822
  %3903 = vst.msk [vmem:[#allocation3 + $0xd0] sm:$0xff] %vm3876, %v3823
  %3904 = vst.msk [vmem:[#allocation3 + $0xd8] sm:$0xff] %vm3876, %v3824
  %3905 = vst.msk [vmem:[#allocation3 + $0xe0] sm:$0xff] %vm3876, %v3825
  %3906 = vst.msk [vmem:[#allocation3 + $0xe8] sm:$0xff] %vm3876, %v3826
  %3907 = vst.msk [vmem:[#allocation3 + $0xf0] sm:$0xff] %vm3876, %v3827
  %3908 = vst.msk [vmem:[#allocation3 + $0xf8] sm:$0xff] %vm3876, %v3828
  %3909 = vst.msk [vmem:[#allocation3 + $0x100] sm:$0xff] %vm3876, %v3829
  %3910 = vst.msk [vmem:[#allocation3 + $0x108] sm:$0xff] %vm3876, %v3830
  %3911 = vst.msk [vmem:[#allocation3 + $0x110] sm:$0xff] %vm3876, %v3831
  %3912 = vst.msk [vmem:[#allocation3 + $0x118] sm:$0xff] %vm3876, %v3832
  %3913 = vst.msk [vmem:[#allocation3 + $0x120] sm:$0xff] %vm3876, %v3833
  %3914 = vst.msk [vmem:[#allocation3 + $0x128] sm:$0xff] %vm3876, %v3834
  %3915 = vst.msk [vmem:[#allocation3 + $0x130] sm:$0xff] %vm3876, %v3835
  %3916 = vst.msk [vmem:[#allocation3 + $0x138] sm:$0xff] %vm3876, %v3836
  %3917 = vst.msk [vmem:[#allocation3 + $0x140] sm:$0xff] %vm3876, %v3837
  %3918 = vst.msk [vmem:[#allocation3 + $0x148] sm:$0xff] %vm3876, %v3838
  %3919 = vst.msk [vmem:[#allocation3 + $0x150] sm:$0xff] %vm3876, %v3839
  %3920 = vst.msk [vmem:[#allocation3 + $0x158] sm:$0xff] %vm3876, %v3840
  %3921 = vst.msk [vmem:[#allocation3 + $0x160] sm:$0xff] %vm3876, %v3841
  %3922 = vst.msk [vmem:[#allocation3 + $0x168] sm:$0xff] %vm3876, %v3842
  %3923 = vst.msk [vmem:[#allocation3 + $0x170] sm:$0xff] %vm3876, %v3843
  %3924 = vst.msk [vmem:[#allocation3 + $0x178] sm:$0xff] %vm3876, %v3844
  %3925 = vst.msk [vmem:[#allocation3 + $0x180] sm:$0xff] %vm3876, %v3845
  %3926 = vst.msk [vmem:[#allocation3 + $0x188] sm:$0xff] %vm3876, %v3846
  %3927 = vst.msk [vmem:[#allocation3 + $0x190] sm:$0xff] %vm3876, %v3847
  %3928 = vst.msk [vmem:[#allocation3 + $0x198] sm:$0xff] %vm3876, %v3848
  %3929 = vst.msk [vmem:[#allocation3 + $0x1a0] sm:$0xff] %vm3876, %v3849
  %3930 = vst.msk [vmem:[#allocation3 + $0x1a8] sm:$0xff] %vm3876, %v3850
  %3931 = vst.msk [vmem:[#allocation3 + $0x1b0] sm:$0xff] %vm3876, %v3851
  %3932 = vst.msk [vmem:[#allocation3 + $0x1b8] sm:$0xff] %vm3876, %v3852
  %3933 = vst.msk [vmem:[#allocation3 + $0x1c0] sm:$0xff] %vm3876, %v3853
  %3934 = vst.msk [vmem:[#allocation3 + $0x1c8] sm:$0xff] %vm3876, %v3854
  %3935 = vst.msk [vmem:[#allocation3 + $0x1d0] sm:$0xff] %vm3876, %v3855
  %3936 = vst.msk [vmem:[#allocation3 + $0x1d8] sm:$0xff] %vm3876, %v3856
  %3937 = vst.msk [vmem:[#allocation3 + $0x1e0] sm:$0xff] %vm3876, %v3857
  %3938 = vst.msk [vmem:[#allocation3 + $0x1e8] sm:$0xff] %vm3876, %v3858
  %3939 = vst.msk [vmem:[#allocation3 + $0x1f0] sm:$0xff] %vm3876, %v3859
  %3940 = vst.msk [vmem:[#allocation3 + $0x1f8] sm:$0xff] %vm3876, %v3860
  %3941 = vst.msk [vmem:[#allocation3 + $0x200] sm:$0xff] %vm3876, %v3861
  %3942 = vst.msk [vmem:[#allocation3 + $0x208] sm:$0xff] %vm3876, %v3862
  %3943 = vst.msk [vmem:[#allocation3 + $0x210] sm:$0xff] %vm3876, %v3863
  %3944 = vst.msk [vmem:[#allocation3 + $0x218] sm:$0xff] %vm3876, %v3864
  %3945 = vst.msk [vmem:[#allocation3 + $0x220] sm:$0xff] %vm3876, %v3865
  %3946 = vst.msk [vmem:[#allocation3 + $0x228] sm:$0xff] %vm3876, %v3866
  %3947 = vst.msk [vmem:[#allocation3 + $0x230] sm:$0xff] %vm3876, %v3867
  %3948 = vst.msk [vmem:[#allocation3 + $0x238] sm:$0xff] %vm3876, %v3868
  %3949 = vst.msk [vmem:[#allocation3 + $0x240] sm:$0xff] %vm3876, %v3869
  %3950 = vst.msk [vmem:[#allocation3 + $0x248] sm:$0xff] %vm3876, %v3870
  %3951 = vst.msk [vmem:[#allocation3 + $0x250] sm:$0xff] %vm3876, %v3871
  %3952 = vst.msk [vmem:[#allocation3 + $0x258] sm:$0xff] %vm3876, %v3872
  %3953 = vst.msk [vmem:[#allocation3 + $0x260] sm:$0xff] %vm3876, %v3873
  %3954 = vst.msk [vmem:[#allocation3 + $0x268] sm:$0xff] %vm3876, %v3874
  %3955 = vst.msk [vmem:[#allocation3 + $0x270] sm:$0xff] %vm3876, %v3875
  %v3956 = vld [vmem:[#allocation3] ss:$2 sm:$0xff]
  %s3957 = scalar_lea.vmem [#allocation3], 1
  %v3958 = vld [vmem:[%s3957] ss:$2 sm:$0xff]
  %v3959 = vadd.f32 %v3956, %v3958
  %s3960 = scalar_lea.vmem [#allocation3], 18
  %v3961 = vld [vmem:[%s3960] ss:$2 sm:$0xff]
  %v3962 = vadd.f32 %v3959, %v3961
  %s3963 = scalar_lea.vmem [#allocation3], 19
  %v3964 = vld [vmem:[%s3963] ss:$2 sm:$0xff]
  %v3965 = vadd.f32 %v3962, %v3964
  %v3966 = vmul.f32 %v3965, 0.25
  %3967 = vst.msk [vmem:[%s4] sm:$0xff] %vm3876, %v3966
  %s3968 = scalar_lea.vmem [#allocation3], 36
  %v3969 = vld [vmem:[%s3968] ss:$2 sm:$0xff]
  %s3970 = scalar_lea.vmem [#allocation3], 37
  %v3971 = vld [vmem:[%s3970] ss:$2 sm:$0xff]
  %v3972 = vadd.f32 %v3969, %v3971
  %s3973 = scalar_lea.vmem [#allocation3], 54
  %v3974 = vld [vmem:[%s3973] ss:$2 sm:$0xff]
  %v3975 = vadd.f32 %v3972, %v3974
  %s3976 = scalar_lea.vmem [#allocation3], 55
  %v3977 = vld [vmem:[%s3976] ss:$2 sm:$0xff]
  %v3978 = vadd.f32 %v3975, %v3977
  %v3979 = vmul.f32 %v3978, 0.25
  %s3980 = scalar_lea.vmem %s4, 8
  %3981 = vst.msk [vmem:[%s3980] sm:$0xff] %vm3876, %v3979
  %s3982 = scalar_lea.vmem [#allocation3], 72
  %v3983 = vld [vmem:[%s3982] ss:$2 sm:$0xff]
  %s3984 = scalar_lea.vmem [#allocation3], 73
  %v3985 = vld [vmem:[%s3984] ss:$2 sm:$0xff]
  %v3986 = vadd.f32 %v3983, %v3985
  %s3987 = scalar_lea.vmem [#allocation3], 90
  %v3988 = vld [vmem:[%s3987] ss:$2 sm:$0xff]
  %v3989 = vadd.f32 %v3986, %v3988
  %s3990 = scalar_lea.vmem [#allocation3], 91
  %v3991 = vld [vmem:[%s3990] ss:$2 sm:$0xff]
  %v3992 = vadd.f32 %v3989, %v3991
  %v3993 = vmul.f32 %v3992, 0.25
  %s3994 = scalar_lea.vmem %s4, 16
  %3995 = vst.msk [vmem:[%s3994] sm:$0xff] %vm3876, %v3993
  %s3996 = scalar_lea.vmem [#allocation3], 108
  %v3997 = vld [vmem:[%s3996] ss:$2 sm:$0xff]
  %s3998 = scalar_lea.vmem [#allocation3], 109
  %v3999 = vld [vmem:[%s3998] ss:$2 sm:$0xff]
  %v4000 = vadd.f32 %v3997, %v3999
  %s4001 = scalar_lea.vmem [#allocation3], 126
  %v4002 = vld [vmem:[%s4001] ss:$2 sm:$0xff]
  %v4003 = vadd.f32 %v4000, %v4002
  %s4004 = scalar_lea.vmem [#allocation3], 127
  %v4005 = vld [vmem:[%s4004] ss:$2 sm:$0xff]
  %v4006 = vadd.f32 %v4003, %v4005
  %v4007 = vmul.f32 %v4006, 0.25
  %s4008 = scalar_lea.vmem %s4, 24
  %4009 = vst.msk [vmem:[%s4008] sm:$0xff] %vm3876, %v4007
  %s4010 = scalar_lea.vmem [#allocation3], 144
  %v4011 = vld [vmem:[%s4010] ss:$2 sm:$0xff]
  %s4012 = scalar_lea.vmem [#allocation3], 145
  %v4013 = vld [vmem:[%s4012] ss:$2 sm:$0xff]
  %v4014 = vadd.f32 %v4011, %v4013
  %s4015 = scalar_lea.vmem [#allocation3], 162
  %v4016 = vld [vmem:[%s4015] ss:$2 sm:$0xff]
  %v4017 = vadd.f32 %v4014, %v4016
  %s4018 = scalar_lea.vmem [#allocation3], 163
  %v4019 = vld [vmem:[%s4018] ss:$2 sm:$0xff]
  %v4020 = vadd.f32 %v4017, %v4019
  %v4021 = vmul.f32 %v4020, 0.25
  %s4022 = scalar_lea.vmem %s4, 32
  %4023 = vst.msk [vmem:[%s4022] sm:$0xff] %vm3876, %v4021
  %s4024 = scalar_lea.vmem [#allocation3], 180
  %v4025 = vld [vmem:[%s4024] ss:$2 sm:$0xff]
  %s4026 = scalar_lea.vmem [#allocation3], 181
  %v4027 = vld [vmem:[%s4026] ss:$2 sm:$0xff]
  %v4028 = vadd.f32 %v4025, %v4027
  %s4029 = scalar_lea.vmem [#allocation3], 198
  %v4030 = vld [vmem:[%s4029] ss:$2 sm:$0xff]
  %v4031 = vadd.f32 %v4028, %v4030
  %s4032 = scalar_lea.vmem [#allocation3], 199
  %v4033 = vld [vmem:[%s4032] ss:$2 sm:$0xff]
  %v4034 = vadd.f32 %v4031, %v4033
  %v4035 = vmul.f32 %v4034, 0.25
  %s4036 = scalar_lea.vmem %s4, 40
  %4037 = vst.msk [vmem:[%s4036] sm:$0xff] %vm3876, %v4035
  %s4038 = scalar_lea.vmem [#allocation3], 216
  %v4039 = vld [vmem:[%s4038] ss:$2 sm:$0xff]
  %s4040 = scalar_lea.vmem [#allocation3], 217
  %v4041 = vld [vmem:[%s4040] ss:$2 sm:$0xff]
  %v4042 = vadd.f32 %v4039, %v4041
  %s4043 = scalar_lea.vmem [#allocation3], 234
  %v4044 = vld [vmem:[%s4043] ss:$2 sm:$0xff]
  %v4045 = vadd.f32 %v4042, %v4044
  %s4046 = scalar_lea.vmem [#allocation3], 235
  %v4047 = vld [vmem:[%s4046] ss:$2 sm:$0xff]
  %v4048 = vadd.f32 %v4045, %v4047
  %v4049 = vmul.f32 %v4048, 0.25
  %s4050 = scalar_lea.vmem %s4, 48
  %4051 = vst.msk [vmem:[%s4050] sm:$0xff] %vm3876, %v4049
  %s4052 = scalar_lea.vmem [#allocation3], 252
  %v4053 = vld [vmem:[%s4052] ss:$2 sm:$0xff]
  %s4054 = scalar_lea.vmem [#allocation3], 253
  %v4055 = vld [vmem:[%s4054] ss:$2 sm:$0xff]
  %v4056 = vadd.f32 %v4053, %v4055
  %s4057 = scalar_lea.vmem [#allocation3], 270
  %v4058 = vld [vmem:[%s4057] ss:$2 sm:$0xff]
  %v4059 = vadd.f32 %v4056, %v4058
  %s4060 = scalar_lea.vmem [#allocation3], 271
  %v4061 = vld [vmem:[%s4060] ss:$2 sm:$0xff]
  %v4062 = vadd.f32 %v4059, %v4061
  %v4063 = vmul.f32 %v4062, 0.25
  %s4064 = scalar_lea.vmem %s4, 56
  %4065 = vst.msk [vmem:[%s4064] sm:$0xff] %vm3876, %v4063
  %s4066 = scalar_lea.vmem [#allocation3], 344
  %v4067 = vld [vmem:[%s4066] ss:$2 sm:$0xff]
  %s4068 = scalar_lea.vmem [#allocation3], 345
  %v4069 = vld [vmem:[%s4068] ss:$2 sm:$0xff]
  %v4070 = vadd.f32 %v4067, %v4069
  %s4071 = scalar_lea.vmem [#allocation3], 362
  %v4072 = vld [vmem:[%s4071] ss:$2 sm:$0xff]
  %v4073 = vadd.f32 %v4070, %v4072
  %s4074 = scalar_lea.vmem [#allocation3], 363
  %v4075 = vld [vmem:[%s4074] ss:$2 sm:$0xff]
  %v4076 = vadd.f32 %v4073, %v4075
  %v4077 = vmul.f32 %v4076, 0.25
  %s4078 = scalar_lea.vmem %s4, 64
  %4079 = vst.msk [vmem:[%s4078] sm:$0xff] %vm3876, %v4077
  %s4080 = scalar_lea.vmem [#allocation3], 380
  %v4081 = vld [vmem:[%s4080] ss:$2 sm:$0xff]
  %s4082 = scalar_lea.vmem [#allocation3], 381
  %v4083 = vld [vmem:[%s4082] ss:$2 sm:$0xff]
  %v4084 = vadd.f32 %v4081, %v4083
  %s4085 = scalar_lea.vmem [#allocation3], 398
  %v4086 = vld [vmem:[%s4085] ss:$2 sm:$0xff]
  %v4087 = vadd.f32 %v4084, %v4086
  %s4088 = scalar_lea.vmem [#allocation3], 399
  %v4089 = vld [vmem:[%s4088] ss:$2 sm:$0xff]
  %v4090 = vadd.f32 %v4087, %v4089
  %v4091 = vmul.f32 %v4090, 0.25
  %s4092 = scalar_lea.vmem %s4, 72
  %4093 = vst.msk [vmem:[%s4092] sm:$0xff] %vm3876, %v4091
  %s4094 = scalar_lea.vmem [#allocation3], 416
  %v4095 = vld [vmem:[%s4094] ss:$2 sm:$0xff]
  %s4096 = scalar_lea.vmem [#allocation3], 417
  %v4097 = vld [vmem:[%s4096] ss:$2 sm:$0xff]
  %v4098 = vadd.f32 %v4095, %v4097
  %s4099 = scalar_lea.vmem [#allocation3], 434
  %v4100 = vld [vmem:[%s4099] ss:$2 sm:$0xff]
  %v4101 = vadd.f32 %v4098, %v4100
  %s4102 = scalar_lea.vmem [#allocation3], 435
  %v4103 = vld [vmem:[%s4102] ss:$2 sm:$0xff]
  %v4104 = vadd.f32 %v4101, %v4103
  %v4105 = vmul.f32 %v4104, 0.25
  %s4106 = scalar_lea.vmem %s4, 80
  %4107 = vst.msk [vmem:[%s4106] sm:$0xff] %vm3876, %v4105
  %s4108 = scalar_lea.vmem [#allocation3], 452
  %v4109 = vld [vmem:[%s4108] ss:$2 sm:$0xff]
  %s4110 = scalar_lea.vmem [#allocation3], 453
  %v4111 = vld [vmem:[%s4110] ss:$2 sm:$0xff]
  %v4112 = vadd.f32 %v4109, %v4111
  %s4113 = scalar_lea.vmem [#allocation3], 470
  %v4114 = vld [vmem:[%s4113] ss:$2 sm:$0xff]
  %v4115 = vadd.f32 %v4112, %v4114
  %s4116 = scalar_lea.vmem [#allocation3], 471
  %v4117 = vld [vmem:[%s4116] ss:$2 sm:$0xff]
  %v4118 = vadd.f32 %v4115, %v4117
  %v4119 = vmul.f32 %v4118, 0.25
  %s4120 = scalar_lea.vmem %s4, 88
  %4121 = vst.msk [vmem:[%s4120] sm:$0xff] %vm3876, %v4119
  %s4122 = scalar_lea.vmem [#allocation3], 488
  %v4123 = vld [vmem:[%s4122] ss:$2 sm:$0xff]
  %s4124 = scalar_lea.vmem [#allocation3], 489
  %v4125 = vld [vmem:[%s4124] ss:$2 sm:$0xff]
  %v4126 = vadd.f32 %v4123, %v4125
  %s4127 = scalar_lea.vmem [#allocation3], 506
  %v4128 = vld [vmem:[%s4127] ss:$2 sm:$0xff]
  %v4129 = vadd.f32 %v4126, %v4128
  %s4130 = scalar_lea.vmem [#allocation3], 507
  %v4131 = vld [vmem:[%s4130] ss:$2 sm:$0xff]
  %v4132 = vadd.f32 %v4129, %v4131
  %v4133 = vmul.f32 %v4132, 0.25
  %s4134 = scalar_lea.vmem %s4, 96
  %4135 = vst.msk [vmem:[%s4134] sm:$0xff] %vm3876, %v4133
  %s4136 = scalar_lea.vmem [#allocation3], 524
  %v4137 = vld [vmem:[%s4136] ss:$2 sm:$0xff]
  %s4138 = scalar_lea.vmem [#allocation3], 525
  %v4139 = vld [vmem:[%s4138] ss:$2 sm:$0xff]
  %v4140 = vadd.f32 %v4137, %v4139
  %s4141 = scalar_lea.vmem [#allocation3], 542
  %v4142 = vld [vmem:[%s4141] ss:$2 sm:$0xff]
  %v4143 = vadd.f32 %v4140, %v4142
  %s4144 = scalar_lea.vmem [#allocation3], 543
  %v4145 = vld [vmem:[%s4144] ss:$2 sm:$0xff]
  %v4146 = vadd.f32 %v4143, %v4145
  %v4147 = vmul.f32 %v4146, 0.25
  %s4148 = scalar_lea.vmem %s4, 104
  %4149 = vst.msk [vmem:[%s4148] sm:$0xff] %vm3876, %v4147
  %s4150 = scalar_lea.vmem [#allocation3], 560
  %v4151 = vld [vmem:[%s4150] ss:$2 sm:$0xff]
  %s4152 = scalar_lea.vmem [#allocation3], 561
  %v4153 = vld [vmem:[%s4152] ss:$2 sm:$0xff]
  %v4154 = vadd.f32 %v4151, %v4153
  %s4155 = scalar_lea.vmem [#allocation3], 578
  %v4156 = vld [vmem:[%s4155] ss:$2 sm:$0xff]
  %v4157 = vadd.f32 %v4154, %v4156
  %s4158 = scalar_lea.vmem [#allocation3], 579
  %v4159 = vld [vmem:[%s4158] ss:$2 sm:$0xff]
  %v4160 = vadd.f32 %v4157, %v4159
  %v4161 = vmul.f32 %v4160, 0.25
  %s4162 = scalar_lea.vmem %s4, 112
  %4163 = vst.msk [vmem:[%s4162] sm:$0xff] %vm3876, %v4161
  %s4164 = scalar_lea.vmem [#allocation3], 596
  %v4165 = vld [vmem:[%s4164] ss:$2 sm:$0xff]
  %s4166 = scalar_lea.vmem [#allocation3], 597
  %v4167 = vld [vmem:[%s4166] ss:$2 sm:$0xff]
  %v4168 = vadd.f32 %v4165, %v4167
  %s4169 = scalar_lea.vmem [#allocation3], 614
  %v4170 = vld [vmem:[%s4169] ss:$2 sm:$0xff]
  %v4171 = vadd.f32 %v4168, %v4170
  %s4172 = scalar_lea.vmem [#allocation3], 615
  %v4173 = vld [vmem:[%s4172] ss:$2 sm:$0xff]
  %v4174 = vadd.f32 %v4171, %v4173
  %v4175 = vmul.f32 %v4174, 0.25
  %s4176 = scalar_lea.vmem %s4, 120
  %4177 = vst.msk [vmem:[%s4176] sm:$0xff] %vm3876, %v4175
  // Predicated region
  $region18: #{hourglass_forward.6} parent=0 // pred_check
    _
  $region19: #{hourglass_forward.6} parent=0 // pred_check_branch
    %4179 = sbr.rel (0) target = $region21
  $region20: #{hourglass_forward.6} parent=0 // pred_region
    _
  $region21: #{hourglass_forward.6} parent=0 // pred_fallthru
    _
  // Predicated region
  $region22: #{hourglass_forward.6} parent=0 // pred_check
    _
  $region23: #{hourglass_forward.6} parent=0 // pred_check_branch
    %4181 = sbr.rel (0) target = $region25
  $region24: #{hourglass_forward.6} parent=0 // pred_region
    _
  $region25: #{hourglass_forward.6} parent=0 // pred_fallthru
    _

// kernel: hourglass_forward.10
$region0: #{hourglass_forward.10}
  #allocation0 [shape = 'u32[]', space=smem, size = 0x4, offset = 0x4, fixed_abs, tag = 'smem constant byte address 0x4 - core index']
  #allocation1 [shape = 'u32[144,128]{1,0:T(1,128)}', space=vmem, size = 0x12000, scoped, tag = 'internal scratch']
  #allocation2 [shape = 'f32[80,256]{1,0:T(8,128)}', space=vmem, size = 0x14000, scoped, tag = 'scratch operand']
  %s0 = inlined_call_operand.vmem [shape: f32[96,64], index: 0, kind: input, shape index: {}]
  %s1 = inlined_call_operand.vmem [shape: f32[4,256,16], index: 1, kind: input, shape index: {}]
  %s2 = inlined_call_operand.vmem [shape: f32[1,16], index: 2, kind: input, shape index: {}]
  %s3 = inlined_call_operand.vmem [shape: f32[1,16], index: 3, kind: input, shape index: {}]
  %s4 = inlined_call_operand.vmem [shape: f32[2,4,24,16], index: 4, kind: output, shape index: {}]
  %s5 = sld [smem:[#allocation0]]
  $region26: #{hourglass_forward.10} parent=0
    _
  %s7 = ssub.s32 1, %s5
  %s8 = scalar_select 0, %s7, %s5
  // Predicated region
  $region2: #{hourglass_forward.10} parent=0 // pred_check
    _
  $region3: #{hourglass_forward.10} parent=0 // pred_check_branch
    %10 = sbr.rel (0) target = $region5
  $region4: #{hourglass_forward.10} parent=0 // pred_region
    _
  $region5: #{hourglass_forward.10} parent=0 // pred_fallthru
    _
  // Predicated region
  $region6: #{hourglass_forward.10} parent=0 // pred_check
    _
  $region7: #{hourglass_forward.10} parent=0 // pred_check_branch
    %12 = sbr.rel (0) target = $region9
  $region8: #{hourglass_forward.10} parent=0 // pred_region
    _
  $region9: #{hourglass_forward.10} parent=0 // pred_fallthru
    _
  // Predicated region
  $region10: #{hourglass_forward.10} parent=0 // pred_check
    _
  $region11: #{hourglass_forward.10} parent=0 // pred_check_branch
    %14 = sbr.rel (0) target = $region13
  $region12: #{hourglass_forward.10} parent=0 // pred_region
    _
  $region13: #{hourglass_forward.10} parent=0 // pred_fallthru
    _
  // Predicated region
  $region14: #{hourglass_forward.10} parent=0 // pred_check
    _
  $region15: #{hourglass_forward.10} parent=0 // pred_check_branch
    %16 = sbr.rel (0) target = $region17
  $region16: #{hourglass_forward.10} parent=0 // pred_region
    _
  $region17: #{hourglass_forward.10} parent=0 // pred_fallthru
    _
  %v17 = vld [vmem:[%s0] sm:$0xff]
  %v18 = vld [vmem:[%s0 + $0x8] sm:$0xff]
  %v19 = vld [vmem:[%s0 + $0x10] sm:$0xff]
  %v20 = vld [vmem:[%s0 + $0x18] sm:$0xff]
  %v21 = vld [vmem:[%s0 + $0x20] sm:$0xff]
  %v22 = vld [vmem:[%s0 + $0x28] sm:$0xff]
  %v23 = vld [vmem:[%s0 + $0x30] sm:$0xff]
  %v24 = vld [vmem:[%s0 + $0x38] sm:$0xff]
  %v25 = vld [vmem:[%s0 + $0x40] sm:$0xff]
  %v26 = vld [vmem:[%s0 + $0x48] sm:$0xff]
  %vm27 = vcmask 523264
  %28 = vst.msk [vmem:[#allocation2] sm:$0xff] %vm27, %v17
  %29 = vst.msk [vmem:[#allocation2 + $0x10] sm:$0xff] %vm27, %v18
  %30 = vst.msk [vmem:[#allocation2 + $0x20] sm:$0xff] %vm27, %v19
  %31 = vst.msk [vmem:[#allocation2 + $0x30] sm:$0xff] %vm27, %v20
  %32 = vst.msk [vmem:[#allocation2 + $0x40] sm:$0xff] %vm27, %v21
  %33 = vst.msk [vmem:[#allocation2 + $0x50] sm:$0xff] %vm27, %v22
  %34 = vst.msk [vmem:[#allocation2 + $0x60] sm:$0xff] %vm27, %v23
  %35 = vst.msk [vmem:[#allocation2 + $0x70] sm:$0xff] %vm27, %v24
  %36 = vst.msk [vmem:[#allocation2 + $0x80] sm:$0xff] %vm27, %v25
  %37 = vst.msk [vmem:[#allocation2 + $0x90] sm:$0xff] %vm27, %v26
  %v38 = vld [vmem:[%s0 + $0x1] sm:$0xff]
  %v39 = vld [vmem:[%s0 + $0x9] sm:$0xff]
  %v40 = vld [vmem:[%s0 + $0x11] sm:$0xff]
  %v41 = vld [vmem:[%s0 + $0x19] sm:$0xff]
  %v42 = vld [vmem:[%s0 + $0x21] sm:$0xff]
  %v43 = vld [vmem:[%s0 + $0x29] sm:$0xff]
  %v44 = vld [vmem:[%s0 + $0x31] sm:$0xff]
  %v45 = vld [vmem:[%s0 + $0x39] sm:$0xff]
  %v46 = vld [vmem:[%s0 + $0x41] sm:$0xff]
  %v47 = vld [vmem:[%s0 + $0x49] sm:$0xff]
  %58 = vrot.lane.b32.xlu0 %v38, 64
  %v59 = vpop.permute.xlu0 %58
  %60 = vrot.lane.b32.xlu0 %v39, 64
  %v61 = vpop.permute.xlu0 %60
  %62 = vrot.lane.b32.xlu0 %v40, 64
  %v63 = vpop.permute.xlu0 %62
  %64 = vrot.lane.b32.xlu0 %v41, 64
  %v65 = vpop.permute.xlu0 %64
  %66 = vrot.lane.b32.xlu0 %v42, 64
  %v67 = vpop.permute.xlu0 %66
  %68 = vrot.lane.b32.xlu0 %v43, 64
  %v69 = vpop.permute.xlu0 %68
  %70 = vrot.lane.b32.xlu0 %v44, 64
  %v71 = vpop.permute.xlu0 %70
  %72 = vrot.lane.b32.xlu0 %v45, 64
  %v73 = vpop.permute.xlu0 %72
  %74 = vrot.lane.b32.xlu0 %v46, 64
  %v75 = vpop.permute.xlu0 %74
  %76 = vrot.lane.b32.xlu0 %v47, 64
  %v77 = vpop.permute.xlu0 %76
  %vm88 = vcmask 1048064
  %89 = vst.msk [vmem:[#allocation2] sm:$0xff] %vm88, %v59
  %90 = vst.msk [vmem:[#allocation2 + $0x10] sm:$0xff] %vm88, %v61
  %91 = vst.msk [vmem:[#allocation2 + $0x20] sm:$0xff] %vm88, %v63
  %92 = vst.msk [vmem:[#allocation2 + $0x30] sm:$0xff] %vm88, %v65
  %93 = vst.msk [vmem:[#allocation2 + $0x40] sm:$0xff] %vm88, %v67
  %94 = vst.msk [vmem:[#allocation2 + $0x50] sm:$0xff] %vm88, %v69
  %95 = vst.msk [vmem:[#allocation2 + $0x60] sm:$0xff] %vm88, %v71
  %96 = vst.msk [vmem:[#allocation2 + $0x70] sm:$0xff] %vm88, %v73
  %97 = vst.msk [vmem:[#allocation2 + $0x80] sm:$0xff] %vm88, %v75
  %98 = vst.msk [vmem:[#allocation2 + $0x90] sm:$0xff] %vm88, %v77
  %v99 = vld [vmem:[%s0 + $0x6] sm:$0xff]
  %v100 = vld [vmem:[%s0 + $0xe] sm:$0xff]
  %v101 = vld [vmem:[%s0 + $0x16] sm:$0xff]
  %v102 = vld [vmem:[%s0 + $0x1e] sm:$0xff]
  %v103 = vld [vmem:[%s0 + $0x26] sm:$0xff]
  %v104 = vld [vmem:[%s0 + $0x2e] sm:$0xff]
  %v105 = vld [vmem:[%s0 + $0x36] sm:$0xff]
  %v106 = vld [vmem:[%s0 + $0x3e] sm:$0xff]
  %v107 = vld [vmem:[%s0 + $0x46] sm:$0xff]
  %v108 = vld [vmem:[%s0 + $0x4e] sm:$0xff]
  %109 = vst.msk [vmem:[#allocation2 + $0x8] sm:$0xff] %vm27, %v99
  %110 = vst.msk [vmem:[#allocation2 + $0x18] sm:$0xff] %vm27, %v100
  %111 = vst.msk [vmem:[#allocation2 + $0x28] sm:$0xff] %vm27, %v101
  %112 = vst.msk [vmem:[#allocation2 + $0x38] sm:$0xff] %vm27, %v102
  %113 = vst.msk [vmem:[#allocation2 + $0x48] sm:$0xff] %vm27, %v103
  %114 = vst.msk [vmem:[#allocation2 + $0x58] sm:$0xff] %vm27, %v104
  %115 = vst.msk [vmem:[#allocation2 + $0x68] sm:$0xff] %vm27, %v105
  %116 = vst.msk [vmem:[#allocation2 + $0x78] sm:$0xff] %vm27, %v106
  %117 = vst.msk [vmem:[#allocation2 + $0x88] sm:$0xff] %vm27, %v107
  %118 = vst.msk [vmem:[#allocation2 + $0x98] sm:$0xff] %vm27, %v108
  %v119 = vld [vmem:[%s0 + $0x7] sm:$0xff]
  %v120 = vld [vmem:[%s0 + $0xf] sm:$0xff]
  %v121 = vld [vmem:[%s0 + $0x17] sm:$0xff]
  %v122 = vld [vmem:[%s0 + $0x1f] sm:$0xff]
  %v123 = vld [vmem:[%s0 + $0x27] sm:$0xff]
  %v124 = vld [vmem:[%s0 + $0x2f] sm:$0xff]
  %v125 = vld [vmem:[%s0 + $0x37] sm:$0xff]
  %v126 = vld [vmem:[%s0 + $0x3f] sm:$0xff]
  %v127 = vld [vmem:[%s0 + $0x47] sm:$0xff]
  %v128 = vld [vmem:[%s0 + $0x4f] sm:$0xff]
  %139 = vrot.lane.b32.xlu0 %v119, 64
  %v140 = vpop.permute.xlu0 %139
  %141 = vrot.lane.b32.xlu0 %v120, 64
  %v142 = vpop.permute.xlu0 %141
  %143 = vrot.lane.b32.xlu0 %v121, 64
  %v144 = vpop.permute.xlu0 %143
  %145 = vrot.lane.b32.xlu0 %v122, 64
  %v146 = vpop.permute.xlu0 %145
  %147 = vrot.lane.b32.xlu0 %v123, 64
  %v148 = vpop.permute.xlu0 %147
  %149 = vrot.lane.b32.xlu0 %v124, 64
  %v150 = vpop.permute.xlu0 %149
  %151 = vrot.lane.b32.xlu0 %v125, 64
  %v152 = vpop.permute.xlu0 %151
  %153 = vrot.lane.b32.xlu0 %v126, 64
  %v154 = vpop.permute.xlu0 %153
  %155 = vrot.lane.b32.xlu0 %v127, 64
  %v156 = vpop.permute.xlu0 %155
  %157 = vrot.lane.b32.xlu0 %v128, 64
  %v158 = vpop.permute.xlu0 %157
  %169 = vst.msk [vmem:[#allocation2 + $0x8] sm:$0xff] %vm88, %v140
  %170 = vst.msk [vmem:[#allocation2 + $0x18] sm:$0xff] %vm88, %v142
  %171 = vst.msk [vmem:[#allocation2 + $0x28] sm:$0xff] %vm88, %v144
  %172 = vst.msk [vmem:[#allocation2 + $0x38] sm:$0xff] %vm88, %v146
  %173 = vst.msk [vmem:[#allocation2 + $0x48] sm:$0xff] %vm88, %v148
  %174 = vst.msk [vmem:[#allocation2 + $0x58] sm:$0xff] %vm88, %v150
  %175 = vst.msk [vmem:[#allocation2 + $0x68] sm:$0xff] %vm88, %v152
  %176 = vst.msk [vmem:[#allocation2 + $0x78] sm:$0xff] %vm88, %v154
  %177 = vst.msk [vmem:[#allocation2 + $0x88] sm:$0xff] %vm88, %v156
  %178 = vst.msk [vmem:[#allocation2 + $0x98] sm:$0xff] %vm88, %v158
  %v179 = vld [vmem:[#allocation2] sm:$0xff]
  %v180 = vld [vmem:[#allocation2 + $0x8] sm:$0xff]
  %v181 = vld [vmem:[#allocation2 + $0x10] sm:$0xff]
  %v182 = vld [vmem:[#allocation2 + $0x18] sm:$0xff]
  %v183 = vld [vmem:[#allocation2 + $0x20] sm:$0xff]
  %v184 = vld [vmem:[#allocation2 + $0x28] sm:$0xff]
  %v185 = vld [vmem:[#allocation2 + $0x30] sm:$0xff]
  %v186 = vld [vmem:[#allocation2 + $0x38] sm:$0xff]
  %v187 = vld [vmem:[#allocation2 + $0x40] sm:$0xff]
  %v188 = vld [vmem:[#allocation2 + $0x48] sm:$0xff]
  %v189 = vld [vmem:[#allocation2 + $0x50] sm:$0xff]
  %v190 = vld [vmem:[#allocation2 + $0x58] sm:$0xff]
  %v191 = vld [vmem:[#allocation2 + $0x60] sm:$0xff]
  %v192 = vld [vmem:[#allocation2 + $0x68] sm:$0xff]
  %v193 = vld [vmem:[#allocation2 + $0x70] sm:$0xff]
  %v194 = vld [vmem:[#allocation2 + $0x78] sm:$0xff]
  %v195 = vld [vmem:[#allocation2 + $0x80] sm:$0xff]
  %v196 = vld [vmem:[#allocation2 + $0x88] sm:$0xff]
  %v197 = vld [vmem:[%s1] sm:$0xff]
  %v198 = vld [vmem:[%s1 + $0x8] sm:$0xff]
  %v199 = vld [vmem:[%s1 + $0x10] sm:$0xff]
  %v200 = vld [vmem:[%s1 + $0x18] sm:$0xff]
  %v201 = vld [vmem:[%s1 + $0x20] sm:$0xff]
  %v202 = vld [vmem:[%s1 + $0x28] sm:$0xff]
  %v203 = vld [vmem:[%s1 + $0x30] sm:$0xff]
  %v204 = vld [vmem:[%s1 + $0x38] sm:$0xff]
  %v205 = vld [vmem:[%s1 + $0x40] sm:$0xff]
  %v206 = vld [vmem:[%s1 + $0x48] sm:$0xff]
  %v207 = vld [vmem:[%s1 + $0x50] sm:$0xff]
  %v208 = vld [vmem:[%s1 + $0x58] sm:$0xff]
  %v209 = vld [vmem:[%s1 + $0x60] sm:$0xff]
  %v210 = vld [vmem:[%s1 + $0x68] sm:$0xff]
  %v211 = vld [vmem:[%s1 + $0x70] sm:$0xff]
  %v212 = vld [vmem:[%s1 + $0x78] sm:$0xff]
  %v213 = vld [vmem:[%s1 + $0x80] sm:$0xff]
  %v214 = vld [vmem:[%s1 + $0x88] sm:$0xff]
  %v215 = vld [vmem:[%s1 + $0x90] sm:$0xff]
  %v216 = vld [vmem:[%s1 + $0x98] sm:$0xff]
  %v217 = vld [vmem:[%s1 + $0xa0] sm:$0xff]
  %v218 = vld [vmem:[%s1 + $0xa8] sm:$0xff]
  %v219 = vld [vmem:[%s1 + $0xb0] sm:$0xff]
  %v220 = vld [vmem:[%s1 + $0xb8] sm:$0xff]
  %v221 = vld [vmem:[%s1 + $0xc0] sm:$0xff]
  %v222 = vld [vmem:[%s1 + $0xc8] sm:$0xff]
  %v223 = vld [vmem:[%s1 + $0xd0] sm:$0xff]
  %v224 = vld [vmem:[%s1 + $0xd8] sm:$0xff]
  %v225 = vld [vmem:[%s1 + $0xe0] sm:$0xff]
  %v226 = vld [vmem:[%s1 + $0xe8] sm:$0xff]
  %v227 = vld [vmem:[%s1 + $0xf0] sm:$0xff]
  %v228 = vld [vmem:[%s1 + $0xf8] sm:$0xff]
  %229 = vmatprep.subr.mxu0 0.0
  %230 = vmatpush1.msra.mxu0 %v197
  %231 = vmatprep.subr.mxu0 0.0
  %232 = vmatpush1.msra.mxu0 %v198
  %233 = vmatprep.subr.mxu0 0.0
  %234 = vmatpush1.msra.mxu0 %v199
  %235 = vmatprep.subr.mxu0 0.0
  %236 = vmatpush1.msra.mxu0 %v200
  %237 = vmatprep.subr.mxu0 0.0
  %238 = vmatpush1.msra.mxu0 %v201
  %239 = vmatprep.subr.mxu0 0.0
  %240 = vmatpush1.msra.mxu0 %v202
  %241 = vmatprep.subr.mxu0 0.0
  %242 = vmatpush1.msra.mxu0 %v203
  %243 = vmatprep.subr.mxu0 0.0
  %244 = vmatpush1.msra.mxu0 %v204
  %245 = vmatprep.subr.mxu0 0.0
  %246 = vmatpush1.msra.mxu0 %v205
  %247 = vmatprep.subr.mxu0 0.0
  %248 = vmatpush1.msra.mxu0 %v206
  %249 = vmatprep.subr.mxu0 0.0
  %250 = vmatpush1.msra.mxu0 %v207
  %251 = vmatprep.subr.mxu0 0.0
  %252 = vmatpush1.msra.mxu0 %v208
  %253 = vmatprep.subr.mxu0 0.0
  %254 = vmatpush1.msra.mxu0 %v209
  %255 = vmatprep.subr.mxu0 0.0
  %256 = vmatpush1.msra.mxu0 %v210
  %257 = vmatprep.subr.mxu0 0.0
  %258 = vmatpush1.msra.mxu0 %v211
  %259 = vmatprep.subr.mxu0 0.0
  %260 = vmatpush1.msra.mxu0 %v212
  %261 = vmatprep.subr.mxu0 0.0
  %262 = vmatpush1.msra.mxu0 %v213
  %263 = vmatprep.subr.mxu0 0.0
  %264 = vmatpush1.msra.mxu0 %v214
  %265 = vmatprep.subr.mxu0 0.0
  %266 = vmatpush1.msra.mxu0 %v215
  %267 = vmatprep.subr.mxu0 0.0
  %268 = vmatpush1.msra.mxu0 %v216
  %269 = vmatprep.subr.mxu0 0.0
  %270 = vmatpush1.msra.mxu0 %v217
  %271 = vmatprep.subr.mxu0 0.0
  %272 = vmatpush1.msra.mxu0 %v218
  %273 = vmatprep.subr.mxu0 0.0
  %274 = vmatpush1.msra.mxu0 %v219
  %275 = vmatprep.subr.mxu0 0.0
  %276 = vmatpush1.msra.mxu0 %v220
  %277 = vmatprep.subr.mxu0 0.0
  %278 = vmatpush1.msra.mxu0 %v221
  %279 = vmatprep.subr.mxu0 0.0
  %280 = vmatpush1.msra.mxu0 %v222
  %281 = vmatprep.subr.mxu0 0.0
  %282 = vmatpush1.msra.mxu0 %v223
  %283 = vmatprep.subr.mxu0 0.0
  %284 = vmatpush1.msra.mxu0 %v224
  %285 = vmatprep.subr.mxu0 0.0
  %286 = vmatpush1.msra.mxu0 %v225
  %287 = vmatprep.subr.mxu0 0.0
  %288 = vmatpush1.msra.mxu0 %v226
  %289 = vmatprep.subr.mxu0 0.0
  %290 = vmatpush1.msra.mxu0 %v227
  %291 = vmatprep.subr.mxu0 0.0
  %292 = vmatpush1.msra.mxu0 %v228
  %293 = vmatprep.mubr.f32.mxu0 %v180
  %294 = vmatmul.mubr.f32.gmra.mrb[0].mxu0 %v179
  %v295 = vpop.f32.mrb[0].mxu0
  %v296 = vadd.f32 0.0, %v295
  %v297 = vpop.f32.mrb[0].mxu0
  %298 = vmatprep.mubr.f32.mxu0 %v182
  %299 = vmatmul.mubr.f32.gmra.mrb[0].mxu0 %v181
  %v300 = vpop.f32.mrb[0].mxu0
  %v301 = vadd.f32 0.0, %v300
  %v302 = vpop.f32.mrb[0].mxu0
  %303 = vmatprep.mubr.f32.mxu0 %v184
  %304 = vmatmul.mubr.f32.gmra.mrb[0].mxu0 %v183
  %v305 = vpop.f32.mrb[0].mxu0
  %v306 = vadd.f32 0.0, %v305
  %v307 = vpop.f32.mrb[0].mxu0
  %308 = vmatprep.mubr.f32.mxu0 %v186
  %309 = vmatmul.mubr.f32.gmra.mrb[0].mxu0 %v185
  %v310 = vpop.f32.mrb[0].mxu0
  %v311 = vpop.f32.mrb[0].mxu0
  %312 = vmatprep.mubr.f32.mxu0 %v188
  %313 = vmatmul.mubr.f32.gmra.mrb[0].mxu0 %v187
  %v314 = vpop.f32.mrb[0].mxu0
  %v315 = vpop.f32.mrb[0].mxu0
  %316 = vmatprep.mubr.f32.mxu0 %v190
  %317 = vmatmul.mubr.f32.gmra.mrb[0].mxu0 %v189
  %v318 = vpop.f32.mrb[0].mxu0
  %v319 = vpop.f32.mrb[0].mxu0
  %320 = vmatprep.mubr.f32.mxu0 %v192
  %321 = vmatmul.mubr.f32.gmra.mrb[0].mxu0 %v191
  %v322 = vpop.f32.mrb[0].mxu0
  %v323 = vadd.f32 0.0, %v322
  %v324 = vpop.f32.mrb[0].mxu0
  %325 = vmatprep.mubr.f32.mxu0 %v194
  %326 = vmatmul.mubr.f32.gmra.mrb[0].mxu0 %v193
  %v327 = vpop.f32.mrb[0].mxu0
  %v328 = vadd.f32 0.0, %v327
  %v329 = vpop.f32.mrb[0].mxu0
  %330 = vmatprep.mubr.f32.mxu0 %v196
  %331 = vmatmul.mubr.f32.gmra.mrb[0].mxu0 %v195
  %v332 = vpop.f32.mrb[0].mxu0
  %v333 = vadd.f32 0.0, %v332
  %v334 = vpop.f32.mrb[0].mxu0
  %335 = vdwg.mxu0
  %v336 = vld [vmem:[%s2] sm:$0x1]
  %v338 = vlaneseq
  %v339 = vshrl.u32 %v338, 7
  %v340 = vsub.s32 0, %v339
  %v341 = vrot.slane %v336, %v340
  %v343 = vmul.f32 %v296, %v341
  %v344 = vmul.f32 %v301, %v341
  %v345 = vmul.f32 %v306, %v341
  %v346 = vmul.f32 %v323, %v341
  %v347 = vmul.f32 %v328, %v341
  %v348 = vmul.f32 %v333, %v341
  %v349 = vld [vmem:[%s3] sm:$0x1]
  %v351 = vlaneseq
  %v352 = vshrl.u32 %v351, 7
  %v353 = vsub.s32 0, %v352
  %v354 = vrot.slane %v349, %v353
  %v356 = vadd.f32 %v343, %v354
  %v357 = vadd.f32 %v344, %v354
  %v358 = vadd.f32 %v345, %v354
  %v359 = vadd.f32 %v346, %v354
  %v360 = vadd.f32 %v347, %v354
  %v361 = vadd.f32 %v348, %v354
  %v362 = vmax.f32 %v356, 0.0
  %v363 = vmax.f32 %v357, 0.0
  %v364 = vmax.f32 %v358, 0.0
  %v365 = vmax.f32 %v359, 0.0
  %v366 = vmax.f32 %v360, 0.0
  %v367 = vmax.f32 %v361, 0.0
  %vm368 = vcmask 130048
  %369 = vst.msk [vmem:[%s4] sm:$0xff] %vm368, %v362
  %370 = vst.msk [vmem:[%s4 + $0x8] sm:$0xff] %vm368, %v363
  %371 = vst.msk [vmem:[%s4 + $0x10] sm:$0xff] %vm368, %v364
  %s372 = scalar_lea.vmem %s4, 96
  %373 = vst.msk [vmem:[%s372] sm:$0xff] %vm368, %v365
  %374 = vst.msk [vmem:[%s372 + $0x8] sm:$0xff] %vm368, %v366
  %375 = vst.msk [vmem:[%s372 + $0x10] sm:$0xff] %vm368, %v367
  %v376 = vld [vmem:[#allocation2] sm:$0xfe]
  %v377 = vld [vmem:[#allocation2 + $0x8] sm:$0xfe]
  %v378 = vld [vmem:[#allocation2 + $0x10] sm:$0xff]
  %v379 = vld [vmem:[#allocation2 + $0x18] sm:$0xff]
  %v380 = vld [vmem:[#allocation2 + $0x20] sm:$0xff]
  %v381 = vld [vmem:[#allocation2 + $0x28] sm:$0xff]
  %v382 = vld [vmem:[#allocation2 + $0x30] sm:$0xff]
  %v383 = vld [vmem:[#allocation2 + $0x38] sm:$0xff]
  %v384 = vld [vmem:[#allocation2 + $0x40] sm:$0xff]
  %v385 = vld [vmem:[#allocation2 + $0x48] sm:$0xff]
  %v386 = vld [vmem:[#allocation2 + $0x50] sm:$0xff]
  %v387 = vld [vmem:[#allocation2 + $0x58] sm:$0xff]
  %v388 = vld [vmem:[#allocation2 + $0x60] sm:$0xff]
  %v389 = vld [vmem:[#allocation2 + $0x68] sm:$0xff]
  %v390 = vld [vmem:[#allocation2 + $0x70] sm:$0xff]
  %v391 = vld [vmem:[#allocation2 + $0x78] sm:$0xff]
  %v392 = vld [vmem:[#allocation2 + $0x80] sm:$0xff]
  %v393 = vld [vmem:[#allocation2 + $0x88] sm:$0xff]
  %v394 = vld [vmem:[#allocation2 + $0x90] sm:$0x1]
  %v395 = vld [vmem:[#allocation2 + $0x98] sm:$0x1]
  %s396 = scalar_lea.vmem %s1, 256
  %v397 = vld [vmem:[%s396] sm:$0xff]
  %v398 = vld [vmem:[%s396 + $0x8] sm:$0xff]
  %v399 = vld [vmem:[%s396 + $0x10] sm:$0xff]
  %v400 = vld [vmem:[%s396 + $0x18] sm:$0xff]
  %v401 = vld [vmem:[%s396 + $0x20] sm:$0xff]
  %v402 = vld [vmem:[%s396 + $0x28] sm:$0xff]
  %v403 = vld [vmem:[%s396 + $0x30] sm:$0xff]
  %v404 = vld [vmem:[%s396 + $0x38] sm:$0xff]
  %v405 = vld [vmem:[%s396 + $0x40] sm:$0xff]
  %v406 = vld [vmem:[%s396 + $0x48] sm:$0xff]
  %v407 = vld [vmem:[%s396 + $0x50] sm:$0xff]
  %v408 = vld [vmem:[%s396 + $0x58] sm:$0xff]
  %v409 = vld [vmem:[%s396 + $0x60] sm:$0xff]
  %v410 = vld [vmem:[%s396 + $0x68] sm:$0xff]
  %v411 = vld [vmem:[%s396 + $0x70] sm:$0xff]
  %v412 = vld [vmem:[%s396 + $0x78] sm:$0xff]
  %v413 = vld [vmem:[%s396 + $0x80] sm:$0xff]
  %v414 = vld [vmem:[%s396 + $0x88] sm:$0xff]
  %v415 = vld [vmem:[%s396 + $0x90] sm:$0xff]
  %v416 = vld [vmem:[%s396 + $0x98] sm:$0xff]
  %v417 = vld [vmem:[%s396 + $0xa0] sm:$0xff]
  %v418 = vld [vmem:[%s396 + $0xa8] sm:$0xff]
  %v419 = vld [vmem:[%s396 + $0xb0] sm:$0xff]
  %v420 = vld [vmem:[%s396 + $0xb8] sm:$0xff]
  %v421 = vld [vmem:[%s396 + $0xc0] sm:$0xff]
  %v422 = vld [vmem:[%s396 + $0xc8] sm:$0xff]
  %v423 = vld [vmem:[%s396 + $0xd0] sm:$0xff]
  %v424 = vld [vmem:[%s396 + $0xd8] sm:$0xff]
  %v425 = vld [vmem:[%s396 + $0xe0] sm:$0xff]
  %v426 = vld [vmem:[%s396 + $0xe8] sm:$0xff]
  %v427 = vld [vmem:[%s396 + $0xf0] sm:$0xff]
  %v428 = vld [vmem:[%s396 + $0xf8] sm:$0xff]
  %vm449 = vcmask 1046528
  %v450 = vrot.slane %v376, 1
  %v451 = vrot.slane %v378, 1
  %v452 = vsel %vm449, %v450, %v451
  %v453 = vrot.slane %v377, 1
  %v454 = vrot.slane %v379, 1
  %v455 = vsel %vm449, %v453, %v454
  %v456 = vrot.slane %v380, 1
  %v457 = vsel %vm449, %v451, %v456
  %v458 = vrot.slane %v381, 1
  %v459 = vsel %vm449, %v454, %v458
  %v460 = vrot.slane %v382, 1
  %v461 = vsel %vm449, %v456, %v460
  %v462 = vrot.slane %v383, 1
  %v463 = vsel %vm449, %v458, %v462
  %v464 = vrot.slane %v384, 1
  %v465 = vsel %vm449, %v460, %v464
  %v466 = vrot.slane %v385, 1
  %v467 = vsel %vm449, %v462, %v466
  %v468 = vrot.slane %v386, 1
  %v469 = vsel %vm449, %v464, %v468
  %v470 = vrot.slane %v387, 1
  %v471 = vsel %vm449, %v466, %v470
  %v472 = vrot.slane %v388, 1
  %v473 = vsel %vm449, %v468, %v472
  %v474 = vrot.slane %v389, 1
  %v475 = vsel %vm449, %v470, %v474
  %v476 = vrot.slane %v390, 1
  %v477 = vsel %vm449, %v472, %v476
  %v478 = vrot.slane %v391, 1
  %v479 = vsel %vm449, %v474, %v478
  %v480 = vrot.slane %v392, 1
  %v481 = vsel %vm449, %v476, %v480
  %v482 = vrot.slane %v393, 1
  %v483 = vsel %vm449, %v478, %v482
  %v484 = vrot.slane %v394, 1
  %v485 = vsel %vm449, %v480, %v484
  %v486 = vrot.slane %v395, 1
  %v487 = vsel %vm449, %v482, %v486
  %506 = vmatprep.subr.mxu0 0.0
  %507 = vmatpush1.msra.mxu0 %v397
  %508 = vmatprep.subr.mxu0 0.0
  %509 = vmatpush1.msra.mxu0 %v398
  %510 = vmatprep.subr.mxu0 0.0
  %511 = vmatpush1.msra.mxu0 %v399
  %512 = vmatprep.subr.mxu0 0.0
  %513 = vmatpush1.msra.mxu0 %v400
  %514 = vmatprep.subr.mxu0 0.0
  %515 = vmatpush1.msra.mxu0 %v401
  %516 = vmatprep.subr.mxu0 0.0
  %517 = vmatpush1.msra.mxu0 %v402
  %518 = vmatprep.subr.mxu0 0.0
  %519 = vmatpush1.msra.mxu0 %v403
  %520 = vmatprep.subr.mxu0 0.0
  %521 = vmatpush1.msra.mxu0 %v404
  %522 = vmatprep.subr.mxu0 0.0
  %523 = vmatpush1.msra.mxu0 %v405
  %524 = vmatprep.subr.mxu0 0.0
  %525 = vmatpush1.msra.mxu0 %v406
  %526 = vmatprep.subr.mxu0 0.0
  %527 = vmatpush1.msra.mxu0 %v407
  %528 = vmatprep.subr.mxu0 0.0
  %529 = vmatpush1.msra.mxu0 %v408
  %530 = vmatprep.subr.mxu0 0.0
  %531 = vmatpush1.msra.mxu0 %v409
  %532 = vmatprep.subr.mxu0 0.0
  %533 = vmatpush1.msra.mxu0 %v410
  %534 = vmatprep.subr.mxu0 0.0
  %535 = vmatpush1.msra.mxu0 %v411
  %536 = vmatprep.subr.mxu0 0.0
  %537 = vmatpush1.msra.mxu0 %v412
  %538 = vmatprep.subr.mxu0 0.0
  %539 = vmatpush1.msra.mxu0 %v413
  %540 = vmatprep.subr.mxu0 0.0
  %541 = vmatpush1.msra.mxu0 %v414
  %542 = vmatprep.subr.mxu0 0.0
  %543 = vmatpush1.msra.mxu0 %v415
  %544 = vmatprep.subr.mxu0 0.0
  %545 = vmatpush1.msra.mxu0 %v416
  %546 = vmatprep.subr.mxu0 0.0
  %547 = vmatpush1.msra.mxu0 %v417
  %548 = vmatprep.subr.mxu0 0.0
  %549 = vmatpush1.msra.mxu0 %v418
  %550 = vmatprep.subr.mxu0 0.0
  %551 = vmatpush1.msra.mxu0 %v419
  %552 = vmatprep.subr.mxu0 0.0
  %553 = vmatpush1.msra.mxu0 %v420
  %554 = vmatprep.subr.mxu0 0.0
  %555 = vmatpush1.msra.mxu0 %v421
  %556 = vmatprep.subr.mxu0 0.0
  %557 = vmatpush1.msra.mxu0 %v422
  %558 = vmatprep.subr.mxu0 0.0
  %559 = vmatpush1.msra.mxu0 %v423
  %560 = vmatprep.subr.mxu0 0.0
  %561 = vmatpush1.msra.mxu0 %v424
  %562 = vmatprep.subr.mxu0 0.0
  %563 = vmatpush1.msra.mxu0 %v425
  %564 = vmatprep.subr.mxu0 0.0
  %565 = vmatpush1.msra.mxu0 %v426
  %566 = vmatprep.subr.mxu0 0.0
  %567 = vmatpush1.msra.mxu0 %v427
  %568 = vmatprep.subr.mxu0 0.0
  %569 = vmatpush1.msra.mxu0 %v428
  %570 = vmatprep.mubr.f32.mxu0 %v455
  %571 = vmatmul.mubr.f32.gmra.mrb[0].mxu0 %v452
  %v572 = vpop.f32.mrb[0].mxu0
  %v573 = vadd.f32 0.0, %v572
  %v574 = vpop.f32.mrb[0].mxu0
  %575 = vmatprep.mubr.f32.mxu0 %v459
  %576 = vmatmul.mubr.f32.gmra.mrb[0].mxu0 %v457
  %v577 = vpop.f32.mrb[0].mxu0
  %v578 = vadd.f32 0.0, %v577
  %v579 = vpop.f32.mrb[0].mxu0
  %580 = vmatprep.mubr.f32.mxu0 %v463
  %581 = vmatmul.mubr.f32.gmra.mrb[0].mxu0 %v461
  %v582 = vpop.f32.mrb[0].mxu0
  %v583 = vadd.f32 0.0, %v582
  %v584 = vpop.f32.mrb[0].mxu0
  %585 = vmatprep.mubr.f32.mxu0 %v467
  %586 = vmatmul.mubr.f32.gmra.mrb[0].mxu0 %v465
  %v587 = vpop.f32.mrb[0].mxu0
  %v588 = vpop.f32.mrb[0].mxu0
  %589 = vmatprep.mubr.f32.mxu0 %v471
  %590 = vmatmul.mubr.f32.gmra.mrb[0].mxu0 %v469
  %v591 = vpop.f32.mrb[0].mxu0
  %v592 = vpop.f32.mrb[0].mxu0
  %593 = vmatprep.mubr.f32.mxu0 %v475
  %594 = vmatmul.mubr.f32.gmra.mrb[0].mxu0 %v473
  %v595 = vpop.f32.mrb[0].mxu0
  %v596 = vpop.f32.mrb[0].mxu0
  %597 = vmatprep.mubr.f32.mxu0 %v479
  %598 = vmatmul.mubr.f32.gmra.mrb[0].mxu0 %v477
  %v599 = vpop.f32.mrb[0].mxu0
  %v600 = vadd.f32 0.0, %v599
  %v601 = vpop.f32.mrb[0].mxu0
  %602 = vmatprep.mubr.f32.mxu0 %v483
  %603 = vmatmul.mubr.f32.gmra.mrb[0].mxu0 %v481
  %v604 = vpop.f32.mrb[0].mxu0
  %v605 = vadd.f32 0.0, %v604
  %v606 = vpop.f32.mrb[0].mxu0
  %607 = vmatprep.mubr.f32.mxu0 %v487
  %608 = vmatmul.mubr.f32.gmra.mrb[0].mxu0 %v485
  %v609 = vpop.f32.mrb[0].mxu0
  %v610 = vadd.f32 0.0, %v609
  %v611 = vpop.f32.mrb[0].mxu0
  %612 = vdwg.mxu0
  %v613 = vld [vmem:[%s2] sm:$0x1]
  %v615 = vlaneseq
  %v616 = vshrl.u32 %v615, 7
  %v617 = vsub.s32 0, %v616
  %v618 = vrot.slane %v613, %v617
  %v620 = vmul.f32 %v573, %v618
  %v621 = vmul.f32 %v578, %v618
  %v622 = vmul.f32 %v583, %v618
  %v623 = vmul.f32 %v600, %v618
  %v624 = vmul.f32 %v605, %v618
  %v625 = vmul.f32 %v610, %v618
  %v626 = vld [vmem:[%s3] sm:$0x1]
  %v628 = vlaneseq
  %v629 = vshrl.u32 %v628, 7
  %v630 = vsub.s32 0, %v629
  %v631 = vrot.slane %v626, %v630
  %v633 = vadd.f32 %v620, %v631
  %v634 = vadd.f32 %v621, %v631
  %v635 = vadd.f32 %v622, %v631
  %v636 = vadd.f32 %v623, %v631
  %v637 = vadd.f32 %v624, %v631
  %v638 = vadd.f32 %v625, %v631
  %v639 = vmax.f32 %v633, 0.0
  %v640 = vmax.f32 %v634, 0.0
  %v641 = vmax.f32 %v635, 0.0
  %v642 = vmax.f32 %v636, 0.0
  %v643 = vmax.f32 %v637, 0.0
  %v644 = vmax.f32 %v638, 0.0
  %s645 = scalar_lea.vmem %s4, 24
  %646 = vst.msk [vmem:[%s645] sm:$0xff] %vm368, %v639
  %647 = vst.msk [vmem:[%s645 + $0x8] sm:$0xff] %vm368, %v640
  %648 = vst.msk [vmem:[%s645 + $0x10] sm:$0xff] %vm368, %v641
  %s649 = scalar_lea.vmem %s4, 120
  %650 = vst.msk [vmem:[%s649] sm:$0xff] %vm368, %v642
  %651 = vst.msk [vmem:[%s649 + $0x8] sm:$0xff] %vm368, %v643
  %652 = vst.msk [vmem:[%s649 + $0x10] sm:$0xff] %vm368, %v644
  %v653 = vld [vmem:[#allocation2] sm:$0xc0]
  %v654 = vld [vmem:[#allocation2 + $0x8] sm:$0xc0]
  %v655 = vld [vmem:[#allocation2 + $0x10] sm:$0xff]
  %v656 = vld [vmem:[#allocation2 + $0x18] sm:$0xff]
  %v657 = vld [vmem:[#allocation2 + $0x20] sm:$0xff]
  %v658 = vld [vmem:[#allocation2 + $0x28] sm:$0xff]
  %v659 = vld [vmem:[#allocation2 + $0x30] sm:$0xff]
  %v660 = vld [vmem:[#allocation2 + $0x38] sm:$0xff]
  %v661 = vld [vmem:[#allocation2 + $0x40] sm:$0xff]
  %v662 = vld [vmem:[#allocation2 + $0x48] sm:$0xff]
  %v663 = vld [vmem:[#allocation2 + $0x50] sm:$0xff]
  %v664 = vld [vmem:[#allocation2 + $0x58] sm:$0xff]
  %v665 = vld [vmem:[#allocation2 + $0x60] sm:$0xff]
  %v666 = vld [vmem:[#allocation2 + $0x68] sm:$0xff]
  %v667 = vld [vmem:[#allocation2 + $0x70] sm:$0xff]
  %v668 = vld [vmem:[#allocation2 + $0x78] sm:$0xff]
  %v669 = vld [vmem:[#allocation2 + $0x80] sm:$0xff]
  %v670 = vld [vmem:[#allocation2 + $0x88] sm:$0xff]
  %v671 = vld [vmem:[#allocation2 + $0x90] sm:$0x3f]
  %v672 = vld [vmem:[#allocation2 + $0x98] sm:$0x3f]
  %s673 = scalar_lea.vmem %s1, 512
  %v674 = vld [vmem:[%s673] sm:$0xff]
  %v675 = vld [vmem:[%s673 + $0x8] sm:$0xff]
  %v676 = vld [vmem:[%s673 + $0x10] sm:$0xff]
  %v677 = vld [vmem:[%s673 + $0x18] sm:$0xff]
  %v678 = vld [vmem:[%s673 + $0x20] sm:$0xff]
  %v679 = vld [vmem:[%s673 + $0x28] sm:$0xff]
  %v680 = vld [vmem:[%s673 + $0x30] sm:$0xff]
  %v681 = vld [vmem:[%s673 + $0x38] sm:$0xff]
  %v682 = vld [vmem:[%s673 + $0x40] sm:$0xff]
  %v683 = vld [vmem:[%s673 + $0x48] sm:$0xff]
  %v684 = vld [vmem:[%s673 + $0x50] sm:$0xff]
  %v685 = vld [vmem:[%s673 + $0x58] sm:$0xff]
  %v686 = vld [vmem:[%s673 + $0x60] sm:$0xff]
  %v687 = vld [vmem:[%s673 + $0x68] sm:$0xff]
  %v688 = vld [vmem:[%s673 + $0x70] sm:$0xff]
  %v689 = vld [vmem:[%s673 + $0x78] sm:$0xff]
  %v690 = vld [vmem:[%s673 + $0x80] sm:$0xff]
  %v691 = vld [vmem:[%s673 + $0x88] sm:$0xff]
  %v692 = vld [vmem:[%s673 + $0x90] sm:$0xff]
  %v693 = vld [vmem:[%s673 + $0x98] sm:$0xff]
  %v694 = vld [vmem:[%s673 + $0xa0] sm:$0xff]
  %v695 = vld [vmem:[%s673 + $0xa8] sm:$0xff]
  %v696 = vld [vmem:[%s673 + $0xb0] sm:$0xff]
  %v697 = vld [vmem:[%s673 + $0xb8] sm:$0xff]
  %v698 = vld [vmem:[%s673 + $0xc0] sm:$0xff]
  %v699 = vld [vmem:[%s673 + $0xc8] sm:$0xff]
  %v700 = vld [vmem:[%s673 + $0xd0] sm:$0xff]
  %v701 = vld [vmem:[%s673 + $0xd8] sm:$0xff]
  %v702 = vld [vmem:[%s673 + $0xe0] sm:$0xff]
  %v703 = vld [vmem:[%s673 + $0xe8] sm:$0xff]
  %v704 = vld [vmem:[%s673 + $0xf0] sm:$0xff]
  %v705 = vld [vmem:[%s673 + $0xf8] sm:$0xff]
  %vm726 = vcmask 1041408
  %v727 = vrot.slane %v653, 6
  %v728 = vrot.slane %v655, 6
  %v729 = vsel %vm726, %v727, %v728
  %v730 = vrot.slane %v654, 6
  %v731 = vrot.slane %v656, 6
  %v732 = vsel %vm726, %v730, %v731
  %v733 = vrot.slane %v657, 6
  %v734 = vsel %vm726, %v728, %v733
  %v735 = vrot.slane %v658, 6
  %v736 = vsel %vm726, %v731, %v735
  %v737 = vrot.slane %v659, 6
  %v738 = vsel %vm726, %v733, %v737
  %v739 = vrot.slane %v660, 6
  %v740 = vsel %vm726, %v735, %v739
  %v741 = vrot.slane %v661, 6
  %v742 = vsel %vm726, %v737, %v741
  %v743 = vrot.slane %v662, 6
  %v744 = vsel %vm726, %v739, %v743
  %v745 = vrot.slane %v663, 6
  %v746 = vsel %vm726, %v741, %v745
  %v747 = vrot.slane %v664, 6
  %v748 = vsel %vm726, %v743, %v747
  %v749 = vrot.slane %v665, 6
  %v750 = vsel %vm726, %v745, %v749
  %v751 = vrot.slane %v666, 6
  %v752 = vsel %vm726, %v747, %v751
  %v753 = vrot.slane %v667, 6
  %v754 = vsel %vm726, %v749, %v753
  %v755 = vrot.slane %v668, 6
  %v756 = vsel %vm726, %v751, %v755
  %v757 = vrot.slane %v669, 6
  %v758 = vsel %vm726, %v753, %v757
  %v759 = vrot.slane %v670, 6
  %v760 = vsel %vm726, %v755, %v759
  %v761 = vrot.slane %v671, 6
  %v762 = vsel %vm726, %v757, %v761
  %v763 = vrot.slane %v672, 6
  %v764 = vsel %vm726, %v759, %v763
  %783 = vmatprep.subr.mxu0 0.0
  %784 = vmatpush1.msra.mxu0 %v674
  %785 = vmatprep.subr.mxu0 0.0
  %786 = vmatpush1.msra.mxu0 %v675
  %787 = vmatprep.subr.mxu0 0.0
  %788 = vmatpush1.msra.mxu0 %v676
  %789 = vmatprep.subr.mxu0 0.0
  %790 = vmatpush1.msra.mxu0 %v677
  %791 = vmatprep.subr.mxu0 0.0
  %792 = vmatpush1.msra.mxu0 %v678
  %793 = vmatprep.subr.mxu0 0.0
  %794 = vmatpush1.msra.mxu0 %v679
  %795 = vmatprep.subr.mxu0 0.0
  %796 = vmatpush1.msra.mxu0 %v680
  %797 = vmatprep.subr.mxu0 0.0
  %798 = vmatpush1.msra.mxu0 %v681
  %799 = vmatprep.subr.mxu0 0.0
  %800 = vmatpush1.msra.mxu0 %v682
  %801 = vmatprep.subr.mxu0 0.0
  %802 = vmatpush1.msra.mxu0 %v683
  %803 = vmatprep.subr.mxu0 0.0
  %804 = vmatpush1.msra.mxu0 %v684
  %805 = vmatprep.subr.mxu0 0.0
  %806 = vmatpush1.msra.mxu0 %v685
  %807 = vmatprep.subr.mxu0 0.0
  %808 = vmatpush1.msra.mxu0 %v686
  %809 = vmatprep.subr.mxu0 0.0
  %810 = vmatpush1.msra.mxu0 %v687
  %811 = vmatprep.subr.mxu0 0.0
  %812 = vmatpush1.msra.mxu0 %v688
  %813 = vmatprep.subr.mxu0 0.0
  %814 = vmatpush1.msra.mxu0 %v689
  %815 = vmatprep.subr.mxu0 0.0
  %816 = vmatpush1.msra.mxu0 %v690
  %817 = vmatprep.subr.mxu0 0.0
  %818 = vmatpush1.msra.mxu0 %v691
  %819 = vmatprep.subr.mxu0 0.0
  %820 = vmatpush1.msra.mxu0 %v692
  %821 = vmatprep.subr.mxu0 0.0
  %822 = vmatpush1.msra.mxu0 %v693
  %823 = vmatprep.subr.mxu0 0.0
  %824 = vmatpush1.msra.mxu0 %v694
  %825 = vmatprep.subr.mxu0 0.0
  %826 = vmatpush1.msra.mxu0 %v695
  %827 = vmatprep.subr.mxu0 0.0
  %828 = vmatpush1.msra.mxu0 %v696
  %829 = vmatprep.subr.mxu0 0.0
  %830 = vmatpush1.msra.mxu0 %v697
  %831 = vmatprep.subr.mxu0 0.0
  %832 = vmatpush1.msra.mxu0 %v698
  %833 = vmatprep.subr.mxu0 0.0
  %834 = vmatpush1.msra.mxu0 %v699
  %835 = vmatprep.subr.mxu0 0.0
  %836 = vmatpush1.msra.mxu0 %v700
  %837 = vmatprep.subr.mxu0 0.0
  %838 = vmatpush1.msra.mxu0 %v701
  %839 = vmatprep.subr.mxu0 0.0
  %840 = vmatpush1.msra.mxu0 %v702
  %841 = vmatprep.subr.mxu0 0.0
  %842 = vmatpush1.msra.mxu0 %v703
  %843 = vmatprep.subr.mxu0 0.0
  %844 = vmatpush1.msra.mxu0 %v704
  %845 = vmatprep.subr.mxu0 0.0
  %846 = vmatpush1.msra.mxu0 %v705
  %847 = vmatprep.mubr.f32.mxu0 %v732
  %848 = vmatmul.mubr.f32.gmra.mrb[0].mxu0 %v729
  %v849 = vpop.f32.mrb[0].mxu0
  %v850 = vadd.f32 0.0, %v849
  %v851 = vpop.f32.mrb[0].mxu0
  %852 = vmatprep.mubr.f32.mxu0 %v736
  %853 = vmatmul.mubr.f32.gmra.mrb[0].mxu0 %v734
  %v854 = vpop.f32.mrb[0].mxu0
  %v855 = vadd.f32 0.0, %v854
  %v856 = vpop.f32.mrb[0].mxu0
  %857 = vmatprep.mubr.f32.mxu0 %v740
  %858 = vmatmul.mubr.f32.gmra.mrb[0].mxu0 %v738
  %v859 = vpop.f32.mrb[0].mxu0
  %v860 = vadd.f32 0.0, %v859
  %v861 = vpop.f32.mrb[0].mxu0
  %862 = vmatprep.mubr.f32.mxu0 %v744
  %863 = vmatmul.mubr.f32.gmra.mrb[0].mxu0 %v742
  %v864 = vpop.f32.mrb[0].mxu0
  %v865 = vpop.f32.mrb[0].mxu0
  %866 = vmatprep.mubr.f32.mxu0 %v748
  %867 = vmatmul.mubr.f32.gmra.mrb[0].mxu0 %v746
  %v868 = vpop.f32.mrb[0].mxu0
  %v869 = vpop.f32.mrb[0].mxu0
  %870 = vmatprep.mubr.f32.mxu0 %v752
  %871 = vmatmul.mubr.f32.gmra.mrb[0].mxu0 %v750
  %v872 = vpop.f32.mrb[0].mxu0
  %v873 = vpop.f32.mrb[0].mxu0
  %874 = vmatprep.mubr.f32.mxu0 %v756
  %875 = vmatmul.mubr.f32.gmra.mrb[0].mxu0 %v754
  %v876 = vpop.f32.mrb[0].mxu0
  %v877 = vadd.f32 0.0, %v876
  %v878 = vpop.f32.mrb[0].mxu0
  %879 = vmatprep.mubr.f32.mxu0 %v760
  %880 = vmatmul.mubr.f32.gmra.mrb[0].mxu0 %v758
  %v881 = vpop.f32.mrb[0].mxu0
  %v882 = vadd.f32 0.0, %v881
  %v883 = vpop.f32.mrb[0].mxu0
  %884 = vmatprep.mubr.f32.mxu0 %v764
  %885 = vmatmul.mubr.f32.gmra.mrb[0].mxu0 %v762
  %v886 = vpop.f32.mrb[0].mxu0
  %v887 = vadd.f32 0.0, %v886
  %v888 = vpop.f32.mrb[0].mxu0
  %889 = vdwg.mxu0
  %v890 = vld [vmem:[%s2] sm:$0x1]
  %v892 = vlaneseq
  %v893 = vshrl.u32 %v892, 7
  %v894 = vsub.s32 0, %v893
  %v895 = vrot.slane %v890, %v894
  %v897 = vmul.f32 %v850, %v895
  %v898 = vmul.f32 %v855, %v895
  %v899 = vmul.f32 %v860, %v895
  %v900 = vmul.f32 %v877, %v895
  %v901 = vmul.f32 %v882, %v895
  %v902 = vmul.f32 %v887, %v895
  %v903 = vld [vmem:[%s3] sm:$0x1]
  %v905 = vlaneseq
  %v906 = vshrl.u32 %v905, 7
  %v907 = vsub.s32 0, %v906
  %v908 = vrot.slane %v903, %v907
  %v910 = vadd.f32 %v897, %v908
  %v911 = vadd.f32 %v898, %v908
  %v912 = vadd.f32 %v899, %v908
  %v913 = vadd.f32 %v900, %v908
  %v914 = vadd.f32 %v901, %v908
  %v915 = vadd.f32 %v902, %v908
  %v916 = vmax.f32 %v910, 0.0
  %v917 = vmax.f32 %v911, 0.0
  %v918 = vmax.f32 %v912, 0.0
  %v919 = vmax.f32 %v913, 0.0
  %v920 = vmax.f32 %v914, 0.0
  %v921 = vmax.f32 %v915, 0.0
  %s922 = scalar_lea.vmem %s4, 48
  %923 = vst.msk [vmem:[%s922] sm:$0xff] %vm368, %v916
  %924 = vst.msk [vmem:[%s922 + $0x8] sm:$0xff] %vm368, %v917
  %925 = vst.msk [vmem:[%s922 + $0x10] sm:$0xff] %vm368, %v918
  %s926 = scalar_lea.vmem %s4, 144
  %927 = vst.msk [vmem:[%s926] sm:$0xff] %vm368, %v919
  %928 = vst.msk [vmem:[%s926 + $0x8] sm:$0xff] %vm368, %v920
  %929 = vst.msk [vmem:[%s926 + $0x10] sm:$0xff] %vm368, %v921
  %v930 = vld [vmem:[#allocation2] sm:$0x80]
  %v931 = vld [vmem:[#allocation2 + $0x8] sm:$0x80]
  %v932 = vld [vmem:[#allocation2 + $0x10] sm:$0xff]
  %v933 = vld [vmem:[#allocation2 + $0x18] sm:$0xff]
  %v934 = vld [vmem:[#allocation2 + $0x20] sm:$0xff]
  %v935 = vld [vmem:[#allocation2 + $0x28] sm:$0xff]
  %v936 = vld [vmem:[#allocation2 + $0x30] sm:$0xff]
  %v937 = vld [vmem:[#allocation2 + $0x38] sm:$0xff]
  %v938 = vld [vmem:[#allocation2 + $0x40] sm:$0xff]
  %v939 = vld [vmem:[#allocation2 + $0x48] sm:$0xff]
  %v940 = vld [vmem:[#allocation2 + $0x50] sm:$0xff]
  %v941 = vld [vmem:[#allocation2 + $0x58] sm:$0xff]
  %v942 = vld [vmem:[#allocation2 + $0x60] sm:$0xff]
  %v943 = vld [vmem:[#allocation2 + $0x68] sm:$0xff]
  %v944 = vld [vmem:[#allocation2 + $0x70] sm:$0xff]
  %v945 = vld [vmem:[#allocation2 + $0x78] sm:$0xff]
  %v946 = vld [vmem:[#allocation2 + $0x80] sm:$0xff]
  %v947 = vld [vmem:[#allocation2 + $0x88] sm:$0xff]
  %v948 = vld [vmem:[#allocation2 + $0x90] sm:$0x7f]
  %v949 = vld [vmem:[#allocation2 + $0x98] sm:$0x7f]
  %s950 = scalar_lea.vmem %s1, 768
  %v951 = vld [vmem:[%s950] sm:$0xff]
  %v952 = vld [vmem:[%s950 + $0x8] sm:$0xff]
  %v953 = vld [vmem:[%s950 + $0x10] sm:$0xff]
  %v954 = vld [vmem:[%s950 + $0x18] sm:$0xff]
  %v955 = vld [vmem:[%s950 + $0x20] sm:$0xff]
  %v956 = vld [vmem:[%s950 + $0x28] sm:$0xff]
  %v957 = vld [vmem:[%s950 + $0x30] sm:$0xff]
  %v958 = vld [vmem:[%s950 + $0x38] sm:$0xff]
  %v959 = vld [vmem:[%s950 + $0x40] sm:$0xff]
  %v960 = vld [vmem:[%s950 + $0x48] sm:$0xff]
  %v961 = vld [vmem:[%s950 + $0x50] sm:$0xff]
  %v962 = vld [vmem:[%s950 + $0x58] sm:$0xff]
  %v963 = vld [vmem:[%s950 + $0x60] sm:$0xff]
  %v964 = vld [vmem:[%s950 + $0x68] sm:$0xff]
  %v965 = vld [vmem:[%s950 + $0x70] sm:$0xff]
  %v966 = vld [vmem:[%s950 + $0x78] sm:$0xff]
  %v967 = vld [vmem:[%s950 + $0x80] sm:$0xff]
  %v968 = vld [vmem:[%s950 + $0x88] sm:$0xff]
  %v969 = vld [vmem:[%s950 + $0x90] sm:$0xff]
  %v970 = vld [vmem:[%s950 + $0x98] sm:$0xff]
  %v971 = vld [vmem:[%s950 + $0xa0] sm:$0xff]
  %v972 = vld [vmem:[%s950 + $0xa8] sm:$0xff]
  %v973 = vld [vmem:[%s950 + $0xb0] sm:$0xff]
  %v974 = vld [vmem:[%s950 + $0xb8] sm:$0xff]
  %v975 = vld [vmem:[%s950 + $0xc0] sm:$0xff]
  %v976 = vld [vmem:[%s950 + $0xc8] sm:$0xff]
  %v977 = vld [vmem:[%s950 + $0xd0] sm:$0xff]
  %v978 = vld [vmem:[%s950 + $0xd8] sm:$0xff]
  %v979 = vld [vmem:[%s950 + $0xe0] sm:$0xff]
  %v980 = vld [vmem:[%s950 + $0xe8] sm:$0xff]
  %v981 = vld [vmem:[%s950 + $0xf0] sm:$0xff]
  %v982 = vld [vmem:[%s950 + $0xf8] sm:$0xff]
  %vm1003 = vcmask 1040384
  %v1004 = vrot.slane %v930, 7
  %v1005 = vrot.slane %v932, 7
  %v1006 = vsel %vm1003, %v1004, %v1005
  %v1007 = vrot.slane %v931, 7
  %v1008 = vrot.slane %v933, 7
  %v1009 = vsel %vm1003, %v1007, %v1008
  %v1010 = vrot.slane %v934, 7
  %v1011 = vsel %vm1003, %v1005, %v1010
  %v1012 = vrot.slane %v935, 7
  %v1013 = vsel %vm1003, %v1008, %v1012
  %v1014 = vrot.slane %v936, 7
  %v1015 = vsel %vm1003, %v1010, %v1014
  %v1016 = vrot.slane %v937, 7
  %v1017 = vsel %vm1003, %v1012, %v1016
  %v1018 = vrot.slane %v938, 7
  %v1019 = vsel %vm1003, %v1014, %v1018
  %v1020 = vrot.slane %v939, 7
  %v1021 = vsel %vm1003, %v1016, %v1020
  %v1022 = vrot.slane %v940, 7
  %v1023 = vsel %vm1003, %v1018, %v1022
  %v1024 = vrot.slane %v941, 7
  %v1025 = vsel %vm1003, %v1020, %v1024
  %v1026 = vrot.slane %v942, 7
  %v1027 = vsel %vm1003, %v1022, %v1026
  %v1028 = vrot.slane %v943, 7
  %v1029 = vsel %vm1003, %v1024, %v1028
  %v1030 = vrot.slane %v944, 7
  %v1031 = vsel %vm1003, %v1026, %v1030
  %v1032 = vrot.slane %v945, 7
  %v1033 = vsel %vm1003, %v1028, %v1032
  %v1034 = vrot.slane %v946, 7
  %v1035 = vsel %vm1003, %v1030, %v1034
  %v1036 = vrot.slane %v947, 7
  %v1037 = vsel %vm1003, %v1032, %v1036
  %v1038 = vrot.slane %v948, 7
  %v1039 = vsel %vm1003, %v1034, %v1038
  %v1040 = vrot.slane %v949, 7
  %v1041 = vsel %vm1003, %v1036, %v1040
  %1060 = vmatprep.subr.mxu0 0.0
  %1061 = vmatpush1.msra.mxu0 %v951
  %1062 = vmatprep.subr.mxu0 0.0
  %1063 = vmatpush1.msra.mxu0 %v952
  %1064 = vmatprep.subr.mxu0 0.0
  %1065 = vmatpush1.msra.mxu0 %v953
  %1066 = vmatprep.subr.mxu0 0.0
  %1067 = vmatpush1.msra.mxu0 %v954
  %1068 = vmatprep.subr.mxu0 0.0
  %1069 = vmatpush1.msra.mxu0 %v955
  %1070 = vmatprep.subr.mxu0 0.0
  %1071 = vmatpush1.msra.mxu0 %v956
  %1072 = vmatprep.subr.mxu0 0.0
  %1073 = vmatpush1.msra.mxu0 %v957
  %1074 = vmatprep.subr.mxu0 0.0
  %1075 = vmatpush1.msra.mxu0 %v958
  %1076 = vmatprep.subr.mxu0 0.0
  %1077 = vmatpush1.msra.mxu0 %v959
  %1078 = vmatprep.subr.mxu0 0.0
  %1079 = vmatpush1.msra.mxu0 %v960
  %1080 = vmatprep.subr.mxu0 0.0
  %1081 = vmatpush1.msra.mxu0 %v961
  %1082 = vmatprep.subr.mxu0 0.0
  %1083 = vmatpush1.msra.mxu0 %v962
  %1084 = vmatprep.subr.mxu0 0.0
  %1085 = vmatpush1.msra.mxu0 %v963
  %1086 = vmatprep.subr.mxu0 0.0
  %1087 = vmatpush1.msra.mxu0 %v964
  %1088 = vmatprep.subr.mxu0 0.0
  %1089 = vmatpush1.msra.mxu0 %v965
  %1090 = vmatprep.subr.mxu0 0.0
  %1091 = vmatpush1.msra.mxu0 %v966
  %1092 = vmatprep.subr.mxu0 0.0
  %1093 = vmatpush1.msra.mxu0 %v967
  %1094 = vmatprep.subr.mxu0 0.0
  %1095 = vmatpush1.msra.mxu0 %v968
  %1096 = vmatprep.subr.mxu0 0.0
  %1097 = vmatpush1.msra.mxu0 %v969
  %1098 = vmatprep.subr.mxu0 0.0
  %1099 = vmatpush1.msra.mxu0 %v970
  %1100 = vmatprep.subr.mxu0 0.0
  %1101 = vmatpush1.msra.mxu0 %v971
  %1102 = vmatprep.subr.mxu0 0.0
  %1103 = vmatpush1.msra.mxu0 %v972
  %1104 = vmatprep.subr.mxu0 0.0
  %1105 = vmatpush1.msra.mxu0 %v973
  %1106 = vmatprep.subr.mxu0 0.0
  %1107 = vmatpush1.msra.mxu0 %v974
  %1108 = vmatprep.subr.mxu0 0.0
  %1109 = vmatpush1.msra.mxu0 %v975
  %1110 = vmatprep.subr.mxu0 0.0
  %1111 = vmatpush1.msra.mxu0 %v976
  %1112 = vmatprep.subr.mxu0 0.0
  %1113 = vmatpush1.msra.mxu0 %v977
  %1114 = vmatprep.subr.mxu0 0.0
  %1115 = vmatpush1.msra.mxu0 %v978
  %1116 = vmatprep.subr.mxu0 0.0
  %1117 = vmatpush1.msra.mxu0 %v979
  %1118 = vmatprep.subr.mxu0 0.0
  %1119 = vmatpush1.msra.mxu0 %v980
  %1120 = vmatprep.subr.mxu0 0.0
  %1121 = vmatpush1.msra.mxu0 %v981
  %1122 = vmatprep.subr.mxu0 0.0
  %1123 = vmatpush1.msra.mxu0 %v982
  %1124 = vmatprep.mubr.f32.mxu0 %v1009
  %1125 = vmatmul.mubr.f32.gmra.mrb[0].mxu0 %v1006
  %v1126 = vpop.f32.mrb[0].mxu0
  %v1127 = vadd.f32 0.0, %v1126
  %v1128 = vpop.f32.mrb[0].mxu0
  %1129 = vmatprep.mubr.f32.mxu0 %v1013
  %1130 = vmatmul.mubr.f32.gmra.mrb[0].mxu0 %v1011
  %v1131 = vpop.f32.mrb[0].mxu0
  %v1132 = vadd.f32 0.0, %v1131
  %v1133 = vpop.f32.mrb[0].mxu0
  %1134 = vmatprep.mubr.f32.mxu0 %v1017
  %1135 = vmatmul.mubr.f32.gmra.mrb[0].mxu0 %v1015
  %v1136 = vpop.f32.mrb[0].mxu0
  %v1137 = vadd.f32 0.0, %v1136
  %v1138 = vpop.f32.mrb[0].mxu0
  %1139 = vmatprep.mubr.f32.mxu0 %v1021
  %1140 = vmatmul.mubr.f32.gmra.mrb[0].mxu0 %v1019
  %v1141 = vpop.f32.mrb[0].mxu0
  %v1142 = vpop.f32.mrb[0].mxu0
  %1143 = vmatprep.mubr.f32.mxu0 %v1025
  %1144 = vmatmul.mubr.f32.gmra.mrb[0].mxu0 %v1023
  %v1145 = vpop.f32.mrb[0].mxu0
  %v1146 = vpop.f32.mrb[0].mxu0
  %1147 = vmatprep.mubr.f32.mxu0 %v1029
  %1148 = vmatmul.mubr.f32.gmra.mrb[0].mxu0 %v1027
  %v1149 = vpop.f32.mrb[0].mxu0
  %v1150 = vpop.f32.mrb[0].mxu0
  %1151 = vmatprep.mubr.f32.mxu0 %v1033
  %1152 = vmatmul.mubr.f32.gmra.mrb[0].mxu0 %v1031
  %v1153 = vpop.f32.mrb[0].mxu0
  %v1154 = vadd.f32 0.0, %v1153
  %v1155 = vpop.f32.mrb[0].mxu0
  %1156 = vmatprep.mubr.f32.mxu0 %v1037
  %1157 = vmatmul.mubr.f32.gmra.mrb[0].mxu0 %v1035
  %v1158 = vpop.f32.mrb[0].mxu0
  %v1159 = vadd.f32 0.0, %v1158
  %v1160 = vpop.f32.mrb[0].mxu0
  %1161 = vmatprep.mubr.f32.mxu0 %v1041
  %1162 = vmatmul.mubr.f32.gmra.mrb[0].mxu0 %v1039
  %v1163 = vpop.f32.mrb[0].mxu0
  %v1164 = vadd.f32 0.0, %v1163
  %v1165 = vpop.f32.mrb[0].mxu0
  %1166 = vdwg.mxu0
  %v1167 = vld [vmem:[%s2] sm:$0x1]
  %v1169 = vlaneseq
  %v1170 = vshrl.u32 %v1169, 7
  %v1171 = vsub.s32 0, %v1170
  %v1172 = vrot.slane %v1167, %v1171
  %v1174 = vmul.f32 %v1127, %v1172
  %v1175 = vmul.f32 %v1132, %v1172
  %v1176 = vmul.f32 %v1137, %v1172
  %v1177 = vmul.f32 %v1154, %v1172
  %v1178 = vmul.f32 %v1159, %v1172
  %v1179 = vmul.f32 %v1164, %v1172
  %v1180 = vld [vmem:[%s3] sm:$0x1]
  %v1182 = vlaneseq
  %v1183 = vshrl.u32 %v1182, 7
  %v1184 = vsub.s32 0, %v1183
  %v1185 = vrot.slane %v1180, %v1184
  %v1187 = vadd.f32 %v1174, %v1185
  %v1188 = vadd.f32 %v1175, %v1185
  %v1189 = vadd.f32 %v1176, %v1185
  %v1190 = vadd.f32 %v1177, %v1185
  %v1191 = vadd.f32 %v1178, %v1185
  %v1192 = vadd.f32 %v1179, %v1185
  %v1193 = vmax.f32 %v1187, 0.0
  %v1194 = vmax.f32 %v1188, 0.0
  %v1195 = vmax.f32 %v1189, 0.0
  %v1196 = vmax.f32 %v1190, 0.0
  %v1197 = vmax.f32 %v1191, 0.0
  %v1198 = vmax.f32 %v1192, 0.0
  %s1199 = scalar_lea.vmem %s4, 72
  %1200 = vst.msk [vmem:[%s1199] sm:$0xff] %vm368, %v1193
  %1201 = vst.msk [vmem:[%s1199 + $0x8] sm:$0xff] %vm368, %v1194
  %1202 = vst.msk [vmem:[%s1199 + $0x10] sm:$0xff] %vm368, %v1195
  %s1203 = scalar_lea.vmem %s4, 168
  %1204 = vst.msk [vmem:[%s1203] sm:$0xff] %vm368, %v1196
  %1205 = vst.msk [vmem:[%s1203 + $0x8] sm:$0xff] %vm368, %v1197
  %1206 = vst.msk [vmem:[%s1203 + $0x10] sm:$0xff] %vm368, %v1198
  // Predicated region
  $region18: #{hourglass_forward.10} parent=0 // pred_check
    _
  $region19: #{hourglass_forward.10} parent=0 // pred_check_branch
    %1208 = sbr.rel (0) target = $region21
  $region20: #{hourglass_forward.10} parent=0 // pred_region
    _
  $region21: #{hourglass_forward.10} parent=0 // pred_fallthru
    _
  // Predicated region
  $region22: #{hourglass_forward.10} parent=0 // pred_check
    _
  $region23: #{hourglass_forward.10} parent=0 // pred_check_branch
    %1210 = sbr.rel (0) target = $region25
  $region24: #{hourglass_forward.10} parent=0 // pred_region
    _
  $region25: #{hourglass_forward.10} parent=0 // pred_fallthru
    _

// kernel: hourglass_forward.11
$region0: #{hourglass_forward.11}
  #allocation0 [shape = 'u32[]', space=smem, size = 0x4, offset = 0x4, fixed_abs, tag = 'smem constant byte address 0x4 - core index']
  #allocation1 [shape = 'u32[144,128]{1,0:T(1,128)}', space=vmem, size = 0x12000, scoped, tag = 'internal scratch']
  #allocation2 [shape = 'f32[204,128]{1,0:T(8,128)}', space=vmem, size = 0x1a000, scoped, tag = 'scratch operand']
  %s0 = inlined_call_operand.vmem [shape: f32[224,32], index: 0, kind: input, shape index: {}]
  %s1 = inlined_call_operand.vmem [shape: f32[4,128,8], index: 1, kind: input, shape index: {}]
  %s2 = inlined_call_operand.vmem [shape: f32[1,8], index: 2, kind: input, shape index: {}]
  %s3 = inlined_call_operand.vmem [shape: f32[1,8], index: 3, kind: input, shape index: {}]
  %s4 = inlined_call_operand.vmem [shape: f32[2,4,80,8], index: 4, kind: output, shape index: {}]
  %s5 = sld [smem:[#allocation0]]
  $region26: #{hourglass_forward.11} parent=0
    _
  %s7 = ssub.s32 1, %s5
  %s8 = scalar_select 0, %s7, %s5
  // Predicated region
  $region2: #{hourglass_forward.11} parent=0 // pred_check
    _
  $region3: #{hourglass_forward.11} parent=0 // pred_check_branch
    %10 = sbr.rel (0) target = $region5
  $region4: #{hourglass_forward.11} parent=0 // pred_region
    _
  $region5: #{hourglass_forward.11} parent=0 // pred_fallthru
    _
  // Predicated region
  $region6: #{hourglass_forward.11} parent=0 // pred_check
    _
  $region7: #{hourglass_forward.11} parent=0 // pred_check_branch
    %12 = sbr.rel (0) target = $region9
  $region8: #{hourglass_forward.11} parent=0 // pred_region
    _
  $region9: #{hourglass_forward.11} parent=0 // pred_fallthru
    _
  // Predicated region
  $region10: #{hourglass_forward.11} parent=0 // pred_check
    _
  $region11: #{hourglass_forward.11} parent=0 // pred_check_branch
    %14 = sbr.rel (0) target = $region13
  $region12: #{hourglass_forward.11} parent=0 // pred_region
    _
  $region13: #{hourglass_forward.11} parent=0 // pred_fallthru
    _
  // Predicated region
  $region14: #{hourglass_forward.11} parent=0 // pred_check
    _
  $region15: #{hourglass_forward.11} parent=0 // pred_check_branch
    %16 = sbr.rel (0) target = $region17
  $region16: #{hourglass_forward.11} parent=0 // pred_region
    _
  $region17: #{hourglass_forward.11} parent=0 // pred_fallthru
    _
  %v17 = vld [vmem:[%s0] sm:$0xff]
  %v18 = vld [vmem:[%s0 + $0x8] sm:$0xff]
  %v19 = vld [vmem:[%s0 + $0x10] sm:$0xff]
  %v20 = vld [vmem:[%s0 + $0x18] sm:$0xff]
  %v21 = vld [vmem:[%s0 + $0x20] sm:$0xff]
  %v22 = vld [vmem:[%s0 + $0x28] sm:$0xff]
  %v23 = vld [vmem:[%s0 + $0x30] sm:$0xff]
  %v24 = vld [vmem:[%s0 + $0x38] sm:$0xff]
  %v25 = vld [vmem:[%s0 + $0x40] sm:$0xff]
  %v26 = vld [vmem:[%s0 + $0x48] sm:$0xff]
  %v27 = vld [vmem:[%s0 + $0x50] sm:$0xff]
  %v28 = vld [vmem:[%s0 + $0x58] sm:$0xff]
  %v29 = vld [vmem:[%s0 + $0x60] sm:$0xff]
  %v30 = vld [vmem:[%s0 + $0x68] sm:$0xff]
  %v31 = vld [vmem:[%s0 + $0x70] sm:$0xff]
  %v32 = vld [vmem:[%s0 + $0x78] sm:$0xff]
  %v33 = vld [vmem:[%s0 + $0x80] sm:$0xff]
  %v34 = vld [vmem:[%s0 + $0x88] sm:$0xff]
  %v35 = vld [vmem:[%s0 + $0x90] sm:$0xff]
  %v36 = vld [vmem:[%s0 + $0x98] sm:$0xff]
  %v37 = vld [vmem:[%s0 + $0xa0] sm:$0xff]
  %v38 = vld [vmem:[%s0 + $0xa8] sm:$0xff]
  %v39 = vld [vmem:[%s0 + $0xb0] sm:$0xff]
  %v40 = vld [vmem:[%s0 + $0xb8] sm:$0xff]
  %v41 = vld [vmem:[%s0 + $0xc0] sm:$0xff]
  %v42 = vld [vmem:[%s0 + $0xc8] sm:$0xf]
  %vm43 = vcmask 261120
  %44 = vst.msk [vmem:[#allocation2] sm:$0xff] %vm43, %v17
  %45 = vst.msk [vmem:[#allocation2 + $0x8] sm:$0xff] %vm43, %v18
  %46 = vst.msk [vmem:[#allocation2 + $0x10] sm:$0xff] %vm43, %v19
  %47 = vst.msk [vmem:[#allocation2 + $0x18] sm:$0xff] %vm43, %v20
  %48 = vst.msk [vmem:[#allocation2 + $0x20] sm:$0xff] %vm43, %v21
  %49 = vst.msk [vmem:[#allocation2 + $0x28] sm:$0xff] %vm43, %v22
  %50 = vst.msk [vmem:[#allocation2 + $0x30] sm:$0xff] %vm43, %v23
  %51 = vst.msk [vmem:[#allocation2 + $0x38] sm:$0xff] %vm43, %v24
  %52 = vst.msk [vmem:[#allocation2 + $0x40] sm:$0xff] %vm43, %v25
  %53 = vst.msk [vmem:[#allocation2 + $0x48] sm:$0xff] %vm43, %v26
  %54 = vst.msk [vmem:[#allocation2 + $0x50] sm:$0xff] %vm43, %v27
  %55 = vst.msk [vmem:[#allocation2 + $0x58] sm:$0xff] %vm43, %v28
  %56 = vst.msk [vmem:[#allocation2 + $0x60] sm:$0xff] %vm43, %v29
  %57 = vst.msk [vmem:[#allocation2 + $0x68] sm:$0xff] %vm43, %v30
  %58 = vst.msk [vmem:[#allocation2 + $0x70] sm:$0xff] %vm43, %v31
  %59 = vst.msk [vmem:[#allocation2 + $0x78] sm:$0xff] %vm43, %v32
  %60 = vst.msk [vmem:[#allocation2 + $0x80] sm:$0xff] %vm43, %v33
  %61 = vst.msk [vmem:[#allocation2 + $0x88] sm:$0xff] %vm43, %v34
  %62 = vst.msk [vmem:[#allocation2 + $0x90] sm:$0xff] %vm43, %v35
  %63 = vst.msk [vmem:[#allocation2 + $0x98] sm:$0xff] %vm43, %v36
  %64 = vst.msk [vmem:[#allocation2 + $0xa0] sm:$0xff] %vm43, %v37
  %65 = vst.msk [vmem:[#allocation2 + $0xa8] sm:$0xff] %vm43, %v38
  %66 = vst.msk [vmem:[#allocation2 + $0xb0] sm:$0xff] %vm43, %v39
  %67 = vst.msk [vmem:[#allocation2 + $0xb8] sm:$0xff] %vm43, %v40
  %68 = vst.msk [vmem:[#allocation2 + $0xc0] sm:$0xff] %vm43, %v41
  %vm69 = vcmask 257024
  %70 = vst.msk [vmem:[#allocation2 + $0xc8] sm:$0xf] %vm69, %v42
  %v71 = vld [vmem:[%s0 + $0x1] sm:$0xff]
  %v72 = vld [vmem:[%s0 + $0x9] sm:$0xff]
  %v73 = vld [vmem:[%s0 + $0x11] sm:$0xff]
  %v74 = vld [vmem:[%s0 + $0x19] sm:$0xff]
  %v75 = vld [vmem:[%s0 + $0x21] sm:$0xff]
  %v76 = vld [vmem:[%s0 + $0x29] sm:$0xff]
  %v77 = vld [vmem:[%s0 + $0x31] sm:$0xff]
  %v78 = vld [vmem:[%s0 + $0x39] sm:$0xff]
  %v79 = vld [vmem:[%s0 + $0x41] sm:$0xff]
  %v80 = vld [vmem:[%s0 + $0x49] sm:$0xff]
  %v81 = vld [vmem:[%s0 + $0x51] sm:$0xff]
  %v82 = vld [vmem:[%s0 + $0x59] sm:$0xff]
  %v83 = vld [vmem:[%s0 + $0x61] sm:$0xff]
  %v84 = vld [vmem:[%s0 + $0x69] sm:$0xff]
  %v85 = vld [vmem:[%s0 + $0x71] sm:$0xff]
  %v86 = vld [vmem:[%s0 + $0x79] sm:$0xff]
  %v87 = vld [vmem:[%s0 + $0x81] sm:$0xff]
  %v88 = vld [vmem:[%s0 + $0x89] sm:$0xff]
  %v89 = vld [vmem:[%s0 + $0x91] sm:$0xff]
  %v90 = vld [vmem:[%s0 + $0x99] sm:$0xff]
  %v91 = vld [vmem:[%s0 + $0xa1] sm:$0xff]
  %v92 = vld [vmem:[%s0 + $0xa9] sm:$0xff]
  %v93 = vld [vmem:[%s0 + $0xb1] sm:$0xff]
  %v94 = vld [vmem:[%s0 + $0xb9] sm:$0xff]
  %v95 = vld [vmem:[%s0 + $0xc1] sm:$0xff]
  %v96 = vld [vmem:[%s0 + $0xc9] sm:$0xf]
  %123 = vrot.lane.b32.xlu0 %v71, 32
  %v124 = vpop.permute.xlu0 %123
  %125 = vrot.lane.b32.xlu0 %v72, 32
  %v126 = vpop.permute.xlu0 %125
  %127 = vrot.lane.b32.xlu0 %v73, 32
  %v128 = vpop.permute.xlu0 %127
  %129 = vrot.lane.b32.xlu0 %v74, 32
  %v130 = vpop.permute.xlu0 %129
  %131 = vrot.lane.b32.xlu0 %v75, 32
  %v132 = vpop.permute.xlu0 %131
  %133 = vrot.lane.b32.xlu0 %v76, 32
  %v134 = vpop.permute.xlu0 %133
  %135 = vrot.lane.b32.xlu0 %v77, 32
  %v136 = vpop.permute.xlu0 %135
  %137 = vrot.lane.b32.xlu0 %v78, 32
  %v138 = vpop.permute.xlu0 %137
  %139 = vrot.lane.b32.xlu0 %v79, 32
  %v140 = vpop.permute.xlu0 %139
  %141 = vrot.lane.b32.xlu0 %v80, 32
  %v142 = vpop.permute.xlu0 %141
  %143 = vrot.lane.b32.xlu0 %v81, 32
  %v144 = vpop.permute.xlu0 %143
  %145 = vrot.lane.b32.xlu0 %v82, 32
  %v146 = vpop.permute.xlu0 %145
  %147 = vrot.lane.b32.xlu0 %v83, 32
  %v148 = vpop.permute.xlu0 %147
  %149 = vrot.lane.b32.xlu0 %v84, 32
  %v150 = vpop.permute.xlu0 %149
  %151 = vrot.lane.b32.xlu0 %v85, 32
  %v152 = vpop.permute.xlu0 %151
  %153 = vrot.lane.b32.xlu0 %v86, 32
  %v154 = vpop.permute.xlu0 %153
  %155 = vrot.lane.b32.xlu0 %v87, 32
  %v156 = vpop.permute.xlu0 %155
  %157 = vrot.lane.b32.xlu0 %v88, 32
  %v158 = vpop.permute.xlu0 %157
  %159 = vrot.lane.b32.xlu0 %v89, 32
  %v160 = vpop.permute.xlu0 %159
  %161 = vrot.lane.b32.xlu0 %v90, 32
  %v162 = vpop.permute.xlu0 %161
  %163 = vrot.lane.b32.xlu0 %v91, 32
  %v164 = vpop.permute.xlu0 %163
  %165 = vrot.lane.b32.xlu0 %v92, 32
  %v166 = vpop.permute.xlu0 %165
  %167 = vrot.lane.b32.xlu0 %v93, 32
  %v168 = vpop.permute.xlu0 %167
  %169 = vrot.lane.b32.xlu0 %v94, 32
  %v170 = vpop.permute.xlu0 %169
  %171 = vrot.lane.b32.xlu0 %v95, 32
  %v172 = vpop.permute.xlu0 %171
  %173 = vrot.lane.b32.xlu0 %v96, 32
  %v174 = vpop.permute.xlu0 %173
  %vm201 = vcmask 523520
  %202 = vst.msk [vmem:[#allocation2] sm:$0xff] %vm201, %v124
  %203 = vst.msk [vmem:[#allocation2 + $0x8] sm:$0xff] %vm201, %v126
  %204 = vst.msk [vmem:[#allocation2 + $0x10] sm:$0xff] %vm201, %v128
  %205 = vst.msk [vmem:[#allocation2 + $0x18] sm:$0xff] %vm201, %v130
  %206 = vst.msk [vmem:[#allocation2 + $0x20] sm:$0xff] %vm201, %v132
  %207 = vst.msk [vmem:[#allocation2 + $0x28] sm:$0xff] %vm201, %v134
  %208 = vst.msk [vmem:[#allocation2 + $0x30] sm:$0xff] %vm201, %v136
  %209 = vst.msk [vmem:[#allocation2 + $0x38] sm:$0xff] %vm201, %v138
  %210 = vst.msk [vmem:[#allocation2 + $0x40] sm:$0xff] %vm201, %v140
  %211 = vst.msk [vmem:[#allocation2 + $0x48] sm:$0xff] %vm201, %v142
  %212 = vst.msk [vmem:[#allocation2 + $0x50] sm:$0xff] %vm201, %v144
  %213 = vst.msk [vmem:[#allocation2 + $0x58] sm:$0xff] %vm201, %v146
  %214 = vst.msk [vmem:[#allocation2 + $0x60] sm:$0xff] %vm201, %v148
  %215 = vst.msk [vmem:[#allocation2 + $0x68] sm:$0xff] %vm201, %v150
  %216 = vst.msk [vmem:[#allocation2 + $0x70] sm:$0xff] %vm201, %v152
  %217 = vst.msk [vmem:[#allocation2 + $0x78] sm:$0xff] %vm201, %v154
  %218 = vst.msk [vmem:[#allocation2 + $0x80] sm:$0xff] %vm201, %v156
  %219 = vst.msk [vmem:[#allocation2 + $0x88] sm:$0xff] %vm201, %v158
  %220 = vst.msk [vmem:[#allocation2 + $0x90] sm:$0xff] %vm201, %v160
  %221 = vst.msk [vmem:[#allocation2 + $0x98] sm:$0xff] %vm201, %v162
  %222 = vst.msk [vmem:[#allocation2 + $0xa0] sm:$0xff] %vm201, %v164
  %223 = vst.msk [vmem:[#allocation2 + $0xa8] sm:$0xff] %vm201, %v166
  %224 = vst.msk [vmem:[#allocation2 + $0xb0] sm:$0xff] %vm201, %v168
  %225 = vst.msk [vmem:[#allocation2 + $0xb8] sm:$0xff] %vm201, %v170
  %226 = vst.msk [vmem:[#allocation2 + $0xc0] sm:$0xff] %vm201, %v172
  %vm227 = vcmask 519424
  %228 = vst.msk [vmem:[#allocation2 + $0xc8] sm:$0xf] %vm227, %v174
  %v229 = vld [vmem:[%s0 + $0xa] sm:$0xff]
  %v230 = vld [vmem:[%s0 + $0x12] sm:$0xff]
  %v231 = vld [vmem:[%s0 + $0x1a] sm:$0xff]
  %v232 = vld [vmem:[%s0 + $0x22] sm:$0xff]
  %v233 = vld [vmem:[%s0 + $0x2a] sm:$0xff]
  %v234 = vld [vmem:[%s0 + $0x32] sm:$0xff]
  %v235 = vld [vmem:[%s0 + $0x3a] sm:$0xff]
  %v236 = vld [vmem:[%s0 + $0x42] sm:$0xff]
  %v237 = vld [vmem:[%s0 + $0x4a] sm:$0xff]
  %v238 = vld [vmem:[%s0 + $0x52] sm:$0xff]
  %v239 = vld [vmem:[%s0 + $0x5a] sm:$0xff]
  %v240 = vld [vmem:[%s0 + $0x62] sm:$0xff]
  %v241 = vld [vmem:[%s0 + $0x6a] sm:$0xff]
  %v242 = vld [vmem:[%s0 + $0x72] sm:$0xff]
  %v243 = vld [vmem:[%s0 + $0x7a] sm:$0xff]
  %v244 = vld [vmem:[%s0 + $0x82] sm:$0xff]
  %v245 = vld [vmem:[%s0 + $0x8a] sm:$0xff]
  %v246 = vld [vmem:[%s0 + $0x92] sm:$0xff]
  %v247 = vld [vmem:[%s0 + $0x9a] sm:$0xff]
  %v248 = vld [vmem:[%s0 + $0xa2] sm:$0xff]
  %v249 = vld [vmem:[%s0 + $0xaa] sm:$0xff]
  %v250 = vld [vmem:[%s0 + $0xb2] sm:$0xff]
  %v251 = vld [vmem:[%s0 + $0xba] sm:$0xff]
  %v252 = vld [vmem:[%s0 + $0xc2] sm:$0xff]
  %v253 = vld [vmem:[%s0 + $0xca] sm:$0xff]
  %v254 = vld [vmem:[%s0 + $0xd2] sm:$0xf]
  %281 = vrot.lane.b32.xlu0 %v229, 64
  %v282 = vpop.permute.xlu0 %281
  %283 = vrot.lane.b32.xlu0 %v230, 64
  %v284 = vpop.permute.xlu0 %283
  %285 = vrot.lane.b32.xlu0 %v231, 64
  %v286 = vpop.permute.xlu0 %285
  %287 = vrot.lane.b32.xlu0 %v232, 64
  %v288 = vpop.permute.xlu0 %287
  %289 = vrot.lane.b32.xlu0 %v233, 64
  %v290 = vpop.permute.xlu0 %289
  %291 = vrot.lane.b32.xlu0 %v234, 64
  %v292 = vpop.permute.xlu0 %291
  %293 = vrot.lane.b32.xlu0 %v235, 64
  %v294 = vpop.permute.xlu0 %293
  %295 = vrot.lane.b32.xlu0 %v236, 64
  %v296 = vpop.permute.xlu0 %295
  %297 = vrot.lane.b32.xlu0 %v237, 64
  %v298 = vpop.permute.xlu0 %297
  %299 = vrot.lane.b32.xlu0 %v238, 64
  %v300 = vpop.permute.xlu0 %299
  %301 = vrot.lane.b32.xlu0 %v239, 64
  %v302 = vpop.permute.xlu0 %301
  %303 = vrot.lane.b32.xlu0 %v240, 64
  %v304 = vpop.permute.xlu0 %303
  %305 = vrot.lane.b32.xlu0 %v241, 64
  %v306 = vpop.permute.xlu0 %305
  %307 = vrot.lane.b32.xlu0 %v242, 64
  %v308 = vpop.permute.xlu0 %307
  %309 = vrot.lane.b32.xlu0 %v243, 64
  %v310 = vpop.permute.xlu0 %309
  %311 = vrot.lane.b32.xlu0 %v244, 64
  %v312 = vpop.permute.xlu0 %311
  %313 = vrot.lane.b32.xlu0 %v245, 64
  %v314 = vpop.permute.xlu0 %313
  %315 = vrot.lane.b32.xlu0 %v246, 64
  %v316 = vpop.permute.xlu0 %315
  %317 = vrot.lane.b32.xlu0 %v247, 64
  %v318 = vpop.permute.xlu0 %317
  %319 = vrot.lane.b32.xlu0 %v248, 64
  %v320 = vpop.permute.xlu0 %319
  %321 = vrot.lane.b32.xlu0 %v249, 64
  %v322 = vpop.permute.xlu0 %321
  %323 = vrot.lane.b32.xlu0 %v250, 64
  %v324 = vpop.permute.xlu0 %323
  %325 = vrot.lane.b32.xlu0 %v251, 64
  %v326 = vpop.permute.xlu0 %325
  %327 = vrot.lane.b32.xlu0 %v252, 64
  %v328 = vpop.permute.xlu0 %327
  %329 = vrot.lane.b32.xlu0 %v253, 64
  %v330 = vpop.permute.xlu0 %329
  %331 = vrot.lane.b32.xlu0 %v254, 64
  %v332 = vpop.permute.xlu0 %331
  %vm359 = vcmask 785920
  %360 = vst.msk [vmem:[#allocation2] sm:$0xff] %vm359, %v282
  %361 = vst.msk [vmem:[#allocation2 + $0x8] sm:$0xff] %vm359, %v284
  %362 = vst.msk [vmem:[#allocation2 + $0x10] sm:$0xff] %vm359, %v286
  %363 = vst.msk [vmem:[#allocation2 + $0x18] sm:$0xff] %vm359, %v288
  %364 = vst.msk [vmem:[#allocation2 + $0x20] sm:$0xff] %vm359, %v290
  %365 = vst.msk [vmem:[#allocation2 + $0x28] sm:$0xff] %vm359, %v292
  %366 = vst.msk [vmem:[#allocation2 + $0x30] sm:$0xff] %vm359, %v294
  %367 = vst.msk [vmem:[#allocation2 + $0x38] sm:$0xff] %vm359, %v296
  %368 = vst.msk [vmem:[#allocation2 + $0x40] sm:$0xff] %vm359, %v298
  %369 = vst.msk [vmem:[#allocation2 + $0x48] sm:$0xff] %vm359, %v300
  %370 = vst.msk [vmem:[#allocation2 + $0x50] sm:$0xff] %vm359, %v302
  %371 = vst.msk [vmem:[#allocation2 + $0x58] sm:$0xff] %vm359, %v304
  %372 = vst.msk [vmem:[#allocation2 + $0x60] sm:$0xff] %vm359, %v306
  %373 = vst.msk [vmem:[#allocation2 + $0x68] sm:$0xff] %vm359, %v308
  %374 = vst.msk [vmem:[#allocation2 + $0x70] sm:$0xff] %vm359, %v310
  %375 = vst.msk [vmem:[#allocation2 + $0x78] sm:$0xff] %vm359, %v312
  %376 = vst.msk [vmem:[#allocation2 + $0x80] sm:$0xff] %vm359, %v314
  %377 = vst.msk [vmem:[#allocation2 + $0x88] sm:$0xff] %vm359, %v316
  %378 = vst.msk [vmem:[#allocation2 + $0x90] sm:$0xff] %vm359, %v318
  %379 = vst.msk [vmem:[#allocation2 + $0x98] sm:$0xff] %vm359, %v320
  %380 = vst.msk [vmem:[#allocation2 + $0xa0] sm:$0xff] %vm359, %v322
  %381 = vst.msk [vmem:[#allocation2 + $0xa8] sm:$0xff] %vm359, %v324
  %382 = vst.msk [vmem:[#allocation2 + $0xb0] sm:$0xff] %vm359, %v326
  %383 = vst.msk [vmem:[#allocation2 + $0xb8] sm:$0xff] %vm359, %v328
  %384 = vst.msk [vmem:[#allocation2 + $0xc0] sm:$0xff] %vm359, %v330
  %vm385 = vcmask 781824
  %386 = vst.msk [vmem:[#allocation2 + $0xc8] sm:$0xf] %vm385, %v332
  %v387 = vld [vmem:[%s0 + $0xb] sm:$0xff]
  %v388 = vld [vmem:[%s0 + $0x13] sm:$0xff]
  %v389 = vld [vmem:[%s0 + $0x1b] sm:$0xff]
  %v390 = vld [vmem:[%s0 + $0x23] sm:$0xff]
  %v391 = vld [vmem:[%s0 + $0x2b] sm:$0xff]
  %v392 = vld [vmem:[%s0 + $0x33] sm:$0xff]
  %v393 = vld [vmem:[%s0 + $0x3b] sm:$0xff]
  %v394 = vld [vmem:[%s0 + $0x43] sm:$0xff]
  %v395 = vld [vmem:[%s0 + $0x4b] sm:$0xff]
  %v396 = vld [vmem:[%s0 + $0x53] sm:$0xff]
  %v397 = vld [vmem:[%s0 + $0x5b] sm:$0xff]
  %v398 = vld [vmem:[%s0 + $0x63] sm:$0xff]
  %v399 = vld [vmem:[%s0 + $0x6b] sm:$0xff]
  %v400 = vld [vmem:[%s0 + $0x73] sm:$0xff]
  %v401 = vld [vmem:[%s0 + $0x7b] sm:$0xff]
  %v402 = vld [vmem:[%s0 + $0x83] sm:$0xff]
  %v403 = vld [vmem:[%s0 + $0x8b] sm:$0xff]
  %v404 = vld [vmem:[%s0 + $0x93] sm:$0xff]
  %v405 = vld [vmem:[%s0 + $0x9b] sm:$0xff]
  %v406 = vld [vmem:[%s0 + $0xa3] sm:$0xff]
  %v407 = vld [vmem:[%s0 + $0xab] sm:$0xff]
  %v408 = vld [vmem:[%s0 + $0xb3] sm:$0xff]
  %v409 = vld [vmem:[%s0 + $0xbb] sm:$0xff]
  %v410 = vld [vmem:[%s0 + $0xc3] sm:$0xff]
  %v411 = vld [vmem:[%s0 + $0xcb] sm:$0xff]
  %v412 = vld [vmem:[%s0 + $0xd3] sm:$0xf]
  %439 = vrot.lane.b32.xlu0 %v387, 96
  %v440 = vpop.permute.xlu0 %439
  %441 = vrot.lane.b32.xlu0 %v388, 96
  %v442 = vpop.permute.xlu0 %441
  %443 = vrot.lane.b32.xlu0 %v389, 96
  %v444 = vpop.permute.xlu0 %443
  %445 = vrot.lane.b32.xlu0 %v390, 96
  %v446 = vpop.permute.xlu0 %445
  %447 = vrot.lane.b32.xlu0 %v391, 96
  %v448 = vpop.permute.xlu0 %447
  %449 = vrot.lane.b32.xlu0 %v392, 96
  %v450 = vpop.permute.xlu0 %449
  %451 = vrot.lane.b32.xlu0 %v393, 96
  %v452 = vpop.permute.xlu0 %451
  %453 = vrot.lane.b32.xlu0 %v394, 96
  %v454 = vpop.permute.xlu0 %453
  %455 = vrot.lane.b32.xlu0 %v395, 96
  %v456 = vpop.permute.xlu0 %455
  %457 = vrot.lane.b32.xlu0 %v396, 96
  %v458 = vpop.permute.xlu0 %457
  %459 = vrot.lane.b32.xlu0 %v397, 96
  %v460 = vpop.permute.xlu0 %459
  %461 = vrot.lane.b32.xlu0 %v398, 96
  %v462 = vpop.permute.xlu0 %461
  %463 = vrot.lane.b32.xlu0 %v399, 96
  %v464 = vpop.permute.xlu0 %463
  %465 = vrot.lane.b32.xlu0 %v400, 96
  %v466 = vpop.permute.xlu0 %465
  %467 = vrot.lane.b32.xlu0 %v401, 96
  %v468 = vpop.permute.xlu0 %467
  %469 = vrot.lane.b32.xlu0 %v402, 96
  %v470 = vpop.permute.xlu0 %469
  %471 = vrot.lane.b32.xlu0 %v403, 96
  %v472 = vpop.permute.xlu0 %471
  %473 = vrot.lane.b32.xlu0 %v404, 96
  %v474 = vpop.permute.xlu0 %473
  %475 = vrot.lane.b32.xlu0 %v405, 96
  %v476 = vpop.permute.xlu0 %475
  %477 = vrot.lane.b32.xlu0 %v406, 96
  %v478 = vpop.permute.xlu0 %477
  %479 = vrot.lane.b32.xlu0 %v407, 96
  %v480 = vpop.permute.xlu0 %479
  %481 = vrot.lane.b32.xlu0 %v408, 96
  %v482 = vpop.permute.xlu0 %481
  %483 = vrot.lane.b32.xlu0 %v409, 96
  %v484 = vpop.permute.xlu0 %483
  %485 = vrot.lane.b32.xlu0 %v410, 96
  %v486 = vpop.permute.xlu0 %485
  %487 = vrot.lane.b32.xlu0 %v411, 96
  %v488 = vpop.permute.xlu0 %487
  %489 = vrot.lane.b32.xlu0 %v412, 96
  %v490 = vpop.permute.xlu0 %489
  %vm517 = vcmask 1048320
  %518 = vst.msk [vmem:[#allocation2] sm:$0xff] %vm517, %v440
  %519 = vst.msk [vmem:[#allocation2 + $0x8] sm:$0xff] %vm517, %v442
  %520 = vst.msk [vmem:[#allocation2 + $0x10] sm:$0xff] %vm517, %v444
  %521 = vst.msk [vmem:[#allocation2 + $0x18] sm:$0xff] %vm517, %v446
  %522 = vst.msk [vmem:[#allocation2 + $0x20] sm:$0xff] %vm517, %v448
  %523 = vst.msk [vmem:[#allocation2 + $0x28] sm:$0xff] %vm517, %v450
  %524 = vst.msk [vmem:[#allocation2 + $0x30] sm:$0xff] %vm517, %v452
  %525 = vst.msk [vmem:[#allocation2 + $0x38] sm:$0xff] %vm517, %v454
  %526 = vst.msk [vmem:[#allocation2 + $0x40] sm:$0xff] %vm517, %v456
  %527 = vst.msk [vmem:[#allocation2 + $0x48] sm:$0xff] %vm517, %v458
  %528 = vst.msk [vmem:[#allocation2 + $0x50] sm:$0xff] %vm517, %v460
  %529 = vst.msk [vmem:[#allocation2 + $0x58] sm:$0xff] %vm517, %v462
  %530 = vst.msk [vmem:[#allocation2 + $0x60] sm:$0xff] %vm517, %v464
  %531 = vst.msk [vmem:[#allocation2 + $0x68] sm:$0xff] %vm517, %v466
  %532 = vst.msk [vmem:[#allocation2 + $0x70] sm:$0xff] %vm517, %v468
  %533 = vst.msk [vmem:[#allocation2 + $0x78] sm:$0xff] %vm517, %v470
  %534 = vst.msk [vmem:[#allocation2 + $0x80] sm:$0xff] %vm517, %v472
  %535 = vst.msk [vmem:[#allocation2 + $0x88] sm:$0xff] %vm517, %v474
  %536 = vst.msk [vmem:[#allocation2 + $0x90] sm:$0xff] %vm517, %v476
  %537 = vst.msk [vmem:[#allocation2 + $0x98] sm:$0xff] %vm517, %v478
  %538 = vst.msk [vmem:[#allocation2 + $0xa0] sm:$0xff] %vm517, %v480
  %539 = vst.msk [vmem:[#allocation2 + $0xa8] sm:$0xff] %vm517, %v482
  %540 = vst.msk [vmem:[#allocation2 + $0xb0] sm:$0xff] %vm517, %v484
  %541 = vst.msk [vmem:[#allocation2 + $0xb8] sm:$0xff] %vm517, %v486
  %542 = vst.msk [vmem:[#allocation2 + $0xc0] sm:$0xff] %vm517, %v488
  %vm543 = vcmask 1044224
  %544 = vst.msk [vmem:[#allocation2 + $0xc8] sm:$0xf] %vm543, %v490
  %v545 = vld [vmem:[#allocation2] sm:$0xff]
  %v546 = vld [vmem:[#allocation2 + $0x8] sm:$0xff]
  %v547 = vld [vmem:[#allocation2 + $0x10] sm:$0xff]
  %v548 = vld [vmem:[#allocation2 + $0x18] sm:$0xff]
  %v549 = vld [vmem:[#allocation2 + $0x20] sm:$0xff]
  %v550 = vld [vmem:[#allocation2 + $0x28] sm:$0xff]
  %v551 = vld [vmem:[#allocation2 + $0x30] sm:$0xff]
  %v552 = vld [vmem:[#allocation2 + $0x38] sm:$0xff]
  %v553 = vld [vmem:[#allocation2 + $0x40] sm:$0xff]
  %v554 = vld [vmem:[#allocation2 + $0x48] sm:$0xff]
  %v555 = vld [vmem:[#allocation2 + $0x50] sm:$0xff]
  %v556 = vld [vmem:[#allocation2 + $0x58] sm:$0xff]
  %v557 = vld [vmem:[#allocation2 + $0x60] sm:$0xff]
  %v558 = vld [vmem:[#allocation2 + $0x68] sm:$0xff]
  %v559 = vld [vmem:[#allocation2 + $0x70] sm:$0xff]
  %v560 = vld [vmem:[#allocation2 + $0x78] sm:$0xff]
  %v561 = vld [vmem:[#allocation2 + $0x80] sm:$0xff]
  %v562 = vld [vmem:[#allocation2 + $0x88] sm:$0xff]
  %v563 = vld [vmem:[#allocation2 + $0x90] sm:$0xff]
  %v564 = vld [vmem:[#allocation2 + $0x98] sm:$0xff]
  %v565 = vld [vmem:[#allocation2 + $0xa0] sm:$0xff]
  %v566 = vld [vmem:[#allocation2 + $0xa8] sm:$0xff]
  %v567 = vld [vmem:[#allocation2 + $0xb0] sm:$0xff]
  %v568 = vld [vmem:[#allocation2 + $0xb8] sm:$0xff]
  %v569 = vld [vmem:[%s1] sm:$0xff]
  %v570 = vld [vmem:[%s1 + $0x8] sm:$0xff]
  %v571 = vld [vmem:[%s1 + $0x10] sm:$0xff]
  %v572 = vld [vmem:[%s1 + $0x18] sm:$0xff]
  %v573 = vld [vmem:[%s1 + $0x20] sm:$0xff]
  %v574 = vld [vmem:[%s1 + $0x28] sm:$0xff]
  %v575 = vld [vmem:[%s1 + $0x30] sm:$0xff]
  %v576 = vld [vmem:[%s1 + $0x38] sm:$0xff]
  %v577 = vld [vmem:[%s1 + $0x40] sm:$0xff]
  %v578 = vld [vmem:[%s1 + $0x48] sm:$0xff]
  %v579 = vld [vmem:[%s1 + $0x50] sm:$0xff]
  %v580 = vld [vmem:[%s1 + $0x58] sm:$0xff]
  %v581 = vld [vmem:[%s1 + $0x60] sm:$0xff]
  %v582 = vld [vmem:[%s1 + $0x68] sm:$0xff]
  %v583 = vld [vmem:[%s1 + $0x70] sm:$0xff]
  %v584 = vld [vmem:[%s1 + $0x78] sm:$0xff]
  %585 = vmatprep.subr.mxu0 0.0
  %586 = vmatpush1.msra.mxu0 %v569
  %587 = vmatprep.subr.mxu0 0.0
  %588 = vmatpush1.msra.mxu0 %v570
  %589 = vmatprep.subr.mxu0 0.0
  %590 = vmatpush1.msra.mxu0 %v571
  %591 = vmatprep.subr.mxu0 0.0
  %592 = vmatpush1.msra.mxu0 %v572
  %593 = vmatprep.subr.mxu0 0.0
  %594 = vmatpush1.msra.mxu0 %v573
  %595 = vmatprep.subr.mxu0 0.0
  %596 = vmatpush1.msra.mxu0 %v574
  %597 = vmatprep.subr.mxu0 0.0
  %598 = vmatpush1.msra.mxu0 %v575
  %599 = vmatprep.subr.mxu0 0.0
  %600 = vmatpush1.msra.mxu0 %v576
  %601 = vmatprep.subr.mxu0 0.0
  %602 = vmatpush1.msra.mxu0 %v577
  %603 = vmatprep.subr.mxu0 0.0
  %604 = vmatpush1.msra.mxu0 %v578
  %605 = vmatprep.subr.mxu0 0.0
  %606 = vmatpush1.msra.mxu0 %v579
  %607 = vmatprep.subr.mxu0 0.0
  %608 = vmatpush1.msra.mxu0 %v580
  %609 = vmatprep.subr.mxu0 0.0
  %610 = vmatpush1.msra.mxu0 %v581
  %611 = vmatprep.subr.mxu0 0.0
  %612 = vmatpush1.msra.mxu0 %v582
  %613 = vmatprep.subr.mxu0 0.0
  %614 = vmatpush1.msra.mxu0 %v583
  %615 = vmatprep.subr.mxu0 0.0
  %616 = vmatpush1.msra.mxu0 %v584
  %617 = vmatprep.subr.mxu0 0.0
  %618 = vmatpush1.msra.mxu0 0.0
  %619 = vmatprep.subr.mxu0 0.0
  %620 = vmatpush1.msra.mxu0 0.0
  %621 = vmatprep.subr.mxu0 0.0
  %622 = vmatpush1.msra.mxu0 0.0
  %623 = vmatprep.subr.mxu0 0.0
  %624 = vmatpush1.msra.mxu0 0.0
  %625 = vmatprep.subr.mxu0 0.0
  %626 = vmatpush1.msra.mxu0 0.0
  %627 = vmatprep.subr.mxu0 0.0
  %628 = vmatpush1.msra.mxu0 0.0
  %629 = vmatprep.subr.mxu0 0.0
  %630 = vmatpush1.msra.mxu0 0.0
  %631 = vmatprep.subr.mxu0 0.0
  %632 = vmatpush1.msra.mxu0 0.0
  %633 = vmatprep.subr.mxu0 0.0
  %634 = vmatpush1.msra.mxu0 0.0
  %635 = vmatprep.subr.mxu0 0.0
  %636 = vmatpush1.msra.mxu0 0.0
  %637 = vmatprep.subr.mxu0 0.0
  %638 = vmatpush1.msra.mxu0 0.0
  %639 = vmatprep.subr.mxu0 0.0
  %640 = vmatpush1.msra.mxu0 0.0
  %641 = vmatprep.subr.mxu0 0.0
  %642 = vmatpush1.msra.mxu0 0.0
  %643 = vmatprep.subr.mxu0 0.0
  %644 = vmatpush1.msra.mxu0 0.0
  %645 = vmatprep.subr.mxu0 0.0
  %646 = vmatpush1.msra.mxu0 0.0
  %647 = vmatprep.subr.mxu0 0.0
  %648 = vmatpush1.msra.mxu0 0.0
  %649 = vmatprep.mubr.f32.mxu0 0.0
  %650 = vmatmul.mubr.f32.gmra.mrb[0].mxu0 %v545
  %v651 = vpop.f32.mrb[0].mxu0
  %v652 = vadd.f32 0.0, %v651
  %v653 = vpop.f32.mrb[0].mxu0
  %654 = vmatprep.mubr.f32.mxu0 0.0
  %655 = vmatmul.mubr.f32.gmra.mrb[0].mxu0 %v546
  %v656 = vpop.f32.mrb[0].mxu0
  %v657 = vadd.f32 0.0, %v656
  %v658 = vpop.f32.mrb[0].mxu0
  %659 = vmatprep.mubr.f32.mxu0 0.0
  %660 = vmatmul.mubr.f32.gmra.mrb[0].mxu0 %v547
  %v661 = vpop.f32.mrb[0].mxu0
  %v662 = vadd.f32 0.0, %v661
  %v663 = vpop.f32.mrb[0].mxu0
  %664 = vmatprep.mubr.f32.mxu0 0.0
  %665 = vmatmul.mubr.f32.gmra.mrb[0].mxu0 %v548
  %v666 = vpop.f32.mrb[0].mxu0
  %v667 = vadd.f32 0.0, %v666
  %v668 = vpop.f32.mrb[0].mxu0
  %669 = vmatprep.mubr.f32.mxu0 0.0
  %670 = vmatmul.mubr.f32.gmra.mrb[0].mxu0 %v549
  %v671 = vpop.f32.mrb[0].mxu0
  %v672 = vadd.f32 0.0, %v671
  %v673 = vpop.f32.mrb[0].mxu0
  %674 = vmatprep.mubr.f32.mxu0 0.0
  %675 = vmatmul.mubr.f32.gmra.mrb[0].mxu0 %v550
  %v676 = vpop.f32.mrb[0].mxu0
  %v677 = vadd.f32 0.0, %v676
  %v678 = vpop.f32.mrb[0].mxu0
  %679 = vmatprep.mubr.f32.mxu0 0.0
  %680 = vmatmul.mubr.f32.gmra.mrb[0].mxu0 %v551
  %v681 = vpop.f32.mrb[0].mxu0
  %v682 = vadd.f32 0.0, %v681
  %v683 = vpop.f32.mrb[0].mxu0
  %684 = vmatprep.mubr.f32.mxu0 0.0
  %685 = vmatmul.mubr.f32.gmra.mrb[0].mxu0 %v552
  %v686 = vpop.f32.mrb[0].mxu0
  %v687 = vadd.f32 0.0, %v686
  %v688 = vpop.f32.mrb[0].mxu0
  %689 = vmatprep.mubr.f32.mxu0 0.0
  %690 = vmatmul.mubr.f32.gmra.mrb[0].mxu0 %v553
  %v691 = vpop.f32.mrb[0].mxu0
  %v692 = vadd.f32 0.0, %v691
  %v693 = vpop.f32.mrb[0].mxu0
  %694 = vmatprep.mubr.f32.mxu0 0.0
  %695 = vmatmul.mubr.f32.gmra.mrb[0].mxu0 %v554
  %v696 = vpop.f32.mrb[0].mxu0
  %v697 = vadd.f32 0.0, %v696
  %v698 = vpop.f32.mrb[0].mxu0
  %699 = vmatprep.mubr.f32.mxu0 0.0
  %700 = vmatmul.mubr.f32.gmra.mrb[0].mxu0 %v555
  %v701 = vpop.f32.mrb[0].mxu0
  %v702 = vpop.f32.mrb[0].mxu0
  %703 = vmatprep.mubr.f32.mxu0 0.0
  %704 = vmatmul.mubr.f32.gmra.mrb[0].mxu0 %v556
  %v705 = vpop.f32.mrb[0].mxu0
  %v706 = vpop.f32.mrb[0].mxu0
  %707 = vmatprep.mubr.f32.mxu0 0.0
  %708 = vmatmul.mubr.f32.gmra.mrb[0].mxu0 %v557
  %v709 = vpop.f32.mrb[0].mxu0
  %v710 = vpop.f32.mrb[0].mxu0
  %711 = vmatprep.mubr.f32.mxu0 0.0
  %712 = vmatmul.mubr.f32.gmra.mrb[0].mxu0 %v558
  %v713 = vpop.f32.mrb[0].mxu0
  %v714 = vpop.f32.mrb[0].mxu0
  %715 = vmatprep.mubr.f32.mxu0 0.0
  %716 = vmatmul.mubr.f32.gmra.mrb[0].mxu0 %v559
  %v717 = vpop.f32.mrb[0].mxu0
  %v718 = vadd.f32 0.0, %v717
  %v719 = vpop.f32.mrb[0].mxu0
  %720 = vmatprep.mubr.f32.mxu0 0.0
  %721 = vmatmul.mubr.f32.gmra.mrb[0].mxu0 %v560
  %v722 = vpop.f32.mrb[0].mxu0
  %v723 = vadd.f32 0.0, %v722
  %v724 = vpop.f32.mrb[0].mxu0
  %725 = vmatprep.mubr.f32.mxu0 0.0
  %726 = vmatmul.mubr.f32.gmra.mrb[0].mxu0 %v561
  %v727 = vpop.f32.mrb[0].mxu0
  %v728 = vadd.f32 0.0, %v727
  %v729 = vpop.f32.mrb[0].mxu0
  %730 = vmatprep.mubr.f32.mxu0 0.0
  %731 = vmatmul.mubr.f32.gmra.mrb[0].mxu0 %v562
  %v732 = vpop.f32.mrb[0].mxu0
  %v733 = vadd.f32 0.0, %v732
  %v734 = vpop.f32.mrb[0].mxu0
  %735 = vmatprep.mubr.f32.mxu0 0.0
  %736 = vmatmul.mubr.f32.gmra.mrb[0].mxu0 %v563
  %v737 = vpop.f32.mrb[0].mxu0
  %v738 = vadd.f32 0.0, %v737
  %v739 = vpop.f32.mrb[0].mxu0
  %740 = vmatprep.mubr.f32.mxu0 0.0
  %741 = vmatmul.mubr.f32.gmra.mrb[0].mxu0 %v564
  %v742 = vpop.f32.mrb[0].mxu0
  %v743 = vadd.f32 0.0, %v742
  %v744 = vpop.f32.mrb[0].mxu0
  %745 = vmatprep.mubr.f32.mxu0 0.0
  %746 = vmatmul.mubr.f32.gmra.mrb[0].mxu0 %v565
  %v747 = vpop.f32.mrb[0].mxu0
  %v748 = vadd.f32 0.0, %v747
  %v749 = vpop.f32.mrb[0].mxu0
  %750 = vmatprep.mubr.f32.mxu0 0.0
  %751 = vmatmul.mubr.f32.gmra.mrb[0].mxu0 %v566
  %v752 = vpop.f32.mrb[0].mxu0
  %v753 = vadd.f32 0.0, %v752
  %v754 = vpop.f32.mrb[0].mxu0
  %755 = vmatprep.mubr.f32.mxu0 0.0
  %756 = vmatmul.mubr.f32.gmra.mrb[0].mxu0 %v567
  %v757 = vpop.f32.mrb[0].mxu0
  %v758 = vadd.f32 0.0, %v757
  %v759 = vpop.f32.mrb[0].mxu0
  %760 = vmatprep.mubr.f32.mxu0 0.0
  %761 = vmatmul.mubr.f32.gmra.mrb[0].mxu0 %v568
  %v762 = vpop.f32.mrb[0].mxu0
  %v763 = vadd.f32 0.0, %v762
  %v764 = vpop.f32.mrb[0].mxu0
  %765 = vdwg.mxu0
  %v766 = vld [vmem:[%s2] sm:$0x1]
  %v768 = vlaneseq
  %v769 = vshrl.u32 %v768, 7
  %v770 = vsub.s32 0, %v769
  %v771 = vrot.slane %v766, %v770
  %v773 = vmul.f32 %v652, %v771
  %v774 = vmul.f32 %v657, %v771
  %v775 = vmul.f32 %v662, %v771
  %v776 = vmul.f32 %v667, %v771
  %v777 = vmul.f32 %v672, %v771
  %v778 = vmul.f32 %v677, %v771
  %v779 = vmul.f32 %v682, %v771
  %v780 = vmul.f32 %v687, %v771
  %v781 = vmul.f32 %v692, %v771
  %v782 = vmul.f32 %v697, %v771
  %v783 = vmul.f32 %v718, %v771
  %v784 = vmul.f32 %v723, %v771
  %v785 = vmul.f32 %v728, %v771
  %v786 = vmul.f32 %v733, %v771
  %v787 = vmul.f32 %v738, %v771
  %v788 = vmul.f32 %v743, %v771
  %v789 = vmul.f32 %v748, %v771
  %v790 = vmul.f32 %v753, %v771
  %v791 = vmul.f32 %v758, %v771
  %v792 = vmul.f32 %v763, %v771
  %v793 = vld [vmem:[%s3] sm:$0x1]
  %v795 = vlaneseq
  %v796 = vshrl.u32 %v795, 7
  %v797 = vsub.s32 0, %v796
  %v798 = vrot.slane %v793, %v797
  %v800 = vadd.f32 %v773, %v798
  %v801 = vadd.f32 %v774, %v798
  %v802 = vadd.f32 %v775, %v798
  %v803 = vadd.f32 %v776, %v798
  %v804 = vadd.f32 %v777, %v798
  %v805 = vadd.f32 %v778, %v798
  %v806 = vadd.f32 %v779, %v798
  %v807 = vadd.f32 %v780, %v798
  %v808 = vadd.f32 %v781, %v798
  %v809 = vadd.f32 %v782, %v798
  %v810 = vadd.f32 %v783, %v798
  %v811 = vadd.f32 %v784, %v798
  %v812 = vadd.f32 %v785, %v798
  %v813 = vadd.f32 %v786, %v798
  %v814 = vadd.f32 %v787, %v798
  %v815 = vadd.f32 %v788, %v798
  %v816 = vadd.f32 %v789, %v798
  %v817 = vadd.f32 %v790, %v798
  %v818 = vadd.f32 %v791, %v798
  %v819 = vadd.f32 %v792, %v798
  %v820 = vmax.f32 %v800, 0.0
  %v821 = vmax.f32 %v801, 0.0
  %v822 = vmax.f32 %v802, 0.0
  %v823 = vmax.f32 %v803, 0.0
  %v824 = vmax.f32 %v804, 0.0
  %v825 = vmax.f32 %v805, 0.0
  %v826 = vmax.f32 %v806, 0.0
  %v827 = vmax.f32 %v807, 0.0
  %v828 = vmax.f32 %v808, 0.0
  %v829 = vmax.f32 %v809, 0.0
  %v830 = vmax.f32 %v810, 0.0
  %v831 = vmax.f32 %v811, 0.0
  %v832 = vmax.f32 %v812, 0.0
  %v833 = vmax.f32 %v813, 0.0
  %v834 = vmax.f32 %v814, 0.0
  %v835 = vmax.f32 %v815, 0.0
  %v836 = vmax.f32 %v816, 0.0
  %v837 = vmax.f32 %v817, 0.0
  %v838 = vmax.f32 %v818, 0.0
  %v839 = vmax.f32 %v819, 0.0
  %vm840 = vcmask 64512
  %841 = vst.msk [vmem:[%s4] sm:$0xff] %vm840, %v820
  %842 = vst.msk [vmem:[%s4 + $0x8] sm:$0xff] %vm840, %v821
  %843 = vst.msk [vmem:[%s4 + $0x10] sm:$0xff] %vm840, %v822
  %844 = vst.msk [vmem:[%s4 + $0x18] sm:$0xff] %vm840, %v823
  %845 = vst.msk [vmem:[%s4 + $0x20] sm:$0xff] %vm840, %v824
  %846 = vst.msk [vmem:[%s4 + $0x28] sm:$0xff] %vm840, %v825
  %847 = vst.msk [vmem:[%s4 + $0x30] sm:$0xff] %vm840, %v826
  %848 = vst.msk [vmem:[%s4 + $0x38] sm:$0xff] %vm840, %v827
  %849 = vst.msk [vmem:[%s4 + $0x40] sm:$0xff] %vm840, %v828
  %850 = vst.msk [vmem:[%s4 + $0x48] sm:$0xff] %vm840, %v829
  %s851 = scalar_lea.vmem %s4, 320
  %852 = vst.msk [vmem:[%s851] sm:$0xff] %vm840, %v830
  %853 = vst.msk [vmem:[%s851 + $0x8] sm:$0xff] %vm840, %v831
  %854 = vst.msk [vmem:[%s851 + $0x10] sm:$0xff] %vm840, %v832
  %855 = vst.msk [vmem:[%s851 + $0x18] sm:$0xff] %vm840, %v833
  %856 = vst.msk [vmem:[%s851 + $0x20] sm:$0xff] %vm840, %v834
  %857 = vst.msk [vmem:[%s851 + $0x28] sm:$0xff] %vm840, %v835
  %858 = vst.msk [vmem:[%s851 + $0x30] sm:$0xff] %vm840, %v836
  %859 = vst.msk [vmem:[%s851 + $0x38] sm:$0xff] %vm840, %v837
  %860 = vst.msk [vmem:[%s851 + $0x40] sm:$0xff] %vm840, %v838
  %861 = vst.msk [vmem:[%s851 + $0x48] sm:$0xff] %vm840, %v839
  %v862 = vld [vmem:[#allocation2 + $0x1] sm:$0xff]
  %v863 = vld [vmem:[#allocation2 + $0x9] sm:$0xff]
  %v864 = vld [vmem:[#allocation2 + $0x11] sm:$0xff]
  %v865 = vld [vmem:[#allocation2 + $0x19] sm:$0xff]
  %v866 = vld [vmem:[#allocation2 + $0x21] sm:$0xff]
  %v867 = vld [vmem:[#allocation2 + $0x29] sm:$0xff]
  %v868 = vld [vmem:[#allocation2 + $0x31] sm:$0xff]
  %v869 = vld [vmem:[#allocation2 + $0x39] sm:$0xff]
  %v870 = vld [vmem:[#allocation2 + $0x41] sm:$0xff]
  %v871 = vld [vmem:[#allocation2 + $0x49] sm:$0xff]
  %v872 = vld [vmem:[#allocation2 + $0x51] sm:$0xff]
  %v873 = vld [vmem:[#allocation2 + $0x59] sm:$0xff]
  %v874 = vld [vmem:[#allocation2 + $0x61] sm:$0xff]
  %v875 = vld [vmem:[#allocation2 + $0x69] sm:$0xff]
  %v876 = vld [vmem:[#allocation2 + $0x71] sm:$0xff]
  %v877 = vld [vmem:[#allocation2 + $0x79] sm:$0xff]
  %v878 = vld [vmem:[#allocation2 + $0x81] sm:$0xff]
  %v879 = vld [vmem:[#allocation2 + $0x89] sm:$0xff]
  %v880 = vld [vmem:[#allocation2 + $0x91] sm:$0xff]
  %v881 = vld [vmem:[#allocation2 + $0x99] sm:$0xff]
  %v882 = vld [vmem:[#allocation2 + $0xa1] sm:$0xff]
  %v883 = vld [vmem:[#allocation2 + $0xa9] sm:$0xff]
  %v884 = vld [vmem:[#allocation2 + $0xb1] sm:$0xff]
  %v885 = vld [vmem:[#allocation2 + $0xb9] sm:$0xff]
  %s886 = scalar_lea.vmem %s1, 128
  %v887 = vld [vmem:[%s886] sm:$0xff]
  %v888 = vld [vmem:[%s886 + $0x8] sm:$0xff]
  %v889 = vld [vmem:[%s886 + $0x10] sm:$0xff]
  %v890 = vld [vmem:[%s886 + $0x18] sm:$0xff]
  %v891 = vld [vmem:[%s886 + $0x20] sm:$0xff]
  %v892 = vld [vmem:[%s886 + $0x28] sm:$0xff]
  %v893 = vld [vmem:[%s886 + $0x30] sm:$0xff]
  %v894 = vld [vmem:[%s886 + $0x38] sm:$0xff]
  %v895 = vld [vmem:[%s886 + $0x40] sm:$0xff]
  %v896 = vld [vmem:[%s886 + $0x48] sm:$0xff]
  %v897 = vld [vmem:[%s886 + $0x50] sm:$0xff]
  %v898 = vld [vmem:[%s886 + $0x58] sm:$0xff]
  %v899 = vld [vmem:[%s886 + $0x60] sm:$0xff]
  %v900 = vld [vmem:[%s886 + $0x68] sm:$0xff]
  %v901 = vld [vmem:[%s886 + $0x70] sm:$0xff]
  %v902 = vld [vmem:[%s886 + $0x78] sm:$0xff]
  %903 = vmatprep.subr.mxu0 0.0
  %904 = vmatpush1.msra.mxu0 %v887
  %905 = vmatprep.subr.mxu0 0.0
  %906 = vmatpush1.msra.mxu0 %v888
  %907 = vmatprep.subr.mxu0 0.0
  %908 = vmatpush1.msra.mxu0 %v889
  %909 = vmatprep.subr.mxu0 0.0
  %910 = vmatpush1.msra.mxu0 %v890
  %911 = vmatprep.subr.mxu0 0.0
  %912 = vmatpush1.msra.mxu0 %v891
  %913 = vmatprep.subr.mxu0 0.0
  %914 = vmatpush1.msra.mxu0 %v892
  %915 = vmatprep.subr.mxu0 0.0
  %916 = vmatpush1.msra.mxu0 %v893
  %917 = vmatprep.subr.mxu0 0.0
  %918 = vmatpush1.msra.mxu0 %v894
  %919 = vmatprep.subr.mxu0 0.0
  %920 = vmatpush1.msra.mxu0 %v895
  %921 = vmatprep.subr.mxu0 0.0
  %922 = vmatpush1.msra.mxu0 %v896
  %923 = vmatprep.subr.mxu0 0.0
  %924 = vmatpush1.msra.mxu0 %v897
  %925 = vmatprep.subr.mxu0 0.0
  %926 = vmatpush1.msra.mxu0 %v898
  %927 = vmatprep.subr.mxu0 0.0
  %928 = vmatpush1.msra.mxu0 %v899
  %929 = vmatprep.subr.mxu0 0.0
  %930 = vmatpush1.msra.mxu0 %v900
  %931 = vmatprep.subr.mxu0 0.0
  %932 = vmatpush1.msra.mxu0 %v901
  %933 = vmatprep.subr.mxu0 0.0
  %934 = vmatpush1.msra.mxu0 %v902
  %935 = vmatprep.subr.mxu0 0.0
  %936 = vmatpush1.msra.mxu0 0.0
  %937 = vmatprep.subr.mxu0 0.0
  %938 = vmatpush1.msra.mxu0 0.0
  %939 = vmatprep.subr.mxu0 0.0
  %940 = vmatpush1.msra.mxu0 0.0
  %941 = vmatprep.subr.mxu0 0.0
  %942 = vmatpush1.msra.mxu0 0.0
  %943 = vmatprep.subr.mxu0 0.0
  %944 = vmatpush1.msra.mxu0 0.0
  %945 = vmatprep.subr.mxu0 0.0
  %946 = vmatpush1.msra.mxu0 0.0
  %947 = vmatprep.subr.mxu0 0.0
  %948 = vmatpush1.msra.mxu0 0.0
  %949 = vmatprep.subr.mxu0 0.0
  %950 = vmatpush1.msra.mxu0 0.0
  %951 = vmatprep.subr.mxu0 0.0
  %952 = vmatpush1.msra.mxu0 0.0
  %953 = vmatprep.subr.mxu0 0.0
  %954 = vmatpush1.msra.mxu0 0.0
  %955 = vmatprep.subr.mxu0 0.0
  %956 = vmatpush1.msra.mxu0 0.0
  %957 = vmatprep.subr.mxu0 0.0
  %958 = vmatpush1.msra.mxu0 0.0
  %959 = vmatprep.subr.mxu0 0.0
  %960 = vmatpush1.msra.mxu0 0.0
  %961 = vmatprep.subr.mxu0 0.0
  %962 = vmatpush1.msra.mxu0 0.0
  %963 = vmatprep.subr.mxu0 0.0
  %964 = vmatpush1.msra.mxu0 0.0
  %965 = vmatprep.subr.mxu0 0.0
  %966 = vmatpush1.msra.mxu0 0.0
  %967 = vmatprep.mubr.f32.mxu0 0.0
  %968 = vmatmul.mubr.f32.gmra.mrb[0].mxu0 %v862
  %v969 = vpop.f32.mrb[0].mxu0
  %v970 = vadd.f32 0.0, %v969
  %v971 = vpop.f32.mrb[0].mxu0
  %972 = vmatprep.mubr.f32.mxu0 0.0
  %973 = vmatmul.mubr.f32.gmra.mrb[0].mxu0 %v863
  %v974 = vpop.f32.mrb[0].mxu0
  %v975 = vadd.f32 0.0, %v974
  %v976 = vpop.f32.mrb[0].mxu0
  %977 = vmatprep.mubr.f32.mxu0 0.0
  %978 = vmatmul.mubr.f32.gmra.mrb[0].mxu0 %v864
  %v979 = vpop.f32.mrb[0].mxu0
  %v980 = vadd.f32 0.0, %v979
  %v981 = vpop.f32.mrb[0].mxu0
  %982 = vmatprep.mubr.f32.mxu0 0.0
  %983 = vmatmul.mubr.f32.gmra.mrb[0].mxu0 %v865
  %v984 = vpop.f32.mrb[0].mxu0
  %v985 = vadd.f32 0.0, %v984
  %v986 = vpop.f32.mrb[0].mxu0
  %987 = vmatprep.mubr.f32.mxu0 0.0
  %988 = vmatmul.mubr.f32.gmra.mrb[0].mxu0 %v866
  %v989 = vpop.f32.mrb[0].mxu0
  %v990 = vadd.f32 0.0, %v989
  %v991 = vpop.f32.mrb[0].mxu0
  %992 = vmatprep.mubr.f32.mxu0 0.0
  %993 = vmatmul.mubr.f32.gmra.mrb[0].mxu0 %v867
  %v994 = vpop.f32.mrb[0].mxu0
  %v995 = vadd.f32 0.0, %v994
  %v996 = vpop.f32.mrb[0].mxu0
  %997 = vmatprep.mubr.f32.mxu0 0.0
  %998 = vmatmul.mubr.f32.gmra.mrb[0].mxu0 %v868
  %v999 = vpop.f32.mrb[0].mxu0
  %v1000 = vadd.f32 0.0, %v999
  %v1001 = vpop.f32.mrb[0].mxu0
  %1002 = vmatprep.mubr.f32.mxu0 0.0
  %1003 = vmatmul.mubr.f32.gmra.mrb[0].mxu0 %v869
  %v1004 = vpop.f32.mrb[0].mxu0
  %v1005 = vadd.f32 0.0, %v1004
  %v1006 = vpop.f32.mrb[0].mxu0
  %1007 = vmatprep.mubr.f32.mxu0 0.0
  %1008 = vmatmul.mubr.f32.gmra.mrb[0].mxu0 %v870
  %v1009 = vpop.f32.mrb[0].mxu0
  %v1010 = vadd.f32 0.0, %v1009
  %v1011 = vpop.f32.mrb[0].mxu0
  %1012 = vmatprep.mubr.f32.mxu0 0.0
  %1013 = vmatmul.mubr.f32.gmra.mrb[0].mxu0 %v871
  %v1014 = vpop.f32.mrb[0].mxu0
  %v1015 = vadd.f32 0.0, %v1014
  %v1016 = vpop.f32.mrb[0].mxu0
  %1017 = vmatprep.mubr.f32.mxu0 0.0
  %1018 = vmatmul.mubr.f32.gmra.mrb[0].mxu0 %v872
  %v1019 = vpop.f32.mrb[0].mxu0
  %v1020 = vpop.f32.mrb[0].mxu0
  %1021 = vmatprep.mubr.f32.mxu0 0.0
  %1022 = vmatmul.mubr.f32.gmra.mrb[0].mxu0 %v873
  %v1023 = vpop.f32.mrb[0].mxu0
  %v1024 = vpop.f32.mrb[0].mxu0
  %1025 = vmatprep.mubr.f32.mxu0 0.0
  %1026 = vmatmul.mubr.f32.gmra.mrb[0].mxu0 %v874
  %v1027 = vpop.f32.mrb[0].mxu0
  %v1028 = vpop.f32.mrb[0].mxu0
  %1029 = vmatprep.mubr.f32.mxu0 0.0
  %1030 = vmatmul.mubr.f32.gmra.mrb[0].mxu0 %v875
  %v1031 = vpop.f32.mrb[0].mxu0
  %v1032 = vpop.f32.mrb[0].mxu0
  %1033 = vmatprep.mubr.f32.mxu0 0.0
  %1034 = vmatmul.mubr.f32.gmra.mrb[0].mxu0 %v876
  %v1035 = vpop.f32.mrb[0].mxu0
  %v1036 = vadd.f32 0.0, %v1035
  %v1037 = vpop.f32.mrb[0].mxu0
  %1038 = vmatprep.mubr.f32.mxu0 0.0
  %1039 = vmatmul.mubr.f32.gmra.mrb[0].mxu0 %v877
  %v1040 = vpop.f32.mrb[0].mxu0
  %v1041 = vadd.f32 0.0, %v1040
  %v1042 = vpop.f32.mrb[0].mxu0
  %1043 = vmatprep.mubr.f32.mxu0 0.0
  %1044 = vmatmul.mubr.f32.gmra.mrb[0].mxu0 %v878
  %v1045 = vpop.f32.mrb[0].mxu0
  %v1046 = vadd.f32 0.0, %v1045
  %v1047 = vpop.f32.mrb[0].mxu0
  %1048 = vmatprep.mubr.f32.mxu0 0.0
  %1049 = vmatmul.mubr.f32.gmra.mrb[0].mxu0 %v879
  %v1050 = vpop.f32.mrb[0].mxu0
  %v1051 = vadd.f32 0.0, %v1050
  %v1052 = vpop.f32.mrb[0].mxu0
  %1053 = vmatprep.mubr.f32.mxu0 0.0
  %1054 = vmatmul.mubr.f32.gmra.mrb[0].mxu0 %v880
  %v1055 = vpop.f32.mrb[0].mxu0
  %v1056 = vadd.f32 0.0, %v1055
  %v1057 = vpop.f32.mrb[0].mxu0
  %1058 = vmatprep.mubr.f32.mxu0 0.0
  %1059 = vmatmul.mubr.f32.gmra.mrb[0].mxu0 %v881
  %v1060 = vpop.f32.mrb[0].mxu0
  %v1061 = vadd.f32 0.0, %v1060
  %v1062 = vpop.f32.mrb[0].mxu0
  %1063 = vmatprep.mubr.f32.mxu0 0.0
  %1064 = vmatmul.mubr.f32.gmra.mrb[0].mxu0 %v882
  %v1065 = vpop.f32.mrb[0].mxu0
  %v1066 = vadd.f32 0.0, %v1065
  %v1067 = vpop.f32.mrb[0].mxu0
  %1068 = vmatprep.mubr.f32.mxu0 0.0
  %1069 = vmatmul.mubr.f32.gmra.mrb[0].mxu0 %v883
  %v1070 = vpop.f32.mrb[0].mxu0
  %v1071 = vadd.f32 0.0, %v1070
  %v1072 = vpop.f32.mrb[0].mxu0
  %1073 = vmatprep.mubr.f32.mxu0 0.0
  %1074 = vmatmul.mubr.f32.gmra.mrb[0].mxu0 %v884
  %v1075 = vpop.f32.mrb[0].mxu0
  %v1076 = vadd.f32 0.0, %v1075
  %v1077 = vpop.f32.mrb[0].mxu0
  %1078 = vmatprep.mubr.f32.mxu0 0.0
  %1079 = vmatmul.mubr.f32.gmra.mrb[0].mxu0 %v885
  %v1080 = vpop.f32.mrb[0].mxu0
  %v1081 = vadd.f32 0.0, %v1080
  %v1082 = vpop.f32.mrb[0].mxu0
  %1083 = vdwg.mxu0
  %v1084 = vld [vmem:[%s2] sm:$0x1]
  %v1086 = vlaneseq
  %v1087 = vshrl.u32 %v1086, 7
  %v1088 = vsub.s32 0, %v1087
  %v1089 = vrot.slane %v1084, %v1088
  %v1091 = vmul.f32 %v970, %v1089
  %v1092 = vmul.f32 %v975, %v1089
  %v1093 = vmul.f32 %v980, %v1089
  %v1094 = vmul.f32 %v985, %v1089
  %v1095 = vmul.f32 %v990, %v1089
  %v1096 = vmul.f32 %v995, %v1089
  %v1097 = vmul.f32 %v1000, %v1089
  %v1098 = vmul.f32 %v1005, %v1089
  %v1099 = vmul.f32 %v1010, %v1089
  %v1100 = vmul.f32 %v1015, %v1089
  %v1101 = vmul.f32 %v1036, %v1089
  %v1102 = vmul.f32 %v1041, %v1089
  %v1103 = vmul.f32 %v1046, %v1089
  %v1104 = vmul.f32 %v1051, %v1089
  %v1105 = vmul.f32 %v1056, %v1089
  %v1106 = vmul.f32 %v1061, %v1089
  %v1107 = vmul.f32 %v1066, %v1089
  %v1108 = vmul.f32 %v1071, %v1089
  %v1109 = vmul.f32 %v1076, %v1089
  %v1110 = vmul.f32 %v1081, %v1089
  %v1111 = vld [vmem:[%s3] sm:$0x1]
  %v1113 = vlaneseq
  %v1114 = vshrl.u32 %v1113, 7
  %v1115 = vsub.s32 0, %v1114
  %v1116 = vrot.slane %v1111, %v1115
  %v1118 = vadd.f32 %v1091, %v1116
  %v1119 = vadd.f32 %v1092, %v1116
  %v1120 = vadd.f32 %v1093, %v1116
  %v1121 = vadd.f32 %v1094, %v1116
  %v1122 = vadd.f32 %v1095, %v1116
  %v1123 = vadd.f32 %v1096, %v1116
  %v1124 = vadd.f32 %v1097, %v1116
  %v1125 = vadd.f32 %v1098, %v1116
  %v1126 = vadd.f32 %v1099, %v1116
  %v1127 = vadd.f32 %v1100, %v1116
  %v1128 = vadd.f32 %v1101, %v1116
  %v1129 = vadd.f32 %v1102, %v1116
  %v1130 = vadd.f32 %v1103, %v1116
  %v1131 = vadd.f32 %v1104, %v1116
  %v1132 = vadd.f32 %v1105, %v1116
  %v1133 = vadd.f32 %v1106, %v1116
  %v1134 = vadd.f32 %v1107, %v1116
  %v1135 = vadd.f32 %v1108, %v1116
  %v1136 = vadd.f32 %v1109, %v1116
  %v1137 = vadd.f32 %v1110, %v1116
  %v1138 = vmax.f32 %v1118, 0.0
  %v1139 = vmax.f32 %v1119, 0.0
  %v1140 = vmax.f32 %v1120, 0.0
  %v1141 = vmax.f32 %v1121, 0.0
  %v1142 = vmax.f32 %v1122, 0.0
  %v1143 = vmax.f32 %v1123, 0.0
  %v1144 = vmax.f32 %v1124, 0.0
  %v1145 = vmax.f32 %v1125, 0.0
  %v1146 = vmax.f32 %v1126, 0.0
  %v1147 = vmax.f32 %v1127, 0.0
  %v1148 = vmax.f32 %v1128, 0.0
  %v1149 = vmax.f32 %v1129, 0.0
  %v1150 = vmax.f32 %v1130, 0.0
  %v1151 = vmax.f32 %v1131, 0.0
  %v1152 = vmax.f32 %v1132, 0.0
  %v1153 = vmax.f32 %v1133, 0.0
  %v1154 = vmax.f32 %v1134, 0.0
  %v1155 = vmax.f32 %v1135, 0.0
  %v1156 = vmax.f32 %v1136, 0.0
  %v1157 = vmax.f32 %v1137, 0.0
  %s1158 = scalar_lea.vmem %s4, 80
  %1159 = vst.msk [vmem:[%s1158] sm:$0xff] %vm840, %v1138
  %1160 = vst.msk [vmem:[%s1158 + $0x8] sm:$0xff] %vm840, %v1139
  %1161 = vst.msk [vmem:[%s1158 + $0x10] sm:$0xff] %vm840, %v1140
  %1162 = vst.msk [vmem:[%s1158 + $0x18] sm:$0xff] %vm840, %v1141
  %1163 = vst.msk [vmem:[%s1158 + $0x20] sm:$0xff] %vm840, %v1142
  %1164 = vst.msk [vmem:[%s1158 + $0x28] sm:$0xff] %vm840, %v1143
  %1165 = vst.msk [vmem:[%s1158 + $0x30] sm:$0xff] %vm840, %v1144
  %1166 = vst.msk [vmem:[%s1158 + $0x38] sm:$0xff] %vm840, %v1145
  %1167 = vst.msk [vmem:[%s1158 + $0x40] sm:$0xff] %vm840, %v1146
  %1168 = vst.msk [vmem:[%s1158 + $0x48] sm:$0xff] %vm840, %v1147
  %s1169 = scalar_lea.vmem %s4, 400
  %1170 = vst.msk [vmem:[%s1169] sm:$0xff] %vm840, %v1148
  %1171 = vst.msk [vmem:[%s1169 + $0x8] sm:$0xff] %vm840, %v1149
  %1172 = vst.msk [vmem:[%s1169 + $0x10] sm:$0xff] %vm840, %v1150
  %1173 = vst.msk [vmem:[%s1169 + $0x18] sm:$0xff] %vm840, %v1151
  %1174 = vst.msk [vmem:[%s1169 + $0x20] sm:$0xff] %vm840, %v1152
  %1175 = vst.msk [vmem:[%s1169 + $0x28] sm:$0xff] %vm840, %v1153
  %1176 = vst.msk [vmem:[%s1169 + $0x30] sm:$0xff] %vm840, %v1154
  %1177 = vst.msk [vmem:[%s1169 + $0x38] sm:$0xff] %vm840, %v1155
  %1178 = vst.msk [vmem:[%s1169 + $0x40] sm:$0xff] %vm840, %v1156
  %1179 = vst.msk [vmem:[%s1169 + $0x48] sm:$0xff] %vm840, %v1157
  %v1180 = vld [vmem:[#allocation2 + $0xa] sm:$0xff]
  %v1181 = vld [vmem:[#allocation2 + $0x12] sm:$0xff]
  %v1182 = vld [vmem:[#allocation2 + $0x1a] sm:$0xff]
  %v1183 = vld [vmem:[#allocation2 + $0x22] sm:$0xff]
  %v1184 = vld [vmem:[#allocation2 + $0x2a] sm:$0xff]
  %v1185 = vld [vmem:[#allocation2 + $0x32] sm:$0xff]
  %v1186 = vld [vmem:[#allocation2 + $0x3a] sm:$0xff]
  %v1187 = vld [vmem:[#allocation2 + $0x42] sm:$0xff]
  %v1188 = vld [vmem:[#allocation2 + $0x4a] sm:$0xff]
  %v1189 = vld [vmem:[#allocation2 + $0x52] sm:$0xff]
  %v1190 = vld [vmem:[#allocation2 + $0x5a] sm:$0xff]
  %v1191 = vld [vmem:[#allocation2 + $0x62] sm:$0xff]
  %v1192 = vld [vmem:[#allocation2 + $0x6a] sm:$0xff]
  %v1193 = vld [vmem:[#allocation2 + $0x72] sm:$0xff]
  %v1194 = vld [vmem:[#allocation2 + $0x7a] sm:$0xff]
  %v1195 = vld [vmem:[#allocation2 + $0x82] sm:$0xff]
  %v1196 = vld [vmem:[#allocation2 + $0x8a] sm:$0xff]
  %v1197 = vld [vmem:[#allocation2 + $0x92] sm:$0xff]
  %v1198 = vld [vmem:[#allocation2 + $0x9a] sm:$0xff]
  %v1199 = vld [vmem:[#allocation2 + $0xa2] sm:$0xff]
  %v1200 = vld [vmem:[#allocation2 + $0xaa] sm:$0xff]
  %v1201 = vld [vmem:[#allocation2 + $0xb2] sm:$0xff]
  %v1202 = vld [vmem:[#allocation2 + $0xba] sm:$0xff]
  %v1203 = vld [vmem:[#allocation2 + $0xc2] sm:$0xff]
  %s1204 = scalar_lea.vmem %s1, 256
  %v1205 = vld [vmem:[%s1204] sm:$0xff]
  %v1206 = vld [vmem:[%s1204 + $0x8] sm:$0xff]
  %v1207 = vld [vmem:[%s1204 + $0x10] sm:$0xff]
  %v1208 = vld [vmem:[%s1204 + $0x18] sm:$0xff]
  %v1209 = vld [vmem:[%s1204 + $0x20] sm:$0xff]
  %v1210 = vld [vmem:[%s1204 + $0x28] sm:$0xff]
  %v1211 = vld [vmem:[%s1204 + $0x30] sm:$0xff]
  %v1212 = vld [vmem:[%s1204 + $0x38] sm:$0xff]
  %v1213 = vld [vmem:[%s1204 + $0x40] sm:$0xff]
  %v1214 = vld [vmem:[%s1204 + $0x48] sm:$0xff]
  %v1215 = vld [vmem:[%s1204 + $0x50] sm:$0xff]
  %v1216 = vld [vmem:[%s1204 + $0x58] sm:$0xff]
  %v1217 = vld [vmem:[%s1204 + $0x60] sm:$0xff]
  %v1218 = vld [vmem:[%s1204 + $0x68] sm:$0xff]
  %v1219 = vld [vmem:[%s1204 + $0x70] sm:$0xff]
  %v1220 = vld [vmem:[%s1204 + $0x78] sm:$0xff]
  %1221 = vmatprep.subr.mxu0 0.0
  %1222 = vmatpush1.msra.mxu0 %v1205
  %1223 = vmatprep.subr.mxu0 0.0
  %1224 = vmatpush1.msra.mxu0 %v1206
  %1225 = vmatprep.subr.mxu0 0.0
  %1226 = vmatpush1.msra.mxu0 %v1207
  %1227 = vmatprep.subr.mxu0 0.0
  %1228 = vmatpush1.msra.mxu0 %v1208
  %1229 = vmatprep.subr.mxu0 0.0
  %1230 = vmatpush1.msra.mxu0 %v1209
  %1231 = vmatprep.subr.mxu0 0.0
  %1232 = vmatpush1.msra.mxu0 %v1210
  %1233 = vmatprep.subr.mxu0 0.0
  %1234 = vmatpush1.msra.mxu0 %v1211
  %1235 = vmatprep.subr.mxu0 0.0
  %1236 = vmatpush1.msra.mxu0 %v1212
  %1237 = vmatprep.subr.mxu0 0.0
  %1238 = vmatpush1.msra.mxu0 %v1213
  %1239 = vmatprep.subr.mxu0 0.0
  %1240 = vmatpush1.msra.mxu0 %v1214
  %1241 = vmatprep.subr.mxu0 0.0
  %1242 = vmatpush1.msra.mxu0 %v1215
  %1243 = vmatprep.subr.mxu0 0.0
  %1244 = vmatpush1.msra.mxu0 %v1216
  %1245 = vmatprep.subr.mxu0 0.0
  %1246 = vmatpush1.msra.mxu0 %v1217
  %1247 = vmatprep.subr.mxu0 0.0
  %1248 = vmatpush1.msra.mxu0 %v1218
  %1249 = vmatprep.subr.mxu0 0.0
  %1250 = vmatpush1.msra.mxu0 %v1219
  %1251 = vmatprep.subr.mxu0 0.0
  %1252 = vmatpush1.msra.mxu0 %v1220
  %1253 = vmatprep.subr.mxu0 0.0
  %1254 = vmatpush1.msra.mxu0 0.0
  %1255 = vmatprep.subr.mxu0 0.0
  %1256 = vmatpush1.msra.mxu0 0.0
  %1257 = vmatprep.subr.mxu0 0.0
  %1258 = vmatpush1.msra.mxu0 0.0
  %1259 = vmatprep.subr.mxu0 0.0
  %1260 = vmatpush1.msra.mxu0 0.0
  %1261 = vmatprep.subr.mxu0 0.0
  %1262 = vmatpush1.msra.mxu0 0.0
  %1263 = vmatprep.subr.mxu0 0.0
  %1264 = vmatpush1.msra.mxu0 0.0
  %1265 = vmatprep.subr.mxu0 0.0
  %1266 = vmatpush1.msra.mxu0 0.0
  %1267 = vmatprep.subr.mxu0 0.0
  %1268 = vmatpush1.msra.mxu0 0.0
  %1269 = vmatprep.subr.mxu0 0.0
  %1270 = vmatpush1.msra.mxu0 0.0
  %1271 = vmatprep.subr.mxu0 0.0
  %1272 = vmatpush1.msra.mxu0 0.0
  %1273 = vmatprep.subr.mxu0 0.0
  %1274 = vmatpush1.msra.mxu0 0.0
  %1275 = vmatprep.subr.mxu0 0.0
  %1276 = vmatpush1.msra.mxu0 0.0
  %1277 = vmatprep.subr.mxu0 0.0
  %1278 = vmatpush1.msra.mxu0 0.0
  %1279 = vmatprep.subr.mxu0 0.0
  %1280 = vmatpush1.msra.mxu0 0.0
  %1281 = vmatprep.subr.mxu0 0.0
  %1282 = vmatpush1.msra.mxu0 0.0
  %1283 = vmatprep.subr.mxu0 0.0
  %1284 = vmatpush1.msra.mxu0 0.0
  %1285 = vmatprep.mubr.f32.mxu0 0.0
  %1286 = vmatmul.mubr.f32.gmra.mrb[0].mxu0 %v1180
  %v1287 = vpop.f32.mrb[0].mxu0
  %v1288 = vadd.f32 0.0, %v1287
  %v1289 = vpop.f32.mrb[0].mxu0
  %1290 = vmatprep.mubr.f32.mxu0 0.0
  %1291 = vmatmul.mubr.f32.gmra.mrb[0].mxu0 %v1181
  %v1292 = vpop.f32.mrb[0].mxu0
  %v1293 = vadd.f32 0.0, %v1292
  %v1294 = vpop.f32.mrb[0].mxu0
  %1295 = vmatprep.mubr.f32.mxu0 0.0
  %1296 = vmatmul.mubr.f32.gmra.mrb[0].mxu0 %v1182
  %v1297 = vpop.f32.mrb[0].mxu0
  %v1298 = vadd.f32 0.0, %v1297
  %v1299 = vpop.f32.mrb[0].mxu0
  %1300 = vmatprep.mubr.f32.mxu0 0.0
  %1301 = vmatmul.mubr.f32.gmra.mrb[0].mxu0 %v1183
  %v1302 = vpop.f32.mrb[0].mxu0
  %v1303 = vadd.f32 0.0, %v1302
  %v1304 = vpop.f32.mrb[0].mxu0
  %1305 = vmatprep.mubr.f32.mxu0 0.0
  %1306 = vmatmul.mubr.f32.gmra.mrb[0].mxu0 %v1184
  %v1307 = vpop.f32.mrb[0].mxu0
  %v1308 = vadd.f32 0.0, %v1307
  %v1309 = vpop.f32.mrb[0].mxu0
  %1310 = vmatprep.mubr.f32.mxu0 0.0
  %1311 = vmatmul.mubr.f32.gmra.mrb[0].mxu0 %v1185
  %v1312 = vpop.f32.mrb[0].mxu0
  %v1313 = vadd.f32 0.0, %v1312
  %v1314 = vpop.f32.mrb[0].mxu0
  %1315 = vmatprep.mubr.f32.mxu0 0.0
  %1316 = vmatmul.mubr.f32.gmra.mrb[0].mxu0 %v1186
  %v1317 = vpop.f32.mrb[0].mxu0
  %v1318 = vadd.f32 0.0, %v1317
  %v1319 = vpop.f32.mrb[0].mxu0
  %1320 = vmatprep.mubr.f32.mxu0 0.0
  %1321 = vmatmul.mubr.f32.gmra.mrb[0].mxu0 %v1187
  %v1322 = vpop.f32.mrb[0].mxu0
  %v1323 = vadd.f32 0.0, %v1322
  %v1324 = vpop.f32.mrb[0].mxu0
  %1325 = vmatprep.mubr.f32.mxu0 0.0
  %1326 = vmatmul.mubr.f32.gmra.mrb[0].mxu0 %v1188
  %v1327 = vpop.f32.mrb[0].mxu0
  %v1328 = vadd.f32 0.0, %v1327
  %v1329 = vpop.f32.mrb[0].mxu0
  %1330 = vmatprep.mubr.f32.mxu0 0.0
  %1331 = vmatmul.mubr.f32.gmra.mrb[0].mxu0 %v1189
  %v1332 = vpop.f32.mrb[0].mxu0
  %v1333 = vadd.f32 0.0, %v1332
  %v1334 = vpop.f32.mrb[0].mxu0
  %1335 = vmatprep.mubr.f32.mxu0 0.0
  %1336 = vmatmul.mubr.f32.gmra.mrb[0].mxu0 %v1190
  %v1337 = vpop.f32.mrb[0].mxu0
  %v1338 = vpop.f32.mrb[0].mxu0
  %1339 = vmatprep.mubr.f32.mxu0 0.0
  %1340 = vmatmul.mubr.f32.gmra.mrb[0].mxu0 %v1191
  %v1341 = vpop.f32.mrb[0].mxu0
  %v1342 = vpop.f32.mrb[0].mxu0
  %1343 = vmatprep.mubr.f32.mxu0 0.0
  %1344 = vmatmul.mubr.f32.gmra.mrb[0].mxu0 %v1192
  %v1345 = vpop.f32.mrb[0].mxu0
  %v1346 = vpop.f32.mrb[0].mxu0
  %1347 = vmatprep.mubr.f32.mxu0 0.0
  %1348 = vmatmul.mubr.f32.gmra.mrb[0].mxu0 %v1193
  %v1349 = vpop.f32.mrb[0].mxu0
  %v1350 = vpop.f32.mrb[0].mxu0
  %1351 = vmatprep.mubr.f32.mxu0 0.0
  %1352 = vmatmul.mubr.f32.gmra.mrb[0].mxu0 %v1194
  %v1353 = vpop.f32.mrb[0].mxu0
  %v1354 = vadd.f32 0.0, %v1353
  %v1355 = vpop.f32.mrb[0].mxu0
  %1356 = vmatprep.mubr.f32.mxu0 0.0
  %1357 = vmatmul.mubr.f32.gmra.mrb[0].mxu0 %v1195
  %v1358 = vpop.f32.mrb[0].mxu0
  %v1359 = vadd.f32 0.0, %v1358
  %v1360 = vpop.f32.mrb[0].mxu0
  %1361 = vmatprep.mubr.f32.mxu0 0.0
  %1362 = vmatmul.mubr.f32.gmra.mrb[0].mxu0 %v1196
  %v1363 = vpop.f32.mrb[0].mxu0
  %v1364 = vadd.f32 0.0, %v1363
  %v1365 = vpop.f32.mrb[0].mxu0
  %1366 = vmatprep.mubr.f32.mxu0 0.0
  %1367 = vmatmul.mubr.f32.gmra.mrb[0].mxu0 %v1197
  %v1368 = vpop.f32.mrb[0].mxu0
  %v1369 = vadd.f32 0.0, %v1368
  %v1370 = vpop.f32.mrb[0].mxu0
  %1371 = vmatprep.mubr.f32.mxu0 0.0
  %1372 = vmatmul.mubr.f32.gmra.mrb[0].mxu0 %v1198
  %v1373 = vpop.f32.mrb[0].mxu0
  %v1374 = vadd.f32 0.0, %v1373
  %v1375 = vpop.f32.mrb[0].mxu0
  %1376 = vmatprep.mubr.f32.mxu0 0.0
  %1377 = vmatmul.mubr.f32.gmra.mrb[0].mxu0 %v1199
  %v1378 = vpop.f32.mrb[0].mxu0
  %v1379 = vadd.f32 0.0, %v1378
  %v1380 = vpop.f32.mrb[0].mxu0
  %1381 = vmatprep.mubr.f32.mxu0 0.0
  %1382 = vmatmul.mubr.f32.gmra.mrb[0].mxu0 %v1200
  %v1383 = vpop.f32.mrb[0].mxu0
  %v1384 = vadd.f32 0.0, %v1383
  %v1385 = vpop.f32.mrb[0].mxu0
  %1386 = vmatprep.mubr.f32.mxu0 0.0
  %1387 = vmatmul.mubr.f32.gmra.mrb[0].mxu0 %v1201
  %v1388 = vpop.f32.mrb[0].mxu0
  %v1389 = vadd.f32 0.0, %v1388
  %v1390 = vpop.f32.mrb[0].mxu0
  %1391 = vmatprep.mubr.f32.mxu0 0.0
  %1392 = vmatmul.mubr.f32.gmra.mrb[0].mxu0 %v1202
  %v1393 = vpop.f32.mrb[0].mxu0
  %v1394 = vadd.f32 0.0, %v1393
  %v1395 = vpop.f32.mrb[0].mxu0
  %1396 = vmatprep.mubr.f32.mxu0 0.0
  %1397 = vmatmul.mubr.f32.gmra.mrb[0].mxu0 %v1203
  %v1398 = vpop.f32.mrb[0].mxu0
  %v1399 = vadd.f32 0.0, %v1398
  %v1400 = vpop.f32.mrb[0].mxu0
  %1401 = vdwg.mxu0
  %v1402 = vld [vmem:[%s2] sm:$0x1]
  %v1404 = vlaneseq
  %v1405 = vshrl.u32 %v1404, 7
  %v1406 = vsub.s32 0, %v1405
  %v1407 = vrot.slane %v1402, %v1406
  %v1409 = vmul.f32 %v1288, %v1407
  %v1410 = vmul.f32 %v1293, %v1407
  %v1411 = vmul.f32 %v1298, %v1407
  %v1412 = vmul.f32 %v1303, %v1407
  %v1413 = vmul.f32 %v1308, %v1407
  %v1414 = vmul.f32 %v1313, %v1407
  %v1415 = vmul.f32 %v1318, %v1407
  %v1416 = vmul.f32 %v1323, %v1407
  %v1417 = vmul.f32 %v1328, %v1407
  %v1418 = vmul.f32 %v1333, %v1407
  %v1419 = vmul.f32 %v1354, %v1407
  %v1420 = vmul.f32 %v1359, %v1407
  %v1421 = vmul.f32 %v1364, %v1407
  %v1422 = vmul.f32 %v1369, %v1407
  %v1423 = vmul.f32 %v1374, %v1407
  %v1424 = vmul.f32 %v1379, %v1407
  %v1425 = vmul.f32 %v1384, %v1407
  %v1426 = vmul.f32 %v1389, %v1407
  %v1427 = vmul.f32 %v1394, %v1407
  %v1428 = vmul.f32 %v1399, %v1407
  %v1429 = vld [vmem:[%s3] sm:$0x1]
  %v1431 = vlaneseq
  %v1432 = vshrl.u32 %v1431, 7
  %v1433 = vsub.s32 0, %v1432
  %v1434 = vrot.slane %v1429, %v1433
  %v1436 = vadd.f32 %v1409, %v1434
  %v1437 = vadd.f32 %v1410, %v1434
  %v1438 = vadd.f32 %v1411, %v1434
  %v1439 = vadd.f32 %v1412, %v1434
  %v1440 = vadd.f32 %v1413, %v1434
  %v1441 = vadd.f32 %v1414, %v1434
  %v1442 = vadd.f32 %v1415, %v1434
  %v1443 = vadd.f32 %v1416, %v1434
  %v1444 = vadd.f32 %v1417, %v1434
  %v1445 = vadd.f32 %v1418, %v1434
  %v1446 = vadd.f32 %v1419, %v1434
  %v1447 = vadd.f32 %v1420, %v1434
  %v1448 = vadd.f32 %v1421, %v1434
  %v1449 = vadd.f32 %v1422, %v1434
  %v1450 = vadd.f32 %v1423, %v1434
  %v1451 = vadd.f32 %v1424, %v1434
  %v1452 = vadd.f32 %v1425, %v1434
  %v1453 = vadd.f32 %v1426, %v1434
  %v1454 = vadd.f32 %v1427, %v1434
  %v1455 = vadd.f32 %v1428, %v1434
  %v1456 = vmax.f32 %v1436, 0.0
  %v1457 = vmax.f32 %v1437, 0.0
  %v1458 = vmax.f32 %v1438, 0.0
  %v1459 = vmax.f32 %v1439, 0.0
  %v1460 = vmax.f32 %v1440, 0.0
  %v1461 = vmax.f32 %v1441, 0.0
  %v1462 = vmax.f32 %v1442, 0.0
  %v1463 = vmax.f32 %v1443, 0.0
  %v1464 = vmax.f32 %v1444, 0.0
  %v1465 = vmax.f32 %v1445, 0.0
  %v1466 = vmax.f32 %v1446, 0.0
  %v1467 = vmax.f32 %v1447, 0.0
  %v1468 = vmax.f32 %v1448, 0.0
  %v1469 = vmax.f32 %v1449, 0.0
  %v1470 = vmax.f32 %v1450, 0.0
  %v1471 = vmax.f32 %v1451, 0.0
  %v1472 = vmax.f32 %v1452, 0.0
  %v1473 = vmax.f32 %v1453, 0.0
  %v1474 = vmax.f32 %v1454, 0.0
  %v1475 = vmax.f32 %v1455, 0.0
  %s1476 = scalar_lea.vmem %s4, 160
  %1477 = vst.msk [vmem:[%s1476] sm:$0xff] %vm840, %v1456
  %1478 = vst.msk [vmem:[%s1476 + $0x8] sm:$0xff] %vm840, %v1457
  %1479 = vst.msk [vmem:[%s1476 + $0x10] sm:$0xff] %vm840, %v1458
  %1480 = vst.msk [vmem:[%s1476 + $0x18] sm:$0xff] %vm840, %v1459
  %1481 = vst.msk [vmem:[%s1476 + $0x20] sm:$0xff] %vm840, %v1460
  %1482 = vst.msk [vmem:[%s1476 + $0x28] sm:$0xff] %vm840, %v1461
  %1483 = vst.msk [vmem:[%s1476 + $0x30] sm:$0xff] %vm840, %v1462
  %1484 = vst.msk [vmem:[%s1476 + $0x38] sm:$0xff] %vm840, %v1463
  %1485 = vst.msk [vmem:[%s1476 + $0x40] sm:$0xff] %vm840, %v1464
  %1486 = vst.msk [vmem:[%s1476 + $0x48] sm:$0xff] %vm840, %v1465
  %s1487 = scalar_lea.vmem %s4, 480
  %1488 = vst.msk [vmem:[%s1487] sm:$0xff] %vm840, %v1466
  %1489 = vst.msk [vmem:[%s1487 + $0x8] sm:$0xff] %vm840, %v1467
  %1490 = vst.msk [vmem:[%s1487 + $0x10] sm:$0xff] %vm840, %v1468
  %1491 = vst.msk [vmem:[%s1487 + $0x18] sm:$0xff] %vm840, %v1469
  %1492 = vst.msk [vmem:[%s1487 + $0x20] sm:$0xff] %vm840, %v1470
  %1493 = vst.msk [vmem:[%s1487 + $0x28] sm:$0xff] %vm840, %v1471
  %1494 = vst.msk [vmem:[%s1487 + $0x30] sm:$0xff] %vm840, %v1472
  %1495 = vst.msk [vmem:[%s1487 + $0x38] sm:$0xff] %vm840, %v1473
  %1496 = vst.msk [vmem:[%s1487 + $0x40] sm:$0xff] %vm840, %v1474
  %1497 = vst.msk [vmem:[%s1487 + $0x48] sm:$0xff] %vm840, %v1475
  %v1498 = vld [vmem:[#allocation2 + $0xb] sm:$0xff]
  %v1499 = vld [vmem:[#allocation2 + $0x13] sm:$0xff]
  %v1500 = vld [vmem:[#allocation2 + $0x1b] sm:$0xff]
  %v1501 = vld [vmem:[#allocation2 + $0x23] sm:$0xff]
  %v1502 = vld [vmem:[#allocation2 + $0x2b] sm:$0xff]
  %v1503 = vld [vmem:[#allocation2 + $0x33] sm:$0xff]
  %v1504 = vld [vmem:[#allocation2 + $0x3b] sm:$0xff]
  %v1505 = vld [vmem:[#allocation2 + $0x43] sm:$0xff]
  %v1506 = vld [vmem:[#allocation2 + $0x4b] sm:$0xff]
  %v1507 = vld [vmem:[#allocation2 + $0x53] sm:$0xff]
  %v1508 = vld [vmem:[#allocation2 + $0x5b] sm:$0xff]
  %v1509 = vld [vmem:[#allocation2 + $0x63] sm:$0xff]
  %v1510 = vld [vmem:[#allocation2 + $0x6b] sm:$0xff]
  %v1511 = vld [vmem:[#allocation2 + $0x73] sm:$0xff]
  %v1512 = vld [vmem:[#allocation2 + $0x7b] sm:$0xff]
  %v1513 = vld [vmem:[#allocation2 + $0x83] sm:$0xff]
  %v1514 = vld [vmem:[#allocation2 + $0x8b] sm:$0xff]
  %v1515 = vld [vmem:[#allocation2 + $0x93] sm:$0xff]
  %v1516 = vld [vmem:[#allocation2 + $0x9b] sm:$0xff]
  %v1517 = vld [vmem:[#allocation2 + $0xa3] sm:$0xff]
  %v1518 = vld [vmem:[#allocation2 + $0xab] sm:$0xff]
  %v1519 = vld [vmem:[#allocation2 + $0xb3] sm:$0xff]
  %v1520 = vld [vmem:[#allocation2 + $0xbb] sm:$0xff]
  %v1521 = vld [vmem:[#allocation2 + $0xc3] sm:$0xff]
  %s1522 = scalar_lea.vmem %s1, 384
  %v1523 = vld [vmem:[%s1522] sm:$0xff]
  %v1524 = vld [vmem:[%s1522 + $0x8] sm:$0xff]
  %v1525 = vld [vmem:[%s1522 + $0x10] sm:$0xff]
  %v1526 = vld [vmem:[%s1522 + $0x18] sm:$0xff]
  %v1527 = vld [vmem:[%s1522 + $0x20] sm:$0xff]
  %v1528 = vld [vmem:[%s1522 + $0x28] sm:$0xff]
  %v1529 = vld [vmem:[%s1522 + $0x30] sm:$0xff]
  %v1530 = vld [vmem:[%s1522 + $0x38] sm:$0xff]
  %v1531 = vld [vmem:[%s1522 + $0x40] sm:$0xff]
  %v1532 = vld [vmem:[%s1522 + $0x48] sm:$0xff]
  %v1533 = vld [vmem:[%s1522 + $0x50] sm:$0xff]
  %v1534 = vld [vmem:[%s1522 + $0x58] sm:$0xff]
  %v1535 = vld [vmem:[%s1522 + $0x60] sm:$0xff]
  %v1536 = vld [vmem:[%s1522 + $0x68] sm:$0xff]
  %v1537 = vld [vmem:[%s1522 + $0x70] sm:$0xff]
  %v1538 = vld [vmem:[%s1522 + $0x78] sm:$0xff]
  %1539 = vmatprep.subr.mxu0 0.0
  %1540 = vmatpush1.msra.mxu0 %v1523
  %1541 = vmatprep.subr.mxu0 0.0
  %1542 = vmatpush1.msra.mxu0 %v1524
  %1543 = vmatprep.subr.mxu0 0.0
  %1544 = vmatpush1.msra.mxu0 %v1525
  %1545 = vmatprep.subr.mxu0 0.0
  %1546 = vmatpush1.msra.mxu0 %v1526
  %1547 = vmatprep.subr.mxu0 0.0
  %1548 = vmatpush1.msra.mxu0 %v1527
  %1549 = vmatprep.subr.mxu0 0.0
  %1550 = vmatpush1.msra.mxu0 %v1528
  %1551 = vmatprep.subr.mxu0 0.0
  %1552 = vmatpush1.msra.mxu0 %v1529
  %1553 = vmatprep.subr.mxu0 0.0
  %1554 = vmatpush1.msra.mxu0 %v1530
  %1555 = vmatprep.subr.mxu0 0.0
  %1556 = vmatpush1.msra.mxu0 %v1531
  %1557 = vmatprep.subr.mxu0 0.0
  %1558 = vmatpush1.msra.mxu0 %v1532
  %1559 = vmatprep.subr.mxu0 0.0
  %1560 = vmatpush1.msra.mxu0 %v1533
  %1561 = vmatprep.subr.mxu0 0.0
  %1562 = vmatpush1.msra.mxu0 %v1534
  %1563 = vmatprep.subr.mxu0 0.0
  %1564 = vmatpush1.msra.mxu0 %v1535
  %1565 = vmatprep.subr.mxu0 0.0
  %1566 = vmatpush1.msra.mxu0 %v1536
  %1567 = vmatprep.subr.mxu0 0.0
  %1568 = vmatpush1.msra.mxu0 %v1537
  %1569 = vmatprep.subr.mxu0 0.0
  %1570 = vmatpush1.msra.mxu0 %v1538
  %1571 = vmatprep.subr.mxu0 0.0
  %1572 = vmatpush1.msra.mxu0 0.0
  %1573 = vmatprep.subr.mxu0 0.0
  %1574 = vmatpush1.msra.mxu0 0.0
  %1575 = vmatprep.subr.mxu0 0.0
  %1576 = vmatpush1.msra.mxu0 0.0
  %1577 = vmatprep.subr.mxu0 0.0
  %1578 = vmatpush1.msra.mxu0 0.0
  %1579 = vmatprep.subr.mxu0 0.0
  %1580 = vmatpush1.msra.mxu0 0.0
  %1581 = vmatprep.subr.mxu0 0.0
  %1582 = vmatpush1.msra.mxu0 0.0
  %1583 = vmatprep.subr.mxu0 0.0
  %1584 = vmatpush1.msra.mxu0 0.0
  %1585 = vmatprep.subr.mxu0 0.0
  %1586 = vmatpush1.msra.mxu0 0.0
  %1587 = vmatprep.subr.mxu0 0.0
  %1588 = vmatpush1.msra.mxu0 0.0
  %1589 = vmatprep.subr.mxu0 0.0
  %1590 = vmatpush1.msra.mxu0 0.0
  %1591 = vmatprep.subr.mxu0 0.0
  %1592 = vmatpush1.msra.mxu0 0.0
  %1593 = vmatprep.subr.mxu0 0.0
  %1594 = vmatpush1.msra.mxu0 0.0
  %1595 = vmatprep.subr.mxu0 0.0
  %1596 = vmatpush1.msra.mxu0 0.0
  %1597 = vmatprep.subr.mxu0 0.0
  %1598 = vmatpush1.msra.mxu0 0.0
  %1599 = vmatprep.subr.mxu0 0.0
  %1600 = vmatpush1.msra.mxu0 0.0
  %1601 = vmatprep.subr.mxu0 0.0
  %1602 = vmatpush1.msra.mxu0 0.0
  %1603 = vmatprep.mubr.f32.mxu0 0.0
  %1604 = vmatmul.mubr.f32.gmra.mrb[0].mxu0 %v1498
  %v1605 = vpop.f32.mrb[0].mxu0
  %v1606 = vadd.f32 0.0, %v1605
  %v1607 = vpop.f32.mrb[0].mxu0
  %1608 = vmatprep.mubr.f32.mxu0 0.0
  %1609 = vmatmul.mubr.f32.gmra.mrb[0].mxu0 %v1499
  %v1610 = vpop.f32.mrb[0].mxu0
  %v1611 = vadd.f32 0.0, %v1610
  %v1612 = vpop.f32.mrb[0].mxu0
  %1613 = vmatprep.mubr.f32.mxu0 0.0
  %1614 = vmatmul.mubr.f32.gmra.mrb[0].mxu0 %v1500
  %v1615 = vpop.f32.mrb[0].mxu0
  %v1616 = vadd.f32 0.0, %v1615
  %v1617 = vpop.f32.mrb[0].mxu0
  %1618 = vmatprep.mubr.f32.mxu0 0.0
  %1619 = vmatmul.mubr.f32.gmra.mrb[0].mxu0 %v1501
  %v1620 = vpop.f32.mrb[0].mxu0
  %v1621 = vadd.f32 0.0, %v1620
  %v1622 = vpop.f32.mrb[0].mxu0
  %1623 = vmatprep.mubr.f32.mxu0 0.0
  %1624 = vmatmul.mubr.f32.gmra.mrb[0].mxu0 %v1502
  %v1625 = vpop.f32.mrb[0].mxu0
  %v1626 = vadd.f32 0.0, %v1625
  %v1627 = vpop.f32.mrb[0].mxu0
  %1628 = vmatprep.mubr.f32.mxu0 0.0
  %1629 = vmatmul.mubr.f32.gmra.mrb[0].mxu0 %v1503
  %v1630 = vpop.f32.mrb[0].mxu0
  %v1631 = vadd.f32 0.0, %v1630
  %v1632 = vpop.f32.mrb[0].mxu0
  %1633 = vmatprep.mubr.f32.mxu0 0.0
  %1634 = vmatmul.mubr.f32.gmra.mrb[0].mxu0 %v1504
  %v1635 = vpop.f32.mrb[0].mxu0
  %v1636 = vadd.f32 0.0, %v1635
  %v1637 = vpop.f32.mrb[0].mxu0
  %1638 = vmatprep.mubr.f32.mxu0 0.0
  %1639 = vmatmul.mubr.f32.gmra.mrb[0].mxu0 %v1505
  %v1640 = vpop.f32.mrb[0].mxu0
  %v1641 = vadd.f32 0.0, %v1640
  %v1642 = vpop.f32.mrb[0].mxu0
  %1643 = vmatprep.mubr.f32.mxu0 0.0
  %1644 = vmatmul.mubr.f32.gmra.mrb[0].mxu0 %v1506
  %v1645 = vpop.f32.mrb[0].mxu0
  %v1646 = vadd.f32 0.0, %v1645
  %v1647 = vpop.f32.mrb[0].mxu0
  %1648 = vmatprep.mubr.f32.mxu0 0.0
  %1649 = vmatmul.mubr.f32.gmra.mrb[0].mxu0 %v1507
  %v1650 = vpop.f32.mrb[0].mxu0
  %v1651 = vadd.f32 0.0, %v1650
  %v1652 = vpop.f32.mrb[0].mxu0
  %1653 = vmatprep.mubr.f32.mxu0 0.0
  %1654 = vmatmul.mubr.f32.gmra.mrb[0].mxu0 %v1508
  %v1655 = vpop.f32.mrb[0].mxu0
  %v1656 = vpop.f32.mrb[0].mxu0
  %1657 = vmatprep.mubr.f32.mxu0 0.0
  %1658 = vmatmul.mubr.f32.gmra.mrb[0].mxu0 %v1509
  %v1659 = vpop.f32.mrb[0].mxu0
  %v1660 = vpop.f32.mrb[0].mxu0
  %1661 = vmatprep.mubr.f32.mxu0 0.0
  %1662 = vmatmul.mubr.f32.gmra.mrb[0].mxu0 %v1510
  %v1663 = vpop.f32.mrb[0].mxu0
  %v1664 = vpop.f32.mrb[0].mxu0
  %1665 = vmatprep.mubr.f32.mxu0 0.0
  %1666 = vmatmul.mubr.f32.gmra.mrb[0].mxu0 %v1511
  %v1667 = vpop.f32.mrb[0].mxu0
  %v1668 = vpop.f32.mrb[0].mxu0
  %1669 = vmatprep.mubr.f32.mxu0 0.0
  %1670 = vmatmul.mubr.f32.gmra.mrb[0].mxu0 %v1512
  %v1671 = vpop.f32.mrb[0].mxu0
  %v1672 = vadd.f32 0.0, %v1671
  %v1673 = vpop.f32.mrb[0].mxu0
  %1674 = vmatprep.mubr.f32.mxu0 0.0
  %1675 = vmatmul.mubr.f32.gmra.mrb[0].mxu0 %v1513
  %v1676 = vpop.f32.mrb[0].mxu0
  %v1677 = vadd.f32 0.0, %v1676
  %v1678 = vpop.f32.mrb[0].mxu0
  %1679 = vmatprep.mubr.f32.mxu0 0.0
  %1680 = vmatmul.mubr.f32.gmra.mrb[0].mxu0 %v1514
  %v1681 = vpop.f32.mrb[0].mxu0
  %v1682 = vadd.f32 0.0, %v1681
  %v1683 = vpop.f32.mrb[0].mxu0
  %1684 = vmatprep.mubr.f32.mxu0 0.0
  %1685 = vmatmul.mubr.f32.gmra.mrb[0].mxu0 %v1515
  %v1686 = vpop.f32.mrb[0].mxu0
  %v1687 = vadd.f32 0.0, %v1686
  %v1688 = vpop.f32.mrb[0].mxu0
  %1689 = vmatprep.mubr.f32.mxu0 0.0
  %1690 = vmatmul.mubr.f32.gmra.mrb[0].mxu0 %v1516
  %v1691 = vpop.f32.mrb[0].mxu0
  %v1692 = vadd.f32 0.0, %v1691
  %v1693 = vpop.f32.mrb[0].mxu0
  %1694 = vmatprep.mubr.f32.mxu0 0.0
  %1695 = vmatmul.mubr.f32.gmra.mrb[0].mxu0 %v1517
  %v1696 = vpop.f32.mrb[0].mxu0
  %v1697 = vadd.f32 0.0, %v1696
  %v1698 = vpop.f32.mrb[0].mxu0
  %1699 = vmatprep.mubr.f32.mxu0 0.0
  %1700 = vmatmul.mubr.f32.gmra.mrb[0].mxu0 %v1518
  %v1701 = vpop.f32.mrb[0].mxu0
  %v1702 = vadd.f32 0.0, %v1701
  %v1703 = vpop.f32.mrb[0].mxu0
  %1704 = vmatprep.mubr.f32.mxu0 0.0
  %1705 = vmatmul.mubr.f32.gmra.mrb[0].mxu0 %v1519
  %v1706 = vpop.f32.mrb[0].mxu0
  %v1707 = vadd.f32 0.0, %v1706
  %v1708 = vpop.f32.mrb[0].mxu0
  %1709 = vmatprep.mubr.f32.mxu0 0.0
  %1710 = vmatmul.mubr.f32.gmra.mrb[0].mxu0 %v1520
  %v1711 = vpop.f32.mrb[0].mxu0
  %v1712 = vadd.f32 0.0, %v1711
  %v1713 = vpop.f32.mrb[0].mxu0
  %1714 = vmatprep.mubr.f32.mxu0 0.0
  %1715 = vmatmul.mubr.f32.gmra.mrb[0].mxu0 %v1521
  %v1716 = vpop.f32.mrb[0].mxu0
  %v1717 = vadd.f32 0.0, %v1716
  %v1718 = vpop.f32.mrb[0].mxu0
  %1719 = vdwg.mxu0
  %v1720 = vld [vmem:[%s2] sm:$0x1]
  %v1722 = vlaneseq
  %v1723 = vshrl.u32 %v1722, 7
  %v1724 = vsub.s32 0, %v1723
  %v1725 = vrot.slane %v1720, %v1724
  %v1727 = vmul.f32 %v1606, %v1725
  %v1728 = vmul.f32 %v1611, %v1725
  %v1729 = vmul.f32 %v1616, %v1725
  %v1730 = vmul.f32 %v1621, %v1725
  %v1731 = vmul.f32 %v1626, %v1725
  %v1732 = vmul.f32 %v1631, %v1725
  %v1733 = vmul.f32 %v1636, %v1725
  %v1734 = vmul.f32 %v1641, %v1725
  %v1735 = vmul.f32 %v1646, %v1725
  %v1736 = vmul.f32 %v1651, %v1725
  %v1737 = vmul.f32 %v1672, %v1725
  %v1738 = vmul.f32 %v1677, %v1725
  %v1739 = vmul.f32 %v1682, %v1725
  %v1740 = vmul.f32 %v1687, %v1725
  %v1741 = vmul.f32 %v1692, %v1725
  %v1742 = vmul.f32 %v1697, %v1725
  %v1743 = vmul.f32 %v1702, %v1725
  %v1744 = vmul.f32 %v1707, %v1725
  %v1745 = vmul.f32 %v1712, %v1725
  %v1746 = vmul.f32 %v1717, %v1725
  %v1747 = vld [vmem:[%s3] sm:$0x1]
  %v1749 = vlaneseq
  %v1750 = vshrl.u32 %v1749, 7
  %v1751 = vsub.s32 0, %v1750
  %v1752 = vrot.slane %v1747, %v1751
  %v1754 = vadd.f32 %v1727, %v1752
  %v1755 = vadd.f32 %v1728, %v1752
  %v1756 = vadd.f32 %v1729, %v1752
  %v1757 = vadd.f32 %v1730, %v1752
  %v1758 = vadd.f32 %v1731, %v1752
  %v1759 = vadd.f32 %v1732, %v1752
  %v1760 = vadd.f32 %v1733, %v1752
  %v1761 = vadd.f32 %v1734, %v1752
  %v1762 = vadd.f32 %v1735, %v1752
  %v1763 = vadd.f32 %v1736, %v1752
  %v1764 = vadd.f32 %v1737, %v1752
  %v1765 = vadd.f32 %v1738, %v1752
  %v1766 = vadd.f32 %v1739, %v1752
  %v1767 = vadd.f32 %v1740, %v1752
  %v1768 = vadd.f32 %v1741, %v1752
  %v1769 = vadd.f32 %v1742, %v1752
  %v1770 = vadd.f32 %v1743, %v1752
  %v1771 = vadd.f32 %v1744, %v1752
  %v1772 = vadd.f32 %v1745, %v1752
  %v1773 = vadd.f32 %v1746, %v1752
  %v1774 = vmax.f32 %v1754, 0.0
  %v1775 = vmax.f32 %v1755, 0.0
  %v1776 = vmax.f32 %v1756, 0.0
  %v1777 = vmax.f32 %v1757, 0.0
  %v1778 = vmax.f32 %v1758, 0.0
  %v1779 = vmax.f32 %v1759, 0.0
  %v1780 = vmax.f32 %v1760, 0.0
  %v1781 = vmax.f32 %v1761, 0.0
  %v1782 = vmax.f32 %v1762, 0.0
  %v1783 = vmax.f32 %v1763, 0.0
  %v1784 = vmax.f32 %v1764, 0.0
  %v1785 = vmax.f32 %v1765, 0.0
  %v1786 = vmax.f32 %v1766, 0.0
  %v1787 = vmax.f32 %v1767, 0.0
  %v1788 = vmax.f32 %v1768, 0.0
  %v1789 = vmax.f32 %v1769, 0.0
  %v1790 = vmax.f32 %v1770, 0.0
  %v1791 = vmax.f32 %v1771, 0.0
  %v1792 = vmax.f32 %v1772, 0.0
  %v1793 = vmax.f32 %v1773, 0.0
  %s1794 = scalar_lea.vmem %s4, 240
  %1795 = vst.msk [vmem:[%s1794] sm:$0xff] %vm840, %v1774
  %1796 = vst.msk [vmem:[%s1794 + $0x8] sm:$0xff] %vm840, %v1775
  %1797 = vst.msk [vmem:[%s1794 + $0x10] sm:$0xff] %vm840, %v1776
  %1798 = vst.msk [vmem:[%s1794 + $0x18] sm:$0xff] %vm840, %v1777
  %1799 = vst.msk [vmem:[%s1794 + $0x20] sm:$0xff] %vm840, %v1778
  %1800 = vst.msk [vmem:[%s1794 + $0x28] sm:$0xff] %vm840, %v1779
  %1801 = vst.msk [vmem:[%s1794 + $0x30] sm:$0xff] %vm840, %v1780
  %1802 = vst.msk [vmem:[%s1794 + $0x38] sm:$0xff] %vm840, %v1781
  %1803 = vst.msk [vmem:[%s1794 + $0x40] sm:$0xff] %vm840, %v1782
  %1804 = vst.msk [vmem:[%s1794 + $0x48] sm:$0xff] %vm840, %v1783
  %s1805 = scalar_lea.vmem %s4, 560
  %1806 = vst.msk [vmem:[%s1805] sm:$0xff] %vm840, %v1784
  %1807 = vst.msk [vmem:[%s1805 + $0x8] sm:$0xff] %vm840, %v1785
  %1808 = vst.msk [vmem:[%s1805 + $0x10] sm:$0xff] %vm840, %v1786
  %1809 = vst.msk [vmem:[%s1805 + $0x18] sm:$0xff] %vm840, %v1787
  %1810 = vst.msk [vmem:[%s1805 + $0x20] sm:$0xff] %vm840, %v1788
  %1811 = vst.msk [vmem:[%s1805 + $0x28] sm:$0xff] %vm840, %v1789
  %1812 = vst.msk [vmem:[%s1805 + $0x30] sm:$0xff] %vm840, %v1790
  %1813 = vst.msk [vmem:[%s1805 + $0x38] sm:$0xff] %vm840, %v1791
  %1814 = vst.msk [vmem:[%s1805 + $0x40] sm:$0xff] %vm840, %v1792
  %1815 = vst.msk [vmem:[%s1805 + $0x48] sm:$0xff] %vm840, %v1793
  // Predicated region
  $region18: #{hourglass_forward.11} parent=0 // pred_check
    _
  $region19: #{hourglass_forward.11} parent=0 // pred_check_branch
    %1817 = sbr.rel (0) target = $region21
  $region20: #{hourglass_forward.11} parent=0 // pred_region
    _
  $region21: #{hourglass_forward.11} parent=0 // pred_fallthru
    _
  // Predicated region
  $region22: #{hourglass_forward.11} parent=0 // pred_check
    _
  $region23: #{hourglass_forward.11} parent=0 // pred_check_branch
    %1819 = sbr.rel (0) target = $region25
  $region24: #{hourglass_forward.11} parent=0 // pred_region
    _
  $region25: #{hourglass_forward.11} parent=0 // pred_fallthru
    _

</llo_original>
